<compile_context>
chip_gen: v6e
topology: v6e:2x2x1
jax: 0.10.0
libtpu: 0.0.40
codegen_flags: <defaults>
</compile_context>

<pallas_src>
import math
import numpy as np
import jax
import jax.numpy as jnp
from jax.experimental import pallas as pl
from jax.experimental.pallas import tpu as pltpu

W0 = 30.0
HIDDEN = 32          # small hidden dim for the test (module default is 256)
IN_DIM = 5           # 3 coords + 2 time-encoding features
COORD_DIM = 3
OUT_DIM = 3


def _num_tensorcores():
    """2 TensorCores per chip on v7x, else 1 (best-effort, safe fallback)."""
    try:
        kind = jax.devices()[0].device_kind.lower()
    except Exception:
        return 1
    return 2 if ("v7" in kind or "7x" in kind) else 1


def _make_siren_kernel(h):
    """SIREN MLP on a transposed (feature, lane) tile.

    Packed weight slab layout (rows x cols), cols padded to h+1:
      rows [0   ,  h): cols [0:4]   = layer-1 weight with W0, time encoding and
                                      bias folded into column 3 (ones row of x)
      rows [h   , 2h): cols [0:h] = W0*W2^T, col h = W0*b2
      rows [2h  , 3h): cols [0:h] = W0*W3^T, col h = W0*b3
      rows [3h, 3h+3): cols [0:h] = W4^T,    col h = b4
    """
    def kernel(x_ref, w_ref, o_ref):
        x = x_ref[...]                                            # (4, tile)
        # layer 1: bias + time encoding ride the MXU via the ones row of x
        h1 = jnp.sin(jnp.dot(w_ref[0:h, 0:4], x,
                             preferred_element_type=jnp.float32))
        # layers 2/3: MXU matmul + (small) VALU bias add + sin
        h2 = jnp.sin(jnp.dot(w_ref[h:2 * h, 0:h], h1,
                             preferred_element_type=jnp.float32)
                     + w_ref[h:2 * h, h:h + 1])
        h3 = jnp.sin(jnp.dot(w_ref[2 * h:3 * h, 0:h], h2,
                             preferred_element_type=jnp.float32)
                     + w_ref[2 * h:3 * h, h:h + 1])
        # output layer: no activation, lane-dense (3, tile) store
        o_ref[...] = (jnp.dot(w_ref[3 * h:3 * h + OUT_DIM, 0:h], h3,
                              preferred_element_type=jnp.float32)
                      + w_ref[3 * h:3 * h + OUT_DIM, h:h + 1]
                      ).astype(o_ref.dtype)
    return kernel


def _pack_weights(params, t):
    """Fold W0 / time encoding / layer-1 bias and pack all params in one slab."""
    (w1, b1), (w2, b2), (w3, b3), (w4, b4) = params
    w1 = jnp.asarray(w1, jnp.float32)
    w2 = jnp.asarray(w2, jnp.float32)
    w3 = jnp.asarray(w3, jnp.float32)
    w4 = jnp.asarray(w4, jnp.float32)
    h = w1.shape[1]
    # robust to (1, H) or (H,) bias shapes
    b1v = jnp.reshape(jnp.asarray(b1, jnp.float32), (-1,))
    b2v = jnp.reshape(jnp.asarray(b2, jnp.float32), (-1,))
    b3v = jnp.reshape(jnp.asarray(b3, jnp.float32), (-1,))
    b4v = jnp.reshape(jnp.asarray(b4, jnp.float32), (-1,))

    # scalar time encoding (t is a single scalar for all rows, as in the ODE)
    t_scalar = jnp.asarray(t, jnp.float32).reshape(())
    theta = 2.0 * math.pi * t_scalar
    ct, st = jnp.cos(theta), jnp.sin(theta)

    # layer-1 effective weight (h, 4): cols 0..2 = W0*W1[:3]^T,
    # col 3 = W0*(b1 + cos*W1[3] + sin*W1[4])  (elementwise — no wrapper dot)
    t_fold = b1v + ct * w1[COORD_DIM] + st * w1[COORD_DIM + 1]
    w1e = jnp.concatenate([(W0 * w1[:COORD_DIM]).T,
                           (W0 * t_fold)[:, None]], axis=1)       # (h, 4)

    blk1 = jnp.pad(w1e, ((0, 0), (0, h + 1 - 4)))                 # (h, h+1)
    blk2 = jnp.concatenate([(W0 * w2).T, (W0 * b2v)[:, None]], axis=1)
    blk3 = jnp.concatenate([(W0 * w3).T, (W0 * b3v)[:, None]], axis=1)
    blk4 = jnp.concatenate([w4.T, b4v[:, None]], axis=1)          # (3, h+1)
    wslab = jnp.concatenate([blk1, blk2, blk3, blk4], axis=0)     # (3h+3, h+1)
    return wslab.astype(jnp.float32), h


def _pick_tile(n, h, tile_n):
    """Lane-tile selection: big tiles for overhead amortization, VMEM-aware cap,
    and a v7x-only split so each TensorCore gets several pipelined steps."""
    n128 = -(-n // 128) * 128
    tile = max(128, (min(tile_n, n128) // 128) * 128)
    # keep the (h, tile) f32 activation working set modest (matters at H=256)
    act_cap = max(128, ((6 * 1024 * 1024) // max(h * 4, 1)) // 128 * 128)
    tile = min(tile, act_cap)
    ncores = _num_tensorcores()
    if ncores > 1 and n128 >= 1024:
        # v7x megacore: aim for >= 4 grid steps per TensorCore
        per_step = max(128, ((n128 // (4 * ncores)) // 128) * 128)
        tile = min(tile, per_step)
    return tile


def siren_velocity_field(coords, t, params, *, tile_n=4096):
    """coords: (N, 3) float32; t: scalar float32 (broadcast over all rows).

    Returns (N, 3) velocities, matching SIRENVelocityField(phi, t_full).
    """
    n = coords.shape[0]
    wslab, h = _pack_weights(params, t)
    tile = _pick_tile(n, h, tile_n)
    n_pad = -(-n // tile) * tile

    # TODO(synk): in a real ODE loop, carry the state channels-first (3, N) so
    # this transpose/pad and the final transpose (extra HBM round trips per
    # integrator step) disappear.
    xT = coords.astype(jnp.float32).T                             # (3, N)
    x_slab = jnp.concatenate([xT, jnp.ones((1, n), jnp.float32)], axis=0)
    if n_pad != n:
        x_slab = jnp.pad(x_slab, ((0, 0), (0, n_pad - n)))        # (4, N_pad)

    # only raise the scoped-VMEM limit when the footprint actually needs it
    est_bytes = (wslab.size * 4
                 + 2 * (COORD_DIM + 1 + OUT_DIM) * tile * 4       # dbl-buf I/O
                 + 4 * h * tile * 4)                              # activations
    compiler_kwargs = dict(dimension_semantics=("parallel",))
    if est_bytes > 24 * 1024 * 1024:
        compiler_kwargs["vmem_limit_bytes"] = int(
            min(2 * est_bytes, 48 * 1024 * 1024))

    outT = pl.pallas_call(
        _make_siren_kernel(h),
        out_shape=jax.ShapeDtypeStruct((OUT_DIM, n_pad), jnp.float32),
        grid_spec=pltpu.PrefetchScalarGridSpec(
            num_scalar_prefetch=0,
            grid=(n_pad // tile,),
            in_specs=[
                pl.BlockSpec((COORD_DIM + 1, tile), lambda i: (0, i)),  # coords
                pl.BlockSpec(wslab.shape, lambda i: (0, 0)),            # weights
            ],
            out_specs=pl.BlockSpec((OUT_DIM, tile), lambda i: (0, i)),
        ),
        compiler_params=pltpu.CompilerParams(**compiler_kwargs),
    )(x_slab, wslab)

    return outT[:, :n].T                                          # (N, 3)


def velocity_field_ode(t, phi, params, *, tile_n=4096):
    """Pallas equivalent of VelocityFieldODE.forward(t, phi)."""
    return siren_velocity_field(phi, t, params, tile_n=tile_n)


def init_params(key, hidden_dim=HIDDEN, w0=W0):
    """Deterministic init mirroring SIRENVelocityField._initialize_weights.

    Weights stored as (in_features, out_features). Biases use PyTorch's default
    Linear bias init: U(-1/sqrt(in), 1/sqrt(in)).
    """
    dims = [(IN_DIM, hidden_dim), (hidden_dim, hidden_dim),
            (hidden_dim, hidden_dim), (hidden_dim, OUT_DIM)]
    params = []
    keys = jax.random.split(key, 2 * len(dims))
    for i, (din, dout) in enumerate(dims):
        if i == 0:
            wbound = 1.0 / din                     # first-layer SIREN init
        else:
            wbound = math.sqrt(6.0 / din) / w0     # hidden-layer SIREN init
        bbound = 1.0 / math.sqrt(din)
        w = jax.random.uniform(keys[2 * i], (din, dout), jnp.float32,
                               minval=-wbound, maxval=wbound)
        b = jax.random.uniform(keys[2 * i + 1], (1, dout), jnp.float32,
                               minval=-bbound, maxval=bbound)
        params.append((w, b))
    return params


def _reference(coords, t, params):
    """float64 numpy reference (precision-unambiguous) of the torch forward."""
    coords = np.asarray(coords, np.float64)
    theta = 2.0 * math.pi * float(t)
    t_enc = np.broadcast_to(
        np.array([math.cos(theta), math.sin(theta)], np.float64),
        (coords.shape[0], 2))
    h = np.concatenate([coords, t_enc], axis=-1)
    ps = [(np.asarray(w, np.float64), np.asarray(b, np.float64).reshape(1, -1))
          for (w, b) in params]
    (w1, b1), (w2, b2), (w3, b3), (w4, b4) = ps
    h = np.sin(W0 * (h @ w1 + b1))
    h = np.sin(W0 * (h @ w2 + b2))
    h = np.sin(W0 * (h @ w3 + b3))
    return h @ w4 + b4


if __name__ == "__main__":
    key = jax.random.PRNGKey(0)
    k_coords, k_t, k_params = jax.random.split(key, 3)

    N = 1024
    coords = jax.random.uniform(k_coords, (N, COORD_DIM), jnp.float32,
                                minval=-1.0, maxval=1.0)
    t = jax.random.uniform(k_t, (), jnp.float32)   # scalar time (ODE solver t)
    params = init_params(k_params)

    out = jax.block_until_ready(velocity_field_ode(t, coords, params))
    ref = _reference(np.asarray(coords), float(t), params)
    assert out.shape == (N, OUT_DIM)
    np.testing.assert_allclose(np.asarray(out), ref, atol=2e-3, rtol=2e-3)

    # multi-grid-step path (forced small tile)
    out_multi = jax.block_until_ready(
        velocity_field_ode(t, coords, params, tile_n=256))
    np.testing.assert_allclose(np.asarray(out_multi), ref, atol=2e-3, rtol=2e-3)

    # padding path (N not a multiple of 128)
    N2 = 200
    coords2 = jax.random.uniform(jax.random.PRNGKey(7), (N2, COORD_DIM),
                                 jnp.float32, minval=-1.0, maxval=1.0)
    out2 = jax.block_until_ready(velocity_field_ode(t, coords2, params))
    ref2 = _reference(np.asarray(coords2), float(t), params)
    assert out2.shape == (N2, OUT_DIM)
    np.testing.assert_allclose(np.asarray(out2), ref2, atol=2e-3, rtol=2e-3)

    print("KERNEL_OK")
</pallas_src>

<mosaic_0001>
module attributes {stable_mosaic.version = 11 : i64} {
  func.func @kernel(%arg0: i32, %arg1: memref<4x1024xf32, #tpu.memory_space<vmem>>, %arg2: memref<99x33xf32, #tpu.memory_space<vmem>>, %arg3: memref<3x1024xf32, #tpu.memory_space<vmem>>) attributes {dimension_semantics = [#tpu.dimension_semantics<parallel>], iteration_bounds = array<i64: 1>, scalar_prefetch = 0 : i64, scratch_operands = 0 : i64, tpu.core_type = #tpu.core_type<tc>, window_params = [{transform_indices = @transform_0, window_bounds = array<i64: 4, 1024>}, {pipeline_mode = #tpu.pipeline_mode<synchronous>, transform_indices = @transform_1, window_bounds = array<i64: 99, 33>}, {transform_indices = @transform_2, window_bounds = array<i64: 3, 1024>}]} {
    %c0 = arith.constant 0 : index
    %c0_0 = arith.constant 0 : index
    %0 = vector.load %arg1[%c0, %c0_0] : memref<4x1024xf32, #tpu.memory_space<vmem>>, vector<4x1024xf32>
    %c0_1 = arith.constant 0 : index
    %c0_2 = arith.constant 0 : index
    %1 = vector.load %arg2[%c0_1, %c0_2] : memref<99x33xf32, #tpu.memory_space<vmem>>, vector<32x4xf32>
    %cst = arith.constant dense<0.000000e+00> : vector<32x1024xf32>
    %2 = tpu.matmul %1, %0, %cst {dimension_numbers = #tpu.dot_dimension_numbers<[1], [0], [0], [1], [0, 0, 1, 1], [], []>} : vector<32x4xf32>, vector<4x1024xf32>, vector<32x1024xf32> -> vector<32x1024xf32>
    %3 = math.sin %2 : vector<32x1024xf32>
    %c32 = arith.constant 32 : index
    %c0_3 = arith.constant 0 : index
    %4 = vector.load %arg2[%c32, %c0_3] : memref<99x33xf32, #tpu.memory_space<vmem>>, vector<32x32xf32>
    %cst_4 = arith.constant dense<0.000000e+00> : vector<32x1024xf32>
    %5 = tpu.matmul %4, %3, %cst_4 {dimension_numbers = #tpu.dot_dimension_numbers<[1], [0], [0], [1], [0, 0, 1, 1], [], []>} : vector<32x32xf32>, vector<32x1024xf32>, vector<32x1024xf32> -> vector<32x1024xf32>
    %c32_5 = arith.constant 32 : index
    %c32_6 = arith.constant 32 : index
    %6 = vector.load %arg2[%c32_5, %c32_6] : memref<99x33xf32, #tpu.memory_space<vmem>>, vector<32x1xf32>
    %7 = vector.broadcast %6 : vector<32x1xf32> to vector<32x1024xf32>
    %8 = arith.addf %5, %7 : vector<32x1024xf32>
    %9 = math.sin %8 : vector<32x1024xf32>
    %c64 = arith.constant 64 : index
    %c0_7 = arith.constant 0 : index
    %10 = vector.load %arg2[%c64, %c0_7] : memref<99x33xf32, #tpu.memory_space<vmem>>, vector<32x32xf32>
    %cst_8 = arith.constant dense<0.000000e+00> : vector<32x1024xf32>
    %11 = tpu.matmul %10, %9, %cst_8 {dimension_numbers = #tpu.dot_dimension_numbers<[1], [0], [0], [1], [0, 0, 1, 1], [], []>} : vector<32x32xf32>, vector<32x1024xf32>, vector<32x1024xf32> -> vector<32x1024xf32>
    %c64_9 = arith.constant 64 : index
    %c32_10 = arith.constant 32 : index
    %12 = vector.load %arg2[%c64_9, %c32_10] : memref<99x33xf32, #tpu.memory_space<vmem>>, vector<32x1xf32>
    %13 = vector.broadcast %12 : vector<32x1xf32> to vector<32x1024xf32>
    %14 = arith.addf %11, %13 : vector<32x1024xf32>
    %15 = math.sin %14 : vector<32x1024xf32>
    %c96 = arith.constant 96 : index
    %c0_11 = arith.constant 0 : index
    %16 = vector.load %arg2[%c96, %c0_11] : memref<99x33xf32, #tpu.memory_space<vmem>>, vector<3x32xf32>
    %cst_12 = arith.constant dense<0.000000e+00> : vector<3x1024xf32>
    %17 = tpu.matmul %16, %15, %cst_12 {dimension_numbers = #tpu.dot_dimension_numbers<[1], [0], [0], [1], [0, 0, 1, 1], [], []>} : vector<3x32xf32>, vector<32x1024xf32>, vector<3x1024xf32> -> vector<3x1024xf32>
    %c96_13 = arith.constant 96 : index
    %c32_14 = arith.constant 32 : index
    %18 = vector.load %arg2[%c96_13, %c32_14] : memref<99x33xf32, #tpu.memory_space<vmem>>, vector<3x1xf32>
    %19 = vector.broadcast %18 : vector<3x1xf32> to vector<3x1024xf32>
    %20 = arith.addf %17, %19 : vector<3x1024xf32>
    %c0_15 = arith.constant 0 : index
    %c0_16 = arith.constant 0 : index
    %21 = vector.load %arg3[%c0_15, %c0_16] : memref<3x1024xf32, #tpu.memory_space<vmem>>, vector<3x1024xf32>
    tpu.vector_store %arg3[%c0_15, %c0_16], %20 {strides = array<i32>} : memref<3x1024xf32, #tpu.memory_space<vmem>>, vector<3x1024xf32>,
    return
  }
  func.func @transform_0(%arg0: i32) -> (i32, i32) {
    %c0_i32 = arith.constant 0 : i32
    %c0_i32_0 = arith.constant 0 : i32
    return %c0_i32, %arg0 : i32, i32
  }
  func.func @transform_1(%arg0: i32) -> (i32, i32) {
    %c0_i32 = arith.constant 0 : i32
    %c0_i32_0 = arith.constant 0 : i32
    %c0_i32_1 = arith.constant 0 : i32
    return %c0_i32, %c0_i32_0 : i32, i32
  }
  func.func @transform_2(%arg0: i32) -> (i32, i32) {
    %c0_i32 = arith.constant 0 : i32
    %c0_i32_0 = arith.constant 0 : i32
    return %c0_i32, %arg0 : i32, i32
  }
}

</mosaic_0001>

<llo_original>
// kernel: tpu_custom_call.1
$region0: #{tpu_custom_call.1}
  #allocation0 [shape = 'u32[]', space=smem, size = 0x4, offset = 0x4, fixed_abs, tag = 'smem constant byte address 0x4 - core index']
  #allocation1 [shape = 'u32[144,128]{1,0:T(1,128)}', space=vmem, size = 0x12000, scoped, tag = 'internal scratch']
  %s0 = inlined_call_operand.vmem [shape: f32[4,1024], index: 0, kind: input, shape index: {}]
  %s1 = inlined_call_operand.vmem [shape: f32[99,33], index: 1, kind: input, shape index: {}]
  %s2 = inlined_call_operand.hbm [shape: f32[3,1024], index: 2, kind: output, shape index: {}]
  %s3 = sld [smem:[#allocation0]]
  $region18: #{tpu_custom_call.1} parent=0
    _
  %s5 = ssub.s32 1, %s3
  %s6 = scalar_select 0, %s5, %s3
  $region1: #{tpu_custom_call.1} parent=0
    #allocation2 [shape = 'u8[16384]{0}', space=vmem, size = 0x4000, scoped, tag = 'output window, operand 0, single buffered']
    #allocation3 [shape = 's32[1]{0}', space=sflag, size = 0x4, scoped, tag = 'scoped memory for tpu_custom_call.1']
    %7 = vsyncpa [#allocation3], 0
    // Predicated region
    $region2: #{tpu_custom_call.1} parent=1 // pred_check
      _
    $region3: #{tpu_custom_call.1} parent=1 // pred_check_branch
      %9 = sbr.rel (0) target = $region5
    $region4: #{tpu_custom_call.1} parent=1 // pred_region
      _
    $region5: #{tpu_custom_call.1} parent=1 // pred_fallthru
      _
    // Predicated region
    $region6: #{tpu_custom_call.1} parent=1 // pred_check
      _
    $region7: #{tpu_custom_call.1} parent=1 // pred_check_branch
      %11 = sbr.rel (0) target = $region9
    $region8: #{tpu_custom_call.1} parent=1 // pred_region
      _
    $region9: #{tpu_custom_call.1} parent=1 // pred_fallthru
      _
    %v12 = vld [vmem:[%s0] sm:$0xff]
    %v13 = vld [vmem:[%s0 + $0x8] sm:$0xff]
    %v14 = vld [vmem:[%s0 + $0x10] sm:$0xff]
    %v15 = vld [vmem:[%s0 + $0x18] sm:$0xff]
    %v16 = vld [vmem:[%s1] sm:$0xff]
    %v17 = vld [vmem:[%s1 + $0x8] sm:$0xff]
    %v18 = vld [vmem:[%s1 + $0x10] sm:$0xff]
    %v19 = vld [vmem:[%s1 + $0x18] sm:$0xff]
    %v24 = vcombine.high %v12, %v12
    %v25 = vcombine.high %v13, %v13
    %v26 = vcombine.high %v14, %v14
    %v27 = vcombine.high %v15, %v15
    %vm28 = vcmask 31744
    %v30 = vsel %vm28, %v16, 0
    %v33 = vsel %vm28, %v17, 0
    %v36 = vsel %vm28, %v18, 0
    %v39 = vsel %vm28, %v19, 0
    %vm41 = vcmask 1043456
    %v42 = vsel %vm41, %v12, 0
    %v44 = vsel %vm41, %v24, 0
    %v46 = vsel %vm41, %v13, 0
    %v48 = vsel %vm41, %v25, 0
    %v50 = vsel %vm41, %v14, 0
    %v52 = vsel %vm41, %v26, 0
    %v54 = vsel %vm41, %v15, 0
    %v56 = vsel %vm41, %v27, 0
    %58 = vmatprep.subr.mxu0 0.0
    %59 = vmatpush1.msra.mxu0 0.0
    %60 = vmatprep.subr.mxu0 0.0
    %61 = vmatpush1.msra.mxu0 0.0
    %62 = vmatprep.subr.mxu0 0.0
    %63 = vmatpush1.msra.mxu0 0.0
    %64 = vmatprep.subr.mxu0 0.0
    %65 = vmatpush1.msra.mxu0 0.0
    %66 = vmatprep.subr.mxu0 0.0
    %67 = vmatpush1.msra.mxu0 0.0
    %68 = vmatprep.subr.mxu0 0.0
    %69 = vmatpush1.msra.mxu0 0.0
    %70 = vmatprep.subr.mxu0 0.0
    %71 = vmatpush1.msra.mxu0 0.0
    %72 = vmatprep.subr.mxu0 0.0
    %73 = vmatpush1.msra.mxu0 0.0
    %74 = vmatprep.subr.mxu0 0.0
    %75 = vmatpush1.msra.mxu0 0.0
    %76 = vmatprep.subr.mxu0 0.0
    %77 = vmatpush1.msra.mxu0 0.0
    %78 = vmatprep.subr.mxu0 0.0
    %79 = vmatpush1.msra.mxu0 0.0
    %80 = vmatprep.subr.mxu0 0.0
    %81 = vmatpush1.msra.mxu0 0.0
    %82 = vmatprep.subr.mxu0 0.0
    %83 = vmatpush1.msra.mxu0 0.0
    %84 = vmatprep.subr.mxu0 0.0
    %85 = vmatpush1.msra.mxu0 0.0
    %86 = vmatprep.subr.mxu0 0.0
    %87 = vmatpush1.msra.mxu0 0.0
    %88 = vmatprep.subr.mxu0 %v44
    %89 = vmatpush1.msra.mxu0 %v42
    %90 = vmatprep.subr.mxu0 0.0
    %91 = vmatpush2.msra.mxu0 0.0
    %92 = vmatprep.subr.mxu0 0.0
    %93 = vmatpush2.msra.mxu0 0.0
    %94 = vmatprep.subr.mxu0 0.0
    %95 = vmatpush2.msra.mxu0 0.0
    %96 = vmatprep.subr.mxu0 0.0
    %97 = vmatpush2.msra.mxu0 0.0
    %98 = vmatprep.subr.mxu0 0.0
    %99 = vmatpush2.msra.mxu0 0.0
    %100 = vmatprep.subr.mxu0 0.0
    %101 = vmatpush2.msra.mxu0 0.0
    %102 = vmatprep.subr.mxu0 0.0
    %103 = vmatpush2.msra.mxu0 0.0
    %104 = vmatprep.subr.mxu0 0.0
    %105 = vmatpush2.msra.mxu0 0.0
    %106 = vmatprep.subr.mxu0 0.0
    %107 = vmatpush2.msra.mxu0 0.0
    %108 = vmatprep.subr.mxu0 0.0
    %109 = vmatpush2.msra.mxu0 0.0
    %110 = vmatprep.subr.mxu0 0.0
    %111 = vmatpush2.msra.mxu0 0.0
    %112 = vmatprep.subr.mxu0 0.0
    %113 = vmatpush2.msra.mxu0 0.0
    %114 = vmatprep.subr.mxu0 0.0
    %115 = vmatpush2.msra.mxu0 0.0
    %116 = vmatprep.subr.mxu0 0.0
    %117 = vmatpush2.msra.mxu0 0.0
    %118 = vmatprep.subr.mxu0 0.0
    %119 = vmatpush2.msra.mxu0 0.0
    %120 = vmatprep.subr.mxu0 0.0
    %121 = vmatpush2.msra.mxu0 0.0
    %122 = vmatprep.mubr.f32.mxu0 0.0
    %123 = vmatmul.mubr.f32.gmra.mxu0 %v30
    %v124 = vpop.f32.mrf.mxu0
    %v125 = vadd.f32 0.0, %v124
    %v126 = vpop.f32.mrf.mxu0
    %v127 = vadd.f32 0.0, %v126
    %128 = vmatprep.mubr.f32.mxu0 0.0
    %129 = vmatmul.mubr.f32.gmra.mxu0 %v33
    %v130 = vpop.f32.mrf.mxu0
    %v131 = vadd.f32 0.0, %v130
    %v132 = vpop.f32.mrf.mxu0
    %v133 = vadd.f32 0.0, %v132
    %134 = vmatprep.mubr.f32.mxu0 0.0
    %135 = vmatmul.mubr.f32.gmra.mxu0 %v36
    %v136 = vpop.f32.mrf.mxu0
    %v137 = vadd.f32 0.0, %v136
    %v138 = vpop.f32.mrf.mxu0
    %v139 = vadd.f32 0.0, %v138
    %140 = vmatprep.mubr.f32.mxu0 0.0
    %141 = vmatmul.mubr.f32.gmra.mxu0 %v39
    %v142 = vpop.f32.mrf.mxu0
    %v143 = vadd.f32 0.0, %v142
    %v144 = vpop.f32.mrf.mxu0
    %v145 = vadd.f32 0.0, %v144
    %146 = vdwg.mxu0
    %147 = vmatprep.subr.mxu0 0.0
    %148 = vmatpush1.msra.mxu0 0.0
    %149 = vmatprep.subr.mxu0 0.0
    %150 = vmatpush1.msra.mxu0 0.0
    %151 = vmatprep.subr.mxu0 0.0
    %152 = vmatpush1.msra.mxu0 0.0
    %153 = vmatprep.subr.mxu0 0.0
    %154 = vmatpush1.msra.mxu0 0.0
    %155 = vmatprep.subr.mxu0 0.0
    %156 = vmatpush1.msra.mxu0 0.0
    %157 = vmatprep.subr.mxu0 0.0
    %158 = vmatpush1.msra.mxu0 0.0
    %159 = vmatprep.subr.mxu0 0.0
    %160 = vmatpush1.msra.mxu0 0.0
    %161 = vmatprep.subr.mxu0 0.0
    %162 = vmatpush1.msra.mxu0 0.0
    %163 = vmatprep.subr.mxu0 0.0
    %164 = vmatpush1.msra.mxu0 0.0
    %165 = vmatprep.subr.mxu0 0.0
    %166 = vmatpush1.msra.mxu0 0.0
    %167 = vmatprep.subr.mxu0 0.0
    %168 = vmatpush1.msra.mxu0 0.0
    %169 = vmatprep.subr.mxu0 0.0
    %170 = vmatpush1.msra.mxu0 0.0
    %171 = vmatprep.subr.mxu0 0.0
    %172 = vmatpush1.msra.mxu0 0.0
    %173 = vmatprep.subr.mxu0 0.0
    %174 = vmatpush1.msra.mxu0 0.0
    %175 = vmatprep.subr.mxu0 0.0
    %176 = vmatpush1.msra.mxu0 0.0
    %177 = vmatprep.subr.mxu0 %v48
    %178 = vmatpush1.msra.mxu0 %v46
    %179 = vmatprep.subr.mxu0 0.0
    %180 = vmatpush2.msra.mxu0 0.0
    %181 = vmatprep.subr.mxu0 0.0
    %182 = vmatpush2.msra.mxu0 0.0
    %183 = vmatprep.subr.mxu0 0.0
    %184 = vmatpush2.msra.mxu0 0.0
    %185 = vmatprep.subr.mxu0 0.0
    %186 = vmatpush2.msra.mxu0 0.0
    %187 = vmatprep.subr.mxu0 0.0
    %188 = vmatpush2.msra.mxu0 0.0
    %189 = vmatprep.subr.mxu0 0.0
    %190 = vmatpush2.msra.mxu0 0.0
    %191 = vmatprep.subr.mxu0 0.0
    %192 = vmatpush2.msra.mxu0 0.0
    %193 = vmatprep.subr.mxu0 0.0
    %194 = vmatpush2.msra.mxu0 0.0
    %195 = vmatprep.subr.mxu0 0.0
    %196 = vmatpush2.msra.mxu0 0.0
    %197 = vmatprep.subr.mxu0 0.0
    %198 = vmatpush2.msra.mxu0 0.0
    %199 = vmatprep.subr.mxu0 0.0
    %200 = vmatpush2.msra.mxu0 0.0
    %201 = vmatprep.subr.mxu0 0.0
    %202 = vmatpush2.msra.mxu0 0.0
    %203 = vmatprep.subr.mxu0 0.0
    %204 = vmatpush2.msra.mxu0 0.0
    %205 = vmatprep.subr.mxu0 0.0
    %206 = vmatpush2.msra.mxu0 0.0
    %207 = vmatprep.subr.mxu0 0.0
    %208 = vmatpush2.msra.mxu0 0.0
    %209 = vmatprep.subr.mxu0 0.0
    %210 = vmatpush2.msra.mxu0 0.0
    %211 = vmatprep.mubr.f32.mxu0 0.0
    %212 = vmatmul.mubr.f32.gmra.mxu0 %v30
    %v213 = vpop.f32.mrf.mxu0
    %v214 = vadd.f32 0.0, %v213
    %v215 = vpop.f32.mrf.mxu0
    %v216 = vadd.f32 0.0, %v215
    %217 = vmatprep.mubr.f32.mxu0 0.0
    %218 = vmatmul.mubr.f32.gmra.mxu0 %v33
    %v219 = vpop.f32.mrf.mxu0
    %v220 = vadd.f32 0.0, %v219
    %v221 = vpop.f32.mrf.mxu0
    %v222 = vadd.f32 0.0, %v221
    %223 = vmatprep.mubr.f32.mxu0 0.0
    %224 = vmatmul.mubr.f32.gmra.mxu0 %v36
    %v225 = vpop.f32.mrf.mxu0
    %v226 = vadd.f32 0.0, %v225
    %v227 = vpop.f32.mrf.mxu0
    %v228 = vadd.f32 0.0, %v227
    %229 = vmatprep.mubr.f32.mxu0 0.0
    %230 = vmatmul.mubr.f32.gmra.mxu0 %v39
    %v231 = vpop.f32.mrf.mxu0
    %v232 = vadd.f32 0.0, %v231
    %v233 = vpop.f32.mrf.mxu0
    %v234 = vadd.f32 0.0, %v233
    %235 = vdwg.mxu0
    %236 = vmatprep.subr.mxu0 0.0
    %237 = vmatpush1.msra.mxu0 0.0
    %238 = vmatprep.subr.mxu0 0.0
    %239 = vmatpush1.msra.mxu0 0.0
    %240 = vmatprep.subr.mxu0 0.0
    %241 = vmatpush1.msra.mxu0 0.0
    %242 = vmatprep.subr.mxu0 0.0
    %243 = vmatpush1.msra.mxu0 0.0
    %244 = vmatprep.subr.mxu0 0.0
    %245 = vmatpush1.msra.mxu0 0.0
    %246 = vmatprep.subr.mxu0 0.0
    %247 = vmatpush1.msra.mxu0 0.0
    %248 = vmatprep.subr.mxu0 0.0
    %249 = vmatpush1.msra.mxu0 0.0
    %250 = vmatprep.subr.mxu0 0.0
    %251 = vmatpush1.msra.mxu0 0.0
    %252 = vmatprep.subr.mxu0 0.0
    %253 = vmatpush1.msra.mxu0 0.0
    %254 = vmatprep.subr.mxu0 0.0
    %255 = vmatpush1.msra.mxu0 0.0
    %256 = vmatprep.subr.mxu0 0.0
    %257 = vmatpush1.msra.mxu0 0.0
    %258 = vmatprep.subr.mxu0 0.0
    %259 = vmatpush1.msra.mxu0 0.0
    %260 = vmatprep.subr.mxu0 0.0
    %261 = vmatpush1.msra.mxu0 0.0
    %262 = vmatprep.subr.mxu0 0.0
    %263 = vmatpush1.msra.mxu0 0.0
    %264 = vmatprep.subr.mxu0 0.0
    %265 = vmatpush1.msra.mxu0 0.0
    %266 = vmatprep.subr.mxu0 %v52
    %267 = vmatpush1.msra.mxu0 %v50
    %268 = vmatprep.subr.mxu0 0.0
    %269 = vmatpush2.msra.mxu0 0.0
    %270 = vmatprep.subr.mxu0 0.0
    %271 = vmatpush2.msra.mxu0 0.0
    %272 = vmatprep.subr.mxu0 0.0
    %273 = vmatpush2.msra.mxu0 0.0
    %274 = vmatprep.subr.mxu0 0.0
    %275 = vmatpush2.msra.mxu0 0.0
    %276 = vmatprep.subr.mxu0 0.0
    %277 = vmatpush2.msra.mxu0 0.0
    %278 = vmatprep.subr.mxu0 0.0
    %279 = vmatpush2.msra.mxu0 0.0
    %280 = vmatprep.subr.mxu0 0.0
    %281 = vmatpush2.msra.mxu0 0.0
    %282 = vmatprep.subr.mxu0 0.0
    %283 = vmatpush2.msra.mxu0 0.0
    %284 = vmatprep.subr.mxu0 0.0
    %285 = vmatpush2.msra.mxu0 0.0
    %286 = vmatprep.subr.mxu0 0.0
    %287 = vmatpush2.msra.mxu0 0.0
    %288 = vmatprep.subr.mxu0 0.0
    %289 = vmatpush2.msra.mxu0 0.0
    %290 = vmatprep.subr.mxu0 0.0
    %291 = vmatpush2.msra.mxu0 0.0
    %292 = vmatprep.subr.mxu0 0.0
    %293 = vmatpush2.msra.mxu0 0.0
    %294 = vmatprep.subr.mxu0 0.0
    %295 = vmatpush2.msra.mxu0 0.0
    %296 = vmatprep.subr.mxu0 0.0
    %297 = vmatpush2.msra.mxu0 0.0
    %298 = vmatprep.subr.mxu0 0.0
    %299 = vmatpush2.msra.mxu0 0.0
    %300 = vmatprep.mubr.f32.mxu0 0.0
    %301 = vmatmul.mubr.f32.gmra.mxu0 %v30
    %v302 = vpop.f32.mrf.mxu0
    %v303 = vadd.f32 0.0, %v302
    %v304 = vpop.f32.mrf.mxu0
    %v305 = vadd.f32 0.0, %v304
    %306 = vmatprep.mubr.f32.mxu0 0.0
    %307 = vmatmul.mubr.f32.gmra.mxu0 %v33
    %v308 = vpop.f32.mrf.mxu0
    %v309 = vadd.f32 0.0, %v308
    %v310 = vpop.f32.mrf.mxu0
    %v311 = vadd.f32 0.0, %v310
    %312 = vmatprep.mubr.f32.mxu0 0.0
    %313 = vmatmul.mubr.f32.gmra.mxu0 %v36
    %v314 = vpop.f32.mrf.mxu0
    %v315 = vadd.f32 0.0, %v314
    %v316 = vpop.f32.mrf.mxu0
    %v317 = vadd.f32 0.0, %v316
    %318 = vmatprep.mubr.f32.mxu0 0.0
    %319 = vmatmul.mubr.f32.gmra.mxu0 %v39
    %v320 = vpop.f32.mrf.mxu0
    %v321 = vadd.f32 0.0, %v320
    %v322 = vpop.f32.mrf.mxu0
    %v323 = vadd.f32 0.0, %v322
    %324 = vdwg.mxu0
    %325 = vmatprep.subr.mxu0 0.0
    %326 = vmatpush1.msra.mxu0 0.0
    %327 = vmatprep.subr.mxu0 0.0
    %328 = vmatpush1.msra.mxu0 0.0
    %329 = vmatprep.subr.mxu0 0.0
    %330 = vmatpush1.msra.mxu0 0.0
    %331 = vmatprep.subr.mxu0 0.0
    %332 = vmatpush1.msra.mxu0 0.0
    %333 = vmatprep.subr.mxu0 0.0
    %334 = vmatpush1.msra.mxu0 0.0
    %335 = vmatprep.subr.mxu0 0.0
    %336 = vmatpush1.msra.mxu0 0.0
    %337 = vmatprep.subr.mxu0 0.0
    %338 = vmatpush1.msra.mxu0 0.0
    %339 = vmatprep.subr.mxu0 0.0
    %340 = vmatpush1.msra.mxu0 0.0
    %341 = vmatprep.subr.mxu0 0.0
    %342 = vmatpush1.msra.mxu0 0.0
    %343 = vmatprep.subr.mxu0 0.0
    %344 = vmatpush1.msra.mxu0 0.0
    %345 = vmatprep.subr.mxu0 0.0
    %346 = vmatpush1.msra.mxu0 0.0
    %347 = vmatprep.subr.mxu0 0.0
    %348 = vmatpush1.msra.mxu0 0.0
    %349 = vmatprep.subr.mxu0 0.0
    %350 = vmatpush1.msra.mxu0 0.0
    %351 = vmatprep.subr.mxu0 0.0
    %352 = vmatpush1.msra.mxu0 0.0
    %353 = vmatprep.subr.mxu0 0.0
    %354 = vmatpush1.msra.mxu0 0.0
    %355 = vmatprep.subr.mxu0 %v56
    %356 = vmatpush1.msra.mxu0 %v54
    %357 = vmatprep.subr.mxu0 0.0
    %358 = vmatpush2.msra.mxu0 0.0
    %359 = vmatprep.subr.mxu0 0.0
    %360 = vmatpush2.msra.mxu0 0.0
    %361 = vmatprep.subr.mxu0 0.0
    %362 = vmatpush2.msra.mxu0 0.0
    %363 = vmatprep.subr.mxu0 0.0
    %364 = vmatpush2.msra.mxu0 0.0
    %365 = vmatprep.subr.mxu0 0.0
    %366 = vmatpush2.msra.mxu0 0.0
    %367 = vmatprep.subr.mxu0 0.0
    %368 = vmatpush2.msra.mxu0 0.0
    %369 = vmatprep.subr.mxu0 0.0
    %370 = vmatpush2.msra.mxu0 0.0
    %371 = vmatprep.subr.mxu0 0.0
    %372 = vmatpush2.msra.mxu0 0.0
    %373 = vmatprep.subr.mxu0 0.0
    %374 = vmatpush2.msra.mxu0 0.0
    %375 = vmatprep.subr.mxu0 0.0
    %376 = vmatpush2.msra.mxu0 0.0
    %377 = vmatprep.subr.mxu0 0.0
    %378 = vmatpush2.msra.mxu0 0.0
    %379 = vmatprep.subr.mxu0 0.0
    %380 = vmatpush2.msra.mxu0 0.0
    %381 = vmatprep.subr.mxu0 0.0
    %382 = vmatpush2.msra.mxu0 0.0
    %383 = vmatprep.subr.mxu0 0.0
    %384 = vmatpush2.msra.mxu0 0.0
    %385 = vmatprep.subr.mxu0 0.0
    %386 = vmatpush2.msra.mxu0 0.0
    %387 = vmatprep.subr.mxu0 0.0
    %388 = vmatpush2.msra.mxu0 0.0
    %389 = vmatprep.mubr.f32.mxu0 0.0
    %390 = vmatmul.mubr.f32.gmra.mxu0 %v30
    %v391 = vpop.f32.mrf.mxu0
    %v392 = vadd.f32 0.0, %v391
    %v393 = vpop.f32.mrf.mxu0
    %v394 = vadd.f32 0.0, %v393
    %395 = vmatprep.mubr.f32.mxu0 0.0
    %396 = vmatmul.mubr.f32.gmra.mxu0 %v33
    %v397 = vpop.f32.mrf.mxu0
    %v398 = vadd.f32 0.0, %v397
    %v399 = vpop.f32.mrf.mxu0
    %v400 = vadd.f32 0.0, %v399
    %401 = vmatprep.mubr.f32.mxu0 0.0
    %402 = vmatmul.mubr.f32.gmra.mxu0 %v36
    %v403 = vpop.f32.mrf.mxu0
    %v404 = vadd.f32 0.0, %v403
    %v405 = vpop.f32.mrf.mxu0
    %v406 = vadd.f32 0.0, %v405
    %407 = vmatprep.mubr.f32.mxu0 0.0
    %408 = vmatmul.mubr.f32.gmra.mxu0 %v39
    %v409 = vpop.f32.mrf.mxu0
    %v410 = vadd.f32 0.0, %v409
    %v411 = vpop.f32.mrf.mxu0
    %v412 = vadd.f32 0.0, %v411
    %413 = vdwg.mxu0
    %v414 = vand.u32 2147483647, %v125
    %vm415 = vcmp.le.f32.partialorder %v414, 0.7853982
    %vm416 = vcmp.lt.s32.totalorder %v125, 0
    %v417 = vand.u32 %v125, 2139095040
    %v418 = vshrl.u32 %v417, 23
    %v419 = vsub.s32 %v418, 127
    %v420 = vand.u32 2147483647, %v125
    %v421 = vand.u32 %v420, 8388607
    %v422 = vor.u32 %v421, 8388608
    %v423 = vsub.s32 0, %v422
    %v424 = vadd.s32 %v419, 1
    %vm425 = vcmp.gt.s32.totalorder %v424, 0
    %v426 = vsel %vm425, %v424, 0
    %v427 = vshrl.u32 %v426, 5
    %v428 = vand.u32 %v426, 31
    %v429 = vsub.s32 32, %v428
    %v430 = vshrl.u32 683565275, %v429
    %v431 = vshll.u32 683565275, %v428
    %v432 = vshrl.u32 2475754826, %v429
    %v433 = vor.u32 %v431, %v432
    %v434 = vshll.u32 2475754826, %v428
    %v435 = vshrl.u32 2131351028, %v429
    %v436 = vor.u32 %v434, %v435
    %v437 = vshll.u32 2131351028, %v428
    %v438 = vshrl.u32 2102212464, %v429
    %v439 = vor.u32 %v437, %v438
    %v440 = vshll.u32 2102212464, %v428
    %v441 = vshrl.u32 920167782, %v429
    %v442 = vor.u32 %v440, %v441
    %v443 = vshll.u32 920167782, %v428
    %v444 = vshrl.u32 1326507024, %v429
    %v445 = vor.u32 %v443, %v444
    %vm446 = vcmp.lt.s32.totalorder %v427, 1
    %vm447 = vcmp.lt.s32.totalorder %v427, 2
    %vm448 = vcmp.lt.s32.totalorder %v427, 3
    %vm449 = vcmp.lt.s32.totalorder %v427, 4
    %v450 = vsel %vm446, %v430, %v433
    %v451 = vsel %vm449, %v439, 2102212464
    %v452 = vsel %vm448, %v436, %v451
    %v453 = vsel %vm447, %v450, %v452
    %v454 = vsel %vm446, %v433, %v436
    %v455 = vsel %vm449, %v442, 920167782
    %v456 = vsel %vm448, %v439, %v455
    %v457 = vsel %vm447, %v454, %v456
    %v458 = vsel %vm446, %v436, %v439
    %v459 = vsel %vm449, %v445, 1326507024
    %v460 = vsel %vm448, %v442, %v459
    %v461 = vsel %vm447, %v458, %v460
    %v462 = vshll.u32 %v422, 8
    %v463 = vmul.u32.u64.compose %v462, %v461
    %v464 = vextract.low.u32 %v463
    %v465 = vextract.high.u32 %v463
    %v466 = vmul.u32.u64.compose %v462, %v457
    %v467 = vextract.low.u32 %v466
    %v468 = vextract.high.u32 %v466
    %v469 = vmul.u32 %v462, %v453
    %v470 = vadd.s32 %v465, %v467
    %vm471 = vc.u32 %v465, %v467
    %v472 = vadd.s32 %v468, 1
    %v473 = vsel %vm471, %v472, %v468
    %v474 = vadd.s32 %v469, %v473
    %v475 = vadd.s32 %v474, 536870912
    %v476 = vshrl.u32 %v475, 30
    %v477 = vshll.u32 %v476, 30
    %v478 = vsub.s32 %v474, %v477
    %vm479 = vcmp.lt.s32.totalorder %v478, 0
    %v480 = vsub.s32 0, %v478
    %v481 = vsel %vm479, %v480, %v478
    %v482 = vclz %v481
    %v483 = vsub.s32 %v482, 2
    %vm484 = vcmp.gt.s32.totalorder 0, %v483
    %v485 = vsel %vm484, 0, %v483
    %v486 = vsub.s32 32, %v485
    %v487 = vshll.u32 %v478, %v485
    %v488 = vshrl.u32 %v470, %v486
    %v489 = vor.u32 %v487, %v488
    %v490 = vsub.s32 4294967266, %v485
    %v491 = vadd.s32 %v490, 127
    %v492 = vshll.u32 %v491, 23
    %v493 = vor.u32 4788187, %v492
    %v494 = vand.u32 2147483647, %v493
    %v496 = vcvt.s32.f32 %v489
    %v497 = vmul.f32 %v496, %v494
    %v498 = vxor.u32 %v497, 2147483648
    %v499 = vsel %vm416, %v498, %v497
    %v500 = vsub.s32 4, %v476
    %v501 = vsel %vm416, %v500, %v476
    %v502 = vsel %vm415, %v125, %v499
    %v503 = vsel %vm415, 0, %v501
    %v504 = vcosq.f32.pop %v502
    %v505 = vsinq.f32.pop %v502
    %vm506 = vweird.f32 %v125
    %v507 = vadd.s32 %v503, 3
    %v508 = vand.u32 %v507, 3
    %vm509 = vcmp.lt.s32.totalorder %v508, 2
    %vm510 = vcmp.eq.s32.totalorder %v508, 0
    %v511 = vxor.u32 %v505, 2147483648
    %v512 = vsel %vm510, %v504, %v511
    %vm513 = vcmp.eq.s32.totalorder %v508, 2
    %v514 = vxor.u32 %v504, 2147483648
    %v515 = vsel %vm513, %v514, %v505
    %v516 = vsel %vm509, %v512, %v515
    %v517 = vsel %vm506, nan, %v516
    %v518 = vand.u32 2147483647, %v127
    %vm519 = vcmp.le.f32.partialorder %v518, 0.7853982
    %vm520 = vcmp.lt.s32.totalorder %v127, 0
    %v521 = vand.u32 %v127, 2139095040
    %v522 = vshrl.u32 %v521, 23
    %v523 = vsub.s32 %v522, 127
    %v524 = vand.u32 2147483647, %v127
    %v525 = vand.u32 %v524, 8388607
    %v526 = vor.u32 %v525, 8388608
    %v527 = vsub.s32 0, %v526
    %v528 = vadd.s32 %v523, 1
    %vm529 = vcmp.gt.s32.totalorder %v528, 0
    %v530 = vsel %vm529, %v528, 0
    %v531 = vshrl.u32 %v530, 5
    %v532 = vand.u32 %v530, 31
    %v533 = vsub.s32 32, %v532
    %v534 = vshrl.u32 683565275, %v533
    %v535 = vshll.u32 683565275, %v532
    %v536 = vshrl.u32 2475754826, %v533
    %v537 = vor.u32 %v535, %v536
    %v538 = vshll.u32 2475754826, %v532
    %v539 = vshrl.u32 2131351028, %v533
    %v540 = vor.u32 %v538, %v539
    %v541 = vshll.u32 2131351028, %v532
    %v542 = vshrl.u32 2102212464, %v533
    %v543 = vor.u32 %v541, %v542
    %v544 = vshll.u32 2102212464, %v532
    %v545 = vshrl.u32 920167782, %v533
    %v546 = vor.u32 %v544, %v545
    %v547 = vshll.u32 920167782, %v532
    %v548 = vshrl.u32 1326507024, %v533
    %v549 = vor.u32 %v547, %v548
    %vm550 = vcmp.lt.s32.totalorder %v531, 1
    %vm551 = vcmp.lt.s32.totalorder %v531, 2
    %vm552 = vcmp.lt.s32.totalorder %v531, 3
    %vm553 = vcmp.lt.s32.totalorder %v531, 4
    %v554 = vsel %vm550, %v534, %v537
    %v555 = vsel %vm553, %v543, 2102212464
    %v556 = vsel %vm552, %v540, %v555
    %v557 = vsel %vm551, %v554, %v556
    %v558 = vsel %vm550, %v537, %v540
    %v559 = vsel %vm553, %v546, 920167782
    %v560 = vsel %vm552, %v543, %v559
    %v561 = vsel %vm551, %v558, %v560
    %v562 = vsel %vm550, %v540, %v543
    %v563 = vsel %vm553, %v549, 1326507024
    %v564 = vsel %vm552, %v546, %v563
    %v565 = vsel %vm551, %v562, %v564
    %v566 = vshll.u32 %v526, 8
    %v567 = vmul.u32.u64.compose %v566, %v565
    %v568 = vextract.low.u32 %v567
    %v569 = vextract.high.u32 %v567
    %v570 = vmul.u32.u64.compose %v566, %v561
    %v571 = vextract.low.u32 %v570
    %v572 = vextract.high.u32 %v570
    %v573 = vmul.u32 %v566, %v557
    %v574 = vadd.s32 %v569, %v571
    %vm575 = vc.u32 %v569, %v571
    %v576 = vadd.s32 %v572, 1
    %v577 = vsel %vm575, %v576, %v572
    %v578 = vadd.s32 %v573, %v577
    %v579 = vadd.s32 %v578, 536870912
    %v580 = vshrl.u32 %v579, 30
    %v581 = vshll.u32 %v580, 30
    %v582 = vsub.s32 %v578, %v581
    %vm583 = vcmp.lt.s32.totalorder %v582, 0
    %v584 = vsub.s32 0, %v582
    %v585 = vsel %vm583, %v584, %v582
    %v586 = vclz %v585
    %v587 = vsub.s32 %v586, 2
    %vm588 = vcmp.gt.s32.totalorder 0, %v587
    %v589 = vsel %vm588, 0, %v587
    %v590 = vsub.s32 32, %v589
    %v591 = vshll.u32 %v582, %v589
    %v592 = vshrl.u32 %v574, %v590
    %v593 = vor.u32 %v591, %v592
    %v594 = vsub.s32 4294967266, %v589
    %v595 = vadd.s32 %v594, 127
    %v596 = vshll.u32 %v595, 23
    %v597 = vor.u32 4788187, %v596
    %v598 = vand.u32 2147483647, %v597
    %v600 = vcvt.s32.f32 %v593
    %v601 = vmul.f32 %v600, %v598
    %v602 = vxor.u32 %v601, 2147483648
    %v603 = vsel %vm520, %v602, %v601
    %v604 = vsub.s32 4, %v580
    %v605 = vsel %vm520, %v604, %v580
    %v606 = vsel %vm519, %v127, %v603
    %v607 = vsel %vm519, 0, %v605
    %v608 = vcosq.f32.pop %v606
    %v609 = vsinq.f32.pop %v606
    %vm610 = vweird.f32 %v127
    %v611 = vadd.s32 %v607, 3
    %v612 = vand.u32 %v611, 3
    %vm613 = vcmp.lt.s32.totalorder %v612, 2
    %vm614 = vcmp.eq.s32.totalorder %v612, 0
    %v615 = vxor.u32 %v609, 2147483648
    %v616 = vsel %vm614, %v608, %v615
    %vm617 = vcmp.eq.s32.totalorder %v612, 2
    %v618 = vxor.u32 %v608, 2147483648
    %v619 = vsel %vm617, %v618, %v609
    %v620 = vsel %vm613, %v616, %v619
    %v621 = vsel %vm610, nan, %v620
    %v622 = vand.u32 2147483647, %v214
    %vm623 = vcmp.le.f32.partialorder %v622, 0.7853982
    %vm624 = vcmp.lt.s32.totalorder %v214, 0
    %v625 = vand.u32 %v214, 2139095040
    %v626 = vshrl.u32 %v625, 23
    %v627 = vsub.s32 %v626, 127
    %v628 = vand.u32 2147483647, %v214
    %v629 = vand.u32 %v628, 8388607
    %v630 = vor.u32 %v629, 8388608
    %v631 = vsub.s32 0, %v630
    %v632 = vadd.s32 %v627, 1
    %vm633 = vcmp.gt.s32.totalorder %v632, 0
    %v634 = vsel %vm633, %v632, 0
    %v635 = vshrl.u32 %v634, 5
    %v636 = vand.u32 %v634, 31
    %v637 = vsub.s32 32, %v636
    %v638 = vshrl.u32 683565275, %v637
    %v639 = vshll.u32 683565275, %v636
    %v640 = vshrl.u32 2475754826, %v637
    %v641 = vor.u32 %v639, %v640
    %v642 = vshll.u32 2475754826, %v636
    %v643 = vshrl.u32 2131351028, %v637
    %v644 = vor.u32 %v642, %v643
    %v645 = vshll.u32 2131351028, %v636
    %v646 = vshrl.u32 2102212464, %v637
    %v647 = vor.u32 %v645, %v646
    %v648 = vshll.u32 2102212464, %v636
    %v649 = vshrl.u32 920167782, %v637
    %v650 = vor.u32 %v648, %v649
    %v651 = vshll.u32 920167782, %v636
    %v652 = vshrl.u32 1326507024, %v637
    %v653 = vor.u32 %v651, %v652
    %vm654 = vcmp.lt.s32.totalorder %v635, 1
    %vm655 = vcmp.lt.s32.totalorder %v635, 2
    %vm656 = vcmp.lt.s32.totalorder %v635, 3
    %vm657 = vcmp.lt.s32.totalorder %v635, 4
    %v658 = vsel %vm654, %v638, %v641
    %v659 = vsel %vm657, %v647, 2102212464
    %v660 = vsel %vm656, %v644, %v659
    %v661 = vsel %vm655, %v658, %v660
    %v662 = vsel %vm654, %v641, %v644
    %v663 = vsel %vm657, %v650, 920167782
    %v664 = vsel %vm656, %v647, %v663
    %v665 = vsel %vm655, %v662, %v664
    %v666 = vsel %vm654, %v644, %v647
    %v667 = vsel %vm657, %v653, 1326507024
    %v668 = vsel %vm656, %v650, %v667
    %v669 = vsel %vm655, %v666, %v668
    %v670 = vshll.u32 %v630, 8
    %v671 = vmul.u32.u64.compose %v670, %v669
    %v672 = vextract.low.u32 %v671
    %v673 = vextract.high.u32 %v671
    %v674 = vmul.u32.u64.compose %v670, %v665
    %v675 = vextract.low.u32 %v674
    %v676 = vextract.high.u32 %v674
    %v677 = vmul.u32 %v670, %v661
    %v678 = vadd.s32 %v673, %v675
    %vm679 = vc.u32 %v673, %v675
    %v680 = vadd.s32 %v676, 1
    %v681 = vsel %vm679, %v680, %v676
    %v682 = vadd.s32 %v677, %v681
    %v683 = vadd.s32 %v682, 536870912
    %v684 = vshrl.u32 %v683, 30
    %v685 = vshll.u32 %v684, 30
    %v686 = vsub.s32 %v682, %v685
    %vm687 = vcmp.lt.s32.totalorder %v686, 0
    %v688 = vsub.s32 0, %v686
    %v689 = vsel %vm687, %v688, %v686
    %v690 = vclz %v689
    %v691 = vsub.s32 %v690, 2
    %vm692 = vcmp.gt.s32.totalorder 0, %v691
    %v693 = vsel %vm692, 0, %v691
    %v694 = vsub.s32 32, %v693
    %v695 = vshll.u32 %v686, %v693
    %v696 = vshrl.u32 %v678, %v694
    %v697 = vor.u32 %v695, %v696
    %v698 = vsub.s32 4294967266, %v693
    %v699 = vadd.s32 %v698, 127
    %v700 = vshll.u32 %v699, 23
    %v701 = vor.u32 4788187, %v700
    %v702 = vand.u32 2147483647, %v701
    %v704 = vcvt.s32.f32 %v697
    %v705 = vmul.f32 %v704, %v702
    %v706 = vxor.u32 %v705, 2147483648
    %v707 = vsel %vm624, %v706, %v705
    %v708 = vsub.s32 4, %v684
    %v709 = vsel %vm624, %v708, %v684
    %v710 = vsel %vm623, %v214, %v707
    %v711 = vsel %vm623, 0, %v709
    %v712 = vcosq.f32.pop %v710
    %v713 = vsinq.f32.pop %v710
    %vm714 = vweird.f32 %v214
    %v715 = vadd.s32 %v711, 3
    %v716 = vand.u32 %v715, 3
    %vm717 = vcmp.lt.s32.totalorder %v716, 2
    %vm718 = vcmp.eq.s32.totalorder %v716, 0
    %v719 = vxor.u32 %v713, 2147483648
    %v720 = vsel %vm718, %v712, %v719
    %vm721 = vcmp.eq.s32.totalorder %v716, 2
    %v722 = vxor.u32 %v712, 2147483648
    %v723 = vsel %vm721, %v722, %v713
    %v724 = vsel %vm717, %v720, %v723
    %v725 = vsel %vm714, nan, %v724
    %v726 = vand.u32 2147483647, %v216
    %vm727 = vcmp.le.f32.partialorder %v726, 0.7853982
    %vm728 = vcmp.lt.s32.totalorder %v216, 0
    %v729 = vand.u32 %v216, 2139095040
    %v730 = vshrl.u32 %v729, 23
    %v731 = vsub.s32 %v730, 127
    %v732 = vand.u32 2147483647, %v216
    %v733 = vand.u32 %v732, 8388607
    %v734 = vor.u32 %v733, 8388608
    %v735 = vsub.s32 0, %v734
    %v736 = vadd.s32 %v731, 1
    %vm737 = vcmp.gt.s32.totalorder %v736, 0
    %v738 = vsel %vm737, %v736, 0
    %v739 = vshrl.u32 %v738, 5
    %v740 = vand.u32 %v738, 31
    %v741 = vsub.s32 32, %v740
    %v742 = vshrl.u32 683565275, %v741
    %v743 = vshll.u32 683565275, %v740
    %v744 = vshrl.u32 2475754826, %v741
    %v745 = vor.u32 %v743, %v744
    %v746 = vshll.u32 2475754826, %v740
    %v747 = vshrl.u32 2131351028, %v741
    %v748 = vor.u32 %v746, %v747
    %v749 = vshll.u32 2131351028, %v740
    %v750 = vshrl.u32 2102212464, %v741
    %v751 = vor.u32 %v749, %v750
    %v752 = vshll.u32 2102212464, %v740
    %v753 = vshrl.u32 920167782, %v741
    %v754 = vor.u32 %v752, %v753
    %v755 = vshll.u32 920167782, %v740
    %v756 = vshrl.u32 1326507024, %v741
    %v757 = vor.u32 %v755, %v756
    %vm758 = vcmp.lt.s32.totalorder %v739, 1
    %vm759 = vcmp.lt.s32.totalorder %v739, 2
    %vm760 = vcmp.lt.s32.totalorder %v739, 3
    %vm761 = vcmp.lt.s32.totalorder %v739, 4
    %v762 = vsel %vm758, %v742, %v745
    %v763 = vsel %vm761, %v751, 2102212464
    %v764 = vsel %vm760, %v748, %v763
    %v765 = vsel %vm759, %v762, %v764
    %v766 = vsel %vm758, %v745, %v748
    %v767 = vsel %vm761, %v754, 920167782
    %v768 = vsel %vm760, %v751, %v767
    %v769 = vsel %vm759, %v766, %v768
    %v770 = vsel %vm758, %v748, %v751
    %v771 = vsel %vm761, %v757, 1326507024
    %v772 = vsel %vm760, %v754, %v771
    %v773 = vsel %vm759, %v770, %v772
    %v774 = vshll.u32 %v734, 8
    %v775 = vmul.u32.u64.compose %v774, %v773
    %v776 = vextract.low.u32 %v775
    %v777 = vextract.high.u32 %v775
    %v778 = vmul.u32.u64.compose %v774, %v769
    %v779 = vextract.low.u32 %v778
    %v780 = vextract.high.u32 %v778
    %v781 = vmul.u32 %v774, %v765
    %v782 = vadd.s32 %v777, %v779
    %vm783 = vc.u32 %v777, %v779
    %v784 = vadd.s32 %v780, 1
    %v785 = vsel %vm783, %v784, %v780
    %v786 = vadd.s32 %v781, %v785
    %v787 = vadd.s32 %v786, 536870912
    %v788 = vshrl.u32 %v787, 30
    %v789 = vshll.u32 %v788, 30
    %v790 = vsub.s32 %v786, %v789
    %vm791 = vcmp.lt.s32.totalorder %v790, 0
    %v792 = vsub.s32 0, %v790
    %v793 = vsel %vm791, %v792, %v790
    %v794 = vclz %v793
    %v795 = vsub.s32 %v794, 2
    %vm796 = vcmp.gt.s32.totalorder 0, %v795
    %v797 = vsel %vm796, 0, %v795
    %v798 = vsub.s32 32, %v797
    %v799 = vshll.u32 %v790, %v797
    %v800 = vshrl.u32 %v782, %v798
    %v801 = vor.u32 %v799, %v800
    %v802 = vsub.s32 4294967266, %v797
    %v803 = vadd.s32 %v802, 127
    %v804 = vshll.u32 %v803, 23
    %v805 = vor.u32 4788187, %v804
    %v806 = vand.u32 2147483647, %v805
    %v808 = vcvt.s32.f32 %v801
    %v809 = vmul.f32 %v808, %v806
    %v810 = vxor.u32 %v809, 2147483648
    %v811 = vsel %vm728, %v810, %v809
    %v812 = vsub.s32 4, %v788
    %v813 = vsel %vm728, %v812, %v788
    %v814 = vsel %vm727, %v216, %v811
    %v815 = vsel %vm727, 0, %v813
    %v816 = vcosq.f32.pop %v814
    %v817 = vsinq.f32.pop %v814
    %vm818 = vweird.f32 %v216
    %v819 = vadd.s32 %v815, 3
    %v820 = vand.u32 %v819, 3
    %vm821 = vcmp.lt.s32.totalorder %v820, 2
    %vm822 = vcmp.eq.s32.totalorder %v820, 0
    %v823 = vxor.u32 %v817, 2147483648
    %v824 = vsel %vm822, %v816, %v823
    %vm825 = vcmp.eq.s32.totalorder %v820, 2
    %v826 = vxor.u32 %v816, 2147483648
    %v827 = vsel %vm825, %v826, %v817
    %v828 = vsel %vm821, %v824, %v827
    %v829 = vsel %vm818, nan, %v828
    %v830 = vand.u32 2147483647, %v303
    %vm831 = vcmp.le.f32.partialorder %v830, 0.7853982
    %vm832 = vcmp.lt.s32.totalorder %v303, 0
    %v833 = vand.u32 %v303, 2139095040
    %v834 = vshrl.u32 %v833, 23
    %v835 = vsub.s32 %v834, 127
    %v836 = vand.u32 2147483647, %v303
    %v837 = vand.u32 %v836, 8388607
    %v838 = vor.u32 %v837, 8388608
    %v839 = vsub.s32 0, %v838
    %v840 = vadd.s32 %v835, 1
    %vm841 = vcmp.gt.s32.totalorder %v840, 0
    %v842 = vsel %vm841, %v840, 0
    %v843 = vshrl.u32 %v842, 5
    %v844 = vand.u32 %v842, 31
    %v845 = vsub.s32 32, %v844
    %v846 = vshrl.u32 683565275, %v845
    %v847 = vshll.u32 683565275, %v844
    %v848 = vshrl.u32 2475754826, %v845
    %v849 = vor.u32 %v847, %v848
    %v850 = vshll.u32 2475754826, %v844
    %v851 = vshrl.u32 2131351028, %v845
    %v852 = vor.u32 %v850, %v851
    %v853 = vshll.u32 2131351028, %v844
    %v854 = vshrl.u32 2102212464, %v845
    %v855 = vor.u32 %v853, %v854
    %v856 = vshll.u32 2102212464, %v844
    %v857 = vshrl.u32 920167782, %v845
    %v858 = vor.u32 %v856, %v857
    %v859 = vshll.u32 920167782, %v844
    %v860 = vshrl.u32 1326507024, %v845
    %v861 = vor.u32 %v859, %v860
    %vm862 = vcmp.lt.s32.totalorder %v843, 1
    %vm863 = vcmp.lt.s32.totalorder %v843, 2
    %vm864 = vcmp.lt.s32.totalorder %v843, 3
    %vm865 = vcmp.lt.s32.totalorder %v843, 4
    %v866 = vsel %vm862, %v846, %v849
    %v867 = vsel %vm865, %v855, 2102212464
    %v868 = vsel %vm864, %v852, %v867
    %v869 = vsel %vm863, %v866, %v868
    %v870 = vsel %vm862, %v849, %v852
    %v871 = vsel %vm865, %v858, 920167782
    %v872 = vsel %vm864, %v855, %v871
    %v873 = vsel %vm863, %v870, %v872
    %v874 = vsel %vm862, %v852, %v855
    %v875 = vsel %vm865, %v861, 1326507024
    %v876 = vsel %vm864, %v858, %v875
    %v877 = vsel %vm863, %v874, %v876
    %v878 = vshll.u32 %v838, 8
    %v879 = vmul.u32.u64.compose %v878, %v877
    %v880 = vextract.low.u32 %v879
    %v881 = vextract.high.u32 %v879
    %v882 = vmul.u32.u64.compose %v878, %v873
    %v883 = vextract.low.u32 %v882
    %v884 = vextract.high.u32 %v882
    %v885 = vmul.u32 %v878, %v869
    %v886 = vadd.s32 %v881, %v883
    %vm887 = vc.u32 %v881, %v883
    %v888 = vadd.s32 %v884, 1
    %v889 = vsel %vm887, %v888, %v884
    %v890 = vadd.s32 %v885, %v889
    %v891 = vadd.s32 %v890, 536870912
    %v892 = vshrl.u32 %v891, 30
    %v893 = vshll.u32 %v892, 30
    %v894 = vsub.s32 %v890, %v893
    %vm895 = vcmp.lt.s32.totalorder %v894, 0
    %v896 = vsub.s32 0, %v894
    %v897 = vsel %vm895, %v896, %v894
    %v898 = vclz %v897
    %v899 = vsub.s32 %v898, 2
    %vm900 = vcmp.gt.s32.totalorder 0, %v899
    %v901 = vsel %vm900, 0, %v899
    %v902 = vsub.s32 32, %v901
    %v903 = vshll.u32 %v894, %v901
    %v904 = vshrl.u32 %v886, %v902
    %v905 = vor.u32 %v903, %v904
    %v906 = vsub.s32 4294967266, %v901
    %v907 = vadd.s32 %v906, 127
    %v908 = vshll.u32 %v907, 23
    %v909 = vor.u32 4788187, %v908
    %v910 = vand.u32 2147483647, %v909
    %v912 = vcvt.s32.f32 %v905
    %v913 = vmul.f32 %v912, %v910
    %v914 = vxor.u32 %v913, 2147483648
    %v915 = vsel %vm832, %v914, %v913
    %v916 = vsub.s32 4, %v892
    %v917 = vsel %vm832, %v916, %v892
    %v918 = vsel %vm831, %v303, %v915
    %v919 = vsel %vm831, 0, %v917
    %v920 = vcosq.f32.pop %v918
    %v921 = vsinq.f32.pop %v918
    %vm922 = vweird.f32 %v303
    %v923 = vadd.s32 %v919, 3
    %v924 = vand.u32 %v923, 3
    %vm925 = vcmp.lt.s32.totalorder %v924, 2
    %vm926 = vcmp.eq.s32.totalorder %v924, 0
    %v927 = vxor.u32 %v921, 2147483648
    %v928 = vsel %vm926, %v920, %v927
    %vm929 = vcmp.eq.s32.totalorder %v924, 2
    %v930 = vxor.u32 %v920, 2147483648
    %v931 = vsel %vm929, %v930, %v921
    %v932 = vsel %vm925, %v928, %v931
    %v933 = vsel %vm922, nan, %v932
    %v934 = vand.u32 2147483647, %v305
    %vm935 = vcmp.le.f32.partialorder %v934, 0.7853982
    %vm936 = vcmp.lt.s32.totalorder %v305, 0
    %v937 = vand.u32 %v305, 2139095040
    %v938 = vshrl.u32 %v937, 23
    %v939 = vsub.s32 %v938, 127
    %v940 = vand.u32 2147483647, %v305
    %v941 = vand.u32 %v940, 8388607
    %v942 = vor.u32 %v941, 8388608
    %v943 = vsub.s32 0, %v942
    %v944 = vadd.s32 %v939, 1
    %vm945 = vcmp.gt.s32.totalorder %v944, 0
    %v946 = vsel %vm945, %v944, 0
    %v947 = vshrl.u32 %v946, 5
    %v948 = vand.u32 %v946, 31
    %v949 = vsub.s32 32, %v948
    %v950 = vshrl.u32 683565275, %v949
    %v951 = vshll.u32 683565275, %v948
    %v952 = vshrl.u32 2475754826, %v949
    %v953 = vor.u32 %v951, %v952
    %v954 = vshll.u32 2475754826, %v948
    %v955 = vshrl.u32 2131351028, %v949
    %v956 = vor.u32 %v954, %v955
    %v957 = vshll.u32 2131351028, %v948
    %v958 = vshrl.u32 2102212464, %v949
    %v959 = vor.u32 %v957, %v958
    %v960 = vshll.u32 2102212464, %v948
    %v961 = vshrl.u32 920167782, %v949
    %v962 = vor.u32 %v960, %v961
    %v963 = vshll.u32 920167782, %v948
    %v964 = vshrl.u32 1326507024, %v949
    %v965 = vor.u32 %v963, %v964
    %vm966 = vcmp.lt.s32.totalorder %v947, 1
    %vm967 = vcmp.lt.s32.totalorder %v947, 2
    %vm968 = vcmp.lt.s32.totalorder %v947, 3
    %vm969 = vcmp.lt.s32.totalorder %v947, 4
    %v970 = vsel %vm966, %v950, %v953
    %v971 = vsel %vm969, %v959, 2102212464
    %v972 = vsel %vm968, %v956, %v971
    %v973 = vsel %vm967, %v970, %v972
    %v974 = vsel %vm966, %v953, %v956
    %v975 = vsel %vm969, %v962, 920167782
    %v976 = vsel %vm968, %v959, %v975
    %v977 = vsel %vm967, %v974, %v976
    %v978 = vsel %vm966, %v956, %v959
    %v979 = vsel %vm969, %v965, 1326507024
    %v980 = vsel %vm968, %v962, %v979
    %v981 = vsel %vm967, %v978, %v980
    %v982 = vshll.u32 %v942, 8
    %v983 = vmul.u32.u64.compose %v982, %v981
    %v984 = vextract.low.u32 %v983
    %v985 = vextract.high.u32 %v983
    %v986 = vmul.u32.u64.compose %v982, %v977
    %v987 = vextract.low.u32 %v986
    %v988 = vextract.high.u32 %v986
    %v989 = vmul.u32 %v982, %v973
    %v990 = vadd.s32 %v985, %v987
    %vm991 = vc.u32 %v985, %v987
    %v992 = vadd.s32 %v988, 1
    %v993 = vsel %vm991, %v992, %v988
    %v994 = vadd.s32 %v989, %v993
    %v995 = vadd.s32 %v994, 536870912
    %v996 = vshrl.u32 %v995, 30
    %v997 = vshll.u32 %v996, 30
    %v998 = vsub.s32 %v994, %v997
    %vm999 = vcmp.lt.s32.totalorder %v998, 0
    %v1000 = vsub.s32 0, %v998
    %v1001 = vsel %vm999, %v1000, %v998
    %v1002 = vclz %v1001
    %v1003 = vsub.s32 %v1002, 2
    %vm1004 = vcmp.gt.s32.totalorder 0, %v1003
    %v1005 = vsel %vm1004, 0, %v1003
    %v1006 = vsub.s32 32, %v1005
    %v1007 = vshll.u32 %v998, %v1005
    %v1008 = vshrl.u32 %v990, %v1006
    %v1009 = vor.u32 %v1007, %v1008
    %v1010 = vsub.s32 4294967266, %v1005
    %v1011 = vadd.s32 %v1010, 127
    %v1012 = vshll.u32 %v1011, 23
    %v1013 = vor.u32 4788187, %v1012
    %v1014 = vand.u32 2147483647, %v1013
    %v1016 = vcvt.s32.f32 %v1009
    %v1017 = vmul.f32 %v1016, %v1014
    %v1018 = vxor.u32 %v1017, 2147483648
    %v1019 = vsel %vm936, %v1018, %v1017
    %v1020 = vsub.s32 4, %v996
    %v1021 = vsel %vm936, %v1020, %v996
    %v1022 = vsel %vm935, %v305, %v1019
    %v1023 = vsel %vm935, 0, %v1021
    %v1024 = vcosq.f32.pop %v1022
    %v1025 = vsinq.f32.pop %v1022
    %vm1026 = vweird.f32 %v305
    %v1027 = vadd.s32 %v1023, 3
    %v1028 = vand.u32 %v1027, 3
    %vm1029 = vcmp.lt.s32.totalorder %v1028, 2
    %vm1030 = vcmp.eq.s32.totalorder %v1028, 0
    %v1031 = vxor.u32 %v1025, 2147483648
    %v1032 = vsel %vm1030, %v1024, %v1031
    %vm1033 = vcmp.eq.s32.totalorder %v1028, 2
    %v1034 = vxor.u32 %v1024, 2147483648
    %v1035 = vsel %vm1033, %v1034, %v1025
    %v1036 = vsel %vm1029, %v1032, %v1035
    %v1037 = vsel %vm1026, nan, %v1036
    %v1038 = vand.u32 2147483647, %v392
    %vm1039 = vcmp.le.f32.partialorder %v1038, 0.7853982
    %vm1040 = vcmp.lt.s32.totalorder %v392, 0
    %v1041 = vand.u32 %v392, 2139095040
    %v1042 = vshrl.u32 %v1041, 23
    %v1043 = vsub.s32 %v1042, 127
    %v1044 = vand.u32 2147483647, %v392
    %v1045 = vand.u32 %v1044, 8388607
    %v1046 = vor.u32 %v1045, 8388608
    %v1047 = vsub.s32 0, %v1046
    %v1048 = vadd.s32 %v1043, 1
    %vm1049 = vcmp.gt.s32.totalorder %v1048, 0
    %v1050 = vsel %vm1049, %v1048, 0
    %v1051 = vshrl.u32 %v1050, 5
    %v1052 = vand.u32 %v1050, 31
    %v1053 = vsub.s32 32, %v1052
    %v1054 = vshrl.u32 683565275, %v1053
    %v1055 = vshll.u32 683565275, %v1052
    %v1056 = vshrl.u32 2475754826, %v1053
    %v1057 = vor.u32 %v1055, %v1056
    %v1058 = vshll.u32 2475754826, %v1052
    %v1059 = vshrl.u32 2131351028, %v1053
    %v1060 = vor.u32 %v1058, %v1059
    %v1061 = vshll.u32 2131351028, %v1052
    %v1062 = vshrl.u32 2102212464, %v1053
    %v1063 = vor.u32 %v1061, %v1062
    %v1064 = vshll.u32 2102212464, %v1052
    %v1065 = vshrl.u32 920167782, %v1053
    %v1066 = vor.u32 %v1064, %v1065
    %v1067 = vshll.u32 920167782, %v1052
    %v1068 = vshrl.u32 1326507024, %v1053
    %v1069 = vor.u32 %v1067, %v1068
    %vm1070 = vcmp.lt.s32.totalorder %v1051, 1
    %vm1071 = vcmp.lt.s32.totalorder %v1051, 2
    %vm1072 = vcmp.lt.s32.totalorder %v1051, 3
    %vm1073 = vcmp.lt.s32.totalorder %v1051, 4
    %v1074 = vsel %vm1070, %v1054, %v1057
    %v1075 = vsel %vm1073, %v1063, 2102212464
    %v1076 = vsel %vm1072, %v1060, %v1075
    %v1077 = vsel %vm1071, %v1074, %v1076
    %v1078 = vsel %vm1070, %v1057, %v1060
    %v1079 = vsel %vm1073, %v1066, 920167782
    %v1080 = vsel %vm1072, %v1063, %v1079
    %v1081 = vsel %vm1071, %v1078, %v1080
    %v1082 = vsel %vm1070, %v1060, %v1063
    %v1083 = vsel %vm1073, %v1069, 1326507024
    %v1084 = vsel %vm1072, %v1066, %v1083
    %v1085 = vsel %vm1071, %v1082, %v1084
    %v1086 = vshll.u32 %v1046, 8
    %v1087 = vmul.u32.u64.compose %v1086, %v1085
    %v1088 = vextract.low.u32 %v1087
    %v1089 = vextract.high.u32 %v1087
    %v1090 = vmul.u32.u64.compose %v1086, %v1081
    %v1091 = vextract.low.u32 %v1090
    %v1092 = vextract.high.u32 %v1090
    %v1093 = vmul.u32 %v1086, %v1077
    %v1094 = vadd.s32 %v1089, %v1091
    %vm1095 = vc.u32 %v1089, %v1091
    %v1096 = vadd.s32 %v1092, 1
    %v1097 = vsel %vm1095, %v1096, %v1092
    %v1098 = vadd.s32 %v1093, %v1097
    %v1099 = vadd.s32 %v1098, 536870912
    %v1100 = vshrl.u32 %v1099, 30
    %v1101 = vshll.u32 %v1100, 30
    %v1102 = vsub.s32 %v1098, %v1101
    %vm1103 = vcmp.lt.s32.totalorder %v1102, 0
    %v1104 = vsub.s32 0, %v1102
    %v1105 = vsel %vm1103, %v1104, %v1102
    %v1106 = vclz %v1105
    %v1107 = vsub.s32 %v1106, 2
    %vm1108 = vcmp.gt.s32.totalorder 0, %v1107
    %v1109 = vsel %vm1108, 0, %v1107
    %v1110 = vsub.s32 32, %v1109
    %v1111 = vshll.u32 %v1102, %v1109
    %v1112 = vshrl.u32 %v1094, %v1110
    %v1113 = vor.u32 %v1111, %v1112
    %v1114 = vsub.s32 4294967266, %v1109
    %v1115 = vadd.s32 %v1114, 127
    %v1116 = vshll.u32 %v1115, 23
    %v1117 = vor.u32 4788187, %v1116
    %v1118 = vand.u32 2147483647, %v1117
    %v1120 = vcvt.s32.f32 %v1113
    %v1121 = vmul.f32 %v1120, %v1118
    %v1122 = vxor.u32 %v1121, 2147483648
    %v1123 = vsel %vm1040, %v1122, %v1121
    %v1124 = vsub.s32 4, %v1100
    %v1125 = vsel %vm1040, %v1124, %v1100
    %v1126 = vsel %vm1039, %v392, %v1123
    %v1127 = vsel %vm1039, 0, %v1125
    %v1128 = vcosq.f32.pop %v1126
    %v1129 = vsinq.f32.pop %v1126
    %vm1130 = vweird.f32 %v392
    %v1131 = vadd.s32 %v1127, 3
    %v1132 = vand.u32 %v1131, 3
    %vm1133 = vcmp.lt.s32.totalorder %v1132, 2
    %vm1134 = vcmp.eq.s32.totalorder %v1132, 0
    %v1135 = vxor.u32 %v1129, 2147483648
    %v1136 = vsel %vm1134, %v1128, %v1135
    %vm1137 = vcmp.eq.s32.totalorder %v1132, 2
    %v1138 = vxor.u32 %v1128, 2147483648
    %v1139 = vsel %vm1137, %v1138, %v1129
    %v1140 = vsel %vm1133, %v1136, %v1139
    %v1141 = vsel %vm1130, nan, %v1140
    %v1142 = vand.u32 2147483647, %v394
    %vm1143 = vcmp.le.f32.partialorder %v1142, 0.7853982
    %vm1144 = vcmp.lt.s32.totalorder %v394, 0
    %v1145 = vand.u32 %v394, 2139095040
    %v1146 = vshrl.u32 %v1145, 23
    %v1147 = vsub.s32 %v1146, 127
    %v1148 = vand.u32 2147483647, %v394
    %v1149 = vand.u32 %v1148, 8388607
    %v1150 = vor.u32 %v1149, 8388608
    %v1151 = vsub.s32 0, %v1150
    %v1152 = vadd.s32 %v1147, 1
    %vm1153 = vcmp.gt.s32.totalorder %v1152, 0
    %v1154 = vsel %vm1153, %v1152, 0
    %v1155 = vshrl.u32 %v1154, 5
    %v1156 = vand.u32 %v1154, 31
    %v1157 = vsub.s32 32, %v1156
    %v1158 = vshrl.u32 683565275, %v1157
    %v1159 = vshll.u32 683565275, %v1156
    %v1160 = vshrl.u32 2475754826, %v1157
    %v1161 = vor.u32 %v1159, %v1160
    %v1162 = vshll.u32 2475754826, %v1156
    %v1163 = vshrl.u32 2131351028, %v1157
    %v1164 = vor.u32 %v1162, %v1163
    %v1165 = vshll.u32 2131351028, %v1156
    %v1166 = vshrl.u32 2102212464, %v1157
    %v1167 = vor.u32 %v1165, %v1166
    %v1168 = vshll.u32 2102212464, %v1156
    %v1169 = vshrl.u32 920167782, %v1157
    %v1170 = vor.u32 %v1168, %v1169
    %v1171 = vshll.u32 920167782, %v1156
    %v1172 = vshrl.u32 1326507024, %v1157
    %v1173 = vor.u32 %v1171, %v1172
    %vm1174 = vcmp.lt.s32.totalorder %v1155, 1
    %vm1175 = vcmp.lt.s32.totalorder %v1155, 2
    %vm1176 = vcmp.lt.s32.totalorder %v1155, 3
    %vm1177 = vcmp.lt.s32.totalorder %v1155, 4
    %v1178 = vsel %vm1174, %v1158, %v1161
    %v1179 = vsel %vm1177, %v1167, 2102212464
    %v1180 = vsel %vm1176, %v1164, %v1179
    %v1181 = vsel %vm1175, %v1178, %v1180
    %v1182 = vsel %vm1174, %v1161, %v1164
    %v1183 = vsel %vm1177, %v1170, 920167782
    %v1184 = vsel %vm1176, %v1167, %v1183
    %v1185 = vsel %vm1175, %v1182, %v1184
    %v1186 = vsel %vm1174, %v1164, %v1167
    %v1187 = vsel %vm1177, %v1173, 1326507024
    %v1188 = vsel %vm1176, %v1170, %v1187
    %v1189 = vsel %vm1175, %v1186, %v1188
    %v1190 = vshll.u32 %v1150, 8
    %v1191 = vmul.u32.u64.compose %v1190, %v1189
    %v1192 = vextract.low.u32 %v1191
    %v1193 = vextract.high.u32 %v1191
    %v1194 = vmul.u32.u64.compose %v1190, %v1185
    %v1195 = vextract.low.u32 %v1194
    %v1196 = vextract.high.u32 %v1194
    %v1197 = vmul.u32 %v1190, %v1181
    %v1198 = vadd.s32 %v1193, %v1195
    %vm1199 = vc.u32 %v1193, %v1195
    %v1200 = vadd.s32 %v1196, 1
    %v1201 = vsel %vm1199, %v1200, %v1196
    %v1202 = vadd.s32 %v1197, %v1201
    %v1203 = vadd.s32 %v1202, 536870912
    %v1204 = vshrl.u32 %v1203, 30
    %v1205 = vshll.u32 %v1204, 30
    %v1206 = vsub.s32 %v1202, %v1205
    %vm1207 = vcmp.lt.s32.totalorder %v1206, 0
    %v1208 = vsub.s32 0, %v1206
    %v1209 = vsel %vm1207, %v1208, %v1206
    %v1210 = vclz %v1209
    %v1211 = vsub.s32 %v1210, 2
    %vm1212 = vcmp.gt.s32.totalorder 0, %v1211
    %v1213 = vsel %vm1212, 0, %v1211
    %v1214 = vsub.s32 32, %v1213
    %v1215 = vshll.u32 %v1206, %v1213
    %v1216 = vshrl.u32 %v1198, %v1214
    %v1217 = vor.u32 %v1215, %v1216
    %v1218 = vsub.s32 4294967266, %v1213
    %v1219 = vadd.s32 %v1218, 127
    %v1220 = vshll.u32 %v1219, 23
    %v1221 = vor.u32 4788187, %v1220
    %v1222 = vand.u32 2147483647, %v1221
    %v1224 = vcvt.s32.f32 %v1217
    %v1225 = vmul.f32 %v1224, %v1222
    %v1226 = vxor.u32 %v1225, 2147483648
    %v1227 = vsel %vm1144, %v1226, %v1225
    %v1228 = vsub.s32 4, %v1204
    %v1229 = vsel %vm1144, %v1228, %v1204
    %v1230 = vsel %vm1143, %v394, %v1227
    %v1231 = vsel %vm1143, 0, %v1229
    %v1232 = vcosq.f32.pop %v1230
    %v1233 = vsinq.f32.pop %v1230
    %vm1234 = vweird.f32 %v394
    %v1235 = vadd.s32 %v1231, 3
    %v1236 = vand.u32 %v1235, 3
    %vm1237 = vcmp.lt.s32.totalorder %v1236, 2
    %vm1238 = vcmp.eq.s32.totalorder %v1236, 0
    %v1239 = vxor.u32 %v1233, 2147483648
    %v1240 = vsel %vm1238, %v1232, %v1239
    %vm1241 = vcmp.eq.s32.totalorder %v1236, 2
    %v1242 = vxor.u32 %v1232, 2147483648
    %v1243 = vsel %vm1241, %v1242, %v1233
    %v1244 = vsel %vm1237, %v1240, %v1243
    %v1245 = vsel %vm1234, nan, %v1244
    %v1246 = vand.u32 2147483647, %v131
    %vm1247 = vcmp.le.f32.partialorder %v1246, 0.7853982
    %vm1248 = vcmp.lt.s32.totalorder %v131, 0
    %v1249 = vand.u32 %v131, 2139095040
    %v1250 = vshrl.u32 %v1249, 23
    %v1251 = vsub.s32 %v1250, 127
    %v1252 = vand.u32 2147483647, %v131
    %v1253 = vand.u32 %v1252, 8388607
    %v1254 = vor.u32 %v1253, 8388608
    %v1255 = vsub.s32 0, %v1254
    %v1256 = vadd.s32 %v1251, 1
    %vm1257 = vcmp.gt.s32.totalorder %v1256, 0
    %v1258 = vsel %vm1257, %v1256, 0
    %v1259 = vshrl.u32 %v1258, 5
    %v1260 = vand.u32 %v1258, 31
    %v1261 = vsub.s32 32, %v1260
    %v1262 = vshrl.u32 683565275, %v1261
    %v1263 = vshll.u32 683565275, %v1260
    %v1264 = vshrl.u32 2475754826, %v1261
    %v1265 = vor.u32 %v1263, %v1264
    %v1266 = vshll.u32 2475754826, %v1260
    %v1267 = vshrl.u32 2131351028, %v1261
    %v1268 = vor.u32 %v1266, %v1267
    %v1269 = vshll.u32 2131351028, %v1260
    %v1270 = vshrl.u32 2102212464, %v1261
    %v1271 = vor.u32 %v1269, %v1270
    %v1272 = vshll.u32 2102212464, %v1260
    %v1273 = vshrl.u32 920167782, %v1261
    %v1274 = vor.u32 %v1272, %v1273
    %v1275 = vshll.u32 920167782, %v1260
    %v1276 = vshrl.u32 1326507024, %v1261
    %v1277 = vor.u32 %v1275, %v1276
    %vm1278 = vcmp.lt.s32.totalorder %v1259, 1
    %vm1279 = vcmp.lt.s32.totalorder %v1259, 2
    %vm1280 = vcmp.lt.s32.totalorder %v1259, 3
    %vm1281 = vcmp.lt.s32.totalorder %v1259, 4
    %v1282 = vsel %vm1278, %v1262, %v1265
    %v1283 = vsel %vm1281, %v1271, 2102212464
    %v1284 = vsel %vm1280, %v1268, %v1283
    %v1285 = vsel %vm1279, %v1282, %v1284
    %v1286 = vsel %vm1278, %v1265, %v1268
    %v1287 = vsel %vm1281, %v1274, 920167782
    %v1288 = vsel %vm1280, %v1271, %v1287
    %v1289 = vsel %vm1279, %v1286, %v1288
    %v1290 = vsel %vm1278, %v1268, %v1271
    %v1291 = vsel %vm1281, %v1277, 1326507024
    %v1292 = vsel %vm1280, %v1274, %v1291
    %v1293 = vsel %vm1279, %v1290, %v1292
    %v1294 = vshll.u32 %v1254, 8
    %v1295 = vmul.u32.u64.compose %v1294, %v1293
    %v1296 = vextract.low.u32 %v1295
    %v1297 = vextract.high.u32 %v1295
    %v1298 = vmul.u32.u64.compose %v1294, %v1289
    %v1299 = vextract.low.u32 %v1298
    %v1300 = vextract.high.u32 %v1298
    %v1301 = vmul.u32 %v1294, %v1285
    %v1302 = vadd.s32 %v1297, %v1299
    %vm1303 = vc.u32 %v1297, %v1299
    %v1304 = vadd.s32 %v1300, 1
    %v1305 = vsel %vm1303, %v1304, %v1300
    %v1306 = vadd.s32 %v1301, %v1305
    %v1307 = vadd.s32 %v1306, 536870912
    %v1308 = vshrl.u32 %v1307, 30
    %v1309 = vshll.u32 %v1308, 30
    %v1310 = vsub.s32 %v1306, %v1309
    %vm1311 = vcmp.lt.s32.totalorder %v1310, 0
    %v1312 = vsub.s32 0, %v1310
    %v1313 = vsel %vm1311, %v1312, %v1310
    %v1314 = vclz %v1313
    %v1315 = vsub.s32 %v1314, 2
    %vm1316 = vcmp.gt.s32.totalorder 0, %v1315
    %v1317 = vsel %vm1316, 0, %v1315
    %v1318 = vsub.s32 32, %v1317
    %v1319 = vshll.u32 %v1310, %v1317
    %v1320 = vshrl.u32 %v1302, %v1318
    %v1321 = vor.u32 %v1319, %v1320
    %v1322 = vsub.s32 4294967266, %v1317
    %v1323 = vadd.s32 %v1322, 127
    %v1324 = vshll.u32 %v1323, 23
    %v1325 = vor.u32 4788187, %v1324
    %v1326 = vand.u32 2147483647, %v1325
    %v1328 = vcvt.s32.f32 %v1321
    %v1329 = vmul.f32 %v1328, %v1326
    %v1330 = vxor.u32 %v1329, 2147483648
    %v1331 = vsel %vm1248, %v1330, %v1329
    %v1332 = vsub.s32 4, %v1308
    %v1333 = vsel %vm1248, %v1332, %v1308
    %v1334 = vsel %vm1247, %v131, %v1331
    %v1335 = vsel %vm1247, 0, %v1333
    %v1336 = vcosq.f32.pop %v1334
    %v1337 = vsinq.f32.pop %v1334
    %vm1338 = vweird.f32 %v131
    %v1339 = vadd.s32 %v1335, 3
    %v1340 = vand.u32 %v1339, 3
    %vm1341 = vcmp.lt.s32.totalorder %v1340, 2
    %vm1342 = vcmp.eq.s32.totalorder %v1340, 0
    %v1343 = vxor.u32 %v1337, 2147483648
    %v1344 = vsel %vm1342, %v1336, %v1343
    %vm1345 = vcmp.eq.s32.totalorder %v1340, 2
    %v1346 = vxor.u32 %v1336, 2147483648
    %v1347 = vsel %vm1345, %v1346, %v1337
    %v1348 = vsel %vm1341, %v1344, %v1347
    %v1349 = vsel %vm1338, nan, %v1348
    %v1350 = vand.u32 2147483647, %v133
    %vm1351 = vcmp.le.f32.partialorder %v1350, 0.7853982
    %vm1352 = vcmp.lt.s32.totalorder %v133, 0
    %v1353 = vand.u32 %v133, 2139095040
    %v1354 = vshrl.u32 %v1353, 23
    %v1355 = vsub.s32 %v1354, 127
    %v1356 = vand.u32 2147483647, %v133
    %v1357 = vand.u32 %v1356, 8388607
    %v1358 = vor.u32 %v1357, 8388608
    %v1359 = vsub.s32 0, %v1358
    %v1360 = vadd.s32 %v1355, 1
    %vm1361 = vcmp.gt.s32.totalorder %v1360, 0
    %v1362 = vsel %vm1361, %v1360, 0
    %v1363 = vshrl.u32 %v1362, 5
    %v1364 = vand.u32 %v1362, 31
    %v1365 = vsub.s32 32, %v1364
    %v1366 = vshrl.u32 683565275, %v1365
    %v1367 = vshll.u32 683565275, %v1364
    %v1368 = vshrl.u32 2475754826, %v1365
    %v1369 = vor.u32 %v1367, %v1368
    %v1370 = vshll.u32 2475754826, %v1364
    %v1371 = vshrl.u32 2131351028, %v1365
    %v1372 = vor.u32 %v1370, %v1371
    %v1373 = vshll.u32 2131351028, %v1364
    %v1374 = vshrl.u32 2102212464, %v1365
    %v1375 = vor.u32 %v1373, %v1374
    %v1376 = vshll.u32 2102212464, %v1364
    %v1377 = vshrl.u32 920167782, %v1365
    %v1378 = vor.u32 %v1376, %v1377
    %v1379 = vshll.u32 920167782, %v1364
    %v1380 = vshrl.u32 1326507024, %v1365
    %v1381 = vor.u32 %v1379, %v1380
    %vm1382 = vcmp.lt.s32.totalorder %v1363, 1
    %vm1383 = vcmp.lt.s32.totalorder %v1363, 2
    %vm1384 = vcmp.lt.s32.totalorder %v1363, 3
    %vm1385 = vcmp.lt.s32.totalorder %v1363, 4
    %v1386 = vsel %vm1382, %v1366, %v1369
    %v1387 = vsel %vm1385, %v1375, 2102212464
    %v1388 = vsel %vm1384, %v1372, %v1387
    %v1389 = vsel %vm1383, %v1386, %v1388
    %v1390 = vsel %vm1382, %v1369, %v1372
    %v1391 = vsel %vm1385, %v1378, 920167782
    %v1392 = vsel %vm1384, %v1375, %v1391
    %v1393 = vsel %vm1383, %v1390, %v1392
    %v1394 = vsel %vm1382, %v1372, %v1375
    %v1395 = vsel %vm1385, %v1381, 1326507024
    %v1396 = vsel %vm1384, %v1378, %v1395
    %v1397 = vsel %vm1383, %v1394, %v1396
    %v1398 = vshll.u32 %v1358, 8
    %v1399 = vmul.u32.u64.compose %v1398, %v1397
    %v1400 = vextract.low.u32 %v1399
    %v1401 = vextract.high.u32 %v1399
    %v1402 = vmul.u32.u64.compose %v1398, %v1393
    %v1403 = vextract.low.u32 %v1402
    %v1404 = vextract.high.u32 %v1402
    %v1405 = vmul.u32 %v1398, %v1389
    %v1406 = vadd.s32 %v1401, %v1403
    %vm1407 = vc.u32 %v1401, %v1403
    %v1408 = vadd.s32 %v1404, 1
    %v1409 = vsel %vm1407, %v1408, %v1404
    %v1410 = vadd.s32 %v1405, %v1409
    %v1411 = vadd.s32 %v1410, 536870912
    %v1412 = vshrl.u32 %v1411, 30
    %v1413 = vshll.u32 %v1412, 30
    %v1414 = vsub.s32 %v1410, %v1413
    %vm1415 = vcmp.lt.s32.totalorder %v1414, 0
    %v1416 = vsub.s32 0, %v1414
    %v1417 = vsel %vm1415, %v1416, %v1414
    %v1418 = vclz %v1417
    %v1419 = vsub.s32 %v1418, 2
    %vm1420 = vcmp.gt.s32.totalorder 0, %v1419
    %v1421 = vsel %vm1420, 0, %v1419
    %v1422 = vsub.s32 32, %v1421
    %v1423 = vshll.u32 %v1414, %v1421
    %v1424 = vshrl.u32 %v1406, %v1422
    %v1425 = vor.u32 %v1423, %v1424
    %v1426 = vsub.s32 4294967266, %v1421
    %v1427 = vadd.s32 %v1426, 127
    %v1428 = vshll.u32 %v1427, 23
    %v1429 = vor.u32 4788187, %v1428
    %v1430 = vand.u32 2147483647, %v1429
    %v1432 = vcvt.s32.f32 %v1425
    %v1433 = vmul.f32 %v1432, %v1430
    %v1434 = vxor.u32 %v1433, 2147483648
    %v1435 = vsel %vm1352, %v1434, %v1433
    %v1436 = vsub.s32 4, %v1412
    %v1437 = vsel %vm1352, %v1436, %v1412
    %v1438 = vsel %vm1351, %v133, %v1435
    %v1439 = vsel %vm1351, 0, %v1437
    %v1440 = vcosq.f32.pop %v1438
    %v1441 = vsinq.f32.pop %v1438
    %vm1442 = vweird.f32 %v133
    %v1443 = vadd.s32 %v1439, 3
    %v1444 = vand.u32 %v1443, 3
    %vm1445 = vcmp.lt.s32.totalorder %v1444, 2
    %vm1446 = vcmp.eq.s32.totalorder %v1444, 0
    %v1447 = vxor.u32 %v1441, 2147483648
    %v1448 = vsel %vm1446, %v1440, %v1447
    %vm1449 = vcmp.eq.s32.totalorder %v1444, 2
    %v1450 = vxor.u32 %v1440, 2147483648
    %v1451 = vsel %vm1449, %v1450, %v1441
    %v1452 = vsel %vm1445, %v1448, %v1451
    %v1453 = vsel %vm1442, nan, %v1452
    %v1454 = vand.u32 2147483647, %v220
    %vm1455 = vcmp.le.f32.partialorder %v1454, 0.7853982
    %vm1456 = vcmp.lt.s32.totalorder %v220, 0
    %v1457 = vand.u32 %v220, 2139095040
    %v1458 = vshrl.u32 %v1457, 23
    %v1459 = vsub.s32 %v1458, 127
    %v1460 = vand.u32 2147483647, %v220
    %v1461 = vand.u32 %v1460, 8388607
    %v1462 = vor.u32 %v1461, 8388608
    %v1463 = vsub.s32 0, %v1462
    %v1464 = vadd.s32 %v1459, 1
    %vm1465 = vcmp.gt.s32.totalorder %v1464, 0
    %v1466 = vsel %vm1465, %v1464, 0
    %v1467 = vshrl.u32 %v1466, 5
    %v1468 = vand.u32 %v1466, 31
    %v1469 = vsub.s32 32, %v1468
    %v1470 = vshrl.u32 683565275, %v1469
    %v1471 = vshll.u32 683565275, %v1468
    %v1472 = vshrl.u32 2475754826, %v1469
    %v1473 = vor.u32 %v1471, %v1472
    %v1474 = vshll.u32 2475754826, %v1468
    %v1475 = vshrl.u32 2131351028, %v1469
    %v1476 = vor.u32 %v1474, %v1475
    %v1477 = vshll.u32 2131351028, %v1468
    %v1478 = vshrl.u32 2102212464, %v1469
    %v1479 = vor.u32 %v1477, %v1478
    %v1480 = vshll.u32 2102212464, %v1468
    %v1481 = vshrl.u32 920167782, %v1469
    %v1482 = vor.u32 %v1480, %v1481
    %v1483 = vshll.u32 920167782, %v1468
    %v1484 = vshrl.u32 1326507024, %v1469
    %v1485 = vor.u32 %v1483, %v1484
    %vm1486 = vcmp.lt.s32.totalorder %v1467, 1
    %vm1487 = vcmp.lt.s32.totalorder %v1467, 2
    %vm1488 = vcmp.lt.s32.totalorder %v1467, 3
    %vm1489 = vcmp.lt.s32.totalorder %v1467, 4
    %v1490 = vsel %vm1486, %v1470, %v1473
    %v1491 = vsel %vm1489, %v1479, 2102212464
    %v1492 = vsel %vm1488, %v1476, %v1491
    %v1493 = vsel %vm1487, %v1490, %v1492
    %v1494 = vsel %vm1486, %v1473, %v1476
    %v1495 = vsel %vm1489, %v1482, 920167782
    %v1496 = vsel %vm1488, %v1479, %v1495
    %v1497 = vsel %vm1487, %v1494, %v1496
    %v1498 = vsel %vm1486, %v1476, %v1479
    %v1499 = vsel %vm1489, %v1485, 1326507024
    %v1500 = vsel %vm1488, %v1482, %v1499
    %v1501 = vsel %vm1487, %v1498, %v1500
    %v1502 = vshll.u32 %v1462, 8
    %v1503 = vmul.u32.u64.compose %v1502, %v1501
    %v1504 = vextract.low.u32 %v1503
    %v1505 = vextract.high.u32 %v1503
    %v1506 = vmul.u32.u64.compose %v1502, %v1497
    %v1507 = vextract.low.u32 %v1506
    %v1508 = vextract.high.u32 %v1506
    %v1509 = vmul.u32 %v1502, %v1493
    %v1510 = vadd.s32 %v1505, %v1507
    %vm1511 = vc.u32 %v1505, %v1507
    %v1512 = vadd.s32 %v1508, 1
    %v1513 = vsel %vm1511, %v1512, %v1508
    %v1514 = vadd.s32 %v1509, %v1513
    %v1515 = vadd.s32 %v1514, 536870912
    %v1516 = vshrl.u32 %v1515, 30
    %v1517 = vshll.u32 %v1516, 30
    %v1518 = vsub.s32 %v1514, %v1517
    %vm1519 = vcmp.lt.s32.totalorder %v1518, 0
    %v1520 = vsub.s32 0, %v1518
    %v1521 = vsel %vm1519, %v1520, %v1518
    %v1522 = vclz %v1521
    %v1523 = vsub.s32 %v1522, 2
    %vm1524 = vcmp.gt.s32.totalorder 0, %v1523
    %v1525 = vsel %vm1524, 0, %v1523
    %v1526 = vsub.s32 32, %v1525
    %v1527 = vshll.u32 %v1518, %v1525
    %v1528 = vshrl.u32 %v1510, %v1526
    %v1529 = vor.u32 %v1527, %v1528
    %v1530 = vsub.s32 4294967266, %v1525
    %v1531 = vadd.s32 %v1530, 127
    %v1532 = vshll.u32 %v1531, 23
    %v1533 = vor.u32 4788187, %v1532
    %v1534 = vand.u32 2147483647, %v1533
    %v1536 = vcvt.s32.f32 %v1529
    %v1537 = vmul.f32 %v1536, %v1534
    %v1538 = vxor.u32 %v1537, 2147483648
    %v1539 = vsel %vm1456, %v1538, %v1537
    %v1540 = vsub.s32 4, %v1516
    %v1541 = vsel %vm1456, %v1540, %v1516
    %v1542 = vsel %vm1455, %v220, %v1539
    %v1543 = vsel %vm1455, 0, %v1541
    %v1544 = vcosq.f32.pop %v1542
    %v1545 = vsinq.f32.pop %v1542
    %vm1546 = vweird.f32 %v220
    %v1547 = vadd.s32 %v1543, 3
    %v1548 = vand.u32 %v1547, 3
    %vm1549 = vcmp.lt.s32.totalorder %v1548, 2
    %vm1550 = vcmp.eq.s32.totalorder %v1548, 0
    %v1551 = vxor.u32 %v1545, 2147483648
    %v1552 = vsel %vm1550, %v1544, %v1551
    %vm1553 = vcmp.eq.s32.totalorder %v1548, 2
    %v1554 = vxor.u32 %v1544, 2147483648
    %v1555 = vsel %vm1553, %v1554, %v1545
    %v1556 = vsel %vm1549, %v1552, %v1555
    %v1557 = vsel %vm1546, nan, %v1556
    %v1558 = vand.u32 2147483647, %v222
    %vm1559 = vcmp.le.f32.partialorder %v1558, 0.7853982
    %vm1560 = vcmp.lt.s32.totalorder %v222, 0
    %v1561 = vand.u32 %v222, 2139095040
    %v1562 = vshrl.u32 %v1561, 23
    %v1563 = vsub.s32 %v1562, 127
    %v1564 = vand.u32 2147483647, %v222
    %v1565 = vand.u32 %v1564, 8388607
    %v1566 = vor.u32 %v1565, 8388608
    %v1567 = vsub.s32 0, %v1566
    %v1568 = vadd.s32 %v1563, 1
    %vm1569 = vcmp.gt.s32.totalorder %v1568, 0
    %v1570 = vsel %vm1569, %v1568, 0
    %v1571 = vshrl.u32 %v1570, 5
    %v1572 = vand.u32 %v1570, 31
    %v1573 = vsub.s32 32, %v1572
    %v1574 = vshrl.u32 683565275, %v1573
    %v1575 = vshll.u32 683565275, %v1572
    %v1576 = vshrl.u32 2475754826, %v1573
    %v1577 = vor.u32 %v1575, %v1576
    %v1578 = vshll.u32 2475754826, %v1572
    %v1579 = vshrl.u32 2131351028, %v1573
    %v1580 = vor.u32 %v1578, %v1579
    %v1581 = vshll.u32 2131351028, %v1572
    %v1582 = vshrl.u32 2102212464, %v1573
    %v1583 = vor.u32 %v1581, %v1582
    %v1584 = vshll.u32 2102212464, %v1572
    %v1585 = vshrl.u32 920167782, %v1573
    %v1586 = vor.u32 %v1584, %v1585
    %v1587 = vshll.u32 920167782, %v1572
    %v1588 = vshrl.u32 1326507024, %v1573
    %v1589 = vor.u32 %v1587, %v1588
    %vm1590 = vcmp.lt.s32.totalorder %v1571, 1
    %vm1591 = vcmp.lt.s32.totalorder %v1571, 2
    %vm1592 = vcmp.lt.s32.totalorder %v1571, 3
    %vm1593 = vcmp.lt.s32.totalorder %v1571, 4
    %v1594 = vsel %vm1590, %v1574, %v1577
    %v1595 = vsel %vm1593, %v1583, 2102212464
    %v1596 = vsel %vm1592, %v1580, %v1595
    %v1597 = vsel %vm1591, %v1594, %v1596
    %v1598 = vsel %vm1590, %v1577, %v1580
    %v1599 = vsel %vm1593, %v1586, 920167782
    %v1600 = vsel %vm1592, %v1583, %v1599
    %v1601 = vsel %vm1591, %v1598, %v1600
    %v1602 = vsel %vm1590, %v1580, %v1583
    %v1603 = vsel %vm1593, %v1589, 1326507024
    %v1604 = vsel %vm1592, %v1586, %v1603
    %v1605 = vsel %vm1591, %v1602, %v1604
    %v1606 = vshll.u32 %v1566, 8
    %v1607 = vmul.u32.u64.compose %v1606, %v1605
    %v1608 = vextract.low.u32 %v1607
    %v1609 = vextract.high.u32 %v1607
    %v1610 = vmul.u32.u64.compose %v1606, %v1601
    %v1611 = vextract.low.u32 %v1610
    %v1612 = vextract.high.u32 %v1610
    %v1613 = vmul.u32 %v1606, %v1597
    %v1614 = vadd.s32 %v1609, %v1611
    %vm1615 = vc.u32 %v1609, %v1611
    %v1616 = vadd.s32 %v1612, 1
    %v1617 = vsel %vm1615, %v1616, %v1612
    %v1618 = vadd.s32 %v1613, %v1617
    %v1619 = vadd.s32 %v1618, 536870912
    %v1620 = vshrl.u32 %v1619, 30
    %v1621 = vshll.u32 %v1620, 30
    %v1622 = vsub.s32 %v1618, %v1621
    %vm1623 = vcmp.lt.s32.totalorder %v1622, 0
    %v1624 = vsub.s32 0, %v1622
    %v1625 = vsel %vm1623, %v1624, %v1622
    %v1626 = vclz %v1625
    %v1627 = vsub.s32 %v1626, 2
    %vm1628 = vcmp.gt.s32.totalorder 0, %v1627
    %v1629 = vsel %vm1628, 0, %v1627
    %v1630 = vsub.s32 32, %v1629
    %v1631 = vshll.u32 %v1622, %v1629
    %v1632 = vshrl.u32 %v1614, %v1630
    %v1633 = vor.u32 %v1631, %v1632
    %v1634 = vsub.s32 4294967266, %v1629
    %v1635 = vadd.s32 %v1634, 127
    %v1636 = vshll.u32 %v1635, 23
    %v1637 = vor.u32 4788187, %v1636
    %v1638 = vand.u32 2147483647, %v1637
    %v1640 = vcvt.s32.f32 %v1633
    %v1641 = vmul.f32 %v1640, %v1638
    %v1642 = vxor.u32 %v1641, 2147483648
    %v1643 = vsel %vm1560, %v1642, %v1641
    %v1644 = vsub.s32 4, %v1620
    %v1645 = vsel %vm1560, %v1644, %v1620
    %v1646 = vsel %vm1559, %v222, %v1643
    %v1647 = vsel %vm1559, 0, %v1645
    %v1648 = vcosq.f32.pop %v1646
    %v1649 = vsinq.f32.pop %v1646
    %vm1650 = vweird.f32 %v222
    %v1651 = vadd.s32 %v1647, 3
    %v1652 = vand.u32 %v1651, 3
    %vm1653 = vcmp.lt.s32.totalorder %v1652, 2
    %vm1654 = vcmp.eq.s32.totalorder %v1652, 0
    %v1655 = vxor.u32 %v1649, 2147483648
    %v1656 = vsel %vm1654, %v1648, %v1655
    %vm1657 = vcmp.eq.s32.totalorder %v1652, 2
    %v1658 = vxor.u32 %v1648, 2147483648
    %v1659 = vsel %vm1657, %v1658, %v1649
    %v1660 = vsel %vm1653, %v1656, %v1659
    %v1661 = vsel %vm1650, nan, %v1660
    %v1662 = vand.u32 2147483647, %v309
    %vm1663 = vcmp.le.f32.partialorder %v1662, 0.7853982
    %vm1664 = vcmp.lt.s32.totalorder %v309, 0
    %v1665 = vand.u32 %v309, 2139095040
    %v1666 = vshrl.u32 %v1665, 23
    %v1667 = vsub.s32 %v1666, 127
    %v1668 = vand.u32 2147483647, %v309
    %v1669 = vand.u32 %v1668, 8388607
    %v1670 = vor.u32 %v1669, 8388608
    %v1671 = vsub.s32 0, %v1670
    %v1672 = vadd.s32 %v1667, 1
    %vm1673 = vcmp.gt.s32.totalorder %v1672, 0
    %v1674 = vsel %vm1673, %v1672, 0
    %v1675 = vshrl.u32 %v1674, 5
    %v1676 = vand.u32 %v1674, 31
    %v1677 = vsub.s32 32, %v1676
    %v1678 = vshrl.u32 683565275, %v1677
    %v1679 = vshll.u32 683565275, %v1676
    %v1680 = vshrl.u32 2475754826, %v1677
    %v1681 = vor.u32 %v1679, %v1680
    %v1682 = vshll.u32 2475754826, %v1676
    %v1683 = vshrl.u32 2131351028, %v1677
    %v1684 = vor.u32 %v1682, %v1683
    %v1685 = vshll.u32 2131351028, %v1676
    %v1686 = vshrl.u32 2102212464, %v1677
    %v1687 = vor.u32 %v1685, %v1686
    %v1688 = vshll.u32 2102212464, %v1676
    %v1689 = vshrl.u32 920167782, %v1677
    %v1690 = vor.u32 %v1688, %v1689
    %v1691 = vshll.u32 920167782, %v1676
    %v1692 = vshrl.u32 1326507024, %v1677
    %v1693 = vor.u32 %v1691, %v1692
    %vm1694 = vcmp.lt.s32.totalorder %v1675, 1
    %vm1695 = vcmp.lt.s32.totalorder %v1675, 2
    %vm1696 = vcmp.lt.s32.totalorder %v1675, 3
    %vm1697 = vcmp.lt.s32.totalorder %v1675, 4
    %v1698 = vsel %vm1694, %v1678, %v1681
    %v1699 = vsel %vm1697, %v1687, 2102212464
    %v1700 = vsel %vm1696, %v1684, %v1699
    %v1701 = vsel %vm1695, %v1698, %v1700
    %v1702 = vsel %vm1694, %v1681, %v1684
    %v1703 = vsel %vm1697, %v1690, 920167782
    %v1704 = vsel %vm1696, %v1687, %v1703
    %v1705 = vsel %vm1695, %v1702, %v1704
    %v1706 = vsel %vm1694, %v1684, %v1687
    %v1707 = vsel %vm1697, %v1693, 1326507024
    %v1708 = vsel %vm1696, %v1690, %v1707
    %v1709 = vsel %vm1695, %v1706, %v1708
    %v1710 = vshll.u32 %v1670, 8
    %v1711 = vmul.u32.u64.compose %v1710, %v1709
    %v1712 = vextract.low.u32 %v1711
    %v1713 = vextract.high.u32 %v1711
    %v1714 = vmul.u32.u64.compose %v1710, %v1705
    %v1715 = vextract.low.u32 %v1714
    %v1716 = vextract.high.u32 %v1714
    %v1717 = vmul.u32 %v1710, %v1701
    %v1718 = vadd.s32 %v1713, %v1715
    %vm1719 = vc.u32 %v1713, %v1715
    %v1720 = vadd.s32 %v1716, 1
    %v1721 = vsel %vm1719, %v1720, %v1716
    %v1722 = vadd.s32 %v1717, %v1721
    %v1723 = vadd.s32 %v1722, 536870912
    %v1724 = vshrl.u32 %v1723, 30
    %v1725 = vshll.u32 %v1724, 30
    %v1726 = vsub.s32 %v1722, %v1725
    %vm1727 = vcmp.lt.s32.totalorder %v1726, 0
    %v1728 = vsub.s32 0, %v1726
    %v1729 = vsel %vm1727, %v1728, %v1726
    %v1730 = vclz %v1729
    %v1731 = vsub.s32 %v1730, 2
    %vm1732 = vcmp.gt.s32.totalorder 0, %v1731
    %v1733 = vsel %vm1732, 0, %v1731
    %v1734 = vsub.s32 32, %v1733
    %v1735 = vshll.u32 %v1726, %v1733
    %v1736 = vshrl.u32 %v1718, %v1734
    %v1737 = vor.u32 %v1735, %v1736
    %v1738 = vsub.s32 4294967266, %v1733
    %v1739 = vadd.s32 %v1738, 127
    %v1740 = vshll.u32 %v1739, 23
    %v1741 = vor.u32 4788187, %v1740
    %v1742 = vand.u32 2147483647, %v1741
    %v1744 = vcvt.s32.f32 %v1737
    %v1745 = vmul.f32 %v1744, %v1742
    %v1746 = vxor.u32 %v1745, 2147483648
    %v1747 = vsel %vm1664, %v1746, %v1745
    %v1748 = vsub.s32 4, %v1724
    %v1749 = vsel %vm1664, %v1748, %v1724
    %v1750 = vsel %vm1663, %v309, %v1747
    %v1751 = vsel %vm1663, 0, %v1749
    %v1752 = vcosq.f32.pop %v1750
    %v1753 = vsinq.f32.pop %v1750
    %vm1754 = vweird.f32 %v309
    %v1755 = vadd.s32 %v1751, 3
    %v1756 = vand.u32 %v1755, 3
    %vm1757 = vcmp.lt.s32.totalorder %v1756, 2
    %vm1758 = vcmp.eq.s32.totalorder %v1756, 0
    %v1759 = vxor.u32 %v1753, 2147483648
    %v1760 = vsel %vm1758, %v1752, %v1759
    %vm1761 = vcmp.eq.s32.totalorder %v1756, 2
    %v1762 = vxor.u32 %v1752, 2147483648
    %v1763 = vsel %vm1761, %v1762, %v1753
    %v1764 = vsel %vm1757, %v1760, %v1763
    %v1765 = vsel %vm1754, nan, %v1764
    %v1766 = vand.u32 2147483647, %v311
    %vm1767 = vcmp.le.f32.partialorder %v1766, 0.7853982
    %vm1768 = vcmp.lt.s32.totalorder %v311, 0
    %v1769 = vand.u32 %v311, 2139095040
    %v1770 = vshrl.u32 %v1769, 23
    %v1771 = vsub.s32 %v1770, 127
    %v1772 = vand.u32 2147483647, %v311
    %v1773 = vand.u32 %v1772, 8388607
    %v1774 = vor.u32 %v1773, 8388608
    %v1775 = vsub.s32 0, %v1774
    %v1776 = vadd.s32 %v1771, 1
    %vm1777 = vcmp.gt.s32.totalorder %v1776, 0
    %v1778 = vsel %vm1777, %v1776, 0
    %v1779 = vshrl.u32 %v1778, 5
    %v1780 = vand.u32 %v1778, 31
    %v1781 = vsub.s32 32, %v1780
    %v1782 = vshrl.u32 683565275, %v1781
    %v1783 = vshll.u32 683565275, %v1780
    %v1784 = vshrl.u32 2475754826, %v1781
    %v1785 = vor.u32 %v1783, %v1784
    %v1786 = vshll.u32 2475754826, %v1780
    %v1787 = vshrl.u32 2131351028, %v1781
    %v1788 = vor.u32 %v1786, %v1787
    %v1789 = vshll.u32 2131351028, %v1780
    %v1790 = vshrl.u32 2102212464, %v1781
    %v1791 = vor.u32 %v1789, %v1790
    %v1792 = vshll.u32 2102212464, %v1780
    %v1793 = vshrl.u32 920167782, %v1781
    %v1794 = vor.u32 %v1792, %v1793
    %v1795 = vshll.u32 920167782, %v1780
    %v1796 = vshrl.u32 1326507024, %v1781
    %v1797 = vor.u32 %v1795, %v1796
    %vm1798 = vcmp.lt.s32.totalorder %v1779, 1
    %vm1799 = vcmp.lt.s32.totalorder %v1779, 2
    %vm1800 = vcmp.lt.s32.totalorder %v1779, 3
    %vm1801 = vcmp.lt.s32.totalorder %v1779, 4
    %v1802 = vsel %vm1798, %v1782, %v1785
    %v1803 = vsel %vm1801, %v1791, 2102212464
    %v1804 = vsel %vm1800, %v1788, %v1803
    %v1805 = vsel %vm1799, %v1802, %v1804
    %v1806 = vsel %vm1798, %v1785, %v1788
    %v1807 = vsel %vm1801, %v1794, 920167782
    %v1808 = vsel %vm1800, %v1791, %v1807
    %v1809 = vsel %vm1799, %v1806, %v1808
    %v1810 = vsel %vm1798, %v1788, %v1791
    %v1811 = vsel %vm1801, %v1797, 1326507024
    %v1812 = vsel %vm1800, %v1794, %v1811
    %v1813 = vsel %vm1799, %v1810, %v1812
    %v1814 = vshll.u32 %v1774, 8
    %v1815 = vmul.u32.u64.compose %v1814, %v1813
    %v1816 = vextract.low.u32 %v1815
    %v1817 = vextract.high.u32 %v1815
    %v1818 = vmul.u32.u64.compose %v1814, %v1809
    %v1819 = vextract.low.u32 %v1818
    %v1820 = vextract.high.u32 %v1818
    %v1821 = vmul.u32 %v1814, %v1805
    %v1822 = vadd.s32 %v1817, %v1819
    %vm1823 = vc.u32 %v1817, %v1819
    %v1824 = vadd.s32 %v1820, 1
    %v1825 = vsel %vm1823, %v1824, %v1820
    %v1826 = vadd.s32 %v1821, %v1825
    %v1827 = vadd.s32 %v1826, 536870912
    %v1828 = vshrl.u32 %v1827, 30
    %v1829 = vshll.u32 %v1828, 30
    %v1830 = vsub.s32 %v1826, %v1829
    %vm1831 = vcmp.lt.s32.totalorder %v1830, 0
    %v1832 = vsub.s32 0, %v1830
    %v1833 = vsel %vm1831, %v1832, %v1830
    %v1834 = vclz %v1833
    %v1835 = vsub.s32 %v1834, 2
    %vm1836 = vcmp.gt.s32.totalorder 0, %v1835
    %v1837 = vsel %vm1836, 0, %v1835
    %v1838 = vsub.s32 32, %v1837
    %v1839 = vshll.u32 %v1830, %v1837
    %v1840 = vshrl.u32 %v1822, %v1838
    %v1841 = vor.u32 %v1839, %v1840
    %v1842 = vsub.s32 4294967266, %v1837
    %v1843 = vadd.s32 %v1842, 127
    %v1844 = vshll.u32 %v1843, 23
    %v1845 = vor.u32 4788187, %v1844
    %v1846 = vand.u32 2147483647, %v1845
    %v1848 = vcvt.s32.f32 %v1841
    %v1849 = vmul.f32 %v1848, %v1846
    %v1850 = vxor.u32 %v1849, 2147483648
    %v1851 = vsel %vm1768, %v1850, %v1849
    %v1852 = vsub.s32 4, %v1828
    %v1853 = vsel %vm1768, %v1852, %v1828
    %v1854 = vsel %vm1767, %v311, %v1851
    %v1855 = vsel %vm1767, 0, %v1853
    %v1856 = vcosq.f32.pop %v1854
    %v1857 = vsinq.f32.pop %v1854
    %vm1858 = vweird.f32 %v311
    %v1859 = vadd.s32 %v1855, 3
    %v1860 = vand.u32 %v1859, 3
    %vm1861 = vcmp.lt.s32.totalorder %v1860, 2
    %vm1862 = vcmp.eq.s32.totalorder %v1860, 0
    %v1863 = vxor.u32 %v1857, 2147483648
    %v1864 = vsel %vm1862, %v1856, %v1863
    %vm1865 = vcmp.eq.s32.totalorder %v1860, 2
    %v1866 = vxor.u32 %v1856, 2147483648
    %v1867 = vsel %vm1865, %v1866, %v1857
    %v1868 = vsel %vm1861, %v1864, %v1867
    %v1869 = vsel %vm1858, nan, %v1868
    %v1870 = vand.u32 2147483647, %v398
    %vm1871 = vcmp.le.f32.partialorder %v1870, 0.7853982
    %vm1872 = vcmp.lt.s32.totalorder %v398, 0
    %v1873 = vand.u32 %v398, 2139095040
    %v1874 = vshrl.u32 %v1873, 23
    %v1875 = vsub.s32 %v1874, 127
    %v1876 = vand.u32 2147483647, %v398
    %v1877 = vand.u32 %v1876, 8388607
    %v1878 = vor.u32 %v1877, 8388608
    %v1879 = vsub.s32 0, %v1878
    %v1880 = vadd.s32 %v1875, 1
    %vm1881 = vcmp.gt.s32.totalorder %v1880, 0
    %v1882 = vsel %vm1881, %v1880, 0
    %v1883 = vshrl.u32 %v1882, 5
    %v1884 = vand.u32 %v1882, 31
    %v1885 = vsub.s32 32, %v1884
    %v1886 = vshrl.u32 683565275, %v1885
    %v1887 = vshll.u32 683565275, %v1884
    %v1888 = vshrl.u32 2475754826, %v1885
    %v1889 = vor.u32 %v1887, %v1888
    %v1890 = vshll.u32 2475754826, %v1884
    %v1891 = vshrl.u32 2131351028, %v1885
    %v1892 = vor.u32 %v1890, %v1891
    %v1893 = vshll.u32 2131351028, %v1884
    %v1894 = vshrl.u32 2102212464, %v1885
    %v1895 = vor.u32 %v1893, %v1894
    %v1896 = vshll.u32 2102212464, %v1884
    %v1897 = vshrl.u32 920167782, %v1885
    %v1898 = vor.u32 %v1896, %v1897
    %v1899 = vshll.u32 920167782, %v1884
    %v1900 = vshrl.u32 1326507024, %v1885
    %v1901 = vor.u32 %v1899, %v1900
    %vm1902 = vcmp.lt.s32.totalorder %v1883, 1
    %vm1903 = vcmp.lt.s32.totalorder %v1883, 2
    %vm1904 = vcmp.lt.s32.totalorder %v1883, 3
    %vm1905 = vcmp.lt.s32.totalorder %v1883, 4
    %v1906 = vsel %vm1902, %v1886, %v1889
    %v1907 = vsel %vm1905, %v1895, 2102212464
    %v1908 = vsel %vm1904, %v1892, %v1907
    %v1909 = vsel %vm1903, %v1906, %v1908
    %v1910 = vsel %vm1902, %v1889, %v1892
    %v1911 = vsel %vm1905, %v1898, 920167782
    %v1912 = vsel %vm1904, %v1895, %v1911
    %v1913 = vsel %vm1903, %v1910, %v1912
    %v1914 = vsel %vm1902, %v1892, %v1895
    %v1915 = vsel %vm1905, %v1901, 1326507024
    %v1916 = vsel %vm1904, %v1898, %v1915
    %v1917 = vsel %vm1903, %v1914, %v1916
    %v1918 = vshll.u32 %v1878, 8
    %v1919 = vmul.u32.u64.compose %v1918, %v1917
    %v1920 = vextract.low.u32 %v1919
    %v1921 = vextract.high.u32 %v1919
    %v1922 = vmul.u32.u64.compose %v1918, %v1913
    %v1923 = vextract.low.u32 %v1922
    %v1924 = vextract.high.u32 %v1922
    %v1925 = vmul.u32 %v1918, %v1909
    %v1926 = vadd.s32 %v1921, %v1923
    %vm1927 = vc.u32 %v1921, %v1923
    %v1928 = vadd.s32 %v1924, 1
    %v1929 = vsel %vm1927, %v1928, %v1924
    %v1930 = vadd.s32 %v1925, %v1929
    %v1931 = vadd.s32 %v1930, 536870912
    %v1932 = vshrl.u32 %v1931, 30
    %v1933 = vshll.u32 %v1932, 30
    %v1934 = vsub.s32 %v1930, %v1933
    %vm1935 = vcmp.lt.s32.totalorder %v1934, 0
    %v1936 = vsub.s32 0, %v1934
    %v1937 = vsel %vm1935, %v1936, %v1934
    %v1938 = vclz %v1937
    %v1939 = vsub.s32 %v1938, 2
    %vm1940 = vcmp.gt.s32.totalorder 0, %v1939
    %v1941 = vsel %vm1940, 0, %v1939
    %v1942 = vsub.s32 32, %v1941
    %v1943 = vshll.u32 %v1934, %v1941
    %v1944 = vshrl.u32 %v1926, %v1942
    %v1945 = vor.u32 %v1943, %v1944
    %v1946 = vsub.s32 4294967266, %v1941
    %v1947 = vadd.s32 %v1946, 127
    %v1948 = vshll.u32 %v1947, 23
    %v1949 = vor.u32 4788187, %v1948
    %v1950 = vand.u32 2147483647, %v1949
    %v1952 = vcvt.s32.f32 %v1945
    %v1953 = vmul.f32 %v1952, %v1950
    %v1954 = vxor.u32 %v1953, 2147483648
    %v1955 = vsel %vm1872, %v1954, %v1953
    %v1956 = vsub.s32 4, %v1932
    %v1957 = vsel %vm1872, %v1956, %v1932
    %v1958 = vsel %vm1871, %v398, %v1955
    %v1959 = vsel %vm1871, 0, %v1957
    %v1960 = vcosq.f32.pop %v1958
    %v1961 = vsinq.f32.pop %v1958
    %vm1962 = vweird.f32 %v398
    %v1963 = vadd.s32 %v1959, 3
    %v1964 = vand.u32 %v1963, 3
    %vm1965 = vcmp.lt.s32.totalorder %v1964, 2
    %vm1966 = vcmp.eq.s32.totalorder %v1964, 0
    %v1967 = vxor.u32 %v1961, 2147483648
    %v1968 = vsel %vm1966, %v1960, %v1967
    %vm1969 = vcmp.eq.s32.totalorder %v1964, 2
    %v1970 = vxor.u32 %v1960, 2147483648
    %v1971 = vsel %vm1969, %v1970, %v1961
    %v1972 = vsel %vm1965, %v1968, %v1971
    %v1973 = vsel %vm1962, nan, %v1972
    %v1974 = vand.u32 2147483647, %v400
    %vm1975 = vcmp.le.f32.partialorder %v1974, 0.7853982
    %vm1976 = vcmp.lt.s32.totalorder %v400, 0
    %v1977 = vand.u32 %v400, 2139095040
    %v1978 = vshrl.u32 %v1977, 23
    %v1979 = vsub.s32 %v1978, 127
    %v1980 = vand.u32 2147483647, %v400
    %v1981 = vand.u32 %v1980, 8388607
    %v1982 = vor.u32 %v1981, 8388608
    %v1983 = vsub.s32 0, %v1982
    %v1984 = vadd.s32 %v1979, 1
    %vm1985 = vcmp.gt.s32.totalorder %v1984, 0
    %v1986 = vsel %vm1985, %v1984, 0
    %v1987 = vshrl.u32 %v1986, 5
    %v1988 = vand.u32 %v1986, 31
    %v1989 = vsub.s32 32, %v1988
    %v1990 = vshrl.u32 683565275, %v1989
    %v1991 = vshll.u32 683565275, %v1988
    %v1992 = vshrl.u32 2475754826, %v1989
    %v1993 = vor.u32 %v1991, %v1992
    %v1994 = vshll.u32 2475754826, %v1988
    %v1995 = vshrl.u32 2131351028, %v1989
    %v1996 = vor.u32 %v1994, %v1995
    %v1997 = vshll.u32 2131351028, %v1988
    %v1998 = vshrl.u32 2102212464, %v1989
    %v1999 = vor.u32 %v1997, %v1998
    %v2000 = vshll.u32 2102212464, %v1988
    %v2001 = vshrl.u32 920167782, %v1989
    %v2002 = vor.u32 %v2000, %v2001
    %v2003 = vshll.u32 920167782, %v1988
    %v2004 = vshrl.u32 1326507024, %v1989
    %v2005 = vor.u32 %v2003, %v2004
    %vm2006 = vcmp.lt.s32.totalorder %v1987, 1
    %vm2007 = vcmp.lt.s32.totalorder %v1987, 2
    %vm2008 = vcmp.lt.s32.totalorder %v1987, 3
    %vm2009 = vcmp.lt.s32.totalorder %v1987, 4
    %v2010 = vsel %vm2006, %v1990, %v1993
    %v2011 = vsel %vm2009, %v1999, 2102212464
    %v2012 = vsel %vm2008, %v1996, %v2011
    %v2013 = vsel %vm2007, %v2010, %v2012
    %v2014 = vsel %vm2006, %v1993, %v1996
    %v2015 = vsel %vm2009, %v2002, 920167782
    %v2016 = vsel %vm2008, %v1999, %v2015
    %v2017 = vsel %vm2007, %v2014, %v2016
    %v2018 = vsel %vm2006, %v1996, %v1999
    %v2019 = vsel %vm2009, %v2005, 1326507024
    %v2020 = vsel %vm2008, %v2002, %v2019
    %v2021 = vsel %vm2007, %v2018, %v2020
    %v2022 = vshll.u32 %v1982, 8
    %v2023 = vmul.u32.u64.compose %v2022, %v2021
    %v2024 = vextract.low.u32 %v2023
    %v2025 = vextract.high.u32 %v2023
    %v2026 = vmul.u32.u64.compose %v2022, %v2017
    %v2027 = vextract.low.u32 %v2026
    %v2028 = vextract.high.u32 %v2026
    %v2029 = vmul.u32 %v2022, %v2013
    %v2030 = vadd.s32 %v2025, %v2027
    %vm2031 = vc.u32 %v2025, %v2027
    %v2032 = vadd.s32 %v2028, 1
    %v2033 = vsel %vm2031, %v2032, %v2028
    %v2034 = vadd.s32 %v2029, %v2033
    %v2035 = vadd.s32 %v2034, 536870912
    %v2036 = vshrl.u32 %v2035, 30
    %v2037 = vshll.u32 %v2036, 30
    %v2038 = vsub.s32 %v2034, %v2037
    %vm2039 = vcmp.lt.s32.totalorder %v2038, 0
    %v2040 = vsub.s32 0, %v2038
    %v2041 = vsel %vm2039, %v2040, %v2038
    %v2042 = vclz %v2041
    %v2043 = vsub.s32 %v2042, 2
    %vm2044 = vcmp.gt.s32.totalorder 0, %v2043
    %v2045 = vsel %vm2044, 0, %v2043
    %v2046 = vsub.s32 32, %v2045
    %v2047 = vshll.u32 %v2038, %v2045
    %v2048 = vshrl.u32 %v2030, %v2046
    %v2049 = vor.u32 %v2047, %v2048
    %v2050 = vsub.s32 4294967266, %v2045
    %v2051 = vadd.s32 %v2050, 127
    %v2052 = vshll.u32 %v2051, 23
    %v2053 = vor.u32 4788187, %v2052
    %v2054 = vand.u32 2147483647, %v2053
    %v2056 = vcvt.s32.f32 %v2049
    %v2057 = vmul.f32 %v2056, %v2054
    %v2058 = vxor.u32 %v2057, 2147483648
    %v2059 = vsel %vm1976, %v2058, %v2057
    %v2060 = vsub.s32 4, %v2036
    %v2061 = vsel %vm1976, %v2060, %v2036
    %v2062 = vsel %vm1975, %v400, %v2059
    %v2063 = vsel %vm1975, 0, %v2061
    %v2064 = vcosq.f32.pop %v2062
    %v2065 = vsinq.f32.pop %v2062
    %vm2066 = vweird.f32 %v400
    %v2067 = vadd.s32 %v2063, 3
    %v2068 = vand.u32 %v2067, 3
    %vm2069 = vcmp.lt.s32.totalorder %v2068, 2
    %vm2070 = vcmp.eq.s32.totalorder %v2068, 0
    %v2071 = vxor.u32 %v2065, 2147483648
    %v2072 = vsel %vm2070, %v2064, %v2071
    %vm2073 = vcmp.eq.s32.totalorder %v2068, 2
    %v2074 = vxor.u32 %v2064, 2147483648
    %v2075 = vsel %vm2073, %v2074, %v2065
    %v2076 = vsel %vm2069, %v2072, %v2075
    %v2077 = vsel %vm2066, nan, %v2076
    %v2078 = vand.u32 2147483647, %v137
    %vm2079 = vcmp.le.f32.partialorder %v2078, 0.7853982
    %vm2080 = vcmp.lt.s32.totalorder %v137, 0
    %v2081 = vand.u32 %v137, 2139095040
    %v2082 = vshrl.u32 %v2081, 23
    %v2083 = vsub.s32 %v2082, 127
    %v2084 = vand.u32 2147483647, %v137
    %v2085 = vand.u32 %v2084, 8388607
    %v2086 = vor.u32 %v2085, 8388608
    %v2087 = vsub.s32 0, %v2086
    %v2088 = vadd.s32 %v2083, 1
    %vm2089 = vcmp.gt.s32.totalorder %v2088, 0
    %v2090 = vsel %vm2089, %v2088, 0
    %v2091 = vshrl.u32 %v2090, 5
    %v2092 = vand.u32 %v2090, 31
    %v2093 = vsub.s32 32, %v2092
    %v2094 = vshrl.u32 683565275, %v2093
    %v2095 = vshll.u32 683565275, %v2092
    %v2096 = vshrl.u32 2475754826, %v2093
    %v2097 = vor.u32 %v2095, %v2096
    %v2098 = vshll.u32 2475754826, %v2092
    %v2099 = vshrl.u32 2131351028, %v2093
    %v2100 = vor.u32 %v2098, %v2099
    %v2101 = vshll.u32 2131351028, %v2092
    %v2102 = vshrl.u32 2102212464, %v2093
    %v2103 = vor.u32 %v2101, %v2102
    %v2104 = vshll.u32 2102212464, %v2092
    %v2105 = vshrl.u32 920167782, %v2093
    %v2106 = vor.u32 %v2104, %v2105
    %v2107 = vshll.u32 920167782, %v2092
    %v2108 = vshrl.u32 1326507024, %v2093
    %v2109 = vor.u32 %v2107, %v2108
    %vm2110 = vcmp.lt.s32.totalorder %v2091, 1
    %vm2111 = vcmp.lt.s32.totalorder %v2091, 2
    %vm2112 = vcmp.lt.s32.totalorder %v2091, 3
    %vm2113 = vcmp.lt.s32.totalorder %v2091, 4
    %v2114 = vsel %vm2110, %v2094, %v2097
    %v2115 = vsel %vm2113, %v2103, 2102212464
    %v2116 = vsel %vm2112, %v2100, %v2115
    %v2117 = vsel %vm2111, %v2114, %v2116
    %v2118 = vsel %vm2110, %v2097, %v2100
    %v2119 = vsel %vm2113, %v2106, 920167782
    %v2120 = vsel %vm2112, %v2103, %v2119
    %v2121 = vsel %vm2111, %v2118, %v2120
    %v2122 = vsel %vm2110, %v2100, %v2103
    %v2123 = vsel %vm2113, %v2109, 1326507024
    %v2124 = vsel %vm2112, %v2106, %v2123
    %v2125 = vsel %vm2111, %v2122, %v2124
    %v2126 = vshll.u32 %v2086, 8
    %v2127 = vmul.u32.u64.compose %v2126, %v2125
    %v2128 = vextract.low.u32 %v2127
    %v2129 = vextract.high.u32 %v2127
    %v2130 = vmul.u32.u64.compose %v2126, %v2121
    %v2131 = vextract.low.u32 %v2130
    %v2132 = vextract.high.u32 %v2130
    %v2133 = vmul.u32 %v2126, %v2117
    %v2134 = vadd.s32 %v2129, %v2131
    %vm2135 = vc.u32 %v2129, %v2131
    %v2136 = vadd.s32 %v2132, 1
    %v2137 = vsel %vm2135, %v2136, %v2132
    %v2138 = vadd.s32 %v2133, %v2137
    %v2139 = vadd.s32 %v2138, 536870912
    %v2140 = vshrl.u32 %v2139, 30
    %v2141 = vshll.u32 %v2140, 30
    %v2142 = vsub.s32 %v2138, %v2141
    %vm2143 = vcmp.lt.s32.totalorder %v2142, 0
    %v2144 = vsub.s32 0, %v2142
    %v2145 = vsel %vm2143, %v2144, %v2142
    %v2146 = vclz %v2145
    %v2147 = vsub.s32 %v2146, 2
    %vm2148 = vcmp.gt.s32.totalorder 0, %v2147
    %v2149 = vsel %vm2148, 0, %v2147
    %v2150 = vsub.s32 32, %v2149
    %v2151 = vshll.u32 %v2142, %v2149
    %v2152 = vshrl.u32 %v2134, %v2150
    %v2153 = vor.u32 %v2151, %v2152
    %v2154 = vsub.s32 4294967266, %v2149
    %v2155 = vadd.s32 %v2154, 127
    %v2156 = vshll.u32 %v2155, 23
    %v2157 = vor.u32 4788187, %v2156
    %v2158 = vand.u32 2147483647, %v2157
    %v2160 = vcvt.s32.f32 %v2153
    %v2161 = vmul.f32 %v2160, %v2158
    %v2162 = vxor.u32 %v2161, 2147483648
    %v2163 = vsel %vm2080, %v2162, %v2161
    %v2164 = vsub.s32 4, %v2140
    %v2165 = vsel %vm2080, %v2164, %v2140
    %v2166 = vsel %vm2079, %v137, %v2163
    %v2167 = vsel %vm2079, 0, %v2165
    %v2168 = vcosq.f32.pop %v2166
    %v2169 = vsinq.f32.pop %v2166
    %vm2170 = vweird.f32 %v137
    %v2171 = vadd.s32 %v2167, 3
    %v2172 = vand.u32 %v2171, 3
    %vm2173 = vcmp.lt.s32.totalorder %v2172, 2
    %vm2174 = vcmp.eq.s32.totalorder %v2172, 0
    %v2175 = vxor.u32 %v2169, 2147483648
    %v2176 = vsel %vm2174, %v2168, %v2175
    %vm2177 = vcmp.eq.s32.totalorder %v2172, 2
    %v2178 = vxor.u32 %v2168, 2147483648
    %v2179 = vsel %vm2177, %v2178, %v2169
    %v2180 = vsel %vm2173, %v2176, %v2179
    %v2181 = vsel %vm2170, nan, %v2180
    %v2182 = vand.u32 2147483647, %v139
    %vm2183 = vcmp.le.f32.partialorder %v2182, 0.7853982
    %vm2184 = vcmp.lt.s32.totalorder %v139, 0
    %v2185 = vand.u32 %v139, 2139095040
    %v2186 = vshrl.u32 %v2185, 23
    %v2187 = vsub.s32 %v2186, 127
    %v2188 = vand.u32 2147483647, %v139
    %v2189 = vand.u32 %v2188, 8388607
    %v2190 = vor.u32 %v2189, 8388608
    %v2191 = vsub.s32 0, %v2190
    %v2192 = vadd.s32 %v2187, 1
    %vm2193 = vcmp.gt.s32.totalorder %v2192, 0
    %v2194 = vsel %vm2193, %v2192, 0
    %v2195 = vshrl.u32 %v2194, 5
    %v2196 = vand.u32 %v2194, 31
    %v2197 = vsub.s32 32, %v2196
    %v2198 = vshrl.u32 683565275, %v2197
    %v2199 = vshll.u32 683565275, %v2196
    %v2200 = vshrl.u32 2475754826, %v2197
    %v2201 = vor.u32 %v2199, %v2200
    %v2202 = vshll.u32 2475754826, %v2196
    %v2203 = vshrl.u32 2131351028, %v2197
    %v2204 = vor.u32 %v2202, %v2203
    %v2205 = vshll.u32 2131351028, %v2196
    %v2206 = vshrl.u32 2102212464, %v2197
    %v2207 = vor.u32 %v2205, %v2206
    %v2208 = vshll.u32 2102212464, %v2196
    %v2209 = vshrl.u32 920167782, %v2197
    %v2210 = vor.u32 %v2208, %v2209
    %v2211 = vshll.u32 920167782, %v2196
    %v2212 = vshrl.u32 1326507024, %v2197
    %v2213 = vor.u32 %v2211, %v2212
    %vm2214 = vcmp.lt.s32.totalorder %v2195, 1
    %vm2215 = vcmp.lt.s32.totalorder %v2195, 2
    %vm2216 = vcmp.lt.s32.totalorder %v2195, 3
    %vm2217 = vcmp.lt.s32.totalorder %v2195, 4
    %v2218 = vsel %vm2214, %v2198, %v2201
    %v2219 = vsel %vm2217, %v2207, 2102212464
    %v2220 = vsel %vm2216, %v2204, %v2219
    %v2221 = vsel %vm2215, %v2218, %v2220
    %v2222 = vsel %vm2214, %v2201, %v2204
    %v2223 = vsel %vm2217, %v2210, 920167782
    %v2224 = vsel %vm2216, %v2207, %v2223
    %v2225 = vsel %vm2215, %v2222, %v2224
    %v2226 = vsel %vm2214, %v2204, %v2207
    %v2227 = vsel %vm2217, %v2213, 1326507024
    %v2228 = vsel %vm2216, %v2210, %v2227
    %v2229 = vsel %vm2215, %v2226, %v2228
    %v2230 = vshll.u32 %v2190, 8
    %v2231 = vmul.u32.u64.compose %v2230, %v2229
    %v2232 = vextract.low.u32 %v2231
    %v2233 = vextract.high.u32 %v2231
    %v2234 = vmul.u32.u64.compose %v2230, %v2225
    %v2235 = vextract.low.u32 %v2234
    %v2236 = vextract.high.u32 %v2234
    %v2237 = vmul.u32 %v2230, %v2221
    %v2238 = vadd.s32 %v2233, %v2235
    %vm2239 = vc.u32 %v2233, %v2235
    %v2240 = vadd.s32 %v2236, 1
    %v2241 = vsel %vm2239, %v2240, %v2236
    %v2242 = vadd.s32 %v2237, %v2241
    %v2243 = vadd.s32 %v2242, 536870912
    %v2244 = vshrl.u32 %v2243, 30
    %v2245 = vshll.u32 %v2244, 30
    %v2246 = vsub.s32 %v2242, %v2245
    %vm2247 = vcmp.lt.s32.totalorder %v2246, 0
    %v2248 = vsub.s32 0, %v2246
    %v2249 = vsel %vm2247, %v2248, %v2246
    %v2250 = vclz %v2249
    %v2251 = vsub.s32 %v2250, 2
    %vm2252 = vcmp.gt.s32.totalorder 0, %v2251
    %v2253 = vsel %vm2252, 0, %v2251
    %v2254 = vsub.s32 32, %v2253
    %v2255 = vshll.u32 %v2246, %v2253
    %v2256 = vshrl.u32 %v2238, %v2254
    %v2257 = vor.u32 %v2255, %v2256
    %v2258 = vsub.s32 4294967266, %v2253
    %v2259 = vadd.s32 %v2258, 127
    %v2260 = vshll.u32 %v2259, 23
    %v2261 = vor.u32 4788187, %v2260
    %v2262 = vand.u32 2147483647, %v2261
    %v2264 = vcvt.s32.f32 %v2257
    %v2265 = vmul.f32 %v2264, %v2262
    %v2266 = vxor.u32 %v2265, 2147483648
    %v2267 = vsel %vm2184, %v2266, %v2265
    %v2268 = vsub.s32 4, %v2244
    %v2269 = vsel %vm2184, %v2268, %v2244
    %v2270 = vsel %vm2183, %v139, %v2267
    %v2271 = vsel %vm2183, 0, %v2269
    %v2272 = vcosq.f32.pop %v2270
    %v2273 = vsinq.f32.pop %v2270
    %vm2274 = vweird.f32 %v139
    %v2275 = vadd.s32 %v2271, 3
    %v2276 = vand.u32 %v2275, 3
    %vm2277 = vcmp.lt.s32.totalorder %v2276, 2
    %vm2278 = vcmp.eq.s32.totalorder %v2276, 0
    %v2279 = vxor.u32 %v2273, 2147483648
    %v2280 = vsel %vm2278, %v2272, %v2279
    %vm2281 = vcmp.eq.s32.totalorder %v2276, 2
    %v2282 = vxor.u32 %v2272, 2147483648
    %v2283 = vsel %vm2281, %v2282, %v2273
    %v2284 = vsel %vm2277, %v2280, %v2283
    %v2285 = vsel %vm2274, nan, %v2284
    %v2286 = vand.u32 2147483647, %v226
    %vm2287 = vcmp.le.f32.partialorder %v2286, 0.7853982
    %vm2288 = vcmp.lt.s32.totalorder %v226, 0
    %v2289 = vand.u32 %v226, 2139095040
    %v2290 = vshrl.u32 %v2289, 23
    %v2291 = vsub.s32 %v2290, 127
    %v2292 = vand.u32 2147483647, %v226
    %v2293 = vand.u32 %v2292, 8388607
    %v2294 = vor.u32 %v2293, 8388608
    %v2295 = vsub.s32 0, %v2294
    %v2296 = vadd.s32 %v2291, 1
    %vm2297 = vcmp.gt.s32.totalorder %v2296, 0
    %v2298 = vsel %vm2297, %v2296, 0
    %v2299 = vshrl.u32 %v2298, 5
    %v2300 = vand.u32 %v2298, 31
    %v2301 = vsub.s32 32, %v2300
    %v2302 = vshrl.u32 683565275, %v2301
    %v2303 = vshll.u32 683565275, %v2300
    %v2304 = vshrl.u32 2475754826, %v2301
    %v2305 = vor.u32 %v2303, %v2304
    %v2306 = vshll.u32 2475754826, %v2300
    %v2307 = vshrl.u32 2131351028, %v2301
    %v2308 = vor.u32 %v2306, %v2307
    %v2309 = vshll.u32 2131351028, %v2300
    %v2310 = vshrl.u32 2102212464, %v2301
    %v2311 = vor.u32 %v2309, %v2310
    %v2312 = vshll.u32 2102212464, %v2300
    %v2313 = vshrl.u32 920167782, %v2301
    %v2314 = vor.u32 %v2312, %v2313
    %v2315 = vshll.u32 920167782, %v2300
    %v2316 = vshrl.u32 1326507024, %v2301
    %v2317 = vor.u32 %v2315, %v2316
    %vm2318 = vcmp.lt.s32.totalorder %v2299, 1
    %vm2319 = vcmp.lt.s32.totalorder %v2299, 2
    %vm2320 = vcmp.lt.s32.totalorder %v2299, 3
    %vm2321 = vcmp.lt.s32.totalorder %v2299, 4
    %v2322 = vsel %vm2318, %v2302, %v2305
    %v2323 = vsel %vm2321, %v2311, 2102212464
    %v2324 = vsel %vm2320, %v2308, %v2323
    %v2325 = vsel %vm2319, %v2322, %v2324
    %v2326 = vsel %vm2318, %v2305, %v2308
    %v2327 = vsel %vm2321, %v2314, 920167782
    %v2328 = vsel %vm2320, %v2311, %v2327
    %v2329 = vsel %vm2319, %v2326, %v2328
    %v2330 = vsel %vm2318, %v2308, %v2311
    %v2331 = vsel %vm2321, %v2317, 1326507024
    %v2332 = vsel %vm2320, %v2314, %v2331
    %v2333 = vsel %vm2319, %v2330, %v2332
    %v2334 = vshll.u32 %v2294, 8
    %v2335 = vmul.u32.u64.compose %v2334, %v2333
    %v2336 = vextract.low.u32 %v2335
    %v2337 = vextract.high.u32 %v2335
    %v2338 = vmul.u32.u64.compose %v2334, %v2329
    %v2339 = vextract.low.u32 %v2338
    %v2340 = vextract.high.u32 %v2338
    %v2341 = vmul.u32 %v2334, %v2325
    %v2342 = vadd.s32 %v2337, %v2339
    %vm2343 = vc.u32 %v2337, %v2339
    %v2344 = vadd.s32 %v2340, 1
    %v2345 = vsel %vm2343, %v2344, %v2340
    %v2346 = vadd.s32 %v2341, %v2345
    %v2347 = vadd.s32 %v2346, 536870912
    %v2348 = vshrl.u32 %v2347, 30
    %v2349 = vshll.u32 %v2348, 30
    %v2350 = vsub.s32 %v2346, %v2349
    %vm2351 = vcmp.lt.s32.totalorder %v2350, 0
    %v2352 = vsub.s32 0, %v2350
    %v2353 = vsel %vm2351, %v2352, %v2350
    %v2354 = vclz %v2353
    %v2355 = vsub.s32 %v2354, 2
    %vm2356 = vcmp.gt.s32.totalorder 0, %v2355
    %v2357 = vsel %vm2356, 0, %v2355
    %v2358 = vsub.s32 32, %v2357
    %v2359 = vshll.u32 %v2350, %v2357
    %v2360 = vshrl.u32 %v2342, %v2358
    %v2361 = vor.u32 %v2359, %v2360
    %v2362 = vsub.s32 4294967266, %v2357
    %v2363 = vadd.s32 %v2362, 127
    %v2364 = vshll.u32 %v2363, 23
    %v2365 = vor.u32 4788187, %v2364
    %v2366 = vand.u32 2147483647, %v2365
    %v2368 = vcvt.s32.f32 %v2361
    %v2369 = vmul.f32 %v2368, %v2366
    %v2370 = vxor.u32 %v2369, 2147483648
    %v2371 = vsel %vm2288, %v2370, %v2369
    %v2372 = vsub.s32 4, %v2348
    %v2373 = vsel %vm2288, %v2372, %v2348
    %v2374 = vsel %vm2287, %v226, %v2371
    %v2375 = vsel %vm2287, 0, %v2373
    %v2376 = vcosq.f32.pop %v2374
    %v2377 = vsinq.f32.pop %v2374
    %vm2378 = vweird.f32 %v226
    %v2379 = vadd.s32 %v2375, 3
    %v2380 = vand.u32 %v2379, 3
    %vm2381 = vcmp.lt.s32.totalorder %v2380, 2
    %vm2382 = vcmp.eq.s32.totalorder %v2380, 0
    %v2383 = vxor.u32 %v2377, 2147483648
    %v2384 = vsel %vm2382, %v2376, %v2383
    %vm2385 = vcmp.eq.s32.totalorder %v2380, 2
    %v2386 = vxor.u32 %v2376, 2147483648
    %v2387 = vsel %vm2385, %v2386, %v2377
    %v2388 = vsel %vm2381, %v2384, %v2387
    %v2389 = vsel %vm2378, nan, %v2388
    %v2390 = vand.u32 2147483647, %v228
    %vm2391 = vcmp.le.f32.partialorder %v2390, 0.7853982
    %vm2392 = vcmp.lt.s32.totalorder %v228, 0
    %v2393 = vand.u32 %v228, 2139095040
    %v2394 = vshrl.u32 %v2393, 23
    %v2395 = vsub.s32 %v2394, 127
    %v2396 = vand.u32 2147483647, %v228
    %v2397 = vand.u32 %v2396, 8388607
    %v2398 = vor.u32 %v2397, 8388608
    %v2399 = vsub.s32 0, %v2398
    %v2400 = vadd.s32 %v2395, 1
    %vm2401 = vcmp.gt.s32.totalorder %v2400, 0
    %v2402 = vsel %vm2401, %v2400, 0
    %v2403 = vshrl.u32 %v2402, 5
    %v2404 = vand.u32 %v2402, 31
    %v2405 = vsub.s32 32, %v2404
    %v2406 = vshrl.u32 683565275, %v2405
    %v2407 = vshll.u32 683565275, %v2404
    %v2408 = vshrl.u32 2475754826, %v2405
    %v2409 = vor.u32 %v2407, %v2408
    %v2410 = vshll.u32 2475754826, %v2404
    %v2411 = vshrl.u32 2131351028, %v2405
    %v2412 = vor.u32 %v2410, %v2411
    %v2413 = vshll.u32 2131351028, %v2404
    %v2414 = vshrl.u32 2102212464, %v2405
    %v2415 = vor.u32 %v2413, %v2414
    %v2416 = vshll.u32 2102212464, %v2404
    %v2417 = vshrl.u32 920167782, %v2405
    %v2418 = vor.u32 %v2416, %v2417
    %v2419 = vshll.u32 920167782, %v2404
    %v2420 = vshrl.u32 1326507024, %v2405
    %v2421 = vor.u32 %v2419, %v2420
    %vm2422 = vcmp.lt.s32.totalorder %v2403, 1
    %vm2423 = vcmp.lt.s32.totalorder %v2403, 2
    %vm2424 = vcmp.lt.s32.totalorder %v2403, 3
    %vm2425 = vcmp.lt.s32.totalorder %v2403, 4
    %v2426 = vsel %vm2422, %v2406, %v2409
    %v2427 = vsel %vm2425, %v2415, 2102212464
    %v2428 = vsel %vm2424, %v2412, %v2427
    %v2429 = vsel %vm2423, %v2426, %v2428
    %v2430 = vsel %vm2422, %v2409, %v2412
    %v2431 = vsel %vm2425, %v2418, 920167782
    %v2432 = vsel %vm2424, %v2415, %v2431
    %v2433 = vsel %vm2423, %v2430, %v2432
    %v2434 = vsel %vm2422, %v2412, %v2415
    %v2435 = vsel %vm2425, %v2421, 1326507024
    %v2436 = vsel %vm2424, %v2418, %v2435
    %v2437 = vsel %vm2423, %v2434, %v2436
    %v2438 = vshll.u32 %v2398, 8
    %v2439 = vmul.u32.u64.compose %v2438, %v2437
    %v2440 = vextract.low.u32 %v2439
    %v2441 = vextract.high.u32 %v2439
    %v2442 = vmul.u32.u64.compose %v2438, %v2433
    %v2443 = vextract.low.u32 %v2442
    %v2444 = vextract.high.u32 %v2442
    %v2445 = vmul.u32 %v2438, %v2429
    %v2446 = vadd.s32 %v2441, %v2443
    %vm2447 = vc.u32 %v2441, %v2443
    %v2448 = vadd.s32 %v2444, 1
    %v2449 = vsel %vm2447, %v2448, %v2444
    %v2450 = vadd.s32 %v2445, %v2449
    %v2451 = vadd.s32 %v2450, 536870912
    %v2452 = vshrl.u32 %v2451, 30
    %v2453 = vshll.u32 %v2452, 30
    %v2454 = vsub.s32 %v2450, %v2453
    %vm2455 = vcmp.lt.s32.totalorder %v2454, 0
    %v2456 = vsub.s32 0, %v2454
    %v2457 = vsel %vm2455, %v2456, %v2454
    %v2458 = vclz %v2457
    %v2459 = vsub.s32 %v2458, 2
    %vm2460 = vcmp.gt.s32.totalorder 0, %v2459
    %v2461 = vsel %vm2460, 0, %v2459
    %v2462 = vsub.s32 32, %v2461
    %v2463 = vshll.u32 %v2454, %v2461
    %v2464 = vshrl.u32 %v2446, %v2462
    %v2465 = vor.u32 %v2463, %v2464
    %v2466 = vsub.s32 4294967266, %v2461
    %v2467 = vadd.s32 %v2466, 127
    %v2468 = vshll.u32 %v2467, 23
    %v2469 = vor.u32 4788187, %v2468
    %v2470 = vand.u32 2147483647, %v2469
    %v2472 = vcvt.s32.f32 %v2465
    %v2473 = vmul.f32 %v2472, %v2470
    %v2474 = vxor.u32 %v2473, 2147483648
    %v2475 = vsel %vm2392, %v2474, %v2473
    %v2476 = vsub.s32 4, %v2452
    %v2477 = vsel %vm2392, %v2476, %v2452
    %v2478 = vsel %vm2391, %v228, %v2475
    %v2479 = vsel %vm2391, 0, %v2477
    %v2480 = vcosq.f32.pop %v2478
    %v2481 = vsinq.f32.pop %v2478
    %vm2482 = vweird.f32 %v228
    %v2483 = vadd.s32 %v2479, 3
    %v2484 = vand.u32 %v2483, 3
    %vm2485 = vcmp.lt.s32.totalorder %v2484, 2
    %vm2486 = vcmp.eq.s32.totalorder %v2484, 0
    %v2487 = vxor.u32 %v2481, 2147483648
    %v2488 = vsel %vm2486, %v2480, %v2487
    %vm2489 = vcmp.eq.s32.totalorder %v2484, 2
    %v2490 = vxor.u32 %v2480, 2147483648
    %v2491 = vsel %vm2489, %v2490, %v2481
    %v2492 = vsel %vm2485, %v2488, %v2491
    %v2493 = vsel %vm2482, nan, %v2492
    %v2494 = vand.u32 2147483647, %v315
    %vm2495 = vcmp.le.f32.partialorder %v2494, 0.7853982
    %vm2496 = vcmp.lt.s32.totalorder %v315, 0
    %v2497 = vand.u32 %v315, 2139095040
    %v2498 = vshrl.u32 %v2497, 23
    %v2499 = vsub.s32 %v2498, 127
    %v2500 = vand.u32 2147483647, %v315
    %v2501 = vand.u32 %v2500, 8388607
    %v2502 = vor.u32 %v2501, 8388608
    %v2503 = vsub.s32 0, %v2502
    %v2504 = vadd.s32 %v2499, 1
    %vm2505 = vcmp.gt.s32.totalorder %v2504, 0
    %v2506 = vsel %vm2505, %v2504, 0
    %v2507 = vshrl.u32 %v2506, 5
    %v2508 = vand.u32 %v2506, 31
    %v2509 = vsub.s32 32, %v2508
    %v2510 = vshrl.u32 683565275, %v2509
    %v2511 = vshll.u32 683565275, %v2508
    %v2512 = vshrl.u32 2475754826, %v2509
    %v2513 = vor.u32 %v2511, %v2512
    %v2514 = vshll.u32 2475754826, %v2508
    %v2515 = vshrl.u32 2131351028, %v2509
    %v2516 = vor.u32 %v2514, %v2515
    %v2517 = vshll.u32 2131351028, %v2508
    %v2518 = vshrl.u32 2102212464, %v2509
    %v2519 = vor.u32 %v2517, %v2518
    %v2520 = vshll.u32 2102212464, %v2508
    %v2521 = vshrl.u32 920167782, %v2509
    %v2522 = vor.u32 %v2520, %v2521
    %v2523 = vshll.u32 920167782, %v2508
    %v2524 = vshrl.u32 1326507024, %v2509
    %v2525 = vor.u32 %v2523, %v2524
    %vm2526 = vcmp.lt.s32.totalorder %v2507, 1
    %vm2527 = vcmp.lt.s32.totalorder %v2507, 2
    %vm2528 = vcmp.lt.s32.totalorder %v2507, 3
    %vm2529 = vcmp.lt.s32.totalorder %v2507, 4
    %v2530 = vsel %vm2526, %v2510, %v2513
    %v2531 = vsel %vm2529, %v2519, 2102212464
    %v2532 = vsel %vm2528, %v2516, %v2531
    %v2533 = vsel %vm2527, %v2530, %v2532
    %v2534 = vsel %vm2526, %v2513, %v2516
    %v2535 = vsel %vm2529, %v2522, 920167782
    %v2536 = vsel %vm2528, %v2519, %v2535
    %v2537 = vsel %vm2527, %v2534, %v2536
    %v2538 = vsel %vm2526, %v2516, %v2519
    %v2539 = vsel %vm2529, %v2525, 1326507024
    %v2540 = vsel %vm2528, %v2522, %v2539
    %v2541 = vsel %vm2527, %v2538, %v2540
    %v2542 = vshll.u32 %v2502, 8
    %v2543 = vmul.u32.u64.compose %v2542, %v2541
    %v2544 = vextract.low.u32 %v2543
    %v2545 = vextract.high.u32 %v2543
    %v2546 = vmul.u32.u64.compose %v2542, %v2537
    %v2547 = vextract.low.u32 %v2546
    %v2548 = vextract.high.u32 %v2546
    %v2549 = vmul.u32 %v2542, %v2533
    %v2550 = vadd.s32 %v2545, %v2547
    %vm2551 = vc.u32 %v2545, %v2547
    %v2552 = vadd.s32 %v2548, 1
    %v2553 = vsel %vm2551, %v2552, %v2548
    %v2554 = vadd.s32 %v2549, %v2553
    %v2555 = vadd.s32 %v2554, 536870912
    %v2556 = vshrl.u32 %v2555, 30
    %v2557 = vshll.u32 %v2556, 30
    %v2558 = vsub.s32 %v2554, %v2557
    %vm2559 = vcmp.lt.s32.totalorder %v2558, 0
    %v2560 = vsub.s32 0, %v2558
    %v2561 = vsel %vm2559, %v2560, %v2558
    %v2562 = vclz %v2561
    %v2563 = vsub.s32 %v2562, 2
    %vm2564 = vcmp.gt.s32.totalorder 0, %v2563
    %v2565 = vsel %vm2564, 0, %v2563
    %v2566 = vsub.s32 32, %v2565
    %v2567 = vshll.u32 %v2558, %v2565
    %v2568 = vshrl.u32 %v2550, %v2566
    %v2569 = vor.u32 %v2567, %v2568
    %v2570 = vsub.s32 4294967266, %v2565
    %v2571 = vadd.s32 %v2570, 127
    %v2572 = vshll.u32 %v2571, 23
    %v2573 = vor.u32 4788187, %v2572
    %v2574 = vand.u32 2147483647, %v2573
    %v2576 = vcvt.s32.f32 %v2569
    %v2577 = vmul.f32 %v2576, %v2574
    %v2578 = vxor.u32 %v2577, 2147483648
    %v2579 = vsel %vm2496, %v2578, %v2577
    %v2580 = vsub.s32 4, %v2556
    %v2581 = vsel %vm2496, %v2580, %v2556
    %v2582 = vsel %vm2495, %v315, %v2579
    %v2583 = vsel %vm2495, 0, %v2581
    %v2584 = vcosq.f32.pop %v2582
    %v2585 = vsinq.f32.pop %v2582
    %vm2586 = vweird.f32 %v315
    %v2587 = vadd.s32 %v2583, 3
    %v2588 = vand.u32 %v2587, 3
    %vm2589 = vcmp.lt.s32.totalorder %v2588, 2
    %vm2590 = vcmp.eq.s32.totalorder %v2588, 0
    %v2591 = vxor.u32 %v2585, 2147483648
    %v2592 = vsel %vm2590, %v2584, %v2591
    %vm2593 = vcmp.eq.s32.totalorder %v2588, 2
    %v2594 = vxor.u32 %v2584, 2147483648
    %v2595 = vsel %vm2593, %v2594, %v2585
    %v2596 = vsel %vm2589, %v2592, %v2595
    %v2597 = vsel %vm2586, nan, %v2596
    %v2598 = vand.u32 2147483647, %v317
    %vm2599 = vcmp.le.f32.partialorder %v2598, 0.7853982
    %vm2600 = vcmp.lt.s32.totalorder %v317, 0
    %v2601 = vand.u32 %v317, 2139095040
    %v2602 = vshrl.u32 %v2601, 23
    %v2603 = vsub.s32 %v2602, 127
    %v2604 = vand.u32 2147483647, %v317
    %v2605 = vand.u32 %v2604, 8388607
    %v2606 = vor.u32 %v2605, 8388608
    %v2607 = vsub.s32 0, %v2606
    %v2608 = vadd.s32 %v2603, 1
    %vm2609 = vcmp.gt.s32.totalorder %v2608, 0
    %v2610 = vsel %vm2609, %v2608, 0
    %v2611 = vshrl.u32 %v2610, 5
    %v2612 = vand.u32 %v2610, 31
    %v2613 = vsub.s32 32, %v2612
    %v2614 = vshrl.u32 683565275, %v2613
    %v2615 = vshll.u32 683565275, %v2612
    %v2616 = vshrl.u32 2475754826, %v2613
    %v2617 = vor.u32 %v2615, %v2616
    %v2618 = vshll.u32 2475754826, %v2612
    %v2619 = vshrl.u32 2131351028, %v2613
    %v2620 = vor.u32 %v2618, %v2619
    %v2621 = vshll.u32 2131351028, %v2612
    %v2622 = vshrl.u32 2102212464, %v2613
    %v2623 = vor.u32 %v2621, %v2622
    %v2624 = vshll.u32 2102212464, %v2612
    %v2625 = vshrl.u32 920167782, %v2613
    %v2626 = vor.u32 %v2624, %v2625
    %v2627 = vshll.u32 920167782, %v2612
    %v2628 = vshrl.u32 1326507024, %v2613
    %v2629 = vor.u32 %v2627, %v2628
    %vm2630 = vcmp.lt.s32.totalorder %v2611, 1
    %vm2631 = vcmp.lt.s32.totalorder %v2611, 2
    %vm2632 = vcmp.lt.s32.totalorder %v2611, 3
    %vm2633 = vcmp.lt.s32.totalorder %v2611, 4
    %v2634 = vsel %vm2630, %v2614, %v2617
    %v2635 = vsel %vm2633, %v2623, 2102212464
    %v2636 = vsel %vm2632, %v2620, %v2635
    %v2637 = vsel %vm2631, %v2634, %v2636
    %v2638 = vsel %vm2630, %v2617, %v2620
    %v2639 = vsel %vm2633, %v2626, 920167782
    %v2640 = vsel %vm2632, %v2623, %v2639
    %v2641 = vsel %vm2631, %v2638, %v2640
    %v2642 = vsel %vm2630, %v2620, %v2623
    %v2643 = vsel %vm2633, %v2629, 1326507024
    %v2644 = vsel %vm2632, %v2626, %v2643
    %v2645 = vsel %vm2631, %v2642, %v2644
    %v2646 = vshll.u32 %v2606, 8
    %v2647 = vmul.u32.u64.compose %v2646, %v2645
    %v2648 = vextract.low.u32 %v2647
    %v2649 = vextract.high.u32 %v2647
    %v2650 = vmul.u32.u64.compose %v2646, %v2641
    %v2651 = vextract.low.u32 %v2650
    %v2652 = vextract.high.u32 %v2650
    %v2653 = vmul.u32 %v2646, %v2637
    %v2654 = vadd.s32 %v2649, %v2651
    %vm2655 = vc.u32 %v2649, %v2651
    %v2656 = vadd.s32 %v2652, 1
    %v2657 = vsel %vm2655, %v2656, %v2652
    %v2658 = vadd.s32 %v2653, %v2657
    %v2659 = vadd.s32 %v2658, 536870912
    %v2660 = vshrl.u32 %v2659, 30
    %v2661 = vshll.u32 %v2660, 30
    %v2662 = vsub.s32 %v2658, %v2661
    %vm2663 = vcmp.lt.s32.totalorder %v2662, 0
    %v2664 = vsub.s32 0, %v2662
    %v2665 = vsel %vm2663, %v2664, %v2662
    %v2666 = vclz %v2665
    %v2667 = vsub.s32 %v2666, 2
    %vm2668 = vcmp.gt.s32.totalorder 0, %v2667
    %v2669 = vsel %vm2668, 0, %v2667
    %v2670 = vsub.s32 32, %v2669
    %v2671 = vshll.u32 %v2662, %v2669
    %v2672 = vshrl.u32 %v2654, %v2670
    %v2673 = vor.u32 %v2671, %v2672
    %v2674 = vsub.s32 4294967266, %v2669
    %v2675 = vadd.s32 %v2674, 127
    %v2676 = vshll.u32 %v2675, 23
    %v2677 = vor.u32 4788187, %v2676
    %v2678 = vand.u32 2147483647, %v2677
    %v2680 = vcvt.s32.f32 %v2673
    %v2681 = vmul.f32 %v2680, %v2678
    %v2682 = vxor.u32 %v2681, 2147483648
    %v2683 = vsel %vm2600, %v2682, %v2681
    %v2684 = vsub.s32 4, %v2660
    %v2685 = vsel %vm2600, %v2684, %v2660
    %v2686 = vsel %vm2599, %v317, %v2683
    %v2687 = vsel %vm2599, 0, %v2685
    %v2688 = vcosq.f32.pop %v2686
    %v2689 = vsinq.f32.pop %v2686
    %vm2690 = vweird.f32 %v317
    %v2691 = vadd.s32 %v2687, 3
    %v2692 = vand.u32 %v2691, 3
    %vm2693 = vcmp.lt.s32.totalorder %v2692, 2
    %vm2694 = vcmp.eq.s32.totalorder %v2692, 0
    %v2695 = vxor.u32 %v2689, 2147483648
    %v2696 = vsel %vm2694, %v2688, %v2695
    %vm2697 = vcmp.eq.s32.totalorder %v2692, 2
    %v2698 = vxor.u32 %v2688, 2147483648
    %v2699 = vsel %vm2697, %v2698, %v2689
    %v2700 = vsel %vm2693, %v2696, %v2699
    %v2701 = vsel %vm2690, nan, %v2700
    %v2702 = vand.u32 2147483647, %v404
    %vm2703 = vcmp.le.f32.partialorder %v2702, 0.7853982
    %vm2704 = vcmp.lt.s32.totalorder %v404, 0
    %v2705 = vand.u32 %v404, 2139095040
    %v2706 = vshrl.u32 %v2705, 23
    %v2707 = vsub.s32 %v2706, 127
    %v2708 = vand.u32 2147483647, %v404
    %v2709 = vand.u32 %v2708, 8388607
    %v2710 = vor.u32 %v2709, 8388608
    %v2711 = vsub.s32 0, %v2710
    %v2712 = vadd.s32 %v2707, 1
    %vm2713 = vcmp.gt.s32.totalorder %v2712, 0
    %v2714 = vsel %vm2713, %v2712, 0
    %v2715 = vshrl.u32 %v2714, 5
    %v2716 = vand.u32 %v2714, 31
    %v2717 = vsub.s32 32, %v2716
    %v2718 = vshrl.u32 683565275, %v2717
    %v2719 = vshll.u32 683565275, %v2716
    %v2720 = vshrl.u32 2475754826, %v2717
    %v2721 = vor.u32 %v2719, %v2720
    %v2722 = vshll.u32 2475754826, %v2716
    %v2723 = vshrl.u32 2131351028, %v2717
    %v2724 = vor.u32 %v2722, %v2723
    %v2725 = vshll.u32 2131351028, %v2716
    %v2726 = vshrl.u32 2102212464, %v2717
    %v2727 = vor.u32 %v2725, %v2726
    %v2728 = vshll.u32 2102212464, %v2716
    %v2729 = vshrl.u32 920167782, %v2717
    %v2730 = vor.u32 %v2728, %v2729
    %v2731 = vshll.u32 920167782, %v2716
    %v2732 = vshrl.u32 1326507024, %v2717
    %v2733 = vor.u32 %v2731, %v2732
    %vm2734 = vcmp.lt.s32.totalorder %v2715, 1
    %vm2735 = vcmp.lt.s32.totalorder %v2715, 2
    %vm2736 = vcmp.lt.s32.totalorder %v2715, 3
    %vm2737 = vcmp.lt.s32.totalorder %v2715, 4
    %v2738 = vsel %vm2734, %v2718, %v2721
    %v2739 = vsel %vm2737, %v2727, 2102212464
    %v2740 = vsel %vm2736, %v2724, %v2739
    %v2741 = vsel %vm2735, %v2738, %v2740
    %v2742 = vsel %vm2734, %v2721, %v2724
    %v2743 = vsel %vm2737, %v2730, 920167782
    %v2744 = vsel %vm2736, %v2727, %v2743
    %v2745 = vsel %vm2735, %v2742, %v2744
    %v2746 = vsel %vm2734, %v2724, %v2727
    %v2747 = vsel %vm2737, %v2733, 1326507024
    %v2748 = vsel %vm2736, %v2730, %v2747
    %v2749 = vsel %vm2735, %v2746, %v2748
    %v2750 = vshll.u32 %v2710, 8
    %v2751 = vmul.u32.u64.compose %v2750, %v2749
    %v2752 = vextract.low.u32 %v2751
    %v2753 = vextract.high.u32 %v2751
    %v2754 = vmul.u32.u64.compose %v2750, %v2745
    %v2755 = vextract.low.u32 %v2754
    %v2756 = vextract.high.u32 %v2754
    %v2757 = vmul.u32 %v2750, %v2741
    %v2758 = vadd.s32 %v2753, %v2755
    %vm2759 = vc.u32 %v2753, %v2755
    %v2760 = vadd.s32 %v2756, 1
    %v2761 = vsel %vm2759, %v2760, %v2756
    %v2762 = vadd.s32 %v2757, %v2761
    %v2763 = vadd.s32 %v2762, 536870912
    %v2764 = vshrl.u32 %v2763, 30
    %v2765 = vshll.u32 %v2764, 30
    %v2766 = vsub.s32 %v2762, %v2765
    %vm2767 = vcmp.lt.s32.totalorder %v2766, 0
    %v2768 = vsub.s32 0, %v2766
    %v2769 = vsel %vm2767, %v2768, %v2766
    %v2770 = vclz %v2769
    %v2771 = vsub.s32 %v2770, 2
    %vm2772 = vcmp.gt.s32.totalorder 0, %v2771
    %v2773 = vsel %vm2772, 0, %v2771
    %v2774 = vsub.s32 32, %v2773
    %v2775 = vshll.u32 %v2766, %v2773
    %v2776 = vshrl.u32 %v2758, %v2774
    %v2777 = vor.u32 %v2775, %v2776
    %v2778 = vsub.s32 4294967266, %v2773
    %v2779 = vadd.s32 %v2778, 127
    %v2780 = vshll.u32 %v2779, 23
    %v2781 = vor.u32 4788187, %v2780
    %v2782 = vand.u32 2147483647, %v2781
    %v2784 = vcvt.s32.f32 %v2777
    %v2785 = vmul.f32 %v2784, %v2782
    %v2786 = vxor.u32 %v2785, 2147483648
    %v2787 = vsel %vm2704, %v2786, %v2785
    %v2788 = vsub.s32 4, %v2764
    %v2789 = vsel %vm2704, %v2788, %v2764
    %v2790 = vsel %vm2703, %v404, %v2787
    %v2791 = vsel %vm2703, 0, %v2789
    %v2792 = vcosq.f32.pop %v2790
    %v2793 = vsinq.f32.pop %v2790
    %vm2794 = vweird.f32 %v404
    %v2795 = vadd.s32 %v2791, 3
    %v2796 = vand.u32 %v2795, 3
    %vm2797 = vcmp.lt.s32.totalorder %v2796, 2
    %vm2798 = vcmp.eq.s32.totalorder %v2796, 0
    %v2799 = vxor.u32 %v2793, 2147483648
    %v2800 = vsel %vm2798, %v2792, %v2799
    %vm2801 = vcmp.eq.s32.totalorder %v2796, 2
    %v2802 = vxor.u32 %v2792, 2147483648
    %v2803 = vsel %vm2801, %v2802, %v2793
    %v2804 = vsel %vm2797, %v2800, %v2803
    %v2805 = vsel %vm2794, nan, %v2804
    %v2806 = vand.u32 2147483647, %v406
    %vm2807 = vcmp.le.f32.partialorder %v2806, 0.7853982
    %vm2808 = vcmp.lt.s32.totalorder %v406, 0
    %v2809 = vand.u32 %v406, 2139095040
    %v2810 = vshrl.u32 %v2809, 23
    %v2811 = vsub.s32 %v2810, 127
    %v2812 = vand.u32 2147483647, %v406
    %v2813 = vand.u32 %v2812, 8388607
    %v2814 = vor.u32 %v2813, 8388608
    %v2815 = vsub.s32 0, %v2814
    %v2816 = vadd.s32 %v2811, 1
    %vm2817 = vcmp.gt.s32.totalorder %v2816, 0
    %v2818 = vsel %vm2817, %v2816, 0
    %v2819 = vshrl.u32 %v2818, 5
    %v2820 = vand.u32 %v2818, 31
    %v2821 = vsub.s32 32, %v2820
    %v2822 = vshrl.u32 683565275, %v2821
    %v2823 = vshll.u32 683565275, %v2820
    %v2824 = vshrl.u32 2475754826, %v2821
    %v2825 = vor.u32 %v2823, %v2824
    %v2826 = vshll.u32 2475754826, %v2820
    %v2827 = vshrl.u32 2131351028, %v2821
    %v2828 = vor.u32 %v2826, %v2827
    %v2829 = vshll.u32 2131351028, %v2820
    %v2830 = vshrl.u32 2102212464, %v2821
    %v2831 = vor.u32 %v2829, %v2830
    %v2832 = vshll.u32 2102212464, %v2820
    %v2833 = vshrl.u32 920167782, %v2821
    %v2834 = vor.u32 %v2832, %v2833
    %v2835 = vshll.u32 920167782, %v2820
    %v2836 = vshrl.u32 1326507024, %v2821
    %v2837 = vor.u32 %v2835, %v2836
    %vm2838 = vcmp.lt.s32.totalorder %v2819, 1
    %vm2839 = vcmp.lt.s32.totalorder %v2819, 2
    %vm2840 = vcmp.lt.s32.totalorder %v2819, 3
    %vm2841 = vcmp.lt.s32.totalorder %v2819, 4
    %v2842 = vsel %vm2838, %v2822, %v2825
    %v2843 = vsel %vm2841, %v2831, 2102212464
    %v2844 = vsel %vm2840, %v2828, %v2843
    %v2845 = vsel %vm2839, %v2842, %v2844
    %v2846 = vsel %vm2838, %v2825, %v2828
    %v2847 = vsel %vm2841, %v2834, 920167782
    %v2848 = vsel %vm2840, %v2831, %v2847
    %v2849 = vsel %vm2839, %v2846, %v2848
    %v2850 = vsel %vm2838, %v2828, %v2831
    %v2851 = vsel %vm2841, %v2837, 1326507024
    %v2852 = vsel %vm2840, %v2834, %v2851
    %v2853 = vsel %vm2839, %v2850, %v2852
    %v2854 = vshll.u32 %v2814, 8
    %v2855 = vmul.u32.u64.compose %v2854, %v2853
    %v2856 = vextract.low.u32 %v2855
    %v2857 = vextract.high.u32 %v2855
    %v2858 = vmul.u32.u64.compose %v2854, %v2849
    %v2859 = vextract.low.u32 %v2858
    %v2860 = vextract.high.u32 %v2858
    %v2861 = vmul.u32 %v2854, %v2845
    %v2862 = vadd.s32 %v2857, %v2859
    %vm2863 = vc.u32 %v2857, %v2859
    %v2864 = vadd.s32 %v2860, 1
    %v2865 = vsel %vm2863, %v2864, %v2860
    %v2866 = vadd.s32 %v2861, %v2865
    %v2867 = vadd.s32 %v2866, 536870912
    %v2868 = vshrl.u32 %v2867, 30
    %v2869 = vshll.u32 %v2868, 30
    %v2870 = vsub.s32 %v2866, %v2869
    %vm2871 = vcmp.lt.s32.totalorder %v2870, 0
    %v2872 = vsub.s32 0, %v2870
    %v2873 = vsel %vm2871, %v2872, %v2870
    %v2874 = vclz %v2873
    %v2875 = vsub.s32 %v2874, 2
    %vm2876 = vcmp.gt.s32.totalorder 0, %v2875
    %v2877 = vsel %vm2876, 0, %v2875
    %v2878 = vsub.s32 32, %v2877
    %v2879 = vshll.u32 %v2870, %v2877
    %v2880 = vshrl.u32 %v2862, %v2878
    %v2881 = vor.u32 %v2879, %v2880
    %v2882 = vsub.s32 4294967266, %v2877
    %v2883 = vadd.s32 %v2882, 127
    %v2884 = vshll.u32 %v2883, 23
    %v2885 = vor.u32 4788187, %v2884
    %v2886 = vand.u32 2147483647, %v2885
    %v2888 = vcvt.s32.f32 %v2881
    %v2889 = vmul.f32 %v2888, %v2886
    %v2890 = vxor.u32 %v2889, 2147483648
    %v2891 = vsel %vm2808, %v2890, %v2889
    %v2892 = vsub.s32 4, %v2868
    %v2893 = vsel %vm2808, %v2892, %v2868
    %v2894 = vsel %vm2807, %v406, %v2891
    %v2895 = vsel %vm2807, 0, %v2893
    %v2896 = vcosq.f32.pop %v2894
    %v2897 = vsinq.f32.pop %v2894
    %vm2898 = vweird.f32 %v406
    %v2899 = vadd.s32 %v2895, 3
    %v2900 = vand.u32 %v2899, 3
    %vm2901 = vcmp.lt.s32.totalorder %v2900, 2
    %vm2902 = vcmp.eq.s32.totalorder %v2900, 0
    %v2903 = vxor.u32 %v2897, 2147483648
    %v2904 = vsel %vm2902, %v2896, %v2903
    %vm2905 = vcmp.eq.s32.totalorder %v2900, 2
    %v2906 = vxor.u32 %v2896, 2147483648
    %v2907 = vsel %vm2905, %v2906, %v2897
    %v2908 = vsel %vm2901, %v2904, %v2907
    %v2909 = vsel %vm2898, nan, %v2908
    %v2910 = vand.u32 2147483647, %v143
    %vm2911 = vcmp.le.f32.partialorder %v2910, 0.7853982
    %vm2912 = vcmp.lt.s32.totalorder %v143, 0
    %v2913 = vand.u32 %v143, 2139095040
    %v2914 = vshrl.u32 %v2913, 23
    %v2915 = vsub.s32 %v2914, 127
    %v2916 = vand.u32 2147483647, %v143
    %v2917 = vand.u32 %v2916, 8388607
    %v2918 = vor.u32 %v2917, 8388608
    %v2919 = vsub.s32 0, %v2918
    %v2920 = vadd.s32 %v2915, 1
    %vm2921 = vcmp.gt.s32.totalorder %v2920, 0
    %v2922 = vsel %vm2921, %v2920, 0
    %v2923 = vshrl.u32 %v2922, 5
    %v2924 = vand.u32 %v2922, 31
    %v2925 = vsub.s32 32, %v2924
    %v2926 = vshrl.u32 683565275, %v2925
    %v2927 = vshll.u32 683565275, %v2924
    %v2928 = vshrl.u32 2475754826, %v2925
    %v2929 = vor.u32 %v2927, %v2928
    %v2930 = vshll.u32 2475754826, %v2924
    %v2931 = vshrl.u32 2131351028, %v2925
    %v2932 = vor.u32 %v2930, %v2931
    %v2933 = vshll.u32 2131351028, %v2924
    %v2934 = vshrl.u32 2102212464, %v2925
    %v2935 = vor.u32 %v2933, %v2934
    %v2936 = vshll.u32 2102212464, %v2924
    %v2937 = vshrl.u32 920167782, %v2925
    %v2938 = vor.u32 %v2936, %v2937
    %v2939 = vshll.u32 920167782, %v2924
    %v2940 = vshrl.u32 1326507024, %v2925
    %v2941 = vor.u32 %v2939, %v2940
    %vm2942 = vcmp.lt.s32.totalorder %v2923, 1
    %vm2943 = vcmp.lt.s32.totalorder %v2923, 2
    %vm2944 = vcmp.lt.s32.totalorder %v2923, 3
    %vm2945 = vcmp.lt.s32.totalorder %v2923, 4
    %v2946 = vsel %vm2942, %v2926, %v2929
    %v2947 = vsel %vm2945, %v2935, 2102212464
    %v2948 = vsel %vm2944, %v2932, %v2947
    %v2949 = vsel %vm2943, %v2946, %v2948
    %v2950 = vsel %vm2942, %v2929, %v2932
    %v2951 = vsel %vm2945, %v2938, 920167782
    %v2952 = vsel %vm2944, %v2935, %v2951
    %v2953 = vsel %vm2943, %v2950, %v2952
    %v2954 = vsel %vm2942, %v2932, %v2935
    %v2955 = vsel %vm2945, %v2941, 1326507024
    %v2956 = vsel %vm2944, %v2938, %v2955
    %v2957 = vsel %vm2943, %v2954, %v2956
    %v2958 = vshll.u32 %v2918, 8
    %v2959 = vmul.u32.u64.compose %v2958, %v2957
    %v2960 = vextract.low.u32 %v2959
    %v2961 = vextract.high.u32 %v2959
    %v2962 = vmul.u32.u64.compose %v2958, %v2953
    %v2963 = vextract.low.u32 %v2962
    %v2964 = vextract.high.u32 %v2962
    %v2965 = vmul.u32 %v2958, %v2949
    %v2966 = vadd.s32 %v2961, %v2963
    %vm2967 = vc.u32 %v2961, %v2963
    %v2968 = vadd.s32 %v2964, 1
    %v2969 = vsel %vm2967, %v2968, %v2964
    %v2970 = vadd.s32 %v2965, %v2969
    %v2971 = vadd.s32 %v2970, 536870912
    %v2972 = vshrl.u32 %v2971, 30
    %v2973 = vshll.u32 %v2972, 30
    %v2974 = vsub.s32 %v2970, %v2973
    %vm2975 = vcmp.lt.s32.totalorder %v2974, 0
    %v2976 = vsub.s32 0, %v2974
    %v2977 = vsel %vm2975, %v2976, %v2974
    %v2978 = vclz %v2977
    %v2979 = vsub.s32 %v2978, 2
    %vm2980 = vcmp.gt.s32.totalorder 0, %v2979
    %v2981 = vsel %vm2980, 0, %v2979
    %v2982 = vsub.s32 32, %v2981
    %v2983 = vshll.u32 %v2974, %v2981
    %v2984 = vshrl.u32 %v2966, %v2982
    %v2985 = vor.u32 %v2983, %v2984
    %v2986 = vsub.s32 4294967266, %v2981
    %v2987 = vadd.s32 %v2986, 127
    %v2988 = vshll.u32 %v2987, 23
    %v2989 = vor.u32 4788187, %v2988
    %v2990 = vand.u32 2147483647, %v2989
    %v2992 = vcvt.s32.f32 %v2985
    %v2993 = vmul.f32 %v2992, %v2990
    %v2994 = vxor.u32 %v2993, 2147483648
    %v2995 = vsel %vm2912, %v2994, %v2993
    %v2996 = vsub.s32 4, %v2972
    %v2997 = vsel %vm2912, %v2996, %v2972
    %v2998 = vsel %vm2911, %v143, %v2995
    %v2999 = vsel %vm2911, 0, %v2997
    %v3000 = vcosq.f32.pop %v2998
    %v3001 = vsinq.f32.pop %v2998
    %vm3002 = vweird.f32 %v143
    %v3003 = vadd.s32 %v2999, 3
    %v3004 = vand.u32 %v3003, 3
    %vm3005 = vcmp.lt.s32.totalorder %v3004, 2
    %vm3006 = vcmp.eq.s32.totalorder %v3004, 0
    %v3007 = vxor.u32 %v3001, 2147483648
    %v3008 = vsel %vm3006, %v3000, %v3007
    %vm3009 = vcmp.eq.s32.totalorder %v3004, 2
    %v3010 = vxor.u32 %v3000, 2147483648
    %v3011 = vsel %vm3009, %v3010, %v3001
    %v3012 = vsel %vm3005, %v3008, %v3011
    %v3013 = vsel %vm3002, nan, %v3012
    %v3014 = vand.u32 2147483647, %v145
    %vm3015 = vcmp.le.f32.partialorder %v3014, 0.7853982
    %vm3016 = vcmp.lt.s32.totalorder %v145, 0
    %v3017 = vand.u32 %v145, 2139095040
    %v3018 = vshrl.u32 %v3017, 23
    %v3019 = vsub.s32 %v3018, 127
    %v3020 = vand.u32 2147483647, %v145
    %v3021 = vand.u32 %v3020, 8388607
    %v3022 = vor.u32 %v3021, 8388608
    %v3023 = vsub.s32 0, %v3022
    %v3024 = vadd.s32 %v3019, 1
    %vm3025 = vcmp.gt.s32.totalorder %v3024, 0
    %v3026 = vsel %vm3025, %v3024, 0
    %v3027 = vshrl.u32 %v3026, 5
    %v3028 = vand.u32 %v3026, 31
    %v3029 = vsub.s32 32, %v3028
    %v3030 = vshrl.u32 683565275, %v3029
    %v3031 = vshll.u32 683565275, %v3028
    %v3032 = vshrl.u32 2475754826, %v3029
    %v3033 = vor.u32 %v3031, %v3032
    %v3034 = vshll.u32 2475754826, %v3028
    %v3035 = vshrl.u32 2131351028, %v3029
    %v3036 = vor.u32 %v3034, %v3035
    %v3037 = vshll.u32 2131351028, %v3028
    %v3038 = vshrl.u32 2102212464, %v3029
    %v3039 = vor.u32 %v3037, %v3038
    %v3040 = vshll.u32 2102212464, %v3028
    %v3041 = vshrl.u32 920167782, %v3029
    %v3042 = vor.u32 %v3040, %v3041
    %v3043 = vshll.u32 920167782, %v3028
    %v3044 = vshrl.u32 1326507024, %v3029
    %v3045 = vor.u32 %v3043, %v3044
    %vm3046 = vcmp.lt.s32.totalorder %v3027, 1
    %vm3047 = vcmp.lt.s32.totalorder %v3027, 2
    %vm3048 = vcmp.lt.s32.totalorder %v3027, 3
    %vm3049 = vcmp.lt.s32.totalorder %v3027, 4
    %v3050 = vsel %vm3046, %v3030, %v3033
    %v3051 = vsel %vm3049, %v3039, 2102212464
    %v3052 = vsel %vm3048, %v3036, %v3051
    %v3053 = vsel %vm3047, %v3050, %v3052
    %v3054 = vsel %vm3046, %v3033, %v3036
    %v3055 = vsel %vm3049, %v3042, 920167782
    %v3056 = vsel %vm3048, %v3039, %v3055
    %v3057 = vsel %vm3047, %v3054, %v3056
    %v3058 = vsel %vm3046, %v3036, %v3039
    %v3059 = vsel %vm3049, %v3045, 1326507024
    %v3060 = vsel %vm3048, %v3042, %v3059
    %v3061 = vsel %vm3047, %v3058, %v3060
    %v3062 = vshll.u32 %v3022, 8
    %v3063 = vmul.u32.u64.compose %v3062, %v3061
    %v3064 = vextract.low.u32 %v3063
    %v3065 = vextract.high.u32 %v3063
    %v3066 = vmul.u32.u64.compose %v3062, %v3057
    %v3067 = vextract.low.u32 %v3066
    %v3068 = vextract.high.u32 %v3066
    %v3069 = vmul.u32 %v3062, %v3053
    %v3070 = vadd.s32 %v3065, %v3067
    %vm3071 = vc.u32 %v3065, %v3067
    %v3072 = vadd.s32 %v3068, 1
    %v3073 = vsel %vm3071, %v3072, %v3068
    %v3074 = vadd.s32 %v3069, %v3073
    %v3075 = vadd.s32 %v3074, 536870912
    %v3076 = vshrl.u32 %v3075, 30
    %v3077 = vshll.u32 %v3076, 30
    %v3078 = vsub.s32 %v3074, %v3077
    %vm3079 = vcmp.lt.s32.totalorder %v3078, 0
    %v3080 = vsub.s32 0, %v3078
    %v3081 = vsel %vm3079, %v3080, %v3078
    %v3082 = vclz %v3081
    %v3083 = vsub.s32 %v3082, 2
    %vm3084 = vcmp.gt.s32.totalorder 0, %v3083
    %v3085 = vsel %vm3084, 0, %v3083
    %v3086 = vsub.s32 32, %v3085
    %v3087 = vshll.u32 %v3078, %v3085
    %v3088 = vshrl.u32 %v3070, %v3086
    %v3089 = vor.u32 %v3087, %v3088
    %v3090 = vsub.s32 4294967266, %v3085
    %v3091 = vadd.s32 %v3090, 127
    %v3092 = vshll.u32 %v3091, 23
    %v3093 = vor.u32 4788187, %v3092
    %v3094 = vand.u32 2147483647, %v3093
    %v3096 = vcvt.s32.f32 %v3089
    %v3097 = vmul.f32 %v3096, %v3094
    %v3098 = vxor.u32 %v3097, 2147483648
    %v3099 = vsel %vm3016, %v3098, %v3097
    %v3100 = vsub.s32 4, %v3076
    %v3101 = vsel %vm3016, %v3100, %v3076
    %v3102 = vsel %vm3015, %v145, %v3099
    %v3103 = vsel %vm3015, 0, %v3101
    %v3104 = vcosq.f32.pop %v3102
    %v3105 = vsinq.f32.pop %v3102
    %vm3106 = vweird.f32 %v145
    %v3107 = vadd.s32 %v3103, 3
    %v3108 = vand.u32 %v3107, 3
    %vm3109 = vcmp.lt.s32.totalorder %v3108, 2
    %vm3110 = vcmp.eq.s32.totalorder %v3108, 0
    %v3111 = vxor.u32 %v3105, 2147483648
    %v3112 = vsel %vm3110, %v3104, %v3111
    %vm3113 = vcmp.eq.s32.totalorder %v3108, 2
    %v3114 = vxor.u32 %v3104, 2147483648
    %v3115 = vsel %vm3113, %v3114, %v3105
    %v3116 = vsel %vm3109, %v3112, %v3115
    %v3117 = vsel %vm3106, nan, %v3116
    %v3118 = vand.u32 2147483647, %v232
    %vm3119 = vcmp.le.f32.partialorder %v3118, 0.7853982
    %vm3120 = vcmp.lt.s32.totalorder %v232, 0
    %v3121 = vand.u32 %v232, 2139095040
    %v3122 = vshrl.u32 %v3121, 23
    %v3123 = vsub.s32 %v3122, 127
    %v3124 = vand.u32 2147483647, %v232
    %v3125 = vand.u32 %v3124, 8388607
    %v3126 = vor.u32 %v3125, 8388608
    %v3127 = vsub.s32 0, %v3126
    %v3128 = vadd.s32 %v3123, 1
    %vm3129 = vcmp.gt.s32.totalorder %v3128, 0
    %v3130 = vsel %vm3129, %v3128, 0
    %v3131 = vshrl.u32 %v3130, 5
    %v3132 = vand.u32 %v3130, 31
    %v3133 = vsub.s32 32, %v3132
    %v3134 = vshrl.u32 683565275, %v3133
    %v3135 = vshll.u32 683565275, %v3132
    %v3136 = vshrl.u32 2475754826, %v3133
    %v3137 = vor.u32 %v3135, %v3136
    %v3138 = vshll.u32 2475754826, %v3132
    %v3139 = vshrl.u32 2131351028, %v3133
    %v3140 = vor.u32 %v3138, %v3139
    %v3141 = vshll.u32 2131351028, %v3132
    %v3142 = vshrl.u32 2102212464, %v3133
    %v3143 = vor.u32 %v3141, %v3142
    %v3144 = vshll.u32 2102212464, %v3132
    %v3145 = vshrl.u32 920167782, %v3133
    %v3146 = vor.u32 %v3144, %v3145
    %v3147 = vshll.u32 920167782, %v3132
    %v3148 = vshrl.u32 1326507024, %v3133
    %v3149 = vor.u32 %v3147, %v3148
    %vm3150 = vcmp.lt.s32.totalorder %v3131, 1
    %vm3151 = vcmp.lt.s32.totalorder %v3131, 2
    %vm3152 = vcmp.lt.s32.totalorder %v3131, 3
    %vm3153 = vcmp.lt.s32.totalorder %v3131, 4
    %v3154 = vsel %vm3150, %v3134, %v3137
    %v3155 = vsel %vm3153, %v3143, 2102212464
    %v3156 = vsel %vm3152, %v3140, %v3155
    %v3157 = vsel %vm3151, %v3154, %v3156
    %v3158 = vsel %vm3150, %v3137, %v3140
    %v3159 = vsel %vm3153, %v3146, 920167782
    %v3160 = vsel %vm3152, %v3143, %v3159
    %v3161 = vsel %vm3151, %v3158, %v3160
    %v3162 = vsel %vm3150, %v3140, %v3143
    %v3163 = vsel %vm3153, %v3149, 1326507024
    %v3164 = vsel %vm3152, %v3146, %v3163
    %v3165 = vsel %vm3151, %v3162, %v3164
    %v3166 = vshll.u32 %v3126, 8
    %v3167 = vmul.u32.u64.compose %v3166, %v3165
    %v3168 = vextract.low.u32 %v3167
    %v3169 = vextract.high.u32 %v3167
    %v3170 = vmul.u32.u64.compose %v3166, %v3161
    %v3171 = vextract.low.u32 %v3170
    %v3172 = vextract.high.u32 %v3170
    %v3173 = vmul.u32 %v3166, %v3157
    %v3174 = vadd.s32 %v3169, %v3171
    %vm3175 = vc.u32 %v3169, %v3171
    %v3176 = vadd.s32 %v3172, 1
    %v3177 = vsel %vm3175, %v3176, %v3172
    %v3178 = vadd.s32 %v3173, %v3177
    %v3179 = vadd.s32 %v3178, 536870912
    %v3180 = vshrl.u32 %v3179, 30
    %v3181 = vshll.u32 %v3180, 30
    %v3182 = vsub.s32 %v3178, %v3181
    %vm3183 = vcmp.lt.s32.totalorder %v3182, 0
    %v3184 = vsub.s32 0, %v3182
    %v3185 = vsel %vm3183, %v3184, %v3182
    %v3186 = vclz %v3185
    %v3187 = vsub.s32 %v3186, 2
    %vm3188 = vcmp.gt.s32.totalorder 0, %v3187
    %v3189 = vsel %vm3188, 0, %v3187
    %v3190 = vsub.s32 32, %v3189
    %v3191 = vshll.u32 %v3182, %v3189
    %v3192 = vshrl.u32 %v3174, %v3190
    %v3193 = vor.u32 %v3191, %v3192
    %v3194 = vsub.s32 4294967266, %v3189
    %v3195 = vadd.s32 %v3194, 127
    %v3196 = vshll.u32 %v3195, 23
    %v3197 = vor.u32 4788187, %v3196
    %v3198 = vand.u32 2147483647, %v3197
    %v3200 = vcvt.s32.f32 %v3193
    %v3201 = vmul.f32 %v3200, %v3198
    %v3202 = vxor.u32 %v3201, 2147483648
    %v3203 = vsel %vm3120, %v3202, %v3201
    %v3204 = vsub.s32 4, %v3180
    %v3205 = vsel %vm3120, %v3204, %v3180
    %v3206 = vsel %vm3119, %v232, %v3203
    %v3207 = vsel %vm3119, 0, %v3205
    %v3208 = vcosq.f32.pop %v3206
    %v3209 = vsinq.f32.pop %v3206
    %vm3210 = vweird.f32 %v232
    %v3211 = vadd.s32 %v3207, 3
    %v3212 = vand.u32 %v3211, 3
    %vm3213 = vcmp.lt.s32.totalorder %v3212, 2
    %vm3214 = vcmp.eq.s32.totalorder %v3212, 0
    %v3215 = vxor.u32 %v3209, 2147483648
    %v3216 = vsel %vm3214, %v3208, %v3215
    %vm3217 = vcmp.eq.s32.totalorder %v3212, 2
    %v3218 = vxor.u32 %v3208, 2147483648
    %v3219 = vsel %vm3217, %v3218, %v3209
    %v3220 = vsel %vm3213, %v3216, %v3219
    %v3221 = vsel %vm3210, nan, %v3220
    %v3222 = vand.u32 2147483647, %v234
    %vm3223 = vcmp.le.f32.partialorder %v3222, 0.7853982
    %vm3224 = vcmp.lt.s32.totalorder %v234, 0
    %v3225 = vand.u32 %v234, 2139095040
    %v3226 = vshrl.u32 %v3225, 23
    %v3227 = vsub.s32 %v3226, 127
    %v3228 = vand.u32 2147483647, %v234
    %v3229 = vand.u32 %v3228, 8388607
    %v3230 = vor.u32 %v3229, 8388608
    %v3231 = vsub.s32 0, %v3230
    %v3232 = vadd.s32 %v3227, 1
    %vm3233 = vcmp.gt.s32.totalorder %v3232, 0
    %v3234 = vsel %vm3233, %v3232, 0
    %v3235 = vshrl.u32 %v3234, 5
    %v3236 = vand.u32 %v3234, 31
    %v3237 = vsub.s32 32, %v3236
    %v3238 = vshrl.u32 683565275, %v3237
    %v3239 = vshll.u32 683565275, %v3236
    %v3240 = vshrl.u32 2475754826, %v3237
    %v3241 = vor.u32 %v3239, %v3240
    %v3242 = vshll.u32 2475754826, %v3236
    %v3243 = vshrl.u32 2131351028, %v3237
    %v3244 = vor.u32 %v3242, %v3243
    %v3245 = vshll.u32 2131351028, %v3236
    %v3246 = vshrl.u32 2102212464, %v3237
    %v3247 = vor.u32 %v3245, %v3246
    %v3248 = vshll.u32 2102212464, %v3236
    %v3249 = vshrl.u32 920167782, %v3237
    %v3250 = vor.u32 %v3248, %v3249
    %v3251 = vshll.u32 920167782, %v3236
    %v3252 = vshrl.u32 1326507024, %v3237
    %v3253 = vor.u32 %v3251, %v3252
    %vm3254 = vcmp.lt.s32.totalorder %v3235, 1
    %vm3255 = vcmp.lt.s32.totalorder %v3235, 2
    %vm3256 = vcmp.lt.s32.totalorder %v3235, 3
    %vm3257 = vcmp.lt.s32.totalorder %v3235, 4
    %v3258 = vsel %vm3254, %v3238, %v3241
    %v3259 = vsel %vm3257, %v3247, 2102212464
    %v3260 = vsel %vm3256, %v3244, %v3259
    %v3261 = vsel %vm3255, %v3258, %v3260
    %v3262 = vsel %vm3254, %v3241, %v3244
    %v3263 = vsel %vm3257, %v3250, 920167782
    %v3264 = vsel %vm3256, %v3247, %v3263
    %v3265 = vsel %vm3255, %v3262, %v3264
    %v3266 = vsel %vm3254, %v3244, %v3247
    %v3267 = vsel %vm3257, %v3253, 1326507024
    %v3268 = vsel %vm3256, %v3250, %v3267
    %v3269 = vsel %vm3255, %v3266, %v3268
    %v3270 = vshll.u32 %v3230, 8
    %v3271 = vmul.u32.u64.compose %v3270, %v3269
    %v3272 = vextract.low.u32 %v3271
    %v3273 = vextract.high.u32 %v3271
    %v3274 = vmul.u32.u64.compose %v3270, %v3265
    %v3275 = vextract.low.u32 %v3274
    %v3276 = vextract.high.u32 %v3274
    %v3277 = vmul.u32 %v3270, %v3261
    %v3278 = vadd.s32 %v3273, %v3275
    %vm3279 = vc.u32 %v3273, %v3275
    %v3280 = vadd.s32 %v3276, 1
    %v3281 = vsel %vm3279, %v3280, %v3276
    %v3282 = vadd.s32 %v3277, %v3281
    %v3283 = vadd.s32 %v3282, 536870912
    %v3284 = vshrl.u32 %v3283, 30
    %v3285 = vshll.u32 %v3284, 30
    %v3286 = vsub.s32 %v3282, %v3285
    %vm3287 = vcmp.lt.s32.totalorder %v3286, 0
    %v3288 = vsub.s32 0, %v3286
    %v3289 = vsel %vm3287, %v3288, %v3286
    %v3290 = vclz %v3289
    %v3291 = vsub.s32 %v3290, 2
    %vm3292 = vcmp.gt.s32.totalorder 0, %v3291
    %v3293 = vsel %vm3292, 0, %v3291
    %v3294 = vsub.s32 32, %v3293
    %v3295 = vshll.u32 %v3286, %v3293
    %v3296 = vshrl.u32 %v3278, %v3294
    %v3297 = vor.u32 %v3295, %v3296
    %v3298 = vsub.s32 4294967266, %v3293
    %v3299 = vadd.s32 %v3298, 127
    %v3300 = vshll.u32 %v3299, 23
    %v3301 = vor.u32 4788187, %v3300
    %v3302 = vand.u32 2147483647, %v3301
    %v3304 = vcvt.s32.f32 %v3297
    %v3305 = vmul.f32 %v3304, %v3302
    %v3306 = vxor.u32 %v3305, 2147483648
    %v3307 = vsel %vm3224, %v3306, %v3305
    %v3308 = vsub.s32 4, %v3284
    %v3309 = vsel %vm3224, %v3308, %v3284
    %v3310 = vsel %vm3223, %v234, %v3307
    %v3311 = vsel %vm3223, 0, %v3309
    %v3312 = vcosq.f32.pop %v3310
    %v3313 = vsinq.f32.pop %v3310
    %vm3314 = vweird.f32 %v234
    %v3315 = vadd.s32 %v3311, 3
    %v3316 = vand.u32 %v3315, 3
    %vm3317 = vcmp.lt.s32.totalorder %v3316, 2
    %vm3318 = vcmp.eq.s32.totalorder %v3316, 0
    %v3319 = vxor.u32 %v3313, 2147483648
    %v3320 = vsel %vm3318, %v3312, %v3319
    %vm3321 = vcmp.eq.s32.totalorder %v3316, 2
    %v3322 = vxor.u32 %v3312, 2147483648
    %v3323 = vsel %vm3321, %v3322, %v3313
    %v3324 = vsel %vm3317, %v3320, %v3323
    %v3325 = vsel %vm3314, nan, %v3324
    %v3326 = vand.u32 2147483647, %v321
    %vm3327 = vcmp.le.f32.partialorder %v3326, 0.7853982
    %vm3328 = vcmp.lt.s32.totalorder %v321, 0
    %v3329 = vand.u32 %v321, 2139095040
    %v3330 = vshrl.u32 %v3329, 23
    %v3331 = vsub.s32 %v3330, 127
    %v3332 = vand.u32 2147483647, %v321
    %v3333 = vand.u32 %v3332, 8388607
    %v3334 = vor.u32 %v3333, 8388608
    %v3335 = vsub.s32 0, %v3334
    %v3336 = vadd.s32 %v3331, 1
    %vm3337 = vcmp.gt.s32.totalorder %v3336, 0
    %v3338 = vsel %vm3337, %v3336, 0
    %v3339 = vshrl.u32 %v3338, 5
    %v3340 = vand.u32 %v3338, 31
    %v3341 = vsub.s32 32, %v3340
    %v3342 = vshrl.u32 683565275, %v3341
    %v3343 = vshll.u32 683565275, %v3340
    %v3344 = vshrl.u32 2475754826, %v3341
    %v3345 = vor.u32 %v3343, %v3344
    %v3346 = vshll.u32 2475754826, %v3340
    %v3347 = vshrl.u32 2131351028, %v3341
    %v3348 = vor.u32 %v3346, %v3347
    %v3349 = vshll.u32 2131351028, %v3340
    %v3350 = vshrl.u32 2102212464, %v3341
    %v3351 = vor.u32 %v3349, %v3350
    %v3352 = vshll.u32 2102212464, %v3340
    %v3353 = vshrl.u32 920167782, %v3341
    %v3354 = vor.u32 %v3352, %v3353
    %v3355 = vshll.u32 920167782, %v3340
    %v3356 = vshrl.u32 1326507024, %v3341
    %v3357 = vor.u32 %v3355, %v3356
    %vm3358 = vcmp.lt.s32.totalorder %v3339, 1
    %vm3359 = vcmp.lt.s32.totalorder %v3339, 2
    %vm3360 = vcmp.lt.s32.totalorder %v3339, 3
    %vm3361 = vcmp.lt.s32.totalorder %v3339, 4
    %v3362 = vsel %vm3358, %v3342, %v3345
    %v3363 = vsel %vm3361, %v3351, 2102212464
    %v3364 = vsel %vm3360, %v3348, %v3363
    %v3365 = vsel %vm3359, %v3362, %v3364
    %v3366 = vsel %vm3358, %v3345, %v3348
    %v3367 = vsel %vm3361, %v3354, 920167782
    %v3368 = vsel %vm3360, %v3351, %v3367
    %v3369 = vsel %vm3359, %v3366, %v3368
    %v3370 = vsel %vm3358, %v3348, %v3351
    %v3371 = vsel %vm3361, %v3357, 1326507024
    %v3372 = vsel %vm3360, %v3354, %v3371
    %v3373 = vsel %vm3359, %v3370, %v3372
    %v3374 = vshll.u32 %v3334, 8
    %v3375 = vmul.u32.u64.compose %v3374, %v3373
    %v3376 = vextract.low.u32 %v3375
    %v3377 = vextract.high.u32 %v3375
    %v3378 = vmul.u32.u64.compose %v3374, %v3369
    %v3379 = vextract.low.u32 %v3378
    %v3380 = vextract.high.u32 %v3378
    %v3381 = vmul.u32 %v3374, %v3365
    %v3382 = vadd.s32 %v3377, %v3379
    %vm3383 = vc.u32 %v3377, %v3379
    %v3384 = vadd.s32 %v3380, 1
    %v3385 = vsel %vm3383, %v3384, %v3380
    %v3386 = vadd.s32 %v3381, %v3385
    %v3387 = vadd.s32 %v3386, 536870912
    %v3388 = vshrl.u32 %v3387, 30
    %v3389 = vshll.u32 %v3388, 30
    %v3390 = vsub.s32 %v3386, %v3389
    %vm3391 = vcmp.lt.s32.totalorder %v3390, 0
    %v3392 = vsub.s32 0, %v3390
    %v3393 = vsel %vm3391, %v3392, %v3390
    %v3394 = vclz %v3393
    %v3395 = vsub.s32 %v3394, 2
    %vm3396 = vcmp.gt.s32.totalorder 0, %v3395
    %v3397 = vsel %vm3396, 0, %v3395
    %v3398 = vsub.s32 32, %v3397
    %v3399 = vshll.u32 %v3390, %v3397
    %v3400 = vshrl.u32 %v3382, %v3398
    %v3401 = vor.u32 %v3399, %v3400
    %v3402 = vsub.s32 4294967266, %v3397
    %v3403 = vadd.s32 %v3402, 127
    %v3404 = vshll.u32 %v3403, 23
    %v3405 = vor.u32 4788187, %v3404
    %v3406 = vand.u32 2147483647, %v3405
    %v3408 = vcvt.s32.f32 %v3401
    %v3409 = vmul.f32 %v3408, %v3406
    %v3410 = vxor.u32 %v3409, 2147483648
    %v3411 = vsel %vm3328, %v3410, %v3409
    %v3412 = vsub.s32 4, %v3388
    %v3413 = vsel %vm3328, %v3412, %v3388
    %v3414 = vsel %vm3327, %v321, %v3411
    %v3415 = vsel %vm3327, 0, %v3413
    %v3416 = vcosq.f32.pop %v3414
    %v3417 = vsinq.f32.pop %v3414
    %vm3418 = vweird.f32 %v321
    %v3419 = vadd.s32 %v3415, 3
    %v3420 = vand.u32 %v3419, 3
    %vm3421 = vcmp.lt.s32.totalorder %v3420, 2
    %vm3422 = vcmp.eq.s32.totalorder %v3420, 0
    %v3423 = vxor.u32 %v3417, 2147483648
    %v3424 = vsel %vm3422, %v3416, %v3423
    %vm3425 = vcmp.eq.s32.totalorder %v3420, 2
    %v3426 = vxor.u32 %v3416, 2147483648
    %v3427 = vsel %vm3425, %v3426, %v3417
    %v3428 = vsel %vm3421, %v3424, %v3427
    %v3429 = vsel %vm3418, nan, %v3428
    %v3430 = vand.u32 2147483647, %v323
    %vm3431 = vcmp.le.f32.partialorder %v3430, 0.7853982
    %vm3432 = vcmp.lt.s32.totalorder %v323, 0
    %v3433 = vand.u32 %v323, 2139095040
    %v3434 = vshrl.u32 %v3433, 23
    %v3435 = vsub.s32 %v3434, 127
    %v3436 = vand.u32 2147483647, %v323
    %v3437 = vand.u32 %v3436, 8388607
    %v3438 = vor.u32 %v3437, 8388608
    %v3439 = vsub.s32 0, %v3438
    %v3440 = vadd.s32 %v3435, 1
    %vm3441 = vcmp.gt.s32.totalorder %v3440, 0
    %v3442 = vsel %vm3441, %v3440, 0
    %v3443 = vshrl.u32 %v3442, 5
    %v3444 = vand.u32 %v3442, 31
    %v3445 = vsub.s32 32, %v3444
    %v3446 = vshrl.u32 683565275, %v3445
    %v3447 = vshll.u32 683565275, %v3444
    %v3448 = vshrl.u32 2475754826, %v3445
    %v3449 = vor.u32 %v3447, %v3448
    %v3450 = vshll.u32 2475754826, %v3444
    %v3451 = vshrl.u32 2131351028, %v3445
    %v3452 = vor.u32 %v3450, %v3451
    %v3453 = vshll.u32 2131351028, %v3444
    %v3454 = vshrl.u32 2102212464, %v3445
    %v3455 = vor.u32 %v3453, %v3454
    %v3456 = vshll.u32 2102212464, %v3444
    %v3457 = vshrl.u32 920167782, %v3445
    %v3458 = vor.u32 %v3456, %v3457
    %v3459 = vshll.u32 920167782, %v3444
    %v3460 = vshrl.u32 1326507024, %v3445
    %v3461 = vor.u32 %v3459, %v3460
    %vm3462 = vcmp.lt.s32.totalorder %v3443, 1
    %vm3463 = vcmp.lt.s32.totalorder %v3443, 2
    %vm3464 = vcmp.lt.s32.totalorder %v3443, 3
    %vm3465 = vcmp.lt.s32.totalorder %v3443, 4
    %v3466 = vsel %vm3462, %v3446, %v3449
    %v3467 = vsel %vm3465, %v3455, 2102212464
    %v3468 = vsel %vm3464, %v3452, %v3467
    %v3469 = vsel %vm3463, %v3466, %v3468
    %v3470 = vsel %vm3462, %v3449, %v3452
    %v3471 = vsel %vm3465, %v3458, 920167782
    %v3472 = vsel %vm3464, %v3455, %v3471
    %v3473 = vsel %vm3463, %v3470, %v3472
    %v3474 = vsel %vm3462, %v3452, %v3455
    %v3475 = vsel %vm3465, %v3461, 1326507024
    %v3476 = vsel %vm3464, %v3458, %v3475
    %v3477 = vsel %vm3463, %v3474, %v3476
    %v3478 = vshll.u32 %v3438, 8
    %v3479 = vmul.u32.u64.compose %v3478, %v3477
    %v3480 = vextract.low.u32 %v3479
    %v3481 = vextract.high.u32 %v3479
    %v3482 = vmul.u32.u64.compose %v3478, %v3473
    %v3483 = vextract.low.u32 %v3482
    %v3484 = vextract.high.u32 %v3482
    %v3485 = vmul.u32 %v3478, %v3469
    %v3486 = vadd.s32 %v3481, %v3483
    %vm3487 = vc.u32 %v3481, %v3483
    %v3488 = vadd.s32 %v3484, 1
    %v3489 = vsel %vm3487, %v3488, %v3484
    %v3490 = vadd.s32 %v3485, %v3489
    %v3491 = vadd.s32 %v3490, 536870912
    %v3492 = vshrl.u32 %v3491, 30
    %v3493 = vshll.u32 %v3492, 30
    %v3494 = vsub.s32 %v3490, %v3493
    %vm3495 = vcmp.lt.s32.totalorder %v3494, 0
    %v3496 = vsub.s32 0, %v3494
    %v3497 = vsel %vm3495, %v3496, %v3494
    %v3498 = vclz %v3497
    %v3499 = vsub.s32 %v3498, 2
    %vm3500 = vcmp.gt.s32.totalorder 0, %v3499
    %v3501 = vsel %vm3500, 0, %v3499
    %v3502 = vsub.s32 32, %v3501
    %v3503 = vshll.u32 %v3494, %v3501
    %v3504 = vshrl.u32 %v3486, %v3502
    %v3505 = vor.u32 %v3503, %v3504
    %v3506 = vsub.s32 4294967266, %v3501
    %v3507 = vadd.s32 %v3506, 127
    %v3508 = vshll.u32 %v3507, 23
    %v3509 = vor.u32 4788187, %v3508
    %v3510 = vand.u32 2147483647, %v3509
    %v3512 = vcvt.s32.f32 %v3505
    %v3513 = vmul.f32 %v3512, %v3510
    %v3514 = vxor.u32 %v3513, 2147483648
    %v3515 = vsel %vm3432, %v3514, %v3513
    %v3516 = vsub.s32 4, %v3492
    %v3517 = vsel %vm3432, %v3516, %v3492
    %v3518 = vsel %vm3431, %v323, %v3515
    %v3519 = vsel %vm3431, 0, %v3517
    %v3520 = vcosq.f32.pop %v3518
    %v3521 = vsinq.f32.pop %v3518
    %vm3522 = vweird.f32 %v323
    %v3523 = vadd.s32 %v3519, 3
    %v3524 = vand.u32 %v3523, 3
    %vm3525 = vcmp.lt.s32.totalorder %v3524, 2
    %vm3526 = vcmp.eq.s32.totalorder %v3524, 0
    %v3527 = vxor.u32 %v3521, 2147483648
    %v3528 = vsel %vm3526, %v3520, %v3527
    %vm3529 = vcmp.eq.s32.totalorder %v3524, 2
    %v3530 = vxor.u32 %v3520, 2147483648
    %v3531 = vsel %vm3529, %v3530, %v3521
    %v3532 = vsel %vm3525, %v3528, %v3531
    %v3533 = vsel %vm3522, nan, %v3532
    %v3534 = vand.u32 2147483647, %v410
    %vm3535 = vcmp.le.f32.partialorder %v3534, 0.7853982
    %vm3536 = vcmp.lt.s32.totalorder %v410, 0
    %v3537 = vand.u32 %v410, 2139095040
    %v3538 = vshrl.u32 %v3537, 23
    %v3539 = vsub.s32 %v3538, 127
    %v3540 = vand.u32 2147483647, %v410
    %v3541 = vand.u32 %v3540, 8388607
    %v3542 = vor.u32 %v3541, 8388608
    %v3543 = vsub.s32 0, %v3542
    %v3544 = vadd.s32 %v3539, 1
    %vm3545 = vcmp.gt.s32.totalorder %v3544, 0
    %v3546 = vsel %vm3545, %v3544, 0
    %v3547 = vshrl.u32 %v3546, 5
    %v3548 = vand.u32 %v3546, 31
    %v3549 = vsub.s32 32, %v3548
    %v3550 = vshrl.u32 683565275, %v3549
    %v3551 = vshll.u32 683565275, %v3548
    %v3552 = vshrl.u32 2475754826, %v3549
    %v3553 = vor.u32 %v3551, %v3552
    %v3554 = vshll.u32 2475754826, %v3548
    %v3555 = vshrl.u32 2131351028, %v3549
    %v3556 = vor.u32 %v3554, %v3555
    %v3557 = vshll.u32 2131351028, %v3548
    %v3558 = vshrl.u32 2102212464, %v3549
    %v3559 = vor.u32 %v3557, %v3558
    %v3560 = vshll.u32 2102212464, %v3548
    %v3561 = vshrl.u32 920167782, %v3549
    %v3562 = vor.u32 %v3560, %v3561
    %v3563 = vshll.u32 920167782, %v3548
    %v3564 = vshrl.u32 1326507024, %v3549
    %v3565 = vor.u32 %v3563, %v3564
    %vm3566 = vcmp.lt.s32.totalorder %v3547, 1
    %vm3567 = vcmp.lt.s32.totalorder %v3547, 2
    %vm3568 = vcmp.lt.s32.totalorder %v3547, 3
    %vm3569 = vcmp.lt.s32.totalorder %v3547, 4
    %v3570 = vsel %vm3566, %v3550, %v3553
    %v3571 = vsel %vm3569, %v3559, 2102212464
    %v3572 = vsel %vm3568, %v3556, %v3571
    %v3573 = vsel %vm3567, %v3570, %v3572
    %v3574 = vsel %vm3566, %v3553, %v3556
    %v3575 = vsel %vm3569, %v3562, 920167782
    %v3576 = vsel %vm3568, %v3559, %v3575
    %v3577 = vsel %vm3567, %v3574, %v3576
    %v3578 = vsel %vm3566, %v3556, %v3559
    %v3579 = vsel %vm3569, %v3565, 1326507024
    %v3580 = vsel %vm3568, %v3562, %v3579
    %v3581 = vsel %vm3567, %v3578, %v3580
    %v3582 = vshll.u32 %v3542, 8
    %v3583 = vmul.u32.u64.compose %v3582, %v3581
    %v3584 = vextract.low.u32 %v3583
    %v3585 = vextract.high.u32 %v3583
    %v3586 = vmul.u32.u64.compose %v3582, %v3577
    %v3587 = vextract.low.u32 %v3586
    %v3588 = vextract.high.u32 %v3586
    %v3589 = vmul.u32 %v3582, %v3573
    %v3590 = vadd.s32 %v3585, %v3587
    %vm3591 = vc.u32 %v3585, %v3587
    %v3592 = vadd.s32 %v3588, 1
    %v3593 = vsel %vm3591, %v3592, %v3588
    %v3594 = vadd.s32 %v3589, %v3593
    %v3595 = vadd.s32 %v3594, 536870912
    %v3596 = vshrl.u32 %v3595, 30
    %v3597 = vshll.u32 %v3596, 30
    %v3598 = vsub.s32 %v3594, %v3597
    %vm3599 = vcmp.lt.s32.totalorder %v3598, 0
    %v3600 = vsub.s32 0, %v3598
    %v3601 = vsel %vm3599, %v3600, %v3598
    %v3602 = vclz %v3601
    %v3603 = vsub.s32 %v3602, 2
    %vm3604 = vcmp.gt.s32.totalorder 0, %v3603
    %v3605 = vsel %vm3604, 0, %v3603
    %v3606 = vsub.s32 32, %v3605
    %v3607 = vshll.u32 %v3598, %v3605
    %v3608 = vshrl.u32 %v3590, %v3606
    %v3609 = vor.u32 %v3607, %v3608
    %v3610 = vsub.s32 4294967266, %v3605
    %v3611 = vadd.s32 %v3610, 127
    %v3612 = vshll.u32 %v3611, 23
    %v3613 = vor.u32 4788187, %v3612
    %v3614 = vand.u32 2147483647, %v3613
    %v3616 = vcvt.s32.f32 %v3609
    %v3617 = vmul.f32 %v3616, %v3614
    %v3618 = vxor.u32 %v3617, 2147483648
    %v3619 = vsel %vm3536, %v3618, %v3617
    %v3620 = vsub.s32 4, %v3596
    %v3621 = vsel %vm3536, %v3620, %v3596
    %v3622 = vsel %vm3535, %v410, %v3619
    %v3623 = vsel %vm3535, 0, %v3621
    %v3624 = vcosq.f32.pop %v3622
    %v3625 = vsinq.f32.pop %v3622
    %vm3626 = vweird.f32 %v410
    %v3627 = vadd.s32 %v3623, 3
    %v3628 = vand.u32 %v3627, 3
    %vm3629 = vcmp.lt.s32.totalorder %v3628, 2
    %vm3630 = vcmp.eq.s32.totalorder %v3628, 0
    %v3631 = vxor.u32 %v3625, 2147483648
    %v3632 = vsel %vm3630, %v3624, %v3631
    %vm3633 = vcmp.eq.s32.totalorder %v3628, 2
    %v3634 = vxor.u32 %v3624, 2147483648
    %v3635 = vsel %vm3633, %v3634, %v3625
    %v3636 = vsel %vm3629, %v3632, %v3635
    %v3637 = vsel %vm3626, nan, %v3636
    %v3638 = vand.u32 2147483647, %v412
    %vm3639 = vcmp.le.f32.partialorder %v3638, 0.7853982
    %vm3640 = vcmp.lt.s32.totalorder %v412, 0
    %v3641 = vand.u32 %v412, 2139095040
    %v3642 = vshrl.u32 %v3641, 23
    %v3643 = vsub.s32 %v3642, 127
    %v3644 = vand.u32 2147483647, %v412
    %v3645 = vand.u32 %v3644, 8388607
    %v3646 = vor.u32 %v3645, 8388608
    %v3647 = vsub.s32 0, %v3646
    %v3648 = vadd.s32 %v3643, 1
    %vm3649 = vcmp.gt.s32.totalorder %v3648, 0
    %v3650 = vsel %vm3649, %v3648, 0
    %v3651 = vshrl.u32 %v3650, 5
    %v3652 = vand.u32 %v3650, 31
    %v3653 = vsub.s32 32, %v3652
    %v3654 = vshrl.u32 683565275, %v3653
    %v3655 = vshll.u32 683565275, %v3652
    %v3656 = vshrl.u32 2475754826, %v3653
    %v3657 = vor.u32 %v3655, %v3656
    %v3658 = vshll.u32 2475754826, %v3652
    %v3659 = vshrl.u32 2131351028, %v3653
    %v3660 = vor.u32 %v3658, %v3659
    %v3661 = vshll.u32 2131351028, %v3652
    %v3662 = vshrl.u32 2102212464, %v3653
    %v3663 = vor.u32 %v3661, %v3662
    %v3664 = vshll.u32 2102212464, %v3652
    %v3665 = vshrl.u32 920167782, %v3653
    %v3666 = vor.u32 %v3664, %v3665
    %v3667 = vshll.u32 920167782, %v3652
    %v3668 = vshrl.u32 1326507024, %v3653
    %v3669 = vor.u32 %v3667, %v3668
    %vm3670 = vcmp.lt.s32.totalorder %v3651, 1
    %vm3671 = vcmp.lt.s32.totalorder %v3651, 2
    %vm3672 = vcmp.lt.s32.totalorder %v3651, 3
    %vm3673 = vcmp.lt.s32.totalorder %v3651, 4
    %v3674 = vsel %vm3670, %v3654, %v3657
    %v3675 = vsel %vm3673, %v3663, 2102212464
    %v3676 = vsel %vm3672, %v3660, %v3675
    %v3677 = vsel %vm3671, %v3674, %v3676
    %v3678 = vsel %vm3670, %v3657, %v3660
    %v3679 = vsel %vm3673, %v3666, 920167782
    %v3680 = vsel %vm3672, %v3663, %v3679
    %v3681 = vsel %vm3671, %v3678, %v3680
    %v3682 = vsel %vm3670, %v3660, %v3663
    %v3683 = vsel %vm3673, %v3669, 1326507024
    %v3684 = vsel %vm3672, %v3666, %v3683
    %v3685 = vsel %vm3671, %v3682, %v3684
    %v3686 = vshll.u32 %v3646, 8
    %v3687 = vmul.u32.u64.compose %v3686, %v3685
    %v3688 = vextract.low.u32 %v3687
    %v3689 = vextract.high.u32 %v3687
    %v3690 = vmul.u32.u64.compose %v3686, %v3681
    %v3691 = vextract.low.u32 %v3690
    %v3692 = vextract.high.u32 %v3690
    %v3693 = vmul.u32 %v3686, %v3677
    %v3694 = vadd.s32 %v3689, %v3691
    %vm3695 = vc.u32 %v3689, %v3691
    %v3696 = vadd.s32 %v3692, 1
    %v3697 = vsel %vm3695, %v3696, %v3692
    %v3698 = vadd.s32 %v3693, %v3697
    %v3699 = vadd.s32 %v3698, 536870912
    %v3700 = vshrl.u32 %v3699, 30
    %v3701 = vshll.u32 %v3700, 30
    %v3702 = vsub.s32 %v3698, %v3701
    %vm3703 = vcmp.lt.s32.totalorder %v3702, 0
    %v3704 = vsub.s32 0, %v3702
    %v3705 = vsel %vm3703, %v3704, %v3702
    %v3706 = vclz %v3705
    %v3707 = vsub.s32 %v3706, 2
    %vm3708 = vcmp.gt.s32.totalorder 0, %v3707
    %v3709 = vsel %vm3708, 0, %v3707
    %v3710 = vsub.s32 32, %v3709
    %v3711 = vshll.u32 %v3702, %v3709
    %v3712 = vshrl.u32 %v3694, %v3710
    %v3713 = vor.u32 %v3711, %v3712
    %v3714 = vsub.s32 4294967266, %v3709
    %v3715 = vadd.s32 %v3714, 127
    %v3716 = vshll.u32 %v3715, 23
    %v3717 = vor.u32 4788187, %v3716
    %v3718 = vand.u32 2147483647, %v3717
    %v3720 = vcvt.s32.f32 %v3713
    %v3721 = vmul.f32 %v3720, %v3718
    %v3722 = vxor.u32 %v3721, 2147483648
    %v3723 = vsel %vm3640, %v3722, %v3721
    %v3724 = vsub.s32 4, %v3700
    %v3725 = vsel %vm3640, %v3724, %v3700
    %v3726 = vsel %vm3639, %v412, %v3723
    %v3727 = vsel %vm3639, 0, %v3725
    %v3728 = vcosq.f32.pop %v3726
    %v3729 = vsinq.f32.pop %v3726
    %vm3730 = vweird.f32 %v412
    %v3731 = vadd.s32 %v3727, 3
    %v3732 = vand.u32 %v3731, 3
    %vm3733 = vcmp.lt.s32.totalorder %v3732, 2
    %vm3734 = vcmp.eq.s32.totalorder %v3732, 0
    %v3735 = vxor.u32 %v3729, 2147483648
    %v3736 = vsel %vm3734, %v3728, %v3735
    %vm3737 = vcmp.eq.s32.totalorder %v3732, 2
    %v3738 = vxor.u32 %v3728, 2147483648
    %v3739 = vsel %vm3737, %v3738, %v3729
    %v3740 = vsel %vm3733, %v3736, %v3739
    %v3741 = vsel %vm3730, nan, %v3740
    %v3742 = vld [vmem:[%s1 + $0x20] sm:$0xff]
    %v3743 = vld [vmem:[%s1 + $0x28] sm:$0xff]
    %v3744 = vld [vmem:[%s1 + $0x30] sm:$0xff]
    %v3745 = vld [vmem:[%s1 + $0x38] sm:$0xff]
    %3747 = vset.pattern.permute.xlu0 32
    %3748 = vperm.xlu0 %3747, %v3742
    %v3749 = vpop.permute.xlu0 %3748
    %3752 = vset.pattern.permute.xlu0 32
    %3753 = vperm.xlu0 %3752, %v3743
    %v3754 = vpop.permute.xlu0 %3753
    %3757 = vset.pattern.permute.xlu0 32
    %3758 = vperm.xlu0 %3757, %v3744
    %v3759 = vpop.permute.xlu0 %3758
    %3762 = vset.pattern.permute.xlu0 32
    %3763 = vperm.xlu0 %3762, %v3745
    %v3764 = vpop.permute.xlu0 %3763
    %vm3766 = vcmask 261120
    %v3767 = vsel %vm3766, %v3742, 0
    %v3769 = vsel %vm3766, %v3743, 0
    %v3771 = vsel %vm3766, %v3744, 0
    %v3773 = vsel %vm3766, %v3745, 0
    %3775 = vmatprep.subr.mxu0 0.0
    %3776 = vmatpush1.msra.mxu0 0.0
    %3777 = vmatprep.subr.mxu0 0.0
    %3778 = vmatpush1.msra.mxu0 0.0
    %3779 = vmatprep.subr.mxu0 0.0
    %3780 = vmatpush1.msra.mxu0 0.0
    %3781 = vmatprep.subr.mxu0 0.0
    %3782 = vmatpush1.msra.mxu0 0.0
    %3783 = vmatprep.subr.mxu0 0.0
    %3784 = vmatpush1.msra.mxu0 0.0
    %3785 = vmatprep.subr.mxu0 0.0
    %3786 = vmatpush1.msra.mxu0 0.0
    %3787 = vmatprep.subr.mxu0 0.0
    %3788 = vmatpush1.msra.mxu0 0.0
    %3789 = vmatprep.subr.mxu0 0.0
    %3790 = vmatpush1.msra.mxu0 0.0
    %3791 = vmatprep.subr.mxu0 0.0
    %3792 = vmatpush1.msra.mxu0 0.0
    %3793 = vmatprep.subr.mxu0 0.0
    %3794 = vmatpush1.msra.mxu0 0.0
    %3795 = vmatprep.subr.mxu0 0.0
    %3796 = vmatpush1.msra.mxu0 0.0
    %3797 = vmatprep.subr.mxu0 0.0
    %3798 = vmatpush1.msra.mxu0 0.0
    %3799 = vmatprep.subr.mxu0 %v3117
    %3800 = vmatpush1.msra.mxu0 %v3013
    %3801 = vmatprep.subr.mxu0 %v2285
    %3802 = vmatpush1.msra.mxu0 %v2181
    %3803 = vmatprep.subr.mxu0 %v1453
    %3804 = vmatpush1.msra.mxu0 %v1349
    %3805 = vmatprep.subr.mxu0 %v621
    %3806 = vmatpush1.msra.mxu0 %v517
    %3807 = vmatprep.subr.mxu0 0.0
    %3808 = vmatpush2.msra.mxu0 0.0
    %3809 = vmatprep.subr.mxu0 0.0
    %3810 = vmatpush2.msra.mxu0 0.0
    %3811 = vmatprep.subr.mxu0 0.0
    %3812 = vmatpush2.msra.mxu0 0.0
    %3813 = vmatprep.subr.mxu0 0.0
    %3814 = vmatpush2.msra.mxu0 0.0
    %3815 = vmatprep.subr.mxu0 0.0
    %3816 = vmatpush2.msra.mxu0 0.0
    %3817 = vmatprep.subr.mxu0 0.0
    %3818 = vmatpush2.msra.mxu0 0.0
    %3819 = vmatprep.subr.mxu0 0.0
    %3820 = vmatpush2.msra.mxu0 0.0
    %3821 = vmatprep.subr.mxu0 0.0
    %3822 = vmatpush2.msra.mxu0 0.0
    %3823 = vmatprep.subr.mxu0 0.0
    %3824 = vmatpush2.msra.mxu0 0.0
    %3825 = vmatprep.subr.mxu0 0.0
    %3826 = vmatpush2.msra.mxu0 0.0
    %3827 = vmatprep.subr.mxu0 0.0
    %3828 = vmatpush2.msra.mxu0 0.0
    %3829 = vmatprep.subr.mxu0 0.0
    %3830 = vmatpush2.msra.mxu0 0.0
    %3831 = vmatprep.subr.mxu0 0.0
    %3832 = vmatpush2.msra.mxu0 0.0
    %3833 = vmatprep.subr.mxu0 0.0
    %3834 = vmatpush2.msra.mxu0 0.0
    %3835 = vmatprep.subr.mxu0 0.0
    %3836 = vmatpush2.msra.mxu0 0.0
    %3837 = vmatprep.subr.mxu0 0.0
    %3838 = vmatpush2.msra.mxu0 0.0
    %3839 = vmatprep.mubr.f32.mxu0 0.0
    %3840 = vmatmul.mubr.f32.gmra.mxu0 %v3767
    %v3841 = vpop.f32.mrf.mxu0
    %v3842 = vadd.f32 %v3749, %v3841
    %v3843 = vpop.f32.mrf.mxu0
    %v3844 = vadd.f32 %v3749, %v3843
    %3845 = vmatprep.mubr.f32.mxu0 0.0
    %3846 = vmatmul.mubr.f32.gmra.mxu0 %v3769
    %v3847 = vpop.f32.mrf.mxu0
    %v3848 = vadd.f32 %v3754, %v3847
    %v3849 = vpop.f32.mrf.mxu0
    %v3850 = vadd.f32 %v3754, %v3849
    %3851 = vmatprep.mubr.f32.mxu0 0.0
    %3852 = vmatmul.mubr.f32.gmra.mxu0 %v3771
    %v3853 = vpop.f32.mrf.mxu0
    %v3854 = vadd.f32 %v3759, %v3853
    %v3855 = vpop.f32.mrf.mxu0
    %v3856 = vadd.f32 %v3759, %v3855
    %3857 = vmatprep.mubr.f32.mxu0 0.0
    %3858 = vmatmul.mubr.f32.gmra.mxu0 %v3773
    %v3859 = vpop.f32.mrf.mxu0
    %v3860 = vadd.f32 %v3764, %v3859
    %v3861 = vpop.f32.mrf.mxu0
    %v3862 = vadd.f32 %v3764, %v3861
    %3863 = vdwg.mxu0
    %3864 = vmatprep.subr.mxu0 0.0
    %3865 = vmatpush1.msra.mxu0 0.0
    %3866 = vmatprep.subr.mxu0 0.0
    %3867 = vmatpush1.msra.mxu0 0.0
    %3868 = vmatprep.subr.mxu0 0.0
    %3869 = vmatpush1.msra.mxu0 0.0
    %3870 = vmatprep.subr.mxu0 0.0
    %3871 = vmatpush1.msra.mxu0 0.0
    %3872 = vmatprep.subr.mxu0 0.0
    %3873 = vmatpush1.msra.mxu0 0.0
    %3874 = vmatprep.subr.mxu0 0.0
    %3875 = vmatpush1.msra.mxu0 0.0
    %3876 = vmatprep.subr.mxu0 0.0
    %3877 = vmatpush1.msra.mxu0 0.0
    %3878 = vmatprep.subr.mxu0 0.0
    %3879 = vmatpush1.msra.mxu0 0.0
    %3880 = vmatprep.subr.mxu0 0.0
    %3881 = vmatpush1.msra.mxu0 0.0
    %3882 = vmatprep.subr.mxu0 0.0
    %3883 = vmatpush1.msra.mxu0 0.0
    %3884 = vmatprep.subr.mxu0 0.0
    %3885 = vmatpush1.msra.mxu0 0.0
    %3886 = vmatprep.subr.mxu0 0.0
    %3887 = vmatpush1.msra.mxu0 0.0
    %3888 = vmatprep.subr.mxu0 %v3325
    %3889 = vmatpush1.msra.mxu0 %v3221
    %3890 = vmatprep.subr.mxu0 %v2493
    %3891 = vmatpush1.msra.mxu0 %v2389
    %3892 = vmatprep.subr.mxu0 %v1661
    %3893 = vmatpush1.msra.mxu0 %v1557
    %3894 = vmatprep.subr.mxu0 %v829
    %3895 = vmatpush1.msra.mxu0 %v725
    %3896 = vmatprep.subr.mxu0 0.0
    %3897 = vmatpush2.msra.mxu0 0.0
    %3898 = vmatprep.subr.mxu0 0.0
    %3899 = vmatpush2.msra.mxu0 0.0
    %3900 = vmatprep.subr.mxu0 0.0
    %3901 = vmatpush2.msra.mxu0 0.0
    %3902 = vmatprep.subr.mxu0 0.0
    %3903 = vmatpush2.msra.mxu0 0.0
    %3904 = vmatprep.subr.mxu0 0.0
    %3905 = vmatpush2.msra.mxu0 0.0
    %3906 = vmatprep.subr.mxu0 0.0
    %3907 = vmatpush2.msra.mxu0 0.0
    %3908 = vmatprep.subr.mxu0 0.0
    %3909 = vmatpush2.msra.mxu0 0.0
    %3910 = vmatprep.subr.mxu0 0.0
    %3911 = vmatpush2.msra.mxu0 0.0
    %3912 = vmatprep.subr.mxu0 0.0
    %3913 = vmatpush2.msra.mxu0 0.0
    %3914 = vmatprep.subr.mxu0 0.0
    %3915 = vmatpush2.msra.mxu0 0.0
    %3916 = vmatprep.subr.mxu0 0.0
    %3917 = vmatpush2.msra.mxu0 0.0
    %3918 = vmatprep.subr.mxu0 0.0
    %3919 = vmatpush2.msra.mxu0 0.0
    %3920 = vmatprep.subr.mxu0 0.0
    %3921 = vmatpush2.msra.mxu0 0.0
    %3922 = vmatprep.subr.mxu0 0.0
    %3923 = vmatpush2.msra.mxu0 0.0
    %3924 = vmatprep.subr.mxu0 0.0
    %3925 = vmatpush2.msra.mxu0 0.0
    %3926 = vmatprep.subr.mxu0 0.0
    %3927 = vmatpush2.msra.mxu0 0.0
    %3928 = vmatprep.mubr.f32.mxu0 0.0
    %3929 = vmatmul.mubr.f32.gmra.mxu0 %v3767
    %v3930 = vpop.f32.mrf.mxu0
    %v3931 = vadd.f32 %v3749, %v3930
    %v3932 = vpop.f32.mrf.mxu0
    %v3933 = vadd.f32 %v3749, %v3932
    %3934 = vmatprep.mubr.f32.mxu0 0.0
    %3935 = vmatmul.mubr.f32.gmra.mxu0 %v3769
    %v3936 = vpop.f32.mrf.mxu0
    %v3937 = vadd.f32 %v3754, %v3936
    %v3938 = vpop.f32.mrf.mxu0
    %v3939 = vadd.f32 %v3754, %v3938
    %3940 = vmatprep.mubr.f32.mxu0 0.0
    %3941 = vmatmul.mubr.f32.gmra.mxu0 %v3771
    %v3942 = vpop.f32.mrf.mxu0
    %v3943 = vadd.f32 %v3759, %v3942
    %v3944 = vpop.f32.mrf.mxu0
    %v3945 = vadd.f32 %v3759, %v3944
    %3946 = vmatprep.mubr.f32.mxu0 0.0
    %3947 = vmatmul.mubr.f32.gmra.mxu0 %v3773
    %v3948 = vpop.f32.mrf.mxu0
    %v3949 = vadd.f32 %v3764, %v3948
    %v3950 = vpop.f32.mrf.mxu0
    %v3951 = vadd.f32 %v3764, %v3950
    %3952 = vdwg.mxu0
    %3953 = vmatprep.subr.mxu0 0.0
    %3954 = vmatpush1.msra.mxu0 0.0
    %3955 = vmatprep.subr.mxu0 0.0
    %3956 = vmatpush1.msra.mxu0 0.0
    %3957 = vmatprep.subr.mxu0 0.0
    %3958 = vmatpush1.msra.mxu0 0.0
    %3959 = vmatprep.subr.mxu0 0.0
    %3960 = vmatpush1.msra.mxu0 0.0
    %3961 = vmatprep.subr.mxu0 0.0
    %3962 = vmatpush1.msra.mxu0 0.0
    %3963 = vmatprep.subr.mxu0 0.0
    %3964 = vmatpush1.msra.mxu0 0.0
    %3965 = vmatprep.subr.mxu0 0.0
    %3966 = vmatpush1.msra.mxu0 0.0
    %3967 = vmatprep.subr.mxu0 0.0
    %3968 = vmatpush1.msra.mxu0 0.0
    %3969 = vmatprep.subr.mxu0 0.0
    %3970 = vmatpush1.msra.mxu0 0.0
    %3971 = vmatprep.subr.mxu0 0.0
    %3972 = vmatpush1.msra.mxu0 0.0
    %3973 = vmatprep.subr.mxu0 0.0
    %3974 = vmatpush1.msra.mxu0 0.0
    %3975 = vmatprep.subr.mxu0 0.0
    %3976 = vmatpush1.msra.mxu0 0.0
    %3977 = vmatprep.subr.mxu0 %v3533
    %3978 = vmatpush1.msra.mxu0 %v3429
    %3979 = vmatprep.subr.mxu0 %v2701
    %3980 = vmatpush1.msra.mxu0 %v2597
    %3981 = vmatprep.subr.mxu0 %v1869
    %3982 = vmatpush1.msra.mxu0 %v1765
    %3983 = vmatprep.subr.mxu0 %v1037
    %3984 = vmatpush1.msra.mxu0 %v933
    %3985 = vmatprep.subr.mxu0 0.0
    %3986 = vmatpush2.msra.mxu0 0.0
    %3987 = vmatprep.subr.mxu0 0.0
    %3988 = vmatpush2.msra.mxu0 0.0
    %3989 = vmatprep.subr.mxu0 0.0
    %3990 = vmatpush2.msra.mxu0 0.0
    %3991 = vmatprep.subr.mxu0 0.0
    %3992 = vmatpush2.msra.mxu0 0.0
    %3993 = vmatprep.subr.mxu0 0.0
    %3994 = vmatpush2.msra.mxu0 0.0
    %3995 = vmatprep.subr.mxu0 0.0
    %3996 = vmatpush2.msra.mxu0 0.0
    %3997 = vmatprep.subr.mxu0 0.0
    %3998 = vmatpush2.msra.mxu0 0.0
    %3999 = vmatprep.subr.mxu0 0.0
    %4000 = vmatpush2.msra.mxu0 0.0
    %4001 = vmatprep.subr.mxu0 0.0
    %4002 = vmatpush2.msra.mxu0 0.0
    %4003 = vmatprep.subr.mxu0 0.0
    %4004 = vmatpush2.msra.mxu0 0.0
    %4005 = vmatprep.subr.mxu0 0.0
    %4006 = vmatpush2.msra.mxu0 0.0
    %4007 = vmatprep.subr.mxu0 0.0
    %4008 = vmatpush2.msra.mxu0 0.0
    %4009 = vmatprep.subr.mxu0 0.0
    %4010 = vmatpush2.msra.mxu0 0.0
    %4011 = vmatprep.subr.mxu0 0.0
    %4012 = vmatpush2.msra.mxu0 0.0
    %4013 = vmatprep.subr.mxu0 0.0
    %4014 = vmatpush2.msra.mxu0 0.0
    %4015 = vmatprep.subr.mxu0 0.0
    %4016 = vmatpush2.msra.mxu0 0.0
    %4017 = vmatprep.mubr.f32.mxu0 0.0
    %4018 = vmatmul.mubr.f32.gmra.mxu0 %v3767
    %v4019 = vpop.f32.mrf.mxu0
    %v4020 = vadd.f32 %v3749, %v4019
    %v4021 = vpop.f32.mrf.mxu0
    %v4022 = vadd.f32 %v3749, %v4021
    %4023 = vmatprep.mubr.f32.mxu0 0.0
    %4024 = vmatmul.mubr.f32.gmra.mxu0 %v3769
    %v4025 = vpop.f32.mrf.mxu0
    %v4026 = vadd.f32 %v3754, %v4025
    %v4027 = vpop.f32.mrf.mxu0
    %v4028 = vadd.f32 %v3754, %v4027
    %4029 = vmatprep.mubr.f32.mxu0 0.0
    %4030 = vmatmul.mubr.f32.gmra.mxu0 %v3771
    %v4031 = vpop.f32.mrf.mxu0
    %v4032 = vadd.f32 %v3759, %v4031
    %v4033 = vpop.f32.mrf.mxu0
    %v4034 = vadd.f32 %v3759, %v4033
    %4035 = vmatprep.mubr.f32.mxu0 0.0
    %4036 = vmatmul.mubr.f32.gmra.mxu0 %v3773
    %v4037 = vpop.f32.mrf.mxu0
    %v4038 = vadd.f32 %v3764, %v4037
    %v4039 = vpop.f32.mrf.mxu0
    %v4040 = vadd.f32 %v3764, %v4039
    %4041 = vdwg.mxu0
    %4042 = vmatprep.subr.mxu0 0.0
    %4043 = vmatpush1.msra.mxu0 0.0
    %4044 = vmatprep.subr.mxu0 0.0
    %4045 = vmatpush1.msra.mxu0 0.0
    %4046 = vmatprep.subr.mxu0 0.0
    %4047 = vmatpush1.msra.mxu0 0.0
    %4048 = vmatprep.subr.mxu0 0.0
    %4049 = vmatpush1.msra.mxu0 0.0
    %4050 = vmatprep.subr.mxu0 0.0
    %4051 = vmatpush1.msra.mxu0 0.0
    %4052 = vmatprep.subr.mxu0 0.0
    %4053 = vmatpush1.msra.mxu0 0.0
    %4054 = vmatprep.subr.mxu0 0.0
    %4055 = vmatpush1.msra.mxu0 0.0
    %4056 = vmatprep.subr.mxu0 0.0
    %4057 = vmatpush1.msra.mxu0 0.0
    %4058 = vmatprep.subr.mxu0 0.0
    %4059 = vmatpush1.msra.mxu0 0.0
    %4060 = vmatprep.subr.mxu0 0.0
    %4061 = vmatpush1.msra.mxu0 0.0
    %4062 = vmatprep.subr.mxu0 0.0
    %4063 = vmatpush1.msra.mxu0 0.0
    %4064 = vmatprep.subr.mxu0 0.0
    %4065 = vmatpush1.msra.mxu0 0.0
    %4066 = vmatprep.subr.mxu0 %v3741
    %4067 = vmatpush1.msra.mxu0 %v3637
    %4068 = vmatprep.subr.mxu0 %v2909
    %4069 = vmatpush1.msra.mxu0 %v2805
    %4070 = vmatprep.subr.mxu0 %v2077
    %4071 = vmatpush1.msra.mxu0 %v1973
    %4072 = vmatprep.subr.mxu0 %v1245
    %4073 = vmatpush1.msra.mxu0 %v1141
    %4074 = vmatprep.subr.mxu0 0.0
    %4075 = vmatpush2.msra.mxu0 0.0
    %4076 = vmatprep.subr.mxu0 0.0
    %4077 = vmatpush2.msra.mxu0 0.0
    %4078 = vmatprep.subr.mxu0 0.0
    %4079 = vmatpush2.msra.mxu0 0.0
    %4080 = vmatprep.subr.mxu0 0.0
    %4081 = vmatpush2.msra.mxu0 0.0
    %4082 = vmatprep.subr.mxu0 0.0
    %4083 = vmatpush2.msra.mxu0 0.0
    %4084 = vmatprep.subr.mxu0 0.0
    %4085 = vmatpush2.msra.mxu0 0.0
    %4086 = vmatprep.subr.mxu0 0.0
    %4087 = vmatpush2.msra.mxu0 0.0
    %4088 = vmatprep.subr.mxu0 0.0
    %4089 = vmatpush2.msra.mxu0 0.0
    %4090 = vmatprep.subr.mxu0 0.0
    %4091 = vmatpush2.msra.mxu0 0.0
    %4092 = vmatprep.subr.mxu0 0.0
    %4093 = vmatpush2.msra.mxu0 0.0
    %4094 = vmatprep.subr.mxu0 0.0
    %4095 = vmatpush2.msra.mxu0 0.0
    %4096 = vmatprep.subr.mxu0 0.0
    %4097 = vmatpush2.msra.mxu0 0.0
    %4098 = vmatprep.subr.mxu0 0.0
    %4099 = vmatpush2.msra.mxu0 0.0
    %4100 = vmatprep.subr.mxu0 0.0
    %4101 = vmatpush2.msra.mxu0 0.0
    %4102 = vmatprep.subr.mxu0 0.0
    %4103 = vmatpush2.msra.mxu0 0.0
    %4104 = vmatprep.subr.mxu0 0.0
    %4105 = vmatpush2.msra.mxu0 0.0
    %4106 = vmatprep.mubr.f32.mxu0 0.0
    %4107 = vmatmul.mubr.f32.gmra.mxu0 %v3767
    %v4108 = vpop.f32.mrf.mxu0
    %v4109 = vadd.f32 %v3749, %v4108
    %v4110 = vpop.f32.mrf.mxu0
    %v4111 = vadd.f32 %v3749, %v4110
    %4112 = vmatprep.mubr.f32.mxu0 0.0
    %4113 = vmatmul.mubr.f32.gmra.mxu0 %v3769
    %v4114 = vpop.f32.mrf.mxu0
    %v4115 = vadd.f32 %v3754, %v4114
    %v4116 = vpop.f32.mrf.mxu0
    %v4117 = vadd.f32 %v3754, %v4116
    %4118 = vmatprep.mubr.f32.mxu0 0.0
    %4119 = vmatmul.mubr.f32.gmra.mxu0 %v3771
    %v4120 = vpop.f32.mrf.mxu0
    %v4121 = vadd.f32 %v3759, %v4120
    %v4122 = vpop.f32.mrf.mxu0
    %v4123 = vadd.f32 %v3759, %v4122
    %4124 = vmatprep.mubr.f32.mxu0 0.0
    %4125 = vmatmul.mubr.f32.gmra.mxu0 %v3773
    %v4126 = vpop.f32.mrf.mxu0
    %v4127 = vadd.f32 %v3764, %v4126
    %v4128 = vpop.f32.mrf.mxu0
    %v4129 = vadd.f32 %v3764, %v4128
    %4130 = vdwg.mxu0
    %v4131 = vand.u32 2147483647, %v3842
    %vm4132 = vcmp.le.f32.partialorder %v4131, 0.7853982
    %vm4133 = vcmp.lt.s32.totalorder %v3842, 0
    %v4134 = vand.u32 %v3842, 2139095040
    %v4135 = vshrl.u32 %v4134, 23
    %v4136 = vsub.s32 %v4135, 127
    %v4137 = vand.u32 2147483647, %v3842
    %v4138 = vand.u32 %v4137, 8388607
    %v4139 = vor.u32 %v4138, 8388608
    %v4140 = vsub.s32 0, %v4139
    %v4141 = vadd.s32 %v4136, 1
    %vm4142 = vcmp.gt.s32.totalorder %v4141, 0
    %v4143 = vsel %vm4142, %v4141, 0
    %v4144 = vshrl.u32 %v4143, 5
    %v4145 = vand.u32 %v4143, 31
    %v4146 = vsub.s32 32, %v4145
    %v4147 = vshrl.u32 683565275, %v4146
    %v4148 = vshll.u32 683565275, %v4145
    %v4149 = vshrl.u32 2475754826, %v4146
    %v4150 = vor.u32 %v4148, %v4149
    %v4151 = vshll.u32 2475754826, %v4145
    %v4152 = vshrl.u32 2131351028, %v4146
    %v4153 = vor.u32 %v4151, %v4152
    %v4154 = vshll.u32 2131351028, %v4145
    %v4155 = vshrl.u32 2102212464, %v4146
    %v4156 = vor.u32 %v4154, %v4155
    %v4157 = vshll.u32 2102212464, %v4145
    %v4158 = vshrl.u32 920167782, %v4146
    %v4159 = vor.u32 %v4157, %v4158
    %v4160 = vshll.u32 920167782, %v4145
    %v4161 = vshrl.u32 1326507024, %v4146
    %v4162 = vor.u32 %v4160, %v4161
    %vm4163 = vcmp.lt.s32.totalorder %v4144, 1
    %vm4164 = vcmp.lt.s32.totalorder %v4144, 2
    %vm4165 = vcmp.lt.s32.totalorder %v4144, 3
    %vm4166 = vcmp.lt.s32.totalorder %v4144, 4
    %v4167 = vsel %vm4163, %v4147, %v4150
    %v4168 = vsel %vm4166, %v4156, 2102212464
    %v4169 = vsel %vm4165, %v4153, %v4168
    %v4170 = vsel %vm4164, %v4167, %v4169
    %v4171 = vsel %vm4163, %v4150, %v4153
    %v4172 = vsel %vm4166, %v4159, 920167782
    %v4173 = vsel %vm4165, %v4156, %v4172
    %v4174 = vsel %vm4164, %v4171, %v4173
    %v4175 = vsel %vm4163, %v4153, %v4156
    %v4176 = vsel %vm4166, %v4162, 1326507024
    %v4177 = vsel %vm4165, %v4159, %v4176
    %v4178 = vsel %vm4164, %v4175, %v4177
    %v4179 = vshll.u32 %v4139, 8
    %v4180 = vmul.u32.u64.compose %v4179, %v4178
    %v4181 = vextract.low.u32 %v4180
    %v4182 = vextract.high.u32 %v4180
    %v4183 = vmul.u32.u64.compose %v4179, %v4174
    %v4184 = vextract.low.u32 %v4183
    %v4185 = vextract.high.u32 %v4183
    %v4186 = vmul.u32 %v4179, %v4170
    %v4187 = vadd.s32 %v4182, %v4184
    %vm4188 = vc.u32 %v4182, %v4184
    %v4189 = vadd.s32 %v4185, 1
    %v4190 = vsel %vm4188, %v4189, %v4185
    %v4191 = vadd.s32 %v4186, %v4190
    %v4192 = vadd.s32 %v4191, 536870912
    %v4193 = vshrl.u32 %v4192, 30
    %v4194 = vshll.u32 %v4193, 30
    %v4195 = vsub.s32 %v4191, %v4194
    %vm4196 = vcmp.lt.s32.totalorder %v4195, 0
    %v4197 = vsub.s32 0, %v4195
    %v4198 = vsel %vm4196, %v4197, %v4195
    %v4199 = vclz %v4198
    %v4200 = vsub.s32 %v4199, 2
    %vm4201 = vcmp.gt.s32.totalorder 0, %v4200
    %v4202 = vsel %vm4201, 0, %v4200
    %v4203 = vsub.s32 32, %v4202
    %v4204 = vshll.u32 %v4195, %v4202
    %v4205 = vshrl.u32 %v4187, %v4203
    %v4206 = vor.u32 %v4204, %v4205
    %v4207 = vsub.s32 4294967266, %v4202
    %v4208 = vadd.s32 %v4207, 127
    %v4209 = vshll.u32 %v4208, 23
    %v4210 = vor.u32 4788187, %v4209
    %v4211 = vand.u32 2147483647, %v4210
    %v4213 = vcvt.s32.f32 %v4206
    %v4214 = vmul.f32 %v4213, %v4211
    %v4215 = vxor.u32 %v4214, 2147483648
    %v4216 = vsel %vm4133, %v4215, %v4214
    %v4217 = vsub.s32 4, %v4193
    %v4218 = vsel %vm4133, %v4217, %v4193
    %v4219 = vsel %vm4132, %v3842, %v4216
    %v4220 = vsel %vm4132, 0, %v4218
    %v4221 = vcosq.f32.pop %v4219
    %v4222 = vsinq.f32.pop %v4219
    %vm4223 = vweird.f32 %v3842
    %v4224 = vadd.s32 %v4220, 3
    %v4225 = vand.u32 %v4224, 3
    %vm4226 = vcmp.lt.s32.totalorder %v4225, 2
    %vm4227 = vcmp.eq.s32.totalorder %v4225, 0
    %v4228 = vxor.u32 %v4222, 2147483648
    %v4229 = vsel %vm4227, %v4221, %v4228
    %vm4230 = vcmp.eq.s32.totalorder %v4225, 2
    %v4231 = vxor.u32 %v4221, 2147483648
    %v4232 = vsel %vm4230, %v4231, %v4222
    %v4233 = vsel %vm4226, %v4229, %v4232
    %v4234 = vsel %vm4223, nan, %v4233
    %v4235 = vand.u32 2147483647, %v3844
    %vm4236 = vcmp.le.f32.partialorder %v4235, 0.7853982
    %vm4237 = vcmp.lt.s32.totalorder %v3844, 0
    %v4238 = vand.u32 %v3844, 2139095040
    %v4239 = vshrl.u32 %v4238, 23
    %v4240 = vsub.s32 %v4239, 127
    %v4241 = vand.u32 2147483647, %v3844
    %v4242 = vand.u32 %v4241, 8388607
    %v4243 = vor.u32 %v4242, 8388608
    %v4244 = vsub.s32 0, %v4243
    %v4245 = vadd.s32 %v4240, 1
    %vm4246 = vcmp.gt.s32.totalorder %v4245, 0
    %v4247 = vsel %vm4246, %v4245, 0
    %v4248 = vshrl.u32 %v4247, 5
    %v4249 = vand.u32 %v4247, 31
    %v4250 = vsub.s32 32, %v4249
    %v4251 = vshrl.u32 683565275, %v4250
    %v4252 = vshll.u32 683565275, %v4249
    %v4253 = vshrl.u32 2475754826, %v4250
    %v4254 = vor.u32 %v4252, %v4253
    %v4255 = vshll.u32 2475754826, %v4249
    %v4256 = vshrl.u32 2131351028, %v4250
    %v4257 = vor.u32 %v4255, %v4256
    %v4258 = vshll.u32 2131351028, %v4249
    %v4259 = vshrl.u32 2102212464, %v4250
    %v4260 = vor.u32 %v4258, %v4259
    %v4261 = vshll.u32 2102212464, %v4249
    %v4262 = vshrl.u32 920167782, %v4250
    %v4263 = vor.u32 %v4261, %v4262
    %v4264 = vshll.u32 920167782, %v4249
    %v4265 = vshrl.u32 1326507024, %v4250
    %v4266 = vor.u32 %v4264, %v4265
    %vm4267 = vcmp.lt.s32.totalorder %v4248, 1
    %vm4268 = vcmp.lt.s32.totalorder %v4248, 2
    %vm4269 = vcmp.lt.s32.totalorder %v4248, 3
    %vm4270 = vcmp.lt.s32.totalorder %v4248, 4
    %v4271 = vsel %vm4267, %v4251, %v4254
    %v4272 = vsel %vm4270, %v4260, 2102212464
    %v4273 = vsel %vm4269, %v4257, %v4272
    %v4274 = vsel %vm4268, %v4271, %v4273
    %v4275 = vsel %vm4267, %v4254, %v4257
    %v4276 = vsel %vm4270, %v4263, 920167782
    %v4277 = vsel %vm4269, %v4260, %v4276
    %v4278 = vsel %vm4268, %v4275, %v4277
    %v4279 = vsel %vm4267, %v4257, %v4260
    %v4280 = vsel %vm4270, %v4266, 1326507024
    %v4281 = vsel %vm4269, %v4263, %v4280
    %v4282 = vsel %vm4268, %v4279, %v4281
    %v4283 = vshll.u32 %v4243, 8
    %v4284 = vmul.u32.u64.compose %v4283, %v4282
    %v4285 = vextract.low.u32 %v4284
    %v4286 = vextract.high.u32 %v4284
    %v4287 = vmul.u32.u64.compose %v4283, %v4278
    %v4288 = vextract.low.u32 %v4287
    %v4289 = vextract.high.u32 %v4287
    %v4290 = vmul.u32 %v4283, %v4274
    %v4291 = vadd.s32 %v4286, %v4288
    %vm4292 = vc.u32 %v4286, %v4288
    %v4293 = vadd.s32 %v4289, 1
    %v4294 = vsel %vm4292, %v4293, %v4289
    %v4295 = vadd.s32 %v4290, %v4294
    %v4296 = vadd.s32 %v4295, 536870912
    %v4297 = vshrl.u32 %v4296, 30
    %v4298 = vshll.u32 %v4297, 30
    %v4299 = vsub.s32 %v4295, %v4298
    %vm4300 = vcmp.lt.s32.totalorder %v4299, 0
    %v4301 = vsub.s32 0, %v4299
    %v4302 = vsel %vm4300, %v4301, %v4299
    %v4303 = vclz %v4302
    %v4304 = vsub.s32 %v4303, 2
    %vm4305 = vcmp.gt.s32.totalorder 0, %v4304
    %v4306 = vsel %vm4305, 0, %v4304
    %v4307 = vsub.s32 32, %v4306
    %v4308 = vshll.u32 %v4299, %v4306
    %v4309 = vshrl.u32 %v4291, %v4307
    %v4310 = vor.u32 %v4308, %v4309
    %v4311 = vsub.s32 4294967266, %v4306
    %v4312 = vadd.s32 %v4311, 127
    %v4313 = vshll.u32 %v4312, 23
    %v4314 = vor.u32 4788187, %v4313
    %v4315 = vand.u32 2147483647, %v4314
    %v4317 = vcvt.s32.f32 %v4310
    %v4318 = vmul.f32 %v4317, %v4315
    %v4319 = vxor.u32 %v4318, 2147483648
    %v4320 = vsel %vm4237, %v4319, %v4318
    %v4321 = vsub.s32 4, %v4297
    %v4322 = vsel %vm4237, %v4321, %v4297
    %v4323 = vsel %vm4236, %v3844, %v4320
    %v4324 = vsel %vm4236, 0, %v4322
    %v4325 = vcosq.f32.pop %v4323
    %v4326 = vsinq.f32.pop %v4323
    %vm4327 = vweird.f32 %v3844
    %v4328 = vadd.s32 %v4324, 3
    %v4329 = vand.u32 %v4328, 3
    %vm4330 = vcmp.lt.s32.totalorder %v4329, 2
    %vm4331 = vcmp.eq.s32.totalorder %v4329, 0
    %v4332 = vxor.u32 %v4326, 2147483648
    %v4333 = vsel %vm4331, %v4325, %v4332
    %vm4334 = vcmp.eq.s32.totalorder %v4329, 2
    %v4335 = vxor.u32 %v4325, 2147483648
    %v4336 = vsel %vm4334, %v4335, %v4326
    %v4337 = vsel %vm4330, %v4333, %v4336
    %v4338 = vsel %vm4327, nan, %v4337
    %v4339 = vand.u32 2147483647, %v3931
    %vm4340 = vcmp.le.f32.partialorder %v4339, 0.7853982
    %vm4341 = vcmp.lt.s32.totalorder %v3931, 0
    %v4342 = vand.u32 %v3931, 2139095040
    %v4343 = vshrl.u32 %v4342, 23
    %v4344 = vsub.s32 %v4343, 127
    %v4345 = vand.u32 2147483647, %v3931
    %v4346 = vand.u32 %v4345, 8388607
    %v4347 = vor.u32 %v4346, 8388608
    %v4348 = vsub.s32 0, %v4347
    %v4349 = vadd.s32 %v4344, 1
    %vm4350 = vcmp.gt.s32.totalorder %v4349, 0
    %v4351 = vsel %vm4350, %v4349, 0
    %v4352 = vshrl.u32 %v4351, 5
    %v4353 = vand.u32 %v4351, 31
    %v4354 = vsub.s32 32, %v4353
    %v4355 = vshrl.u32 683565275, %v4354
    %v4356 = vshll.u32 683565275, %v4353
    %v4357 = vshrl.u32 2475754826, %v4354
    %v4358 = vor.u32 %v4356, %v4357
    %v4359 = vshll.u32 2475754826, %v4353
    %v4360 = vshrl.u32 2131351028, %v4354
    %v4361 = vor.u32 %v4359, %v4360
    %v4362 = vshll.u32 2131351028, %v4353
    %v4363 = vshrl.u32 2102212464, %v4354
    %v4364 = vor.u32 %v4362, %v4363
    %v4365 = vshll.u32 2102212464, %v4353
    %v4366 = vshrl.u32 920167782, %v4354
    %v4367 = vor.u32 %v4365, %v4366
    %v4368 = vshll.u32 920167782, %v4353
    %v4369 = vshrl.u32 1326507024, %v4354
    %v4370 = vor.u32 %v4368, %v4369
    %vm4371 = vcmp.lt.s32.totalorder %v4352, 1
    %vm4372 = vcmp.lt.s32.totalorder %v4352, 2
    %vm4373 = vcmp.lt.s32.totalorder %v4352, 3
    %vm4374 = vcmp.lt.s32.totalorder %v4352, 4
    %v4375 = vsel %vm4371, %v4355, %v4358
    %v4376 = vsel %vm4374, %v4364, 2102212464
    %v4377 = vsel %vm4373, %v4361, %v4376
    %v4378 = vsel %vm4372, %v4375, %v4377
    %v4379 = vsel %vm4371, %v4358, %v4361
    %v4380 = vsel %vm4374, %v4367, 920167782
    %v4381 = vsel %vm4373, %v4364, %v4380
    %v4382 = vsel %vm4372, %v4379, %v4381
    %v4383 = vsel %vm4371, %v4361, %v4364
    %v4384 = vsel %vm4374, %v4370, 1326507024
    %v4385 = vsel %vm4373, %v4367, %v4384
    %v4386 = vsel %vm4372, %v4383, %v4385
    %v4387 = vshll.u32 %v4347, 8
    %v4388 = vmul.u32.u64.compose %v4387, %v4386
    %v4389 = vextract.low.u32 %v4388
    %v4390 = vextract.high.u32 %v4388
    %v4391 = vmul.u32.u64.compose %v4387, %v4382
    %v4392 = vextract.low.u32 %v4391
    %v4393 = vextract.high.u32 %v4391
    %v4394 = vmul.u32 %v4387, %v4378
    %v4395 = vadd.s32 %v4390, %v4392
    %vm4396 = vc.u32 %v4390, %v4392
    %v4397 = vadd.s32 %v4393, 1
    %v4398 = vsel %vm4396, %v4397, %v4393
    %v4399 = vadd.s32 %v4394, %v4398
    %v4400 = vadd.s32 %v4399, 536870912
    %v4401 = vshrl.u32 %v4400, 30
    %v4402 = vshll.u32 %v4401, 30
    %v4403 = vsub.s32 %v4399, %v4402
    %vm4404 = vcmp.lt.s32.totalorder %v4403, 0
    %v4405 = vsub.s32 0, %v4403
    %v4406 = vsel %vm4404, %v4405, %v4403
    %v4407 = vclz %v4406
    %v4408 = vsub.s32 %v4407, 2
    %vm4409 = vcmp.gt.s32.totalorder 0, %v4408
    %v4410 = vsel %vm4409, 0, %v4408
    %v4411 = vsub.s32 32, %v4410
    %v4412 = vshll.u32 %v4403, %v4410
    %v4413 = vshrl.u32 %v4395, %v4411
    %v4414 = vor.u32 %v4412, %v4413
    %v4415 = vsub.s32 4294967266, %v4410
    %v4416 = vadd.s32 %v4415, 127
    %v4417 = vshll.u32 %v4416, 23
    %v4418 = vor.u32 4788187, %v4417
    %v4419 = vand.u32 2147483647, %v4418
    %v4421 = vcvt.s32.f32 %v4414
    %v4422 = vmul.f32 %v4421, %v4419
    %v4423 = vxor.u32 %v4422, 2147483648
    %v4424 = vsel %vm4341, %v4423, %v4422
    %v4425 = vsub.s32 4, %v4401
    %v4426 = vsel %vm4341, %v4425, %v4401
    %v4427 = vsel %vm4340, %v3931, %v4424
    %v4428 = vsel %vm4340, 0, %v4426
    %v4429 = vcosq.f32.pop %v4427
    %v4430 = vsinq.f32.pop %v4427
    %vm4431 = vweird.f32 %v3931
    %v4432 = vadd.s32 %v4428, 3
    %v4433 = vand.u32 %v4432, 3
    %vm4434 = vcmp.lt.s32.totalorder %v4433, 2
    %vm4435 = vcmp.eq.s32.totalorder %v4433, 0
    %v4436 = vxor.u32 %v4430, 2147483648
    %v4437 = vsel %vm4435, %v4429, %v4436
    %vm4438 = vcmp.eq.s32.totalorder %v4433, 2
    %v4439 = vxor.u32 %v4429, 2147483648
    %v4440 = vsel %vm4438, %v4439, %v4430
    %v4441 = vsel %vm4434, %v4437, %v4440
    %v4442 = vsel %vm4431, nan, %v4441
    %v4443 = vand.u32 2147483647, %v3933
    %vm4444 = vcmp.le.f32.partialorder %v4443, 0.7853982
    %vm4445 = vcmp.lt.s32.totalorder %v3933, 0
    %v4446 = vand.u32 %v3933, 2139095040
    %v4447 = vshrl.u32 %v4446, 23
    %v4448 = vsub.s32 %v4447, 127
    %v4449 = vand.u32 2147483647, %v3933
    %v4450 = vand.u32 %v4449, 8388607
    %v4451 = vor.u32 %v4450, 8388608
    %v4452 = vsub.s32 0, %v4451
    %v4453 = vadd.s32 %v4448, 1
    %vm4454 = vcmp.gt.s32.totalorder %v4453, 0
    %v4455 = vsel %vm4454, %v4453, 0
    %v4456 = vshrl.u32 %v4455, 5
    %v4457 = vand.u32 %v4455, 31
    %v4458 = vsub.s32 32, %v4457
    %v4459 = vshrl.u32 683565275, %v4458
    %v4460 = vshll.u32 683565275, %v4457
    %v4461 = vshrl.u32 2475754826, %v4458
    %v4462 = vor.u32 %v4460, %v4461
    %v4463 = vshll.u32 2475754826, %v4457
    %v4464 = vshrl.u32 2131351028, %v4458
    %v4465 = vor.u32 %v4463, %v4464
    %v4466 = vshll.u32 2131351028, %v4457
    %v4467 = vshrl.u32 2102212464, %v4458
    %v4468 = vor.u32 %v4466, %v4467
    %v4469 = vshll.u32 2102212464, %v4457
    %v4470 = vshrl.u32 920167782, %v4458
    %v4471 = vor.u32 %v4469, %v4470
    %v4472 = vshll.u32 920167782, %v4457
    %v4473 = vshrl.u32 1326507024, %v4458
    %v4474 = vor.u32 %v4472, %v4473
    %vm4475 = vcmp.lt.s32.totalorder %v4456, 1
    %vm4476 = vcmp.lt.s32.totalorder %v4456, 2
    %vm4477 = vcmp.lt.s32.totalorder %v4456, 3
    %vm4478 = vcmp.lt.s32.totalorder %v4456, 4
    %v4479 = vsel %vm4475, %v4459, %v4462
    %v4480 = vsel %vm4478, %v4468, 2102212464
    %v4481 = vsel %vm4477, %v4465, %v4480
    %v4482 = vsel %vm4476, %v4479, %v4481
    %v4483 = vsel %vm4475, %v4462, %v4465
    %v4484 = vsel %vm4478, %v4471, 920167782
    %v4485 = vsel %vm4477, %v4468, %v4484
    %v4486 = vsel %vm4476, %v4483, %v4485
    %v4487 = vsel %vm4475, %v4465, %v4468
    %v4488 = vsel %vm4478, %v4474, 1326507024
    %v4489 = vsel %vm4477, %v4471, %v4488
    %v4490 = vsel %vm4476, %v4487, %v4489
    %v4491 = vshll.u32 %v4451, 8
    %v4492 = vmul.u32.u64.compose %v4491, %v4490
    %v4493 = vextract.low.u32 %v4492
    %v4494 = vextract.high.u32 %v4492
    %v4495 = vmul.u32.u64.compose %v4491, %v4486
    %v4496 = vextract.low.u32 %v4495
    %v4497 = vextract.high.u32 %v4495
    %v4498 = vmul.u32 %v4491, %v4482
    %v4499 = vadd.s32 %v4494, %v4496
    %vm4500 = vc.u32 %v4494, %v4496
    %v4501 = vadd.s32 %v4497, 1
    %v4502 = vsel %vm4500, %v4501, %v4497
    %v4503 = vadd.s32 %v4498, %v4502
    %v4504 = vadd.s32 %v4503, 536870912
    %v4505 = vshrl.u32 %v4504, 30
    %v4506 = vshll.u32 %v4505, 30
    %v4507 = vsub.s32 %v4503, %v4506
    %vm4508 = vcmp.lt.s32.totalorder %v4507, 0
    %v4509 = vsub.s32 0, %v4507
    %v4510 = vsel %vm4508, %v4509, %v4507
    %v4511 = vclz %v4510
    %v4512 = vsub.s32 %v4511, 2
    %vm4513 = vcmp.gt.s32.totalorder 0, %v4512
    %v4514 = vsel %vm4513, 0, %v4512
    %v4515 = vsub.s32 32, %v4514
    %v4516 = vshll.u32 %v4507, %v4514
    %v4517 = vshrl.u32 %v4499, %v4515
    %v4518 = vor.u32 %v4516, %v4517
    %v4519 = vsub.s32 4294967266, %v4514
    %v4520 = vadd.s32 %v4519, 127
    %v4521 = vshll.u32 %v4520, 23
    %v4522 = vor.u32 4788187, %v4521
    %v4523 = vand.u32 2147483647, %v4522
    %v4525 = vcvt.s32.f32 %v4518
    %v4526 = vmul.f32 %v4525, %v4523
    %v4527 = vxor.u32 %v4526, 2147483648
    %v4528 = vsel %vm4445, %v4527, %v4526
    %v4529 = vsub.s32 4, %v4505
    %v4530 = vsel %vm4445, %v4529, %v4505
    %v4531 = vsel %vm4444, %v3933, %v4528
    %v4532 = vsel %vm4444, 0, %v4530
    %v4533 = vcosq.f32.pop %v4531
    %v4534 = vsinq.f32.pop %v4531
    %vm4535 = vweird.f32 %v3933
    %v4536 = vadd.s32 %v4532, 3
    %v4537 = vand.u32 %v4536, 3
    %vm4538 = vcmp.lt.s32.totalorder %v4537, 2
    %vm4539 = vcmp.eq.s32.totalorder %v4537, 0
    %v4540 = vxor.u32 %v4534, 2147483648
    %v4541 = vsel %vm4539, %v4533, %v4540
    %vm4542 = vcmp.eq.s32.totalorder %v4537, 2
    %v4543 = vxor.u32 %v4533, 2147483648
    %v4544 = vsel %vm4542, %v4543, %v4534
    %v4545 = vsel %vm4538, %v4541, %v4544
    %v4546 = vsel %vm4535, nan, %v4545
    %v4547 = vand.u32 2147483647, %v4020
    %vm4548 = vcmp.le.f32.partialorder %v4547, 0.7853982
    %vm4549 = vcmp.lt.s32.totalorder %v4020, 0
    %v4550 = vand.u32 %v4020, 2139095040
    %v4551 = vshrl.u32 %v4550, 23
    %v4552 = vsub.s32 %v4551, 127
    %v4553 = vand.u32 2147483647, %v4020
    %v4554 = vand.u32 %v4553, 8388607
    %v4555 = vor.u32 %v4554, 8388608
    %v4556 = vsub.s32 0, %v4555
    %v4557 = vadd.s32 %v4552, 1
    %vm4558 = vcmp.gt.s32.totalorder %v4557, 0
    %v4559 = vsel %vm4558, %v4557, 0
    %v4560 = vshrl.u32 %v4559, 5
    %v4561 = vand.u32 %v4559, 31
    %v4562 = vsub.s32 32, %v4561
    %v4563 = vshrl.u32 683565275, %v4562
    %v4564 = vshll.u32 683565275, %v4561
    %v4565 = vshrl.u32 2475754826, %v4562
    %v4566 = vor.u32 %v4564, %v4565
    %v4567 = vshll.u32 2475754826, %v4561
    %v4568 = vshrl.u32 2131351028, %v4562
    %v4569 = vor.u32 %v4567, %v4568
    %v4570 = vshll.u32 2131351028, %v4561
    %v4571 = vshrl.u32 2102212464, %v4562
    %v4572 = vor.u32 %v4570, %v4571
    %v4573 = vshll.u32 2102212464, %v4561
    %v4574 = vshrl.u32 920167782, %v4562
    %v4575 = vor.u32 %v4573, %v4574
    %v4576 = vshll.u32 920167782, %v4561
    %v4577 = vshrl.u32 1326507024, %v4562
    %v4578 = vor.u32 %v4576, %v4577
    %vm4579 = vcmp.lt.s32.totalorder %v4560, 1
    %vm4580 = vcmp.lt.s32.totalorder %v4560, 2
    %vm4581 = vcmp.lt.s32.totalorder %v4560, 3
    %vm4582 = vcmp.lt.s32.totalorder %v4560, 4
    %v4583 = vsel %vm4579, %v4563, %v4566
    %v4584 = vsel %vm4582, %v4572, 2102212464
    %v4585 = vsel %vm4581, %v4569, %v4584
    %v4586 = vsel %vm4580, %v4583, %v4585
    %v4587 = vsel %vm4579, %v4566, %v4569
    %v4588 = vsel %vm4582, %v4575, 920167782
    %v4589 = vsel %vm4581, %v4572, %v4588
    %v4590 = vsel %vm4580, %v4587, %v4589
    %v4591 = vsel %vm4579, %v4569, %v4572
    %v4592 = vsel %vm4582, %v4578, 1326507024
    %v4593 = vsel %vm4581, %v4575, %v4592
    %v4594 = vsel %vm4580, %v4591, %v4593
    %v4595 = vshll.u32 %v4555, 8
    %v4596 = vmul.u32.u64.compose %v4595, %v4594
    %v4597 = vextract.low.u32 %v4596
    %v4598 = vextract.high.u32 %v4596
    %v4599 = vmul.u32.u64.compose %v4595, %v4590
    %v4600 = vextract.low.u32 %v4599
    %v4601 = vextract.high.u32 %v4599
    %v4602 = vmul.u32 %v4595, %v4586
    %v4603 = vadd.s32 %v4598, %v4600
    %vm4604 = vc.u32 %v4598, %v4600
    %v4605 = vadd.s32 %v4601, 1
    %v4606 = vsel %vm4604, %v4605, %v4601
    %v4607 = vadd.s32 %v4602, %v4606
    %v4608 = vadd.s32 %v4607, 536870912
    %v4609 = vshrl.u32 %v4608, 30
    %v4610 = vshll.u32 %v4609, 30
    %v4611 = vsub.s32 %v4607, %v4610
    %vm4612 = vcmp.lt.s32.totalorder %v4611, 0
    %v4613 = vsub.s32 0, %v4611
    %v4614 = vsel %vm4612, %v4613, %v4611
    %v4615 = vclz %v4614
    %v4616 = vsub.s32 %v4615, 2
    %vm4617 = vcmp.gt.s32.totalorder 0, %v4616
    %v4618 = vsel %vm4617, 0, %v4616
    %v4619 = vsub.s32 32, %v4618
    %v4620 = vshll.u32 %v4611, %v4618
    %v4621 = vshrl.u32 %v4603, %v4619
    %v4622 = vor.u32 %v4620, %v4621
    %v4623 = vsub.s32 4294967266, %v4618
    %v4624 = vadd.s32 %v4623, 127
    %v4625 = vshll.u32 %v4624, 23
    %v4626 = vor.u32 4788187, %v4625
    %v4627 = vand.u32 2147483647, %v4626
    %v4629 = vcvt.s32.f32 %v4622
    %v4630 = vmul.f32 %v4629, %v4627
    %v4631 = vxor.u32 %v4630, 2147483648
    %v4632 = vsel %vm4549, %v4631, %v4630
    %v4633 = vsub.s32 4, %v4609
    %v4634 = vsel %vm4549, %v4633, %v4609
    %v4635 = vsel %vm4548, %v4020, %v4632
    %v4636 = vsel %vm4548, 0, %v4634
    %v4637 = vcosq.f32.pop %v4635
    %v4638 = vsinq.f32.pop %v4635
    %vm4639 = vweird.f32 %v4020
    %v4640 = vadd.s32 %v4636, 3
    %v4641 = vand.u32 %v4640, 3
    %vm4642 = vcmp.lt.s32.totalorder %v4641, 2
    %vm4643 = vcmp.eq.s32.totalorder %v4641, 0
    %v4644 = vxor.u32 %v4638, 2147483648
    %v4645 = vsel %vm4643, %v4637, %v4644
    %vm4646 = vcmp.eq.s32.totalorder %v4641, 2
    %v4647 = vxor.u32 %v4637, 2147483648
    %v4648 = vsel %vm4646, %v4647, %v4638
    %v4649 = vsel %vm4642, %v4645, %v4648
    %v4650 = vsel %vm4639, nan, %v4649
    %v4651 = vand.u32 2147483647, %v4022
    %vm4652 = vcmp.le.f32.partialorder %v4651, 0.7853982
    %vm4653 = vcmp.lt.s32.totalorder %v4022, 0
    %v4654 = vand.u32 %v4022, 2139095040
    %v4655 = vshrl.u32 %v4654, 23
    %v4656 = vsub.s32 %v4655, 127
    %v4657 = vand.u32 2147483647, %v4022
    %v4658 = vand.u32 %v4657, 8388607
    %v4659 = vor.u32 %v4658, 8388608
    %v4660 = vsub.s32 0, %v4659
    %v4661 = vadd.s32 %v4656, 1
    %vm4662 = vcmp.gt.s32.totalorder %v4661, 0
    %v4663 = vsel %vm4662, %v4661, 0
    %v4664 = vshrl.u32 %v4663, 5
    %v4665 = vand.u32 %v4663, 31
    %v4666 = vsub.s32 32, %v4665
    %v4667 = vshrl.u32 683565275, %v4666
    %v4668 = vshll.u32 683565275, %v4665
    %v4669 = vshrl.u32 2475754826, %v4666
    %v4670 = vor.u32 %v4668, %v4669
    %v4671 = vshll.u32 2475754826, %v4665
    %v4672 = vshrl.u32 2131351028, %v4666
    %v4673 = vor.u32 %v4671, %v4672
    %v4674 = vshll.u32 2131351028, %v4665
    %v4675 = vshrl.u32 2102212464, %v4666
    %v4676 = vor.u32 %v4674, %v4675
    %v4677 = vshll.u32 2102212464, %v4665
    %v4678 = vshrl.u32 920167782, %v4666
    %v4679 = vor.u32 %v4677, %v4678
    %v4680 = vshll.u32 920167782, %v4665
    %v4681 = vshrl.u32 1326507024, %v4666
    %v4682 = vor.u32 %v4680, %v4681
    %vm4683 = vcmp.lt.s32.totalorder %v4664, 1
    %vm4684 = vcmp.lt.s32.totalorder %v4664, 2
    %vm4685 = vcmp.lt.s32.totalorder %v4664, 3
    %vm4686 = vcmp.lt.s32.totalorder %v4664, 4
    %v4687 = vsel %vm4683, %v4667, %v4670
    %v4688 = vsel %vm4686, %v4676, 2102212464
    %v4689 = vsel %vm4685, %v4673, %v4688
    %v4690 = vsel %vm4684, %v4687, %v4689
    %v4691 = vsel %vm4683, %v4670, %v4673
    %v4692 = vsel %vm4686, %v4679, 920167782
    %v4693 = vsel %vm4685, %v4676, %v4692
    %v4694 = vsel %vm4684, %v4691, %v4693
    %v4695 = vsel %vm4683, %v4673, %v4676
    %v4696 = vsel %vm4686, %v4682, 1326507024
    %v4697 = vsel %vm4685, %v4679, %v4696
    %v4698 = vsel %vm4684, %v4695, %v4697
    %v4699 = vshll.u32 %v4659, 8
    %v4700 = vmul.u32.u64.compose %v4699, %v4698
    %v4701 = vextract.low.u32 %v4700
    %v4702 = vextract.high.u32 %v4700
    %v4703 = vmul.u32.u64.compose %v4699, %v4694
    %v4704 = vextract.low.u32 %v4703
    %v4705 = vextract.high.u32 %v4703
    %v4706 = vmul.u32 %v4699, %v4690
    %v4707 = vadd.s32 %v4702, %v4704
    %vm4708 = vc.u32 %v4702, %v4704
    %v4709 = vadd.s32 %v4705, 1
    %v4710 = vsel %vm4708, %v4709, %v4705
    %v4711 = vadd.s32 %v4706, %v4710
    %v4712 = vadd.s32 %v4711, 536870912
    %v4713 = vshrl.u32 %v4712, 30
    %v4714 = vshll.u32 %v4713, 30
    %v4715 = vsub.s32 %v4711, %v4714
    %vm4716 = vcmp.lt.s32.totalorder %v4715, 0
    %v4717 = vsub.s32 0, %v4715
    %v4718 = vsel %vm4716, %v4717, %v4715
    %v4719 = vclz %v4718
    %v4720 = vsub.s32 %v4719, 2
    %vm4721 = vcmp.gt.s32.totalorder 0, %v4720
    %v4722 = vsel %vm4721, 0, %v4720
    %v4723 = vsub.s32 32, %v4722
    %v4724 = vshll.u32 %v4715, %v4722
    %v4725 = vshrl.u32 %v4707, %v4723
    %v4726 = vor.u32 %v4724, %v4725
    %v4727 = vsub.s32 4294967266, %v4722
    %v4728 = vadd.s32 %v4727, 127
    %v4729 = vshll.u32 %v4728, 23
    %v4730 = vor.u32 4788187, %v4729
    %v4731 = vand.u32 2147483647, %v4730
    %v4733 = vcvt.s32.f32 %v4726
    %v4734 = vmul.f32 %v4733, %v4731
    %v4735 = vxor.u32 %v4734, 2147483648
    %v4736 = vsel %vm4653, %v4735, %v4734
    %v4737 = vsub.s32 4, %v4713
    %v4738 = vsel %vm4653, %v4737, %v4713
    %v4739 = vsel %vm4652, %v4022, %v4736
    %v4740 = vsel %vm4652, 0, %v4738
    %v4741 = vcosq.f32.pop %v4739
    %v4742 = vsinq.f32.pop %v4739
    %vm4743 = vweird.f32 %v4022
    %v4744 = vadd.s32 %v4740, 3
    %v4745 = vand.u32 %v4744, 3
    %vm4746 = vcmp.lt.s32.totalorder %v4745, 2
    %vm4747 = vcmp.eq.s32.totalorder %v4745, 0
    %v4748 = vxor.u32 %v4742, 2147483648
    %v4749 = vsel %vm4747, %v4741, %v4748
    %vm4750 = vcmp.eq.s32.totalorder %v4745, 2
    %v4751 = vxor.u32 %v4741, 2147483648
    %v4752 = vsel %vm4750, %v4751, %v4742
    %v4753 = vsel %vm4746, %v4749, %v4752
    %v4754 = vsel %vm4743, nan, %v4753
    %v4755 = vand.u32 2147483647, %v4109
    %vm4756 = vcmp.le.f32.partialorder %v4755, 0.7853982
    %vm4757 = vcmp.lt.s32.totalorder %v4109, 0
    %v4758 = vand.u32 %v4109, 2139095040
    %v4759 = vshrl.u32 %v4758, 23
    %v4760 = vsub.s32 %v4759, 127
    %v4761 = vand.u32 2147483647, %v4109
    %v4762 = vand.u32 %v4761, 8388607
    %v4763 = vor.u32 %v4762, 8388608
    %v4764 = vsub.s32 0, %v4763
    %v4765 = vadd.s32 %v4760, 1
    %vm4766 = vcmp.gt.s32.totalorder %v4765, 0
    %v4767 = vsel %vm4766, %v4765, 0
    %v4768 = vshrl.u32 %v4767, 5
    %v4769 = vand.u32 %v4767, 31
    %v4770 = vsub.s32 32, %v4769
    %v4771 = vshrl.u32 683565275, %v4770
    %v4772 = vshll.u32 683565275, %v4769
    %v4773 = vshrl.u32 2475754826, %v4770
    %v4774 = vor.u32 %v4772, %v4773
    %v4775 = vshll.u32 2475754826, %v4769
    %v4776 = vshrl.u32 2131351028, %v4770
    %v4777 = vor.u32 %v4775, %v4776
    %v4778 = vshll.u32 2131351028, %v4769
    %v4779 = vshrl.u32 2102212464, %v4770
    %v4780 = vor.u32 %v4778, %v4779
    %v4781 = vshll.u32 2102212464, %v4769
    %v4782 = vshrl.u32 920167782, %v4770
    %v4783 = vor.u32 %v4781, %v4782
    %v4784 = vshll.u32 920167782, %v4769
    %v4785 = vshrl.u32 1326507024, %v4770
    %v4786 = vor.u32 %v4784, %v4785
    %vm4787 = vcmp.lt.s32.totalorder %v4768, 1
    %vm4788 = vcmp.lt.s32.totalorder %v4768, 2
    %vm4789 = vcmp.lt.s32.totalorder %v4768, 3
    %vm4790 = vcmp.lt.s32.totalorder %v4768, 4
    %v4791 = vsel %vm4787, %v4771, %v4774
    %v4792 = vsel %vm4790, %v4780, 2102212464
    %v4793 = vsel %vm4789, %v4777, %v4792
    %v4794 = vsel %vm4788, %v4791, %v4793
    %v4795 = vsel %vm4787, %v4774, %v4777
    %v4796 = vsel %vm4790, %v4783, 920167782
    %v4797 = vsel %vm4789, %v4780, %v4796
    %v4798 = vsel %vm4788, %v4795, %v4797
    %v4799 = vsel %vm4787, %v4777, %v4780
    %v4800 = vsel %vm4790, %v4786, 1326507024
    %v4801 = vsel %vm4789, %v4783, %v4800
    %v4802 = vsel %vm4788, %v4799, %v4801
    %v4803 = vshll.u32 %v4763, 8
    %v4804 = vmul.u32.u64.compose %v4803, %v4802
    %v4805 = vextract.low.u32 %v4804
    %v4806 = vextract.high.u32 %v4804
    %v4807 = vmul.u32.u64.compose %v4803, %v4798
    %v4808 = vextract.low.u32 %v4807
    %v4809 = vextract.high.u32 %v4807
    %v4810 = vmul.u32 %v4803, %v4794
    %v4811 = vadd.s32 %v4806, %v4808
    %vm4812 = vc.u32 %v4806, %v4808
    %v4813 = vadd.s32 %v4809, 1
    %v4814 = vsel %vm4812, %v4813, %v4809
    %v4815 = vadd.s32 %v4810, %v4814
    %v4816 = vadd.s32 %v4815, 536870912
    %v4817 = vshrl.u32 %v4816, 30
    %v4818 = vshll.u32 %v4817, 30
    %v4819 = vsub.s32 %v4815, %v4818
    %vm4820 = vcmp.lt.s32.totalorder %v4819, 0
    %v4821 = vsub.s32 0, %v4819
    %v4822 = vsel %vm4820, %v4821, %v4819
    %v4823 = vclz %v4822
    %v4824 = vsub.s32 %v4823, 2
    %vm4825 = vcmp.gt.s32.totalorder 0, %v4824
    %v4826 = vsel %vm4825, 0, %v4824
    %v4827 = vsub.s32 32, %v4826
    %v4828 = vshll.u32 %v4819, %v4826
    %v4829 = vshrl.u32 %v4811, %v4827
    %v4830 = vor.u32 %v4828, %v4829
    %v4831 = vsub.s32 4294967266, %v4826
    %v4832 = vadd.s32 %v4831, 127
    %v4833 = vshll.u32 %v4832, 23
    %v4834 = vor.u32 4788187, %v4833
    %v4835 = vand.u32 2147483647, %v4834
    %v4837 = vcvt.s32.f32 %v4830
    %v4838 = vmul.f32 %v4837, %v4835
    %v4839 = vxor.u32 %v4838, 2147483648
    %v4840 = vsel %vm4757, %v4839, %v4838
    %v4841 = vsub.s32 4, %v4817
    %v4842 = vsel %vm4757, %v4841, %v4817
    %v4843 = vsel %vm4756, %v4109, %v4840
    %v4844 = vsel %vm4756, 0, %v4842
    %v4845 = vcosq.f32.pop %v4843
    %v4846 = vsinq.f32.pop %v4843
    %vm4847 = vweird.f32 %v4109
    %v4848 = vadd.s32 %v4844, 3
    %v4849 = vand.u32 %v4848, 3
    %vm4850 = vcmp.lt.s32.totalorder %v4849, 2
    %vm4851 = vcmp.eq.s32.totalorder %v4849, 0
    %v4852 = vxor.u32 %v4846, 2147483648
    %v4853 = vsel %vm4851, %v4845, %v4852
    %vm4854 = vcmp.eq.s32.totalorder %v4849, 2
    %v4855 = vxor.u32 %v4845, 2147483648
    %v4856 = vsel %vm4854, %v4855, %v4846
    %v4857 = vsel %vm4850, %v4853, %v4856
    %v4858 = vsel %vm4847, nan, %v4857
    %v4859 = vand.u32 2147483647, %v4111
    %vm4860 = vcmp.le.f32.partialorder %v4859, 0.7853982
    %vm4861 = vcmp.lt.s32.totalorder %v4111, 0
    %v4862 = vand.u32 %v4111, 2139095040
    %v4863 = vshrl.u32 %v4862, 23
    %v4864 = vsub.s32 %v4863, 127
    %v4865 = vand.u32 2147483647, %v4111
    %v4866 = vand.u32 %v4865, 8388607
    %v4867 = vor.u32 %v4866, 8388608
    %v4868 = vsub.s32 0, %v4867
    %v4869 = vadd.s32 %v4864, 1
    %vm4870 = vcmp.gt.s32.totalorder %v4869, 0
    %v4871 = vsel %vm4870, %v4869, 0
    %v4872 = vshrl.u32 %v4871, 5
    %v4873 = vand.u32 %v4871, 31
    %v4874 = vsub.s32 32, %v4873
    %v4875 = vshrl.u32 683565275, %v4874
    %v4876 = vshll.u32 683565275, %v4873
    %v4877 = vshrl.u32 2475754826, %v4874
    %v4878 = vor.u32 %v4876, %v4877
    %v4879 = vshll.u32 2475754826, %v4873
    %v4880 = vshrl.u32 2131351028, %v4874
    %v4881 = vor.u32 %v4879, %v4880
    %v4882 = vshll.u32 2131351028, %v4873
    %v4883 = vshrl.u32 2102212464, %v4874
    %v4884 = vor.u32 %v4882, %v4883
    %v4885 = vshll.u32 2102212464, %v4873
    %v4886 = vshrl.u32 920167782, %v4874
    %v4887 = vor.u32 %v4885, %v4886
    %v4888 = vshll.u32 920167782, %v4873
    %v4889 = vshrl.u32 1326507024, %v4874
    %v4890 = vor.u32 %v4888, %v4889
    %vm4891 = vcmp.lt.s32.totalorder %v4872, 1
    %vm4892 = vcmp.lt.s32.totalorder %v4872, 2
    %vm4893 = vcmp.lt.s32.totalorder %v4872, 3
    %vm4894 = vcmp.lt.s32.totalorder %v4872, 4
    %v4895 = vsel %vm4891, %v4875, %v4878
    %v4896 = vsel %vm4894, %v4884, 2102212464
    %v4897 = vsel %vm4893, %v4881, %v4896
    %v4898 = vsel %vm4892, %v4895, %v4897
    %v4899 = vsel %vm4891, %v4878, %v4881
    %v4900 = vsel %vm4894, %v4887, 920167782
    %v4901 = vsel %vm4893, %v4884, %v4900
    %v4902 = vsel %vm4892, %v4899, %v4901
    %v4903 = vsel %vm4891, %v4881, %v4884
    %v4904 = vsel %vm4894, %v4890, 1326507024
    %v4905 = vsel %vm4893, %v4887, %v4904
    %v4906 = vsel %vm4892, %v4903, %v4905
    %v4907 = vshll.u32 %v4867, 8
    %v4908 = vmul.u32.u64.compose %v4907, %v4906
    %v4909 = vextract.low.u32 %v4908
    %v4910 = vextract.high.u32 %v4908
    %v4911 = vmul.u32.u64.compose %v4907, %v4902
    %v4912 = vextract.low.u32 %v4911
    %v4913 = vextract.high.u32 %v4911
    %v4914 = vmul.u32 %v4907, %v4898
    %v4915 = vadd.s32 %v4910, %v4912
    %vm4916 = vc.u32 %v4910, %v4912
    %v4917 = vadd.s32 %v4913, 1
    %v4918 = vsel %vm4916, %v4917, %v4913
    %v4919 = vadd.s32 %v4914, %v4918
    %v4920 = vadd.s32 %v4919, 536870912
    %v4921 = vshrl.u32 %v4920, 30
    %v4922 = vshll.u32 %v4921, 30
    %v4923 = vsub.s32 %v4919, %v4922
    %vm4924 = vcmp.lt.s32.totalorder %v4923, 0
    %v4925 = vsub.s32 0, %v4923
    %v4926 = vsel %vm4924, %v4925, %v4923
    %v4927 = vclz %v4926
    %v4928 = vsub.s32 %v4927, 2
    %vm4929 = vcmp.gt.s32.totalorder 0, %v4928
    %v4930 = vsel %vm4929, 0, %v4928
    %v4931 = vsub.s32 32, %v4930
    %v4932 = vshll.u32 %v4923, %v4930
    %v4933 = vshrl.u32 %v4915, %v4931
    %v4934 = vor.u32 %v4932, %v4933
    %v4935 = vsub.s32 4294967266, %v4930
    %v4936 = vadd.s32 %v4935, 127
    %v4937 = vshll.u32 %v4936, 23
    %v4938 = vor.u32 4788187, %v4937
    %v4939 = vand.u32 2147483647, %v4938
    %v4941 = vcvt.s32.f32 %v4934
    %v4942 = vmul.f32 %v4941, %v4939
    %v4943 = vxor.u32 %v4942, 2147483648
    %v4944 = vsel %vm4861, %v4943, %v4942
    %v4945 = vsub.s32 4, %v4921
    %v4946 = vsel %vm4861, %v4945, %v4921
    %v4947 = vsel %vm4860, %v4111, %v4944
    %v4948 = vsel %vm4860, 0, %v4946
    %v4949 = vcosq.f32.pop %v4947
    %v4950 = vsinq.f32.pop %v4947
    %vm4951 = vweird.f32 %v4111
    %v4952 = vadd.s32 %v4948, 3
    %v4953 = vand.u32 %v4952, 3
    %vm4954 = vcmp.lt.s32.totalorder %v4953, 2
    %vm4955 = vcmp.eq.s32.totalorder %v4953, 0
    %v4956 = vxor.u32 %v4950, 2147483648
    %v4957 = vsel %vm4955, %v4949, %v4956
    %vm4958 = vcmp.eq.s32.totalorder %v4953, 2
    %v4959 = vxor.u32 %v4949, 2147483648
    %v4960 = vsel %vm4958, %v4959, %v4950
    %v4961 = vsel %vm4954, %v4957, %v4960
    %v4962 = vsel %vm4951, nan, %v4961
    %v4963 = vand.u32 2147483647, %v3848
    %vm4964 = vcmp.le.f32.partialorder %v4963, 0.7853982
    %vm4965 = vcmp.lt.s32.totalorder %v3848, 0
    %v4966 = vand.u32 %v3848, 2139095040
    %v4967 = vshrl.u32 %v4966, 23
    %v4968 = vsub.s32 %v4967, 127
    %v4969 = vand.u32 2147483647, %v3848
    %v4970 = vand.u32 %v4969, 8388607
    %v4971 = vor.u32 %v4970, 8388608
    %v4972 = vsub.s32 0, %v4971
    %v4973 = vadd.s32 %v4968, 1
    %vm4974 = vcmp.gt.s32.totalorder %v4973, 0
    %v4975 = vsel %vm4974, %v4973, 0
    %v4976 = vshrl.u32 %v4975, 5
    %v4977 = vand.u32 %v4975, 31
    %v4978 = vsub.s32 32, %v4977
    %v4979 = vshrl.u32 683565275, %v4978
    %v4980 = vshll.u32 683565275, %v4977
    %v4981 = vshrl.u32 2475754826, %v4978
    %v4982 = vor.u32 %v4980, %v4981
    %v4983 = vshll.u32 2475754826, %v4977
    %v4984 = vshrl.u32 2131351028, %v4978
    %v4985 = vor.u32 %v4983, %v4984
    %v4986 = vshll.u32 2131351028, %v4977
    %v4987 = vshrl.u32 2102212464, %v4978
    %v4988 = vor.u32 %v4986, %v4987
    %v4989 = vshll.u32 2102212464, %v4977
    %v4990 = vshrl.u32 920167782, %v4978
    %v4991 = vor.u32 %v4989, %v4990
    %v4992 = vshll.u32 920167782, %v4977
    %v4993 = vshrl.u32 1326507024, %v4978
    %v4994 = vor.u32 %v4992, %v4993
    %vm4995 = vcmp.lt.s32.totalorder %v4976, 1
    %vm4996 = vcmp.lt.s32.totalorder %v4976, 2
    %vm4997 = vcmp.lt.s32.totalorder %v4976, 3
    %vm4998 = vcmp.lt.s32.totalorder %v4976, 4
    %v4999 = vsel %vm4995, %v4979, %v4982
    %v5000 = vsel %vm4998, %v4988, 2102212464
    %v5001 = vsel %vm4997, %v4985, %v5000
    %v5002 = vsel %vm4996, %v4999, %v5001
    %v5003 = vsel %vm4995, %v4982, %v4985
    %v5004 = vsel %vm4998, %v4991, 920167782
    %v5005 = vsel %vm4997, %v4988, %v5004
    %v5006 = vsel %vm4996, %v5003, %v5005
    %v5007 = vsel %vm4995, %v4985, %v4988
    %v5008 = vsel %vm4998, %v4994, 1326507024
    %v5009 = vsel %vm4997, %v4991, %v5008
    %v5010 = vsel %vm4996, %v5007, %v5009
    %v5011 = vshll.u32 %v4971, 8
    %v5012 = vmul.u32.u64.compose %v5011, %v5010
    %v5013 = vextract.low.u32 %v5012
    %v5014 = vextract.high.u32 %v5012
    %v5015 = vmul.u32.u64.compose %v5011, %v5006
    %v5016 = vextract.low.u32 %v5015
    %v5017 = vextract.high.u32 %v5015
    %v5018 = vmul.u32 %v5011, %v5002
    %v5019 = vadd.s32 %v5014, %v5016
    %vm5020 = vc.u32 %v5014, %v5016
    %v5021 = vadd.s32 %v5017, 1
    %v5022 = vsel %vm5020, %v5021, %v5017
    %v5023 = vadd.s32 %v5018, %v5022
    %v5024 = vadd.s32 %v5023, 536870912
    %v5025 = vshrl.u32 %v5024, 30
    %v5026 = vshll.u32 %v5025, 30
    %v5027 = vsub.s32 %v5023, %v5026
    %vm5028 = vcmp.lt.s32.totalorder %v5027, 0
    %v5029 = vsub.s32 0, %v5027
    %v5030 = vsel %vm5028, %v5029, %v5027
    %v5031 = vclz %v5030
    %v5032 = vsub.s32 %v5031, 2
    %vm5033 = vcmp.gt.s32.totalorder 0, %v5032
    %v5034 = vsel %vm5033, 0, %v5032
    %v5035 = vsub.s32 32, %v5034
    %v5036 = vshll.u32 %v5027, %v5034
    %v5037 = vshrl.u32 %v5019, %v5035
    %v5038 = vor.u32 %v5036, %v5037
    %v5039 = vsub.s32 4294967266, %v5034
    %v5040 = vadd.s32 %v5039, 127
    %v5041 = vshll.u32 %v5040, 23
    %v5042 = vor.u32 4788187, %v5041
    %v5043 = vand.u32 2147483647, %v5042
    %v5045 = vcvt.s32.f32 %v5038
    %v5046 = vmul.f32 %v5045, %v5043
    %v5047 = vxor.u32 %v5046, 2147483648
    %v5048 = vsel %vm4965, %v5047, %v5046
    %v5049 = vsub.s32 4, %v5025
    %v5050 = vsel %vm4965, %v5049, %v5025
    %v5051 = vsel %vm4964, %v3848, %v5048
    %v5052 = vsel %vm4964, 0, %v5050
    %v5053 = vcosq.f32.pop %v5051
    %v5054 = vsinq.f32.pop %v5051
    %vm5055 = vweird.f32 %v3848
    %v5056 = vadd.s32 %v5052, 3
    %v5057 = vand.u32 %v5056, 3
    %vm5058 = vcmp.lt.s32.totalorder %v5057, 2
    %vm5059 = vcmp.eq.s32.totalorder %v5057, 0
    %v5060 = vxor.u32 %v5054, 2147483648
    %v5061 = vsel %vm5059, %v5053, %v5060
    %vm5062 = vcmp.eq.s32.totalorder %v5057, 2
    %v5063 = vxor.u32 %v5053, 2147483648
    %v5064 = vsel %vm5062, %v5063, %v5054
    %v5065 = vsel %vm5058, %v5061, %v5064
    %v5066 = vsel %vm5055, nan, %v5065
    %v5067 = vand.u32 2147483647, %v3850
    %vm5068 = vcmp.le.f32.partialorder %v5067, 0.7853982
    %vm5069 = vcmp.lt.s32.totalorder %v3850, 0
    %v5070 = vand.u32 %v3850, 2139095040
    %v5071 = vshrl.u32 %v5070, 23
    %v5072 = vsub.s32 %v5071, 127
    %v5073 = vand.u32 2147483647, %v3850
    %v5074 = vand.u32 %v5073, 8388607
    %v5075 = vor.u32 %v5074, 8388608
    %v5076 = vsub.s32 0, %v5075
    %v5077 = vadd.s32 %v5072, 1
    %vm5078 = vcmp.gt.s32.totalorder %v5077, 0
    %v5079 = vsel %vm5078, %v5077, 0
    %v5080 = vshrl.u32 %v5079, 5
    %v5081 = vand.u32 %v5079, 31
    %v5082 = vsub.s32 32, %v5081
    %v5083 = vshrl.u32 683565275, %v5082
    %v5084 = vshll.u32 683565275, %v5081
    %v5085 = vshrl.u32 2475754826, %v5082
    %v5086 = vor.u32 %v5084, %v5085
    %v5087 = vshll.u32 2475754826, %v5081
    %v5088 = vshrl.u32 2131351028, %v5082
    %v5089 = vor.u32 %v5087, %v5088
    %v5090 = vshll.u32 2131351028, %v5081
    %v5091 = vshrl.u32 2102212464, %v5082
    %v5092 = vor.u32 %v5090, %v5091
    %v5093 = vshll.u32 2102212464, %v5081
    %v5094 = vshrl.u32 920167782, %v5082
    %v5095 = vor.u32 %v5093, %v5094
    %v5096 = vshll.u32 920167782, %v5081
    %v5097 = vshrl.u32 1326507024, %v5082
    %v5098 = vor.u32 %v5096, %v5097
    %vm5099 = vcmp.lt.s32.totalorder %v5080, 1
    %vm5100 = vcmp.lt.s32.totalorder %v5080, 2
    %vm5101 = vcmp.lt.s32.totalorder %v5080, 3
    %vm5102 = vcmp.lt.s32.totalorder %v5080, 4
    %v5103 = vsel %vm5099, %v5083, %v5086
    %v5104 = vsel %vm5102, %v5092, 2102212464
    %v5105 = vsel %vm5101, %v5089, %v5104
    %v5106 = vsel %vm5100, %v5103, %v5105
    %v5107 = vsel %vm5099, %v5086, %v5089
    %v5108 = vsel %vm5102, %v5095, 920167782
    %v5109 = vsel %vm5101, %v5092, %v5108
    %v5110 = vsel %vm5100, %v5107, %v5109
    %v5111 = vsel %vm5099, %v5089, %v5092
    %v5112 = vsel %vm5102, %v5098, 1326507024
    %v5113 = vsel %vm5101, %v5095, %v5112
    %v5114 = vsel %vm5100, %v5111, %v5113
    %v5115 = vshll.u32 %v5075, 8
    %v5116 = vmul.u32.u64.compose %v5115, %v5114
    %v5117 = vextract.low.u32 %v5116
    %v5118 = vextract.high.u32 %v5116
    %v5119 = vmul.u32.u64.compose %v5115, %v5110
    %v5120 = vextract.low.u32 %v5119
    %v5121 = vextract.high.u32 %v5119
    %v5122 = vmul.u32 %v5115, %v5106
    %v5123 = vadd.s32 %v5118, %v5120
    %vm5124 = vc.u32 %v5118, %v5120
    %v5125 = vadd.s32 %v5121, 1
    %v5126 = vsel %vm5124, %v5125, %v5121
    %v5127 = vadd.s32 %v5122, %v5126
    %v5128 = vadd.s32 %v5127, 536870912
    %v5129 = vshrl.u32 %v5128, 30
    %v5130 = vshll.u32 %v5129, 30
    %v5131 = vsub.s32 %v5127, %v5130
    %vm5132 = vcmp.lt.s32.totalorder %v5131, 0
    %v5133 = vsub.s32 0, %v5131
    %v5134 = vsel %vm5132, %v5133, %v5131
    %v5135 = vclz %v5134
    %v5136 = vsub.s32 %v5135, 2
    %vm5137 = vcmp.gt.s32.totalorder 0, %v5136
    %v5138 = vsel %vm5137, 0, %v5136
    %v5139 = vsub.s32 32, %v5138
    %v5140 = vshll.u32 %v5131, %v5138
    %v5141 = vshrl.u32 %v5123, %v5139
    %v5142 = vor.u32 %v5140, %v5141
    %v5143 = vsub.s32 4294967266, %v5138
    %v5144 = vadd.s32 %v5143, 127
    %v5145 = vshll.u32 %v5144, 23
    %v5146 = vor.u32 4788187, %v5145
    %v5147 = vand.u32 2147483647, %v5146
    %v5149 = vcvt.s32.f32 %v5142
    %v5150 = vmul.f32 %v5149, %v5147
    %v5151 = vxor.u32 %v5150, 2147483648
    %v5152 = vsel %vm5069, %v5151, %v5150
    %v5153 = vsub.s32 4, %v5129
    %v5154 = vsel %vm5069, %v5153, %v5129
    %v5155 = vsel %vm5068, %v3850, %v5152
    %v5156 = vsel %vm5068, 0, %v5154
    %v5157 = vcosq.f32.pop %v5155
    %v5158 = vsinq.f32.pop %v5155
    %vm5159 = vweird.f32 %v3850
    %v5160 = vadd.s32 %v5156, 3
    %v5161 = vand.u32 %v5160, 3
    %vm5162 = vcmp.lt.s32.totalorder %v5161, 2
    %vm5163 = vcmp.eq.s32.totalorder %v5161, 0
    %v5164 = vxor.u32 %v5158, 2147483648
    %v5165 = vsel %vm5163, %v5157, %v5164
    %vm5166 = vcmp.eq.s32.totalorder %v5161, 2
    %v5167 = vxor.u32 %v5157, 2147483648
    %v5168 = vsel %vm5166, %v5167, %v5158
    %v5169 = vsel %vm5162, %v5165, %v5168
    %v5170 = vsel %vm5159, nan, %v5169
    %v5171 = vand.u32 2147483647, %v3937
    %vm5172 = vcmp.le.f32.partialorder %v5171, 0.7853982
    %vm5173 = vcmp.lt.s32.totalorder %v3937, 0
    %v5174 = vand.u32 %v3937, 2139095040
    %v5175 = vshrl.u32 %v5174, 23
    %v5176 = vsub.s32 %v5175, 127
    %v5177 = vand.u32 2147483647, %v3937
    %v5178 = vand.u32 %v5177, 8388607
    %v5179 = vor.u32 %v5178, 8388608
    %v5180 = vsub.s32 0, %v5179
    %v5181 = vadd.s32 %v5176, 1
    %vm5182 = vcmp.gt.s32.totalorder %v5181, 0
    %v5183 = vsel %vm5182, %v5181, 0
    %v5184 = vshrl.u32 %v5183, 5
    %v5185 = vand.u32 %v5183, 31
    %v5186 = vsub.s32 32, %v5185
    %v5187 = vshrl.u32 683565275, %v5186
    %v5188 = vshll.u32 683565275, %v5185
    %v5189 = vshrl.u32 2475754826, %v5186
    %v5190 = vor.u32 %v5188, %v5189
    %v5191 = vshll.u32 2475754826, %v5185
    %v5192 = vshrl.u32 2131351028, %v5186
    %v5193 = vor.u32 %v5191, %v5192
    %v5194 = vshll.u32 2131351028, %v5185
    %v5195 = vshrl.u32 2102212464, %v5186
    %v5196 = vor.u32 %v5194, %v5195
    %v5197 = vshll.u32 2102212464, %v5185
    %v5198 = vshrl.u32 920167782, %v5186
    %v5199 = vor.u32 %v5197, %v5198
    %v5200 = vshll.u32 920167782, %v5185
    %v5201 = vshrl.u32 1326507024, %v5186
    %v5202 = vor.u32 %v5200, %v5201
    %vm5203 = vcmp.lt.s32.totalorder %v5184, 1
    %vm5204 = vcmp.lt.s32.totalorder %v5184, 2
    %vm5205 = vcmp.lt.s32.totalorder %v5184, 3
    %vm5206 = vcmp.lt.s32.totalorder %v5184, 4
    %v5207 = vsel %vm5203, %v5187, %v5190
    %v5208 = vsel %vm5206, %v5196, 2102212464
    %v5209 = vsel %vm5205, %v5193, %v5208
    %v5210 = vsel %vm5204, %v5207, %v5209
    %v5211 = vsel %vm5203, %v5190, %v5193
    %v5212 = vsel %vm5206, %v5199, 920167782
    %v5213 = vsel %vm5205, %v5196, %v5212
    %v5214 = vsel %vm5204, %v5211, %v5213
    %v5215 = vsel %vm5203, %v5193, %v5196
    %v5216 = vsel %vm5206, %v5202, 1326507024
    %v5217 = vsel %vm5205, %v5199, %v5216
    %v5218 = vsel %vm5204, %v5215, %v5217
    %v5219 = vshll.u32 %v5179, 8
    %v5220 = vmul.u32.u64.compose %v5219, %v5218
    %v5221 = vextract.low.u32 %v5220
    %v5222 = vextract.high.u32 %v5220
    %v5223 = vmul.u32.u64.compose %v5219, %v5214
    %v5224 = vextract.low.u32 %v5223
    %v5225 = vextract.high.u32 %v5223
    %v5226 = vmul.u32 %v5219, %v5210
    %v5227 = vadd.s32 %v5222, %v5224
    %vm5228 = vc.u32 %v5222, %v5224
    %v5229 = vadd.s32 %v5225, 1
    %v5230 = vsel %vm5228, %v5229, %v5225
    %v5231 = vadd.s32 %v5226, %v5230
    %v5232 = vadd.s32 %v5231, 536870912
    %v5233 = vshrl.u32 %v5232, 30
    %v5234 = vshll.u32 %v5233, 30
    %v5235 = vsub.s32 %v5231, %v5234
    %vm5236 = vcmp.lt.s32.totalorder %v5235, 0
    %v5237 = vsub.s32 0, %v5235
    %v5238 = vsel %vm5236, %v5237, %v5235
    %v5239 = vclz %v5238
    %v5240 = vsub.s32 %v5239, 2
    %vm5241 = vcmp.gt.s32.totalorder 0, %v5240
    %v5242 = vsel %vm5241, 0, %v5240
    %v5243 = vsub.s32 32, %v5242
    %v5244 = vshll.u32 %v5235, %v5242
    %v5245 = vshrl.u32 %v5227, %v5243
    %v5246 = vor.u32 %v5244, %v5245
    %v5247 = vsub.s32 4294967266, %v5242
    %v5248 = vadd.s32 %v5247, 127
    %v5249 = vshll.u32 %v5248, 23
    %v5250 = vor.u32 4788187, %v5249
    %v5251 = vand.u32 2147483647, %v5250
    %v5253 = vcvt.s32.f32 %v5246
    %v5254 = vmul.f32 %v5253, %v5251
    %v5255 = vxor.u32 %v5254, 2147483648
    %v5256 = vsel %vm5173, %v5255, %v5254
    %v5257 = vsub.s32 4, %v5233
    %v5258 = vsel %vm5173, %v5257, %v5233
    %v5259 = vsel %vm5172, %v3937, %v5256
    %v5260 = vsel %vm5172, 0, %v5258
    %v5261 = vcosq.f32.pop %v5259
    %v5262 = vsinq.f32.pop %v5259
    %vm5263 = vweird.f32 %v3937
    %v5264 = vadd.s32 %v5260, 3
    %v5265 = vand.u32 %v5264, 3
    %vm5266 = vcmp.lt.s32.totalorder %v5265, 2
    %vm5267 = vcmp.eq.s32.totalorder %v5265, 0
    %v5268 = vxor.u32 %v5262, 2147483648
    %v5269 = vsel %vm5267, %v5261, %v5268
    %vm5270 = vcmp.eq.s32.totalorder %v5265, 2
    %v5271 = vxor.u32 %v5261, 2147483648
    %v5272 = vsel %vm5270, %v5271, %v5262
    %v5273 = vsel %vm5266, %v5269, %v5272
    %v5274 = vsel %vm5263, nan, %v5273
    %v5275 = vand.u32 2147483647, %v3939
    %vm5276 = vcmp.le.f32.partialorder %v5275, 0.7853982
    %vm5277 = vcmp.lt.s32.totalorder %v3939, 0
    %v5278 = vand.u32 %v3939, 2139095040
    %v5279 = vshrl.u32 %v5278, 23
    %v5280 = vsub.s32 %v5279, 127
    %v5281 = vand.u32 2147483647, %v3939
    %v5282 = vand.u32 %v5281, 8388607
    %v5283 = vor.u32 %v5282, 8388608
    %v5284 = vsub.s32 0, %v5283
    %v5285 = vadd.s32 %v5280, 1
    %vm5286 = vcmp.gt.s32.totalorder %v5285, 0
    %v5287 = vsel %vm5286, %v5285, 0
    %v5288 = vshrl.u32 %v5287, 5
    %v5289 = vand.u32 %v5287, 31
    %v5290 = vsub.s32 32, %v5289
    %v5291 = vshrl.u32 683565275, %v5290
    %v5292 = vshll.u32 683565275, %v5289
    %v5293 = vshrl.u32 2475754826, %v5290
    %v5294 = vor.u32 %v5292, %v5293
    %v5295 = vshll.u32 2475754826, %v5289
    %v5296 = vshrl.u32 2131351028, %v5290
    %v5297 = vor.u32 %v5295, %v5296
    %v5298 = vshll.u32 2131351028, %v5289
    %v5299 = vshrl.u32 2102212464, %v5290
    %v5300 = vor.u32 %v5298, %v5299
    %v5301 = vshll.u32 2102212464, %v5289
    %v5302 = vshrl.u32 920167782, %v5290
    %v5303 = vor.u32 %v5301, %v5302
    %v5304 = vshll.u32 920167782, %v5289
    %v5305 = vshrl.u32 1326507024, %v5290
    %v5306 = vor.u32 %v5304, %v5305
    %vm5307 = vcmp.lt.s32.totalorder %v5288, 1
    %vm5308 = vcmp.lt.s32.totalorder %v5288, 2
    %vm5309 = vcmp.lt.s32.totalorder %v5288, 3
    %vm5310 = vcmp.lt.s32.totalorder %v5288, 4
    %v5311 = vsel %vm5307, %v5291, %v5294
    %v5312 = vsel %vm5310, %v5300, 2102212464
    %v5313 = vsel %vm5309, %v5297, %v5312
    %v5314 = vsel %vm5308, %v5311, %v5313
    %v5315 = vsel %vm5307, %v5294, %v5297
    %v5316 = vsel %vm5310, %v5303, 920167782
    %v5317 = vsel %vm5309, %v5300, %v5316
    %v5318 = vsel %vm5308, %v5315, %v5317
    %v5319 = vsel %vm5307, %v5297, %v5300
    %v5320 = vsel %vm5310, %v5306, 1326507024
    %v5321 = vsel %vm5309, %v5303, %v5320
    %v5322 = vsel %vm5308, %v5319, %v5321
    %v5323 = vshll.u32 %v5283, 8
    %v5324 = vmul.u32.u64.compose %v5323, %v5322
    %v5325 = vextract.low.u32 %v5324
    %v5326 = vextract.high.u32 %v5324
    %v5327 = vmul.u32.u64.compose %v5323, %v5318
    %v5328 = vextract.low.u32 %v5327
    %v5329 = vextract.high.u32 %v5327
    %v5330 = vmul.u32 %v5323, %v5314
    %v5331 = vadd.s32 %v5326, %v5328
    %vm5332 = vc.u32 %v5326, %v5328
    %v5333 = vadd.s32 %v5329, 1
    %v5334 = vsel %vm5332, %v5333, %v5329
    %v5335 = vadd.s32 %v5330, %v5334
    %v5336 = vadd.s32 %v5335, 536870912
    %v5337 = vshrl.u32 %v5336, 30
    %v5338 = vshll.u32 %v5337, 30
    %v5339 = vsub.s32 %v5335, %v5338
    %vm5340 = vcmp.lt.s32.totalorder %v5339, 0
    %v5341 = vsub.s32 0, %v5339
    %v5342 = vsel %vm5340, %v5341, %v5339
    %v5343 = vclz %v5342
    %v5344 = vsub.s32 %v5343, 2
    %vm5345 = vcmp.gt.s32.totalorder 0, %v5344
    %v5346 = vsel %vm5345, 0, %v5344
    %v5347 = vsub.s32 32, %v5346
    %v5348 = vshll.u32 %v5339, %v5346
    %v5349 = vshrl.u32 %v5331, %v5347
    %v5350 = vor.u32 %v5348, %v5349
    %v5351 = vsub.s32 4294967266, %v5346
    %v5352 = vadd.s32 %v5351, 127
    %v5353 = vshll.u32 %v5352, 23
    %v5354 = vor.u32 4788187, %v5353
    %v5355 = vand.u32 2147483647, %v5354
    %v5357 = vcvt.s32.f32 %v5350
    %v5358 = vmul.f32 %v5357, %v5355
    %v5359 = vxor.u32 %v5358, 2147483648
    %v5360 = vsel %vm5277, %v5359, %v5358
    %v5361 = vsub.s32 4, %v5337
    %v5362 = vsel %vm5277, %v5361, %v5337
    %v5363 = vsel %vm5276, %v3939, %v5360
    %v5364 = vsel %vm5276, 0, %v5362
    %v5365 = vcosq.f32.pop %v5363
    %v5366 = vsinq.f32.pop %v5363
    %vm5367 = vweird.f32 %v3939
    %v5368 = vadd.s32 %v5364, 3
    %v5369 = vand.u32 %v5368, 3
    %vm5370 = vcmp.lt.s32.totalorder %v5369, 2
    %vm5371 = vcmp.eq.s32.totalorder %v5369, 0
    %v5372 = vxor.u32 %v5366, 2147483648
    %v5373 = vsel %vm5371, %v5365, %v5372
    %vm5374 = vcmp.eq.s32.totalorder %v5369, 2
    %v5375 = vxor.u32 %v5365, 2147483648
    %v5376 = vsel %vm5374, %v5375, %v5366
    %v5377 = vsel %vm5370, %v5373, %v5376
    %v5378 = vsel %vm5367, nan, %v5377
    %v5379 = vand.u32 2147483647, %v4026
    %vm5380 = vcmp.le.f32.partialorder %v5379, 0.7853982
    %vm5381 = vcmp.lt.s32.totalorder %v4026, 0
    %v5382 = vand.u32 %v4026, 2139095040
    %v5383 = vshrl.u32 %v5382, 23
    %v5384 = vsub.s32 %v5383, 127
    %v5385 = vand.u32 2147483647, %v4026
    %v5386 = vand.u32 %v5385, 8388607
    %v5387 = vor.u32 %v5386, 8388608
    %v5388 = vsub.s32 0, %v5387
    %v5389 = vadd.s32 %v5384, 1
    %vm5390 = vcmp.gt.s32.totalorder %v5389, 0
    %v5391 = vsel %vm5390, %v5389, 0
    %v5392 = vshrl.u32 %v5391, 5
    %v5393 = vand.u32 %v5391, 31
    %v5394 = vsub.s32 32, %v5393
    %v5395 = vshrl.u32 683565275, %v5394
    %v5396 = vshll.u32 683565275, %v5393
    %v5397 = vshrl.u32 2475754826, %v5394
    %v5398 = vor.u32 %v5396, %v5397
    %v5399 = vshll.u32 2475754826, %v5393
    %v5400 = vshrl.u32 2131351028, %v5394
    %v5401 = vor.u32 %v5399, %v5400
    %v5402 = vshll.u32 2131351028, %v5393
    %v5403 = vshrl.u32 2102212464, %v5394
    %v5404 = vor.u32 %v5402, %v5403
    %v5405 = vshll.u32 2102212464, %v5393
    %v5406 = vshrl.u32 920167782, %v5394
    %v5407 = vor.u32 %v5405, %v5406
    %v5408 = vshll.u32 920167782, %v5393
    %v5409 = vshrl.u32 1326507024, %v5394
    %v5410 = vor.u32 %v5408, %v5409
    %vm5411 = vcmp.lt.s32.totalorder %v5392, 1
    %vm5412 = vcmp.lt.s32.totalorder %v5392, 2
    %vm5413 = vcmp.lt.s32.totalorder %v5392, 3
    %vm5414 = vcmp.lt.s32.totalorder %v5392, 4
    %v5415 = vsel %vm5411, %v5395, %v5398
    %v5416 = vsel %vm5414, %v5404, 2102212464
    %v5417 = vsel %vm5413, %v5401, %v5416
    %v5418 = vsel %vm5412, %v5415, %v5417
    %v5419 = vsel %vm5411, %v5398, %v5401
    %v5420 = vsel %vm5414, %v5407, 920167782
    %v5421 = vsel %vm5413, %v5404, %v5420
    %v5422 = vsel %vm5412, %v5419, %v5421
    %v5423 = vsel %vm5411, %v5401, %v5404
    %v5424 = vsel %vm5414, %v5410, 1326507024
    %v5425 = vsel %vm5413, %v5407, %v5424
    %v5426 = vsel %vm5412, %v5423, %v5425
    %v5427 = vshll.u32 %v5387, 8
    %v5428 = vmul.u32.u64.compose %v5427, %v5426
    %v5429 = vextract.low.u32 %v5428
    %v5430 = vextract.high.u32 %v5428
    %v5431 = vmul.u32.u64.compose %v5427, %v5422
    %v5432 = vextract.low.u32 %v5431
    %v5433 = vextract.high.u32 %v5431
    %v5434 = vmul.u32 %v5427, %v5418
    %v5435 = vadd.s32 %v5430, %v5432
    %vm5436 = vc.u32 %v5430, %v5432
    %v5437 = vadd.s32 %v5433, 1
    %v5438 = vsel %vm5436, %v5437, %v5433
    %v5439 = vadd.s32 %v5434, %v5438
    %v5440 = vadd.s32 %v5439, 536870912
    %v5441 = vshrl.u32 %v5440, 30
    %v5442 = vshll.u32 %v5441, 30
    %v5443 = vsub.s32 %v5439, %v5442
    %vm5444 = vcmp.lt.s32.totalorder %v5443, 0
    %v5445 = vsub.s32 0, %v5443
    %v5446 = vsel %vm5444, %v5445, %v5443
    %v5447 = vclz %v5446
    %v5448 = vsub.s32 %v5447, 2
    %vm5449 = vcmp.gt.s32.totalorder 0, %v5448
    %v5450 = vsel %vm5449, 0, %v5448
    %v5451 = vsub.s32 32, %v5450
    %v5452 = vshll.u32 %v5443, %v5450
    %v5453 = vshrl.u32 %v5435, %v5451
    %v5454 = vor.u32 %v5452, %v5453
    %v5455 = vsub.s32 4294967266, %v5450
    %v5456 = vadd.s32 %v5455, 127
    %v5457 = vshll.u32 %v5456, 23
    %v5458 = vor.u32 4788187, %v5457
    %v5459 = vand.u32 2147483647, %v5458
    %v5461 = vcvt.s32.f32 %v5454
    %v5462 = vmul.f32 %v5461, %v5459
    %v5463 = vxor.u32 %v5462, 2147483648
    %v5464 = vsel %vm5381, %v5463, %v5462
    %v5465 = vsub.s32 4, %v5441
    %v5466 = vsel %vm5381, %v5465, %v5441
    %v5467 = vsel %vm5380, %v4026, %v5464
    %v5468 = vsel %vm5380, 0, %v5466
    %v5469 = vcosq.f32.pop %v5467
    %v5470 = vsinq.f32.pop %v5467
    %vm5471 = vweird.f32 %v4026
    %v5472 = vadd.s32 %v5468, 3
    %v5473 = vand.u32 %v5472, 3
    %vm5474 = vcmp.lt.s32.totalorder %v5473, 2
    %vm5475 = vcmp.eq.s32.totalorder %v5473, 0
    %v5476 = vxor.u32 %v5470, 2147483648
    %v5477 = vsel %vm5475, %v5469, %v5476
    %vm5478 = vcmp.eq.s32.totalorder %v5473, 2
    %v5479 = vxor.u32 %v5469, 2147483648
    %v5480 = vsel %vm5478, %v5479, %v5470
    %v5481 = vsel %vm5474, %v5477, %v5480
    %v5482 = vsel %vm5471, nan, %v5481
    %v5483 = vand.u32 2147483647, %v4028
    %vm5484 = vcmp.le.f32.partialorder %v5483, 0.7853982
    %vm5485 = vcmp.lt.s32.totalorder %v4028, 0
    %v5486 = vand.u32 %v4028, 2139095040
    %v5487 = vshrl.u32 %v5486, 23
    %v5488 = vsub.s32 %v5487, 127
    %v5489 = vand.u32 2147483647, %v4028
    %v5490 = vand.u32 %v5489, 8388607
    %v5491 = vor.u32 %v5490, 8388608
    %v5492 = vsub.s32 0, %v5491
    %v5493 = vadd.s32 %v5488, 1
    %vm5494 = vcmp.gt.s32.totalorder %v5493, 0
    %v5495 = vsel %vm5494, %v5493, 0
    %v5496 = vshrl.u32 %v5495, 5
    %v5497 = vand.u32 %v5495, 31
    %v5498 = vsub.s32 32, %v5497
    %v5499 = vshrl.u32 683565275, %v5498
    %v5500 = vshll.u32 683565275, %v5497
    %v5501 = vshrl.u32 2475754826, %v5498
    %v5502 = vor.u32 %v5500, %v5501
    %v5503 = vshll.u32 2475754826, %v5497
    %v5504 = vshrl.u32 2131351028, %v5498
    %v5505 = vor.u32 %v5503, %v5504
    %v5506 = vshll.u32 2131351028, %v5497
    %v5507 = vshrl.u32 2102212464, %v5498
    %v5508 = vor.u32 %v5506, %v5507
    %v5509 = vshll.u32 2102212464, %v5497
    %v5510 = vshrl.u32 920167782, %v5498
    %v5511 = vor.u32 %v5509, %v5510
    %v5512 = vshll.u32 920167782, %v5497
    %v5513 = vshrl.u32 1326507024, %v5498
    %v5514 = vor.u32 %v5512, %v5513
    %vm5515 = vcmp.lt.s32.totalorder %v5496, 1
    %vm5516 = vcmp.lt.s32.totalorder %v5496, 2
    %vm5517 = vcmp.lt.s32.totalorder %v5496, 3
    %vm5518 = vcmp.lt.s32.totalorder %v5496, 4
    %v5519 = vsel %vm5515, %v5499, %v5502
    %v5520 = vsel %vm5518, %v5508, 2102212464
    %v5521 = vsel %vm5517, %v5505, %v5520
    %v5522 = vsel %vm5516, %v5519, %v5521
    %v5523 = vsel %vm5515, %v5502, %v5505
    %v5524 = vsel %vm5518, %v5511, 920167782
    %v5525 = vsel %vm5517, %v5508, %v5524
    %v5526 = vsel %vm5516, %v5523, %v5525
    %v5527 = vsel %vm5515, %v5505, %v5508
    %v5528 = vsel %vm5518, %v5514, 1326507024
    %v5529 = vsel %vm5517, %v5511, %v5528
    %v5530 = vsel %vm5516, %v5527, %v5529
    %v5531 = vshll.u32 %v5491, 8
    %v5532 = vmul.u32.u64.compose %v5531, %v5530
    %v5533 = vextract.low.u32 %v5532
    %v5534 = vextract.high.u32 %v5532
    %v5535 = vmul.u32.u64.compose %v5531, %v5526
    %v5536 = vextract.low.u32 %v5535
    %v5537 = vextract.high.u32 %v5535
    %v5538 = vmul.u32 %v5531, %v5522
    %v5539 = vadd.s32 %v5534, %v5536
    %vm5540 = vc.u32 %v5534, %v5536
    %v5541 = vadd.s32 %v5537, 1
    %v5542 = vsel %vm5540, %v5541, %v5537
    %v5543 = vadd.s32 %v5538, %v5542
    %v5544 = vadd.s32 %v5543, 536870912
    %v5545 = vshrl.u32 %v5544, 30
    %v5546 = vshll.u32 %v5545, 30
    %v5547 = vsub.s32 %v5543, %v5546
    %vm5548 = vcmp.lt.s32.totalorder %v5547, 0
    %v5549 = vsub.s32 0, %v5547
    %v5550 = vsel %vm5548, %v5549, %v5547
    %v5551 = vclz %v5550
    %v5552 = vsub.s32 %v5551, 2
    %vm5553 = vcmp.gt.s32.totalorder 0, %v5552
    %v5554 = vsel %vm5553, 0, %v5552
    %v5555 = vsub.s32 32, %v5554
    %v5556 = vshll.u32 %v5547, %v5554
    %v5557 = vshrl.u32 %v5539, %v5555
    %v5558 = vor.u32 %v5556, %v5557
    %v5559 = vsub.s32 4294967266, %v5554
    %v5560 = vadd.s32 %v5559, 127
    %v5561 = vshll.u32 %v5560, 23
    %v5562 = vor.u32 4788187, %v5561
    %v5563 = vand.u32 2147483647, %v5562
    %v5565 = vcvt.s32.f32 %v5558
    %v5566 = vmul.f32 %v5565, %v5563
    %v5567 = vxor.u32 %v5566, 2147483648
    %v5568 = vsel %vm5485, %v5567, %v5566
    %v5569 = vsub.s32 4, %v5545
    %v5570 = vsel %vm5485, %v5569, %v5545
    %v5571 = vsel %vm5484, %v4028, %v5568
    %v5572 = vsel %vm5484, 0, %v5570
    %v5573 = vcosq.f32.pop %v5571
    %v5574 = vsinq.f32.pop %v5571
    %vm5575 = vweird.f32 %v4028
    %v5576 = vadd.s32 %v5572, 3
    %v5577 = vand.u32 %v5576, 3
    %vm5578 = vcmp.lt.s32.totalorder %v5577, 2
    %vm5579 = vcmp.eq.s32.totalorder %v5577, 0
    %v5580 = vxor.u32 %v5574, 2147483648
    %v5581 = vsel %vm5579, %v5573, %v5580
    %vm5582 = vcmp.eq.s32.totalorder %v5577, 2
    %v5583 = vxor.u32 %v5573, 2147483648
    %v5584 = vsel %vm5582, %v5583, %v5574
    %v5585 = vsel %vm5578, %v5581, %v5584
    %v5586 = vsel %vm5575, nan, %v5585
    %v5587 = vand.u32 2147483647, %v4115
    %vm5588 = vcmp.le.f32.partialorder %v5587, 0.7853982
    %vm5589 = vcmp.lt.s32.totalorder %v4115, 0
    %v5590 = vand.u32 %v4115, 2139095040
    %v5591 = vshrl.u32 %v5590, 23
    %v5592 = vsub.s32 %v5591, 127
    %v5593 = vand.u32 2147483647, %v4115
    %v5594 = vand.u32 %v5593, 8388607
    %v5595 = vor.u32 %v5594, 8388608
    %v5596 = vsub.s32 0, %v5595
    %v5597 = vadd.s32 %v5592, 1
    %vm5598 = vcmp.gt.s32.totalorder %v5597, 0
    %v5599 = vsel %vm5598, %v5597, 0
    %v5600 = vshrl.u32 %v5599, 5
    %v5601 = vand.u32 %v5599, 31
    %v5602 = vsub.s32 32, %v5601
    %v5603 = vshrl.u32 683565275, %v5602
    %v5604 = vshll.u32 683565275, %v5601
    %v5605 = vshrl.u32 2475754826, %v5602
    %v5606 = vor.u32 %v5604, %v5605
    %v5607 = vshll.u32 2475754826, %v5601
    %v5608 = vshrl.u32 2131351028, %v5602
    %v5609 = vor.u32 %v5607, %v5608
    %v5610 = vshll.u32 2131351028, %v5601
    %v5611 = vshrl.u32 2102212464, %v5602
    %v5612 = vor.u32 %v5610, %v5611
    %v5613 = vshll.u32 2102212464, %v5601
    %v5614 = vshrl.u32 920167782, %v5602
    %v5615 = vor.u32 %v5613, %v5614
    %v5616 = vshll.u32 920167782, %v5601
    %v5617 = vshrl.u32 1326507024, %v5602
    %v5618 = vor.u32 %v5616, %v5617
    %vm5619 = vcmp.lt.s32.totalorder %v5600, 1
    %vm5620 = vcmp.lt.s32.totalorder %v5600, 2
    %vm5621 = vcmp.lt.s32.totalorder %v5600, 3
    %vm5622 = vcmp.lt.s32.totalorder %v5600, 4
    %v5623 = vsel %vm5619, %v5603, %v5606
    %v5624 = vsel %vm5622, %v5612, 2102212464
    %v5625 = vsel %vm5621, %v5609, %v5624
    %v5626 = vsel %vm5620, %v5623, %v5625
    %v5627 = vsel %vm5619, %v5606, %v5609
    %v5628 = vsel %vm5622, %v5615, 920167782
    %v5629 = vsel %vm5621, %v5612, %v5628
    %v5630 = vsel %vm5620, %v5627, %v5629
    %v5631 = vsel %vm5619, %v5609, %v5612
    %v5632 = vsel %vm5622, %v5618, 1326507024
    %v5633 = vsel %vm5621, %v5615, %v5632
    %v5634 = vsel %vm5620, %v5631, %v5633
    %v5635 = vshll.u32 %v5595, 8
    %v5636 = vmul.u32.u64.compose %v5635, %v5634
    %v5637 = vextract.low.u32 %v5636
    %v5638 = vextract.high.u32 %v5636
    %v5639 = vmul.u32.u64.compose %v5635, %v5630
    %v5640 = vextract.low.u32 %v5639
    %v5641 = vextract.high.u32 %v5639
    %v5642 = vmul.u32 %v5635, %v5626
    %v5643 = vadd.s32 %v5638, %v5640
    %vm5644 = vc.u32 %v5638, %v5640
    %v5645 = vadd.s32 %v5641, 1
    %v5646 = vsel %vm5644, %v5645, %v5641
    %v5647 = vadd.s32 %v5642, %v5646
    %v5648 = vadd.s32 %v5647, 536870912
    %v5649 = vshrl.u32 %v5648, 30
    %v5650 = vshll.u32 %v5649, 30
    %v5651 = vsub.s32 %v5647, %v5650
    %vm5652 = vcmp.lt.s32.totalorder %v5651, 0
    %v5653 = vsub.s32 0, %v5651
    %v5654 = vsel %vm5652, %v5653, %v5651
    %v5655 = vclz %v5654
    %v5656 = vsub.s32 %v5655, 2
    %vm5657 = vcmp.gt.s32.totalorder 0, %v5656
    %v5658 = vsel %vm5657, 0, %v5656
    %v5659 = vsub.s32 32, %v5658
    %v5660 = vshll.u32 %v5651, %v5658
    %v5661 = vshrl.u32 %v5643, %v5659
    %v5662 = vor.u32 %v5660, %v5661
    %v5663 = vsub.s32 4294967266, %v5658
    %v5664 = vadd.s32 %v5663, 127
    %v5665 = vshll.u32 %v5664, 23
    %v5666 = vor.u32 4788187, %v5665
    %v5667 = vand.u32 2147483647, %v5666
    %v5669 = vcvt.s32.f32 %v5662
    %v5670 = vmul.f32 %v5669, %v5667
    %v5671 = vxor.u32 %v5670, 2147483648
    %v5672 = vsel %vm5589, %v5671, %v5670
    %v5673 = vsub.s32 4, %v5649
    %v5674 = vsel %vm5589, %v5673, %v5649
    %v5675 = vsel %vm5588, %v4115, %v5672
    %v5676 = vsel %vm5588, 0, %v5674
    %v5677 = vcosq.f32.pop %v5675
    %v5678 = vsinq.f32.pop %v5675
    %vm5679 = vweird.f32 %v4115
    %v5680 = vadd.s32 %v5676, 3
    %v5681 = vand.u32 %v5680, 3
    %vm5682 = vcmp.lt.s32.totalorder %v5681, 2
    %vm5683 = vcmp.eq.s32.totalorder %v5681, 0
    %v5684 = vxor.u32 %v5678, 2147483648
    %v5685 = vsel %vm5683, %v5677, %v5684
    %vm5686 = vcmp.eq.s32.totalorder %v5681, 2
    %v5687 = vxor.u32 %v5677, 2147483648
    %v5688 = vsel %vm5686, %v5687, %v5678
    %v5689 = vsel %vm5682, %v5685, %v5688
    %v5690 = vsel %vm5679, nan, %v5689
    %v5691 = vand.u32 2147483647, %v4117
    %vm5692 = vcmp.le.f32.partialorder %v5691, 0.7853982
    %vm5693 = vcmp.lt.s32.totalorder %v4117, 0
    %v5694 = vand.u32 %v4117, 2139095040
    %v5695 = vshrl.u32 %v5694, 23
    %v5696 = vsub.s32 %v5695, 127
    %v5697 = vand.u32 2147483647, %v4117
    %v5698 = vand.u32 %v5697, 8388607
    %v5699 = vor.u32 %v5698, 8388608
    %v5700 = vsub.s32 0, %v5699
    %v5701 = vadd.s32 %v5696, 1
    %vm5702 = vcmp.gt.s32.totalorder %v5701, 0
    %v5703 = vsel %vm5702, %v5701, 0
    %v5704 = vshrl.u32 %v5703, 5
    %v5705 = vand.u32 %v5703, 31
    %v5706 = vsub.s32 32, %v5705
    %v5707 = vshrl.u32 683565275, %v5706
    %v5708 = vshll.u32 683565275, %v5705
    %v5709 = vshrl.u32 2475754826, %v5706
    %v5710 = vor.u32 %v5708, %v5709
    %v5711 = vshll.u32 2475754826, %v5705
    %v5712 = vshrl.u32 2131351028, %v5706
    %v5713 = vor.u32 %v5711, %v5712
    %v5714 = vshll.u32 2131351028, %v5705
    %v5715 = vshrl.u32 2102212464, %v5706
    %v5716 = vor.u32 %v5714, %v5715
    %v5717 = vshll.u32 2102212464, %v5705
    %v5718 = vshrl.u32 920167782, %v5706
    %v5719 = vor.u32 %v5717, %v5718
    %v5720 = vshll.u32 920167782, %v5705
    %v5721 = vshrl.u32 1326507024, %v5706
    %v5722 = vor.u32 %v5720, %v5721
    %vm5723 = vcmp.lt.s32.totalorder %v5704, 1
    %vm5724 = vcmp.lt.s32.totalorder %v5704, 2
    %vm5725 = vcmp.lt.s32.totalorder %v5704, 3
    %vm5726 = vcmp.lt.s32.totalorder %v5704, 4
    %v5727 = vsel %vm5723, %v5707, %v5710
    %v5728 = vsel %vm5726, %v5716, 2102212464
    %v5729 = vsel %vm5725, %v5713, %v5728
    %v5730 = vsel %vm5724, %v5727, %v5729
    %v5731 = vsel %vm5723, %v5710, %v5713
    %v5732 = vsel %vm5726, %v5719, 920167782
    %v5733 = vsel %vm5725, %v5716, %v5732
    %v5734 = vsel %vm5724, %v5731, %v5733
    %v5735 = vsel %vm5723, %v5713, %v5716
    %v5736 = vsel %vm5726, %v5722, 1326507024
    %v5737 = vsel %vm5725, %v5719, %v5736
    %v5738 = vsel %vm5724, %v5735, %v5737
    %v5739 = vshll.u32 %v5699, 8
    %v5740 = vmul.u32.u64.compose %v5739, %v5738
    %v5741 = vextract.low.u32 %v5740
    %v5742 = vextract.high.u32 %v5740
    %v5743 = vmul.u32.u64.compose %v5739, %v5734
    %v5744 = vextract.low.u32 %v5743
    %v5745 = vextract.high.u32 %v5743
    %v5746 = vmul.u32 %v5739, %v5730
    %v5747 = vadd.s32 %v5742, %v5744
    %vm5748 = vc.u32 %v5742, %v5744
    %v5749 = vadd.s32 %v5745, 1
    %v5750 = vsel %vm5748, %v5749, %v5745
    %v5751 = vadd.s32 %v5746, %v5750
    %v5752 = vadd.s32 %v5751, 536870912
    %v5753 = vshrl.u32 %v5752, 30
    %v5754 = vshll.u32 %v5753, 30
    %v5755 = vsub.s32 %v5751, %v5754
    %vm5756 = vcmp.lt.s32.totalorder %v5755, 0
    %v5757 = vsub.s32 0, %v5755
    %v5758 = vsel %vm5756, %v5757, %v5755
    %v5759 = vclz %v5758
    %v5760 = vsub.s32 %v5759, 2
    %vm5761 = vcmp.gt.s32.totalorder 0, %v5760
    %v5762 = vsel %vm5761, 0, %v5760
    %v5763 = vsub.s32 32, %v5762
    %v5764 = vshll.u32 %v5755, %v5762
    %v5765 = vshrl.u32 %v5747, %v5763
    %v5766 = vor.u32 %v5764, %v5765
    %v5767 = vsub.s32 4294967266, %v5762
    %v5768 = vadd.s32 %v5767, 127
    %v5769 = vshll.u32 %v5768, 23
    %v5770 = vor.u32 4788187, %v5769
    %v5771 = vand.u32 2147483647, %v5770
    %v5773 = vcvt.s32.f32 %v5766
    %v5774 = vmul.f32 %v5773, %v5771
    %v5775 = vxor.u32 %v5774, 2147483648
    %v5776 = vsel %vm5693, %v5775, %v5774
    %v5777 = vsub.s32 4, %v5753
    %v5778 = vsel %vm5693, %v5777, %v5753
    %v5779 = vsel %vm5692, %v4117, %v5776
    %v5780 = vsel %vm5692, 0, %v5778
    %v5781 = vcosq.f32.pop %v5779
    %v5782 = vsinq.f32.pop %v5779
    %vm5783 = vweird.f32 %v4117
    %v5784 = vadd.s32 %v5780, 3
    %v5785 = vand.u32 %v5784, 3
    %vm5786 = vcmp.lt.s32.totalorder %v5785, 2
    %vm5787 = vcmp.eq.s32.totalorder %v5785, 0
    %v5788 = vxor.u32 %v5782, 2147483648
    %v5789 = vsel %vm5787, %v5781, %v5788
    %vm5790 = vcmp.eq.s32.totalorder %v5785, 2
    %v5791 = vxor.u32 %v5781, 2147483648
    %v5792 = vsel %vm5790, %v5791, %v5782
    %v5793 = vsel %vm5786, %v5789, %v5792
    %v5794 = vsel %vm5783, nan, %v5793
    %v5795 = vand.u32 2147483647, %v3854
    %vm5796 = vcmp.le.f32.partialorder %v5795, 0.7853982
    %vm5797 = vcmp.lt.s32.totalorder %v3854, 0
    %v5798 = vand.u32 %v3854, 2139095040
    %v5799 = vshrl.u32 %v5798, 23
    %v5800 = vsub.s32 %v5799, 127
    %v5801 = vand.u32 2147483647, %v3854
    %v5802 = vand.u32 %v5801, 8388607
    %v5803 = vor.u32 %v5802, 8388608
    %v5804 = vsub.s32 0, %v5803
    %v5805 = vadd.s32 %v5800, 1
    %vm5806 = vcmp.gt.s32.totalorder %v5805, 0
    %v5807 = vsel %vm5806, %v5805, 0
    %v5808 = vshrl.u32 %v5807, 5
    %v5809 = vand.u32 %v5807, 31
    %v5810 = vsub.s32 32, %v5809
    %v5811 = vshrl.u32 683565275, %v5810
    %v5812 = vshll.u32 683565275, %v5809
    %v5813 = vshrl.u32 2475754826, %v5810
    %v5814 = vor.u32 %v5812, %v5813
    %v5815 = vshll.u32 2475754826, %v5809
    %v5816 = vshrl.u32 2131351028, %v5810
    %v5817 = vor.u32 %v5815, %v5816
    %v5818 = vshll.u32 2131351028, %v5809
    %v5819 = vshrl.u32 2102212464, %v5810
    %v5820 = vor.u32 %v5818, %v5819
    %v5821 = vshll.u32 2102212464, %v5809
    %v5822 = vshrl.u32 920167782, %v5810
    %v5823 = vor.u32 %v5821, %v5822
    %v5824 = vshll.u32 920167782, %v5809
    %v5825 = vshrl.u32 1326507024, %v5810
    %v5826 = vor.u32 %v5824, %v5825
    %vm5827 = vcmp.lt.s32.totalorder %v5808, 1
    %vm5828 = vcmp.lt.s32.totalorder %v5808, 2
    %vm5829 = vcmp.lt.s32.totalorder %v5808, 3
    %vm5830 = vcmp.lt.s32.totalorder %v5808, 4
    %v5831 = vsel %vm5827, %v5811, %v5814
    %v5832 = vsel %vm5830, %v5820, 2102212464
    %v5833 = vsel %vm5829, %v5817, %v5832
    %v5834 = vsel %vm5828, %v5831, %v5833
    %v5835 = vsel %vm5827, %v5814, %v5817
    %v5836 = vsel %vm5830, %v5823, 920167782
    %v5837 = vsel %vm5829, %v5820, %v5836
    %v5838 = vsel %vm5828, %v5835, %v5837
    %v5839 = vsel %vm5827, %v5817, %v5820
    %v5840 = vsel %vm5830, %v5826, 1326507024
    %v5841 = vsel %vm5829, %v5823, %v5840
    %v5842 = vsel %vm5828, %v5839, %v5841
    %v5843 = vshll.u32 %v5803, 8
    %v5844 = vmul.u32.u64.compose %v5843, %v5842
    %v5845 = vextract.low.u32 %v5844
    %v5846 = vextract.high.u32 %v5844
    %v5847 = vmul.u32.u64.compose %v5843, %v5838
    %v5848 = vextract.low.u32 %v5847
    %v5849 = vextract.high.u32 %v5847
    %v5850 = vmul.u32 %v5843, %v5834
    %v5851 = vadd.s32 %v5846, %v5848
    %vm5852 = vc.u32 %v5846, %v5848
    %v5853 = vadd.s32 %v5849, 1
    %v5854 = vsel %vm5852, %v5853, %v5849
    %v5855 = vadd.s32 %v5850, %v5854
    %v5856 = vadd.s32 %v5855, 536870912
    %v5857 = vshrl.u32 %v5856, 30
    %v5858 = vshll.u32 %v5857, 30
    %v5859 = vsub.s32 %v5855, %v5858
    %vm5860 = vcmp.lt.s32.totalorder %v5859, 0
    %v5861 = vsub.s32 0, %v5859
    %v5862 = vsel %vm5860, %v5861, %v5859
    %v5863 = vclz %v5862
    %v5864 = vsub.s32 %v5863, 2
    %vm5865 = vcmp.gt.s32.totalorder 0, %v5864
    %v5866 = vsel %vm5865, 0, %v5864
    %v5867 = vsub.s32 32, %v5866
    %v5868 = vshll.u32 %v5859, %v5866
    %v5869 = vshrl.u32 %v5851, %v5867
    %v5870 = vor.u32 %v5868, %v5869
    %v5871 = vsub.s32 4294967266, %v5866
    %v5872 = vadd.s32 %v5871, 127
    %v5873 = vshll.u32 %v5872, 23
    %v5874 = vor.u32 4788187, %v5873
    %v5875 = vand.u32 2147483647, %v5874
    %v5877 = vcvt.s32.f32 %v5870
    %v5878 = vmul.f32 %v5877, %v5875
    %v5879 = vxor.u32 %v5878, 2147483648
    %v5880 = vsel %vm5797, %v5879, %v5878
    %v5881 = vsub.s32 4, %v5857
    %v5882 = vsel %vm5797, %v5881, %v5857
    %v5883 = vsel %vm5796, %v3854, %v5880
    %v5884 = vsel %vm5796, 0, %v5882
    %v5885 = vcosq.f32.pop %v5883
    %v5886 = vsinq.f32.pop %v5883
    %vm5887 = vweird.f32 %v3854
    %v5888 = vadd.s32 %v5884, 3
    %v5889 = vand.u32 %v5888, 3
    %vm5890 = vcmp.lt.s32.totalorder %v5889, 2
    %vm5891 = vcmp.eq.s32.totalorder %v5889, 0
    %v5892 = vxor.u32 %v5886, 2147483648
    %v5893 = vsel %vm5891, %v5885, %v5892
    %vm5894 = vcmp.eq.s32.totalorder %v5889, 2
    %v5895 = vxor.u32 %v5885, 2147483648
    %v5896 = vsel %vm5894, %v5895, %v5886
    %v5897 = vsel %vm5890, %v5893, %v5896
    %v5898 = vsel %vm5887, nan, %v5897
    %v5899 = vand.u32 2147483647, %v3856
    %vm5900 = vcmp.le.f32.partialorder %v5899, 0.7853982
    %vm5901 = vcmp.lt.s32.totalorder %v3856, 0
    %v5902 = vand.u32 %v3856, 2139095040
    %v5903 = vshrl.u32 %v5902, 23
    %v5904 = vsub.s32 %v5903, 127
    %v5905 = vand.u32 2147483647, %v3856
    %v5906 = vand.u32 %v5905, 8388607
    %v5907 = vor.u32 %v5906, 8388608
    %v5908 = vsub.s32 0, %v5907
    %v5909 = vadd.s32 %v5904, 1
    %vm5910 = vcmp.gt.s32.totalorder %v5909, 0
    %v5911 = vsel %vm5910, %v5909, 0
    %v5912 = vshrl.u32 %v5911, 5
    %v5913 = vand.u32 %v5911, 31
    %v5914 = vsub.s32 32, %v5913
    %v5915 = vshrl.u32 683565275, %v5914
    %v5916 = vshll.u32 683565275, %v5913
    %v5917 = vshrl.u32 2475754826, %v5914
    %v5918 = vor.u32 %v5916, %v5917
    %v5919 = vshll.u32 2475754826, %v5913
    %v5920 = vshrl.u32 2131351028, %v5914
    %v5921 = vor.u32 %v5919, %v5920
    %v5922 = vshll.u32 2131351028, %v5913
    %v5923 = vshrl.u32 2102212464, %v5914
    %v5924 = vor.u32 %v5922, %v5923
    %v5925 = vshll.u32 2102212464, %v5913
    %v5926 = vshrl.u32 920167782, %v5914
    %v5927 = vor.u32 %v5925, %v5926
    %v5928 = vshll.u32 920167782, %v5913
    %v5929 = vshrl.u32 1326507024, %v5914
    %v5930 = vor.u32 %v5928, %v5929
    %vm5931 = vcmp.lt.s32.totalorder %v5912, 1
    %vm5932 = vcmp.lt.s32.totalorder %v5912, 2
    %vm5933 = vcmp.lt.s32.totalorder %v5912, 3
    %vm5934 = vcmp.lt.s32.totalorder %v5912, 4
    %v5935 = vsel %vm5931, %v5915, %v5918
    %v5936 = vsel %vm5934, %v5924, 2102212464
    %v5937 = vsel %vm5933, %v5921, %v5936
    %v5938 = vsel %vm5932, %v5935, %v5937
    %v5939 = vsel %vm5931, %v5918, %v5921
    %v5940 = vsel %vm5934, %v5927, 920167782
    %v5941 = vsel %vm5933, %v5924, %v5940
    %v5942 = vsel %vm5932, %v5939, %v5941
    %v5943 = vsel %vm5931, %v5921, %v5924
    %v5944 = vsel %vm5934, %v5930, 1326507024
    %v5945 = vsel %vm5933, %v5927, %v5944
    %v5946 = vsel %vm5932, %v5943, %v5945
    %v5947 = vshll.u32 %v5907, 8
    %v5948 = vmul.u32.u64.compose %v5947, %v5946
    %v5949 = vextract.low.u32 %v5948
    %v5950 = vextract.high.u32 %v5948
    %v5951 = vmul.u32.u64.compose %v5947, %v5942
    %v5952 = vextract.low.u32 %v5951
    %v5953 = vextract.high.u32 %v5951
    %v5954 = vmul.u32 %v5947, %v5938
    %v5955 = vadd.s32 %v5950, %v5952
    %vm5956 = vc.u32 %v5950, %v5952
    %v5957 = vadd.s32 %v5953, 1
    %v5958 = vsel %vm5956, %v5957, %v5953
    %v5959 = vadd.s32 %v5954, %v5958
    %v5960 = vadd.s32 %v5959, 536870912
    %v5961 = vshrl.u32 %v5960, 30
    %v5962 = vshll.u32 %v5961, 30
    %v5963 = vsub.s32 %v5959, %v5962
    %vm5964 = vcmp.lt.s32.totalorder %v5963, 0
    %v5965 = vsub.s32 0, %v5963
    %v5966 = vsel %vm5964, %v5965, %v5963
    %v5967 = vclz %v5966
    %v5968 = vsub.s32 %v5967, 2
    %vm5969 = vcmp.gt.s32.totalorder 0, %v5968
    %v5970 = vsel %vm5969, 0, %v5968
    %v5971 = vsub.s32 32, %v5970
    %v5972 = vshll.u32 %v5963, %v5970
    %v5973 = vshrl.u32 %v5955, %v5971
    %v5974 = vor.u32 %v5972, %v5973
    %v5975 = vsub.s32 4294967266, %v5970
    %v5976 = vadd.s32 %v5975, 127
    %v5977 = vshll.u32 %v5976, 23
    %v5978 = vor.u32 4788187, %v5977
    %v5979 = vand.u32 2147483647, %v5978
    %v5981 = vcvt.s32.f32 %v5974
    %v5982 = vmul.f32 %v5981, %v5979
    %v5983 = vxor.u32 %v5982, 2147483648
    %v5984 = vsel %vm5901, %v5983, %v5982
    %v5985 = vsub.s32 4, %v5961
    %v5986 = vsel %vm5901, %v5985, %v5961
    %v5987 = vsel %vm5900, %v3856, %v5984
    %v5988 = vsel %vm5900, 0, %v5986
    %v5989 = vcosq.f32.pop %v5987
    %v5990 = vsinq.f32.pop %v5987
    %vm5991 = vweird.f32 %v3856
    %v5992 = vadd.s32 %v5988, 3
    %v5993 = vand.u32 %v5992, 3
    %vm5994 = vcmp.lt.s32.totalorder %v5993, 2
    %vm5995 = vcmp.eq.s32.totalorder %v5993, 0
    %v5996 = vxor.u32 %v5990, 2147483648
    %v5997 = vsel %vm5995, %v5989, %v5996
    %vm5998 = vcmp.eq.s32.totalorder %v5993, 2
    %v5999 = vxor.u32 %v5989, 2147483648
    %v6000 = vsel %vm5998, %v5999, %v5990
    %v6001 = vsel %vm5994, %v5997, %v6000
    %v6002 = vsel %vm5991, nan, %v6001
    %v6003 = vand.u32 2147483647, %v3943
    %vm6004 = vcmp.le.f32.partialorder %v6003, 0.7853982
    %vm6005 = vcmp.lt.s32.totalorder %v3943, 0
    %v6006 = vand.u32 %v3943, 2139095040
    %v6007 = vshrl.u32 %v6006, 23
    %v6008 = vsub.s32 %v6007, 127
    %v6009 = vand.u32 2147483647, %v3943
    %v6010 = vand.u32 %v6009, 8388607
    %v6011 = vor.u32 %v6010, 8388608
    %v6012 = vsub.s32 0, %v6011
    %v6013 = vadd.s32 %v6008, 1
    %vm6014 = vcmp.gt.s32.totalorder %v6013, 0
    %v6015 = vsel %vm6014, %v6013, 0
    %v6016 = vshrl.u32 %v6015, 5
    %v6017 = vand.u32 %v6015, 31
    %v6018 = vsub.s32 32, %v6017
    %v6019 = vshrl.u32 683565275, %v6018
    %v6020 = vshll.u32 683565275, %v6017
    %v6021 = vshrl.u32 2475754826, %v6018
    %v6022 = vor.u32 %v6020, %v6021
    %v6023 = vshll.u32 2475754826, %v6017
    %v6024 = vshrl.u32 2131351028, %v6018
    %v6025 = vor.u32 %v6023, %v6024
    %v6026 = vshll.u32 2131351028, %v6017
    %v6027 = vshrl.u32 2102212464, %v6018
    %v6028 = vor.u32 %v6026, %v6027
    %v6029 = vshll.u32 2102212464, %v6017
    %v6030 = vshrl.u32 920167782, %v6018
    %v6031 = vor.u32 %v6029, %v6030
    %v6032 = vshll.u32 920167782, %v6017
    %v6033 = vshrl.u32 1326507024, %v6018
    %v6034 = vor.u32 %v6032, %v6033
    %vm6035 = vcmp.lt.s32.totalorder %v6016, 1
    %vm6036 = vcmp.lt.s32.totalorder %v6016, 2
    %vm6037 = vcmp.lt.s32.totalorder %v6016, 3
    %vm6038 = vcmp.lt.s32.totalorder %v6016, 4
    %v6039 = vsel %vm6035, %v6019, %v6022
    %v6040 = vsel %vm6038, %v6028, 2102212464
    %v6041 = vsel %vm6037, %v6025, %v6040
    %v6042 = vsel %vm6036, %v6039, %v6041
    %v6043 = vsel %vm6035, %v6022, %v6025
    %v6044 = vsel %vm6038, %v6031, 920167782
    %v6045 = vsel %vm6037, %v6028, %v6044
    %v6046 = vsel %vm6036, %v6043, %v6045
    %v6047 = vsel %vm6035, %v6025, %v6028
    %v6048 = vsel %vm6038, %v6034, 1326507024
    %v6049 = vsel %vm6037, %v6031, %v6048
    %v6050 = vsel %vm6036, %v6047, %v6049
    %v6051 = vshll.u32 %v6011, 8
    %v6052 = vmul.u32.u64.compose %v6051, %v6050
    %v6053 = vextract.low.u32 %v6052
    %v6054 = vextract.high.u32 %v6052
    %v6055 = vmul.u32.u64.compose %v6051, %v6046
    %v6056 = vextract.low.u32 %v6055
    %v6057 = vextract.high.u32 %v6055
    %v6058 = vmul.u32 %v6051, %v6042
    %v6059 = vadd.s32 %v6054, %v6056
    %vm6060 = vc.u32 %v6054, %v6056
    %v6061 = vadd.s32 %v6057, 1
    %v6062 = vsel %vm6060, %v6061, %v6057
    %v6063 = vadd.s32 %v6058, %v6062
    %v6064 = vadd.s32 %v6063, 536870912
    %v6065 = vshrl.u32 %v6064, 30
    %v6066 = vshll.u32 %v6065, 30
    %v6067 = vsub.s32 %v6063, %v6066
    %vm6068 = vcmp.lt.s32.totalorder %v6067, 0
    %v6069 = vsub.s32 0, %v6067
    %v6070 = vsel %vm6068, %v6069, %v6067
    %v6071 = vclz %v6070
    %v6072 = vsub.s32 %v6071, 2
    %vm6073 = vcmp.gt.s32.totalorder 0, %v6072
    %v6074 = vsel %vm6073, 0, %v6072
    %v6075 = vsub.s32 32, %v6074
    %v6076 = vshll.u32 %v6067, %v6074
    %v6077 = vshrl.u32 %v6059, %v6075
    %v6078 = vor.u32 %v6076, %v6077
    %v6079 = vsub.s32 4294967266, %v6074
    %v6080 = vadd.s32 %v6079, 127
    %v6081 = vshll.u32 %v6080, 23
    %v6082 = vor.u32 4788187, %v6081
    %v6083 = vand.u32 2147483647, %v6082
    %v6085 = vcvt.s32.f32 %v6078
    %v6086 = vmul.f32 %v6085, %v6083
    %v6087 = vxor.u32 %v6086, 2147483648
    %v6088 = vsel %vm6005, %v6087, %v6086
    %v6089 = vsub.s32 4, %v6065
    %v6090 = vsel %vm6005, %v6089, %v6065
    %v6091 = vsel %vm6004, %v3943, %v6088
    %v6092 = vsel %vm6004, 0, %v6090
    %v6093 = vcosq.f32.pop %v6091
    %v6094 = vsinq.f32.pop %v6091
    %vm6095 = vweird.f32 %v3943
    %v6096 = vadd.s32 %v6092, 3
    %v6097 = vand.u32 %v6096, 3
    %vm6098 = vcmp.lt.s32.totalorder %v6097, 2
    %vm6099 = vcmp.eq.s32.totalorder %v6097, 0
    %v6100 = vxor.u32 %v6094, 2147483648
    %v6101 = vsel %vm6099, %v6093, %v6100
    %vm6102 = vcmp.eq.s32.totalorder %v6097, 2
    %v6103 = vxor.u32 %v6093, 2147483648
    %v6104 = vsel %vm6102, %v6103, %v6094
    %v6105 = vsel %vm6098, %v6101, %v6104
    %v6106 = vsel %vm6095, nan, %v6105
    %v6107 = vand.u32 2147483647, %v3945
    %vm6108 = vcmp.le.f32.partialorder %v6107, 0.7853982
    %vm6109 = vcmp.lt.s32.totalorder %v3945, 0
    %v6110 = vand.u32 %v3945, 2139095040
    %v6111 = vshrl.u32 %v6110, 23
    %v6112 = vsub.s32 %v6111, 127
    %v6113 = vand.u32 2147483647, %v3945
    %v6114 = vand.u32 %v6113, 8388607
    %v6115 = vor.u32 %v6114, 8388608
    %v6116 = vsub.s32 0, %v6115
    %v6117 = vadd.s32 %v6112, 1
    %vm6118 = vcmp.gt.s32.totalorder %v6117, 0
    %v6119 = vsel %vm6118, %v6117, 0
    %v6120 = vshrl.u32 %v6119, 5
    %v6121 = vand.u32 %v6119, 31
    %v6122 = vsub.s32 32, %v6121
    %v6123 = vshrl.u32 683565275, %v6122
    %v6124 = vshll.u32 683565275, %v6121
    %v6125 = vshrl.u32 2475754826, %v6122
    %v6126 = vor.u32 %v6124, %v6125
    %v6127 = vshll.u32 2475754826, %v6121
    %v6128 = vshrl.u32 2131351028, %v6122
    %v6129 = vor.u32 %v6127, %v6128
    %v6130 = vshll.u32 2131351028, %v6121
    %v6131 = vshrl.u32 2102212464, %v6122
    %v6132 = vor.u32 %v6130, %v6131
    %v6133 = vshll.u32 2102212464, %v6121
    %v6134 = vshrl.u32 920167782, %v6122
    %v6135 = vor.u32 %v6133, %v6134
    %v6136 = vshll.u32 920167782, %v6121
    %v6137 = vshrl.u32 1326507024, %v6122
    %v6138 = vor.u32 %v6136, %v6137
    %vm6139 = vcmp.lt.s32.totalorder %v6120, 1
    %vm6140 = vcmp.lt.s32.totalorder %v6120, 2
    %vm6141 = vcmp.lt.s32.totalorder %v6120, 3
    %vm6142 = vcmp.lt.s32.totalorder %v6120, 4
    %v6143 = vsel %vm6139, %v6123, %v6126
    %v6144 = vsel %vm6142, %v6132, 2102212464
    %v6145 = vsel %vm6141, %v6129, %v6144
    %v6146 = vsel %vm6140, %v6143, %v6145
    %v6147 = vsel %vm6139, %v6126, %v6129
    %v6148 = vsel %vm6142, %v6135, 920167782
    %v6149 = vsel %vm6141, %v6132, %v6148
    %v6150 = vsel %vm6140, %v6147, %v6149
    %v6151 = vsel %vm6139, %v6129, %v6132
    %v6152 = vsel %vm6142, %v6138, 1326507024
    %v6153 = vsel %vm6141, %v6135, %v6152
    %v6154 = vsel %vm6140, %v6151, %v6153
    %v6155 = vshll.u32 %v6115, 8
    %v6156 = vmul.u32.u64.compose %v6155, %v6154
    %v6157 = vextract.low.u32 %v6156
    %v6158 = vextract.high.u32 %v6156
    %v6159 = vmul.u32.u64.compose %v6155, %v6150
    %v6160 = vextract.low.u32 %v6159
    %v6161 = vextract.high.u32 %v6159
    %v6162 = vmul.u32 %v6155, %v6146
    %v6163 = vadd.s32 %v6158, %v6160
    %vm6164 = vc.u32 %v6158, %v6160
    %v6165 = vadd.s32 %v6161, 1
    %v6166 = vsel %vm6164, %v6165, %v6161
    %v6167 = vadd.s32 %v6162, %v6166
    %v6168 = vadd.s32 %v6167, 536870912
    %v6169 = vshrl.u32 %v6168, 30
    %v6170 = vshll.u32 %v6169, 30
    %v6171 = vsub.s32 %v6167, %v6170
    %vm6172 = vcmp.lt.s32.totalorder %v6171, 0
    %v6173 = vsub.s32 0, %v6171
    %v6174 = vsel %vm6172, %v6173, %v6171
    %v6175 = vclz %v6174
    %v6176 = vsub.s32 %v6175, 2
    %vm6177 = vcmp.gt.s32.totalorder 0, %v6176
    %v6178 = vsel %vm6177, 0, %v6176
    %v6179 = vsub.s32 32, %v6178
    %v6180 = vshll.u32 %v6171, %v6178
    %v6181 = vshrl.u32 %v6163, %v6179
    %v6182 = vor.u32 %v6180, %v6181
    %v6183 = vsub.s32 4294967266, %v6178
    %v6184 = vadd.s32 %v6183, 127
    %v6185 = vshll.u32 %v6184, 23
    %v6186 = vor.u32 4788187, %v6185
    %v6187 = vand.u32 2147483647, %v6186
    %v6189 = vcvt.s32.f32 %v6182
    %v6190 = vmul.f32 %v6189, %v6187
    %v6191 = vxor.u32 %v6190, 2147483648
    %v6192 = vsel %vm6109, %v6191, %v6190
    %v6193 = vsub.s32 4, %v6169
    %v6194 = vsel %vm6109, %v6193, %v6169
    %v6195 = vsel %vm6108, %v3945, %v6192
    %v6196 = vsel %vm6108, 0, %v6194
    %v6197 = vcosq.f32.pop %v6195
    %v6198 = vsinq.f32.pop %v6195
    %vm6199 = vweird.f32 %v3945
    %v6200 = vadd.s32 %v6196, 3
    %v6201 = vand.u32 %v6200, 3
    %vm6202 = vcmp.lt.s32.totalorder %v6201, 2
    %vm6203 = vcmp.eq.s32.totalorder %v6201, 0
    %v6204 = vxor.u32 %v6198, 2147483648
    %v6205 = vsel %vm6203, %v6197, %v6204
    %vm6206 = vcmp.eq.s32.totalorder %v6201, 2
    %v6207 = vxor.u32 %v6197, 2147483648
    %v6208 = vsel %vm6206, %v6207, %v6198
    %v6209 = vsel %vm6202, %v6205, %v6208
    %v6210 = vsel %vm6199, nan, %v6209
    %v6211 = vand.u32 2147483647, %v4032
    %vm6212 = vcmp.le.f32.partialorder %v6211, 0.7853982
    %vm6213 = vcmp.lt.s32.totalorder %v4032, 0
    %v6214 = vand.u32 %v4032, 2139095040
    %v6215 = vshrl.u32 %v6214, 23
    %v6216 = vsub.s32 %v6215, 127
    %v6217 = vand.u32 2147483647, %v4032
    %v6218 = vand.u32 %v6217, 8388607
    %v6219 = vor.u32 %v6218, 8388608
    %v6220 = vsub.s32 0, %v6219
    %v6221 = vadd.s32 %v6216, 1
    %vm6222 = vcmp.gt.s32.totalorder %v6221, 0
    %v6223 = vsel %vm6222, %v6221, 0
    %v6224 = vshrl.u32 %v6223, 5
    %v6225 = vand.u32 %v6223, 31
    %v6226 = vsub.s32 32, %v6225
    %v6227 = vshrl.u32 683565275, %v6226
    %v6228 = vshll.u32 683565275, %v6225
    %v6229 = vshrl.u32 2475754826, %v6226
    %v6230 = vor.u32 %v6228, %v6229
    %v6231 = vshll.u32 2475754826, %v6225
    %v6232 = vshrl.u32 2131351028, %v6226
    %v6233 = vor.u32 %v6231, %v6232
    %v6234 = vshll.u32 2131351028, %v6225
    %v6235 = vshrl.u32 2102212464, %v6226
    %v6236 = vor.u32 %v6234, %v6235
    %v6237 = vshll.u32 2102212464, %v6225
    %v6238 = vshrl.u32 920167782, %v6226
    %v6239 = vor.u32 %v6237, %v6238
    %v6240 = vshll.u32 920167782, %v6225
    %v6241 = vshrl.u32 1326507024, %v6226
    %v6242 = vor.u32 %v6240, %v6241
    %vm6243 = vcmp.lt.s32.totalorder %v6224, 1
    %vm6244 = vcmp.lt.s32.totalorder %v6224, 2
    %vm6245 = vcmp.lt.s32.totalorder %v6224, 3
    %vm6246 = vcmp.lt.s32.totalorder %v6224, 4
    %v6247 = vsel %vm6243, %v6227, %v6230
    %v6248 = vsel %vm6246, %v6236, 2102212464
    %v6249 = vsel %vm6245, %v6233, %v6248
    %v6250 = vsel %vm6244, %v6247, %v6249
    %v6251 = vsel %vm6243, %v6230, %v6233
    %v6252 = vsel %vm6246, %v6239, 920167782
    %v6253 = vsel %vm6245, %v6236, %v6252
    %v6254 = vsel %vm6244, %v6251, %v6253
    %v6255 = vsel %vm6243, %v6233, %v6236
    %v6256 = vsel %vm6246, %v6242, 1326507024
    %v6257 = vsel %vm6245, %v6239, %v6256
    %v6258 = vsel %vm6244, %v6255, %v6257
    %v6259 = vshll.u32 %v6219, 8
    %v6260 = vmul.u32.u64.compose %v6259, %v6258
    %v6261 = vextract.low.u32 %v6260
    %v6262 = vextract.high.u32 %v6260
    %v6263 = vmul.u32.u64.compose %v6259, %v6254
    %v6264 = vextract.low.u32 %v6263
    %v6265 = vextract.high.u32 %v6263
    %v6266 = vmul.u32 %v6259, %v6250
    %v6267 = vadd.s32 %v6262, %v6264
    %vm6268 = vc.u32 %v6262, %v6264
    %v6269 = vadd.s32 %v6265, 1
    %v6270 = vsel %vm6268, %v6269, %v6265
    %v6271 = vadd.s32 %v6266, %v6270
    %v6272 = vadd.s32 %v6271, 536870912
    %v6273 = vshrl.u32 %v6272, 30
    %v6274 = vshll.u32 %v6273, 30
    %v6275 = vsub.s32 %v6271, %v6274
    %vm6276 = vcmp.lt.s32.totalorder %v6275, 0
    %v6277 = vsub.s32 0, %v6275
    %v6278 = vsel %vm6276, %v6277, %v6275
    %v6279 = vclz %v6278
    %v6280 = vsub.s32 %v6279, 2
    %vm6281 = vcmp.gt.s32.totalorder 0, %v6280
    %v6282 = vsel %vm6281, 0, %v6280
    %v6283 = vsub.s32 32, %v6282
    %v6284 = vshll.u32 %v6275, %v6282
    %v6285 = vshrl.u32 %v6267, %v6283
    %v6286 = vor.u32 %v6284, %v6285
    %v6287 = vsub.s32 4294967266, %v6282
    %v6288 = vadd.s32 %v6287, 127
    %v6289 = vshll.u32 %v6288, 23
    %v6290 = vor.u32 4788187, %v6289
    %v6291 = vand.u32 2147483647, %v6290
    %v6293 = vcvt.s32.f32 %v6286
    %v6294 = vmul.f32 %v6293, %v6291
    %v6295 = vxor.u32 %v6294, 2147483648
    %v6296 = vsel %vm6213, %v6295, %v6294
    %v6297 = vsub.s32 4, %v6273
    %v6298 = vsel %vm6213, %v6297, %v6273
    %v6299 = vsel %vm6212, %v4032, %v6296
    %v6300 = vsel %vm6212, 0, %v6298
    %v6301 = vcosq.f32.pop %v6299
    %v6302 = vsinq.f32.pop %v6299
    %vm6303 = vweird.f32 %v4032
    %v6304 = vadd.s32 %v6300, 3
    %v6305 = vand.u32 %v6304, 3
    %vm6306 = vcmp.lt.s32.totalorder %v6305, 2
    %vm6307 = vcmp.eq.s32.totalorder %v6305, 0
    %v6308 = vxor.u32 %v6302, 2147483648
    %v6309 = vsel %vm6307, %v6301, %v6308
    %vm6310 = vcmp.eq.s32.totalorder %v6305, 2
    %v6311 = vxor.u32 %v6301, 2147483648
    %v6312 = vsel %vm6310, %v6311, %v6302
    %v6313 = vsel %vm6306, %v6309, %v6312
    %v6314 = vsel %vm6303, nan, %v6313
    %v6315 = vand.u32 2147483647, %v4034
    %vm6316 = vcmp.le.f32.partialorder %v6315, 0.7853982
    %vm6317 = vcmp.lt.s32.totalorder %v4034, 0
    %v6318 = vand.u32 %v4034, 2139095040
    %v6319 = vshrl.u32 %v6318, 23
    %v6320 = vsub.s32 %v6319, 127
    %v6321 = vand.u32 2147483647, %v4034
    %v6322 = vand.u32 %v6321, 8388607
    %v6323 = vor.u32 %v6322, 8388608
    %v6324 = vsub.s32 0, %v6323
    %v6325 = vadd.s32 %v6320, 1
    %vm6326 = vcmp.gt.s32.totalorder %v6325, 0
    %v6327 = vsel %vm6326, %v6325, 0
    %v6328 = vshrl.u32 %v6327, 5
    %v6329 = vand.u32 %v6327, 31
    %v6330 = vsub.s32 32, %v6329
    %v6331 = vshrl.u32 683565275, %v6330
    %v6332 = vshll.u32 683565275, %v6329
    %v6333 = vshrl.u32 2475754826, %v6330
    %v6334 = vor.u32 %v6332, %v6333
    %v6335 = vshll.u32 2475754826, %v6329
    %v6336 = vshrl.u32 2131351028, %v6330
    %v6337 = vor.u32 %v6335, %v6336
    %v6338 = vshll.u32 2131351028, %v6329
    %v6339 = vshrl.u32 2102212464, %v6330
    %v6340 = vor.u32 %v6338, %v6339
    %v6341 = vshll.u32 2102212464, %v6329
    %v6342 = vshrl.u32 920167782, %v6330
    %v6343 = vor.u32 %v6341, %v6342
    %v6344 = vshll.u32 920167782, %v6329
    %v6345 = vshrl.u32 1326507024, %v6330
    %v6346 = vor.u32 %v6344, %v6345
    %vm6347 = vcmp.lt.s32.totalorder %v6328, 1
    %vm6348 = vcmp.lt.s32.totalorder %v6328, 2
    %vm6349 = vcmp.lt.s32.totalorder %v6328, 3
    %vm6350 = vcmp.lt.s32.totalorder %v6328, 4
    %v6351 = vsel %vm6347, %v6331, %v6334
    %v6352 = vsel %vm6350, %v6340, 2102212464
    %v6353 = vsel %vm6349, %v6337, %v6352
    %v6354 = vsel %vm6348, %v6351, %v6353
    %v6355 = vsel %vm6347, %v6334, %v6337
    %v6356 = vsel %vm6350, %v6343, 920167782
    %v6357 = vsel %vm6349, %v6340, %v6356
    %v6358 = vsel %vm6348, %v6355, %v6357
    %v6359 = vsel %vm6347, %v6337, %v6340
    %v6360 = vsel %vm6350, %v6346, 1326507024
    %v6361 = vsel %vm6349, %v6343, %v6360
    %v6362 = vsel %vm6348, %v6359, %v6361
    %v6363 = vshll.u32 %v6323, 8
    %v6364 = vmul.u32.u64.compose %v6363, %v6362
    %v6365 = vextract.low.u32 %v6364
    %v6366 = vextract.high.u32 %v6364
    %v6367 = vmul.u32.u64.compose %v6363, %v6358
    %v6368 = vextract.low.u32 %v6367
    %v6369 = vextract.high.u32 %v6367
    %v6370 = vmul.u32 %v6363, %v6354
    %v6371 = vadd.s32 %v6366, %v6368
    %vm6372 = vc.u32 %v6366, %v6368
    %v6373 = vadd.s32 %v6369, 1
    %v6374 = vsel %vm6372, %v6373, %v6369
    %v6375 = vadd.s32 %v6370, %v6374
    %v6376 = vadd.s32 %v6375, 536870912
    %v6377 = vshrl.u32 %v6376, 30
    %v6378 = vshll.u32 %v6377, 30
    %v6379 = vsub.s32 %v6375, %v6378
    %vm6380 = vcmp.lt.s32.totalorder %v6379, 0
    %v6381 = vsub.s32 0, %v6379
    %v6382 = vsel %vm6380, %v6381, %v6379
    %v6383 = vclz %v6382
    %v6384 = vsub.s32 %v6383, 2
    %vm6385 = vcmp.gt.s32.totalorder 0, %v6384
    %v6386 = vsel %vm6385, 0, %v6384
    %v6387 = vsub.s32 32, %v6386
    %v6388 = vshll.u32 %v6379, %v6386
    %v6389 = vshrl.u32 %v6371, %v6387
    %v6390 = vor.u32 %v6388, %v6389
    %v6391 = vsub.s32 4294967266, %v6386
    %v6392 = vadd.s32 %v6391, 127
    %v6393 = vshll.u32 %v6392, 23
    %v6394 = vor.u32 4788187, %v6393
    %v6395 = vand.u32 2147483647, %v6394
    %v6397 = vcvt.s32.f32 %v6390
    %v6398 = vmul.f32 %v6397, %v6395
    %v6399 = vxor.u32 %v6398, 2147483648
    %v6400 = vsel %vm6317, %v6399, %v6398
    %v6401 = vsub.s32 4, %v6377
    %v6402 = vsel %vm6317, %v6401, %v6377
    %v6403 = vsel %vm6316, %v4034, %v6400
    %v6404 = vsel %vm6316, 0, %v6402
    %v6405 = vcosq.f32.pop %v6403
    %v6406 = vsinq.f32.pop %v6403
    %vm6407 = vweird.f32 %v4034
    %v6408 = vadd.s32 %v6404, 3
    %v6409 = vand.u32 %v6408, 3
    %vm6410 = vcmp.lt.s32.totalorder %v6409, 2
    %vm6411 = vcmp.eq.s32.totalorder %v6409, 0
    %v6412 = vxor.u32 %v6406, 2147483648
    %v6413 = vsel %vm6411, %v6405, %v6412
    %vm6414 = vcmp.eq.s32.totalorder %v6409, 2
    %v6415 = vxor.u32 %v6405, 2147483648
    %v6416 = vsel %vm6414, %v6415, %v6406
    %v6417 = vsel %vm6410, %v6413, %v6416
    %v6418 = vsel %vm6407, nan, %v6417
    %v6419 = vand.u32 2147483647, %v4121
    %vm6420 = vcmp.le.f32.partialorder %v6419, 0.7853982
    %vm6421 = vcmp.lt.s32.totalorder %v4121, 0
    %v6422 = vand.u32 %v4121, 2139095040
    %v6423 = vshrl.u32 %v6422, 23
    %v6424 = vsub.s32 %v6423, 127
    %v6425 = vand.u32 2147483647, %v4121
    %v6426 = vand.u32 %v6425, 8388607
    %v6427 = vor.u32 %v6426, 8388608
    %v6428 = vsub.s32 0, %v6427
    %v6429 = vadd.s32 %v6424, 1
    %vm6430 = vcmp.gt.s32.totalorder %v6429, 0
    %v6431 = vsel %vm6430, %v6429, 0
    %v6432 = vshrl.u32 %v6431, 5
    %v6433 = vand.u32 %v6431, 31
    %v6434 = vsub.s32 32, %v6433
    %v6435 = vshrl.u32 683565275, %v6434
    %v6436 = vshll.u32 683565275, %v6433
    %v6437 = vshrl.u32 2475754826, %v6434
    %v6438 = vor.u32 %v6436, %v6437
    %v6439 = vshll.u32 2475754826, %v6433
    %v6440 = vshrl.u32 2131351028, %v6434
    %v6441 = vor.u32 %v6439, %v6440
    %v6442 = vshll.u32 2131351028, %v6433
    %v6443 = vshrl.u32 2102212464, %v6434
    %v6444 = vor.u32 %v6442, %v6443
    %v6445 = vshll.u32 2102212464, %v6433
    %v6446 = vshrl.u32 920167782, %v6434
    %v6447 = vor.u32 %v6445, %v6446
    %v6448 = vshll.u32 920167782, %v6433
    %v6449 = vshrl.u32 1326507024, %v6434
    %v6450 = vor.u32 %v6448, %v6449
    %vm6451 = vcmp.lt.s32.totalorder %v6432, 1
    %vm6452 = vcmp.lt.s32.totalorder %v6432, 2
    %vm6453 = vcmp.lt.s32.totalorder %v6432, 3
    %vm6454 = vcmp.lt.s32.totalorder %v6432, 4
    %v6455 = vsel %vm6451, %v6435, %v6438
    %v6456 = vsel %vm6454, %v6444, 2102212464
    %v6457 = vsel %vm6453, %v6441, %v6456
    %v6458 = vsel %vm6452, %v6455, %v6457
    %v6459 = vsel %vm6451, %v6438, %v6441
    %v6460 = vsel %vm6454, %v6447, 920167782
    %v6461 = vsel %vm6453, %v6444, %v6460
    %v6462 = vsel %vm6452, %v6459, %v6461
    %v6463 = vsel %vm6451, %v6441, %v6444
    %v6464 = vsel %vm6454, %v6450, 1326507024
    %v6465 = vsel %vm6453, %v6447, %v6464
    %v6466 = vsel %vm6452, %v6463, %v6465
    %v6467 = vshll.u32 %v6427, 8
    %v6468 = vmul.u32.u64.compose %v6467, %v6466
    %v6469 = vextract.low.u32 %v6468
    %v6470 = vextract.high.u32 %v6468
    %v6471 = vmul.u32.u64.compose %v6467, %v6462
    %v6472 = vextract.low.u32 %v6471
    %v6473 = vextract.high.u32 %v6471
    %v6474 = vmul.u32 %v6467, %v6458
    %v6475 = vadd.s32 %v6470, %v6472
    %vm6476 = vc.u32 %v6470, %v6472
    %v6477 = vadd.s32 %v6473, 1
    %v6478 = vsel %vm6476, %v6477, %v6473
    %v6479 = vadd.s32 %v6474, %v6478
    %v6480 = vadd.s32 %v6479, 536870912
    %v6481 = vshrl.u32 %v6480, 30
    %v6482 = vshll.u32 %v6481, 30
    %v6483 = vsub.s32 %v6479, %v6482
    %vm6484 = vcmp.lt.s32.totalorder %v6483, 0
    %v6485 = vsub.s32 0, %v6483
    %v6486 = vsel %vm6484, %v6485, %v6483
    %v6487 = vclz %v6486
    %v6488 = vsub.s32 %v6487, 2
    %vm6489 = vcmp.gt.s32.totalorder 0, %v6488
    %v6490 = vsel %vm6489, 0, %v6488
    %v6491 = vsub.s32 32, %v6490
    %v6492 = vshll.u32 %v6483, %v6490
    %v6493 = vshrl.u32 %v6475, %v6491
    %v6494 = vor.u32 %v6492, %v6493
    %v6495 = vsub.s32 4294967266, %v6490
    %v6496 = vadd.s32 %v6495, 127
    %v6497 = vshll.u32 %v6496, 23
    %v6498 = vor.u32 4788187, %v6497
    %v6499 = vand.u32 2147483647, %v6498
    %v6501 = vcvt.s32.f32 %v6494
    %v6502 = vmul.f32 %v6501, %v6499
    %v6503 = vxor.u32 %v6502, 2147483648
    %v6504 = vsel %vm6421, %v6503, %v6502
    %v6505 = vsub.s32 4, %v6481
    %v6506 = vsel %vm6421, %v6505, %v6481
    %v6507 = vsel %vm6420, %v4121, %v6504
    %v6508 = vsel %vm6420, 0, %v6506
    %v6509 = vcosq.f32.pop %v6507
    %v6510 = vsinq.f32.pop %v6507
    %vm6511 = vweird.f32 %v4121
    %v6512 = vadd.s32 %v6508, 3
    %v6513 = vand.u32 %v6512, 3
    %vm6514 = vcmp.lt.s32.totalorder %v6513, 2
    %vm6515 = vcmp.eq.s32.totalorder %v6513, 0
    %v6516 = vxor.u32 %v6510, 2147483648
    %v6517 = vsel %vm6515, %v6509, %v6516
    %vm6518 = vcmp.eq.s32.totalorder %v6513, 2
    %v6519 = vxor.u32 %v6509, 2147483648
    %v6520 = vsel %vm6518, %v6519, %v6510
    %v6521 = vsel %vm6514, %v6517, %v6520
    %v6522 = vsel %vm6511, nan, %v6521
    %v6523 = vand.u32 2147483647, %v4123
    %vm6524 = vcmp.le.f32.partialorder %v6523, 0.7853982
    %vm6525 = vcmp.lt.s32.totalorder %v4123, 0
    %v6526 = vand.u32 %v4123, 2139095040
    %v6527 = vshrl.u32 %v6526, 23
    %v6528 = vsub.s32 %v6527, 127
    %v6529 = vand.u32 2147483647, %v4123
    %v6530 = vand.u32 %v6529, 8388607
    %v6531 = vor.u32 %v6530, 8388608
    %v6532 = vsub.s32 0, %v6531
    %v6533 = vadd.s32 %v6528, 1
    %vm6534 = vcmp.gt.s32.totalorder %v6533, 0
    %v6535 = vsel %vm6534, %v6533, 0
    %v6536 = vshrl.u32 %v6535, 5
    %v6537 = vand.u32 %v6535, 31
    %v6538 = vsub.s32 32, %v6537
    %v6539 = vshrl.u32 683565275, %v6538
    %v6540 = vshll.u32 683565275, %v6537
    %v6541 = vshrl.u32 2475754826, %v6538
    %v6542 = vor.u32 %v6540, %v6541
    %v6543 = vshll.u32 2475754826, %v6537
    %v6544 = vshrl.u32 2131351028, %v6538
    %v6545 = vor.u32 %v6543, %v6544
    %v6546 = vshll.u32 2131351028, %v6537
    %v6547 = vshrl.u32 2102212464, %v6538
    %v6548 = vor.u32 %v6546, %v6547
    %v6549 = vshll.u32 2102212464, %v6537
    %v6550 = vshrl.u32 920167782, %v6538
    %v6551 = vor.u32 %v6549, %v6550
    %v6552 = vshll.u32 920167782, %v6537
    %v6553 = vshrl.u32 1326507024, %v6538
    %v6554 = vor.u32 %v6552, %v6553
    %vm6555 = vcmp.lt.s32.totalorder %v6536, 1
    %vm6556 = vcmp.lt.s32.totalorder %v6536, 2
    %vm6557 = vcmp.lt.s32.totalorder %v6536, 3
    %vm6558 = vcmp.lt.s32.totalorder %v6536, 4
    %v6559 = vsel %vm6555, %v6539, %v6542
    %v6560 = vsel %vm6558, %v6548, 2102212464
    %v6561 = vsel %vm6557, %v6545, %v6560
    %v6562 = vsel %vm6556, %v6559, %v6561
    %v6563 = vsel %vm6555, %v6542, %v6545
    %v6564 = vsel %vm6558, %v6551, 920167782
    %v6565 = vsel %vm6557, %v6548, %v6564
    %v6566 = vsel %vm6556, %v6563, %v6565
    %v6567 = vsel %vm6555, %v6545, %v6548
    %v6568 = vsel %vm6558, %v6554, 1326507024
    %v6569 = vsel %vm6557, %v6551, %v6568
    %v6570 = vsel %vm6556, %v6567, %v6569
    %v6571 = vshll.u32 %v6531, 8
    %v6572 = vmul.u32.u64.compose %v6571, %v6570
    %v6573 = vextract.low.u32 %v6572
    %v6574 = vextract.high.u32 %v6572
    %v6575 = vmul.u32.u64.compose %v6571, %v6566
    %v6576 = vextract.low.u32 %v6575
    %v6577 = vextract.high.u32 %v6575
    %v6578 = vmul.u32 %v6571, %v6562
    %v6579 = vadd.s32 %v6574, %v6576
    %vm6580 = vc.u32 %v6574, %v6576
    %v6581 = vadd.s32 %v6577, 1
    %v6582 = vsel %vm6580, %v6581, %v6577
    %v6583 = vadd.s32 %v6578, %v6582
    %v6584 = vadd.s32 %v6583, 536870912
    %v6585 = vshrl.u32 %v6584, 30
    %v6586 = vshll.u32 %v6585, 30
    %v6587 = vsub.s32 %v6583, %v6586
    %vm6588 = vcmp.lt.s32.totalorder %v6587, 0
    %v6589 = vsub.s32 0, %v6587
    %v6590 = vsel %vm6588, %v6589, %v6587
    %v6591 = vclz %v6590
    %v6592 = vsub.s32 %v6591, 2
    %vm6593 = vcmp.gt.s32.totalorder 0, %v6592
    %v6594 = vsel %vm6593, 0, %v6592
    %v6595 = vsub.s32 32, %v6594
    %v6596 = vshll.u32 %v6587, %v6594
    %v6597 = vshrl.u32 %v6579, %v6595
    %v6598 = vor.u32 %v6596, %v6597
    %v6599 = vsub.s32 4294967266, %v6594
    %v6600 = vadd.s32 %v6599, 127
    %v6601 = vshll.u32 %v6600, 23
    %v6602 = vor.u32 4788187, %v6601
    %v6603 = vand.u32 2147483647, %v6602
    %v6605 = vcvt.s32.f32 %v6598
    %v6606 = vmul.f32 %v6605, %v6603
    %v6607 = vxor.u32 %v6606, 2147483648
    %v6608 = vsel %vm6525, %v6607, %v6606
    %v6609 = vsub.s32 4, %v6585
    %v6610 = vsel %vm6525, %v6609, %v6585
    %v6611 = vsel %vm6524, %v4123, %v6608
    %v6612 = vsel %vm6524, 0, %v6610
    %v6613 = vcosq.f32.pop %v6611
    %v6614 = vsinq.f32.pop %v6611
    %vm6615 = vweird.f32 %v4123
    %v6616 = vadd.s32 %v6612, 3
    %v6617 = vand.u32 %v6616, 3
    %vm6618 = vcmp.lt.s32.totalorder %v6617, 2
    %vm6619 = vcmp.eq.s32.totalorder %v6617, 0
    %v6620 = vxor.u32 %v6614, 2147483648
    %v6621 = vsel %vm6619, %v6613, %v6620
    %vm6622 = vcmp.eq.s32.totalorder %v6617, 2
    %v6623 = vxor.u32 %v6613, 2147483648
    %v6624 = vsel %vm6622, %v6623, %v6614
    %v6625 = vsel %vm6618, %v6621, %v6624
    %v6626 = vsel %vm6615, nan, %v6625
    %v6627 = vand.u32 2147483647, %v3860
    %vm6628 = vcmp.le.f32.partialorder %v6627, 0.7853982
    %vm6629 = vcmp.lt.s32.totalorder %v3860, 0
    %v6630 = vand.u32 %v3860, 2139095040
    %v6631 = vshrl.u32 %v6630, 23
    %v6632 = vsub.s32 %v6631, 127
    %v6633 = vand.u32 2147483647, %v3860
    %v6634 = vand.u32 %v6633, 8388607
    %v6635 = vor.u32 %v6634, 8388608
    %v6636 = vsub.s32 0, %v6635
    %v6637 = vadd.s32 %v6632, 1
    %vm6638 = vcmp.gt.s32.totalorder %v6637, 0
    %v6639 = vsel %vm6638, %v6637, 0
    %v6640 = vshrl.u32 %v6639, 5
    %v6641 = vand.u32 %v6639, 31
    %v6642 = vsub.s32 32, %v6641
    %v6643 = vshrl.u32 683565275, %v6642
    %v6644 = vshll.u32 683565275, %v6641
    %v6645 = vshrl.u32 2475754826, %v6642
    %v6646 = vor.u32 %v6644, %v6645
    %v6647 = vshll.u32 2475754826, %v6641
    %v6648 = vshrl.u32 2131351028, %v6642
    %v6649 = vor.u32 %v6647, %v6648
    %v6650 = vshll.u32 2131351028, %v6641
    %v6651 = vshrl.u32 2102212464, %v6642
    %v6652 = vor.u32 %v6650, %v6651
    %v6653 = vshll.u32 2102212464, %v6641
    %v6654 = vshrl.u32 920167782, %v6642
    %v6655 = vor.u32 %v6653, %v6654
    %v6656 = vshll.u32 920167782, %v6641
    %v6657 = vshrl.u32 1326507024, %v6642
    %v6658 = vor.u32 %v6656, %v6657
    %vm6659 = vcmp.lt.s32.totalorder %v6640, 1
    %vm6660 = vcmp.lt.s32.totalorder %v6640, 2
    %vm6661 = vcmp.lt.s32.totalorder %v6640, 3
    %vm6662 = vcmp.lt.s32.totalorder %v6640, 4
    %v6663 = vsel %vm6659, %v6643, %v6646
    %v6664 = vsel %vm6662, %v6652, 2102212464
    %v6665 = vsel %vm6661, %v6649, %v6664
    %v6666 = vsel %vm6660, %v6663, %v6665
    %v6667 = vsel %vm6659, %v6646, %v6649
    %v6668 = vsel %vm6662, %v6655, 920167782
    %v6669 = vsel %vm6661, %v6652, %v6668
    %v6670 = vsel %vm6660, %v6667, %v6669
    %v6671 = vsel %vm6659, %v6649, %v6652
    %v6672 = vsel %vm6662, %v6658, 1326507024
    %v6673 = vsel %vm6661, %v6655, %v6672
    %v6674 = vsel %vm6660, %v6671, %v6673
    %v6675 = vshll.u32 %v6635, 8
    %v6676 = vmul.u32.u64.compose %v6675, %v6674
    %v6677 = vextract.low.u32 %v6676
    %v6678 = vextract.high.u32 %v6676
    %v6679 = vmul.u32.u64.compose %v6675, %v6670
    %v6680 = vextract.low.u32 %v6679
    %v6681 = vextract.high.u32 %v6679
    %v6682 = vmul.u32 %v6675, %v6666
    %v6683 = vadd.s32 %v6678, %v6680
    %vm6684 = vc.u32 %v6678, %v6680
    %v6685 = vadd.s32 %v6681, 1
    %v6686 = vsel %vm6684, %v6685, %v6681
    %v6687 = vadd.s32 %v6682, %v6686
    %v6688 = vadd.s32 %v6687, 536870912
    %v6689 = vshrl.u32 %v6688, 30
    %v6690 = vshll.u32 %v6689, 30
    %v6691 = vsub.s32 %v6687, %v6690
    %vm6692 = vcmp.lt.s32.totalorder %v6691, 0
    %v6693 = vsub.s32 0, %v6691
    %v6694 = vsel %vm6692, %v6693, %v6691
    %v6695 = vclz %v6694
    %v6696 = vsub.s32 %v6695, 2
    %vm6697 = vcmp.gt.s32.totalorder 0, %v6696
    %v6698 = vsel %vm6697, 0, %v6696
    %v6699 = vsub.s32 32, %v6698
    %v6700 = vshll.u32 %v6691, %v6698
    %v6701 = vshrl.u32 %v6683, %v6699
    %v6702 = vor.u32 %v6700, %v6701
    %v6703 = vsub.s32 4294967266, %v6698
    %v6704 = vadd.s32 %v6703, 127
    %v6705 = vshll.u32 %v6704, 23
    %v6706 = vor.u32 4788187, %v6705
    %v6707 = vand.u32 2147483647, %v6706
    %v6709 = vcvt.s32.f32 %v6702
    %v6710 = vmul.f32 %v6709, %v6707
    %v6711 = vxor.u32 %v6710, 2147483648
    %v6712 = vsel %vm6629, %v6711, %v6710
    %v6713 = vsub.s32 4, %v6689
    %v6714 = vsel %vm6629, %v6713, %v6689
    %v6715 = vsel %vm6628, %v3860, %v6712
    %v6716 = vsel %vm6628, 0, %v6714
    %v6717 = vcosq.f32.pop %v6715
    %v6718 = vsinq.f32.pop %v6715
    %vm6719 = vweird.f32 %v3860
    %v6720 = vadd.s32 %v6716, 3
    %v6721 = vand.u32 %v6720, 3
    %vm6722 = vcmp.lt.s32.totalorder %v6721, 2
    %vm6723 = vcmp.eq.s32.totalorder %v6721, 0
    %v6724 = vxor.u32 %v6718, 2147483648
    %v6725 = vsel %vm6723, %v6717, %v6724
    %vm6726 = vcmp.eq.s32.totalorder %v6721, 2
    %v6727 = vxor.u32 %v6717, 2147483648
    %v6728 = vsel %vm6726, %v6727, %v6718
    %v6729 = vsel %vm6722, %v6725, %v6728
    %v6730 = vsel %vm6719, nan, %v6729
    %v6731 = vand.u32 2147483647, %v3862
    %vm6732 = vcmp.le.f32.partialorder %v6731, 0.7853982
    %vm6733 = vcmp.lt.s32.totalorder %v3862, 0
    %v6734 = vand.u32 %v3862, 2139095040
    %v6735 = vshrl.u32 %v6734, 23
    %v6736 = vsub.s32 %v6735, 127
    %v6737 = vand.u32 2147483647, %v3862
    %v6738 = vand.u32 %v6737, 8388607
    %v6739 = vor.u32 %v6738, 8388608
    %v6740 = vsub.s32 0, %v6739
    %v6741 = vadd.s32 %v6736, 1
    %vm6742 = vcmp.gt.s32.totalorder %v6741, 0
    %v6743 = vsel %vm6742, %v6741, 0
    %v6744 = vshrl.u32 %v6743, 5
    %v6745 = vand.u32 %v6743, 31
    %v6746 = vsub.s32 32, %v6745
    %v6747 = vshrl.u32 683565275, %v6746
    %v6748 = vshll.u32 683565275, %v6745
    %v6749 = vshrl.u32 2475754826, %v6746
    %v6750 = vor.u32 %v6748, %v6749
    %v6751 = vshll.u32 2475754826, %v6745
    %v6752 = vshrl.u32 2131351028, %v6746
    %v6753 = vor.u32 %v6751, %v6752
    %v6754 = vshll.u32 2131351028, %v6745
    %v6755 = vshrl.u32 2102212464, %v6746
    %v6756 = vor.u32 %v6754, %v6755
    %v6757 = vshll.u32 2102212464, %v6745
    %v6758 = vshrl.u32 920167782, %v6746
    %v6759 = vor.u32 %v6757, %v6758
    %v6760 = vshll.u32 920167782, %v6745
    %v6761 = vshrl.u32 1326507024, %v6746
    %v6762 = vor.u32 %v6760, %v6761
    %vm6763 = vcmp.lt.s32.totalorder %v6744, 1
    %vm6764 = vcmp.lt.s32.totalorder %v6744, 2
    %vm6765 = vcmp.lt.s32.totalorder %v6744, 3
    %vm6766 = vcmp.lt.s32.totalorder %v6744, 4
    %v6767 = vsel %vm6763, %v6747, %v6750
    %v6768 = vsel %vm6766, %v6756, 2102212464
    %v6769 = vsel %vm6765, %v6753, %v6768
    %v6770 = vsel %vm6764, %v6767, %v6769
    %v6771 = vsel %vm6763, %v6750, %v6753
    %v6772 = vsel %vm6766, %v6759, 920167782
    %v6773 = vsel %vm6765, %v6756, %v6772
    %v6774 = vsel %vm6764, %v6771, %v6773
    %v6775 = vsel %vm6763, %v6753, %v6756
    %v6776 = vsel %vm6766, %v6762, 1326507024
    %v6777 = vsel %vm6765, %v6759, %v6776
    %v6778 = vsel %vm6764, %v6775, %v6777
    %v6779 = vshll.u32 %v6739, 8
    %v6780 = vmul.u32.u64.compose %v6779, %v6778
    %v6781 = vextract.low.u32 %v6780
    %v6782 = vextract.high.u32 %v6780
    %v6783 = vmul.u32.u64.compose %v6779, %v6774
    %v6784 = vextract.low.u32 %v6783
    %v6785 = vextract.high.u32 %v6783
    %v6786 = vmul.u32 %v6779, %v6770
    %v6787 = vadd.s32 %v6782, %v6784
    %vm6788 = vc.u32 %v6782, %v6784
    %v6789 = vadd.s32 %v6785, 1
    %v6790 = vsel %vm6788, %v6789, %v6785
    %v6791 = vadd.s32 %v6786, %v6790
    %v6792 = vadd.s32 %v6791, 536870912
    %v6793 = vshrl.u32 %v6792, 30
    %v6794 = vshll.u32 %v6793, 30
    %v6795 = vsub.s32 %v6791, %v6794
    %vm6796 = vcmp.lt.s32.totalorder %v6795, 0
    %v6797 = vsub.s32 0, %v6795
    %v6798 = vsel %vm6796, %v6797, %v6795
    %v6799 = vclz %v6798
    %v6800 = vsub.s32 %v6799, 2
    %vm6801 = vcmp.gt.s32.totalorder 0, %v6800
    %v6802 = vsel %vm6801, 0, %v6800
    %v6803 = vsub.s32 32, %v6802
    %v6804 = vshll.u32 %v6795, %v6802
    %v6805 = vshrl.u32 %v6787, %v6803
    %v6806 = vor.u32 %v6804, %v6805
    %v6807 = vsub.s32 4294967266, %v6802
    %v6808 = vadd.s32 %v6807, 127
    %v6809 = vshll.u32 %v6808, 23
    %v6810 = vor.u32 4788187, %v6809
    %v6811 = vand.u32 2147483647, %v6810
    %v6813 = vcvt.s32.f32 %v6806
    %v6814 = vmul.f32 %v6813, %v6811
    %v6815 = vxor.u32 %v6814, 2147483648
    %v6816 = vsel %vm6733, %v6815, %v6814
    %v6817 = vsub.s32 4, %v6793
    %v6818 = vsel %vm6733, %v6817, %v6793
    %v6819 = vsel %vm6732, %v3862, %v6816
    %v6820 = vsel %vm6732, 0, %v6818
    %v6821 = vcosq.f32.pop %v6819
    %v6822 = vsinq.f32.pop %v6819
    %vm6823 = vweird.f32 %v3862
    %v6824 = vadd.s32 %v6820, 3
    %v6825 = vand.u32 %v6824, 3
    %vm6826 = vcmp.lt.s32.totalorder %v6825, 2
    %vm6827 = vcmp.eq.s32.totalorder %v6825, 0
    %v6828 = vxor.u32 %v6822, 2147483648
    %v6829 = vsel %vm6827, %v6821, %v6828
    %vm6830 = vcmp.eq.s32.totalorder %v6825, 2
    %v6831 = vxor.u32 %v6821, 2147483648
    %v6832 = vsel %vm6830, %v6831, %v6822
    %v6833 = vsel %vm6826, %v6829, %v6832
    %v6834 = vsel %vm6823, nan, %v6833
    %v6835 = vand.u32 2147483647, %v3949
    %vm6836 = vcmp.le.f32.partialorder %v6835, 0.7853982
    %vm6837 = vcmp.lt.s32.totalorder %v3949, 0
    %v6838 = vand.u32 %v3949, 2139095040
    %v6839 = vshrl.u32 %v6838, 23
    %v6840 = vsub.s32 %v6839, 127
    %v6841 = vand.u32 2147483647, %v3949
    %v6842 = vand.u32 %v6841, 8388607
    %v6843 = vor.u32 %v6842, 8388608
    %v6844 = vsub.s32 0, %v6843
    %v6845 = vadd.s32 %v6840, 1
    %vm6846 = vcmp.gt.s32.totalorder %v6845, 0
    %v6847 = vsel %vm6846, %v6845, 0
    %v6848 = vshrl.u32 %v6847, 5
    %v6849 = vand.u32 %v6847, 31
    %v6850 = vsub.s32 32, %v6849
    %v6851 = vshrl.u32 683565275, %v6850
    %v6852 = vshll.u32 683565275, %v6849
    %v6853 = vshrl.u32 2475754826, %v6850
    %v6854 = vor.u32 %v6852, %v6853
    %v6855 = vshll.u32 2475754826, %v6849
    %v6856 = vshrl.u32 2131351028, %v6850
    %v6857 = vor.u32 %v6855, %v6856
    %v6858 = vshll.u32 2131351028, %v6849
    %v6859 = vshrl.u32 2102212464, %v6850
    %v6860 = vor.u32 %v6858, %v6859
    %v6861 = vshll.u32 2102212464, %v6849
    %v6862 = vshrl.u32 920167782, %v6850
    %v6863 = vor.u32 %v6861, %v6862
    %v6864 = vshll.u32 920167782, %v6849
    %v6865 = vshrl.u32 1326507024, %v6850
    %v6866 = vor.u32 %v6864, %v6865
    %vm6867 = vcmp.lt.s32.totalorder %v6848, 1
    %vm6868 = vcmp.lt.s32.totalorder %v6848, 2
    %vm6869 = vcmp.lt.s32.totalorder %v6848, 3
    %vm6870 = vcmp.lt.s32.totalorder %v6848, 4
    %v6871 = vsel %vm6867, %v6851, %v6854
    %v6872 = vsel %vm6870, %v6860, 2102212464
    %v6873 = vsel %vm6869, %v6857, %v6872
    %v6874 = vsel %vm6868, %v6871, %v6873
    %v6875 = vsel %vm6867, %v6854, %v6857
    %v6876 = vsel %vm6870, %v6863, 920167782
    %v6877 = vsel %vm6869, %v6860, %v6876
    %v6878 = vsel %vm6868, %v6875, %v6877
    %v6879 = vsel %vm6867, %v6857, %v6860
    %v6880 = vsel %vm6870, %v6866, 1326507024
    %v6881 = vsel %vm6869, %v6863, %v6880
    %v6882 = vsel %vm6868, %v6879, %v6881
    %v6883 = vshll.u32 %v6843, 8
    %v6884 = vmul.u32.u64.compose %v6883, %v6882
    %v6885 = vextract.low.u32 %v6884
    %v6886 = vextract.high.u32 %v6884
    %v6887 = vmul.u32.u64.compose %v6883, %v6878
    %v6888 = vextract.low.u32 %v6887
    %v6889 = vextract.high.u32 %v6887
    %v6890 = vmul.u32 %v6883, %v6874
    %v6891 = vadd.s32 %v6886, %v6888
    %vm6892 = vc.u32 %v6886, %v6888
    %v6893 = vadd.s32 %v6889, 1
    %v6894 = vsel %vm6892, %v6893, %v6889
    %v6895 = vadd.s32 %v6890, %v6894
    %v6896 = vadd.s32 %v6895, 536870912
    %v6897 = vshrl.u32 %v6896, 30
    %v6898 = vshll.u32 %v6897, 30
    %v6899 = vsub.s32 %v6895, %v6898
    %vm6900 = vcmp.lt.s32.totalorder %v6899, 0
    %v6901 = vsub.s32 0, %v6899
    %v6902 = vsel %vm6900, %v6901, %v6899
    %v6903 = vclz %v6902
    %v6904 = vsub.s32 %v6903, 2
    %vm6905 = vcmp.gt.s32.totalorder 0, %v6904
    %v6906 = vsel %vm6905, 0, %v6904
    %v6907 = vsub.s32 32, %v6906
    %v6908 = vshll.u32 %v6899, %v6906
    %v6909 = vshrl.u32 %v6891, %v6907
    %v6910 = vor.u32 %v6908, %v6909
    %v6911 = vsub.s32 4294967266, %v6906
    %v6912 = vadd.s32 %v6911, 127
    %v6913 = vshll.u32 %v6912, 23
    %v6914 = vor.u32 4788187, %v6913
    %v6915 = vand.u32 2147483647, %v6914
    %v6917 = vcvt.s32.f32 %v6910
    %v6918 = vmul.f32 %v6917, %v6915
    %v6919 = vxor.u32 %v6918, 2147483648
    %v6920 = vsel %vm6837, %v6919, %v6918
    %v6921 = vsub.s32 4, %v6897
    %v6922 = vsel %vm6837, %v6921, %v6897
    %v6923 = vsel %vm6836, %v3949, %v6920
    %v6924 = vsel %vm6836, 0, %v6922
    %v6925 = vcosq.f32.pop %v6923
    %v6926 = vsinq.f32.pop %v6923
    %vm6927 = vweird.f32 %v3949
    %v6928 = vadd.s32 %v6924, 3
    %v6929 = vand.u32 %v6928, 3
    %vm6930 = vcmp.lt.s32.totalorder %v6929, 2
    %vm6931 = vcmp.eq.s32.totalorder %v6929, 0
    %v6932 = vxor.u32 %v6926, 2147483648
    %v6933 = vsel %vm6931, %v6925, %v6932
    %vm6934 = vcmp.eq.s32.totalorder %v6929, 2
    %v6935 = vxor.u32 %v6925, 2147483648
    %v6936 = vsel %vm6934, %v6935, %v6926
    %v6937 = vsel %vm6930, %v6933, %v6936
    %v6938 = vsel %vm6927, nan, %v6937
    %v6939 = vand.u32 2147483647, %v3951
    %vm6940 = vcmp.le.f32.partialorder %v6939, 0.7853982
    %vm6941 = vcmp.lt.s32.totalorder %v3951, 0
    %v6942 = vand.u32 %v3951, 2139095040
    %v6943 = vshrl.u32 %v6942, 23
    %v6944 = vsub.s32 %v6943, 127
    %v6945 = vand.u32 2147483647, %v3951
    %v6946 = vand.u32 %v6945, 8388607
    %v6947 = vor.u32 %v6946, 8388608
    %v6948 = vsub.s32 0, %v6947
    %v6949 = vadd.s32 %v6944, 1
    %vm6950 = vcmp.gt.s32.totalorder %v6949, 0
    %v6951 = vsel %vm6950, %v6949, 0
    %v6952 = vshrl.u32 %v6951, 5
    %v6953 = vand.u32 %v6951, 31
    %v6954 = vsub.s32 32, %v6953
    %v6955 = vshrl.u32 683565275, %v6954
    %v6956 = vshll.u32 683565275, %v6953
    %v6957 = vshrl.u32 2475754826, %v6954
    %v6958 = vor.u32 %v6956, %v6957
    %v6959 = vshll.u32 2475754826, %v6953
    %v6960 = vshrl.u32 2131351028, %v6954
    %v6961 = vor.u32 %v6959, %v6960
    %v6962 = vshll.u32 2131351028, %v6953
    %v6963 = vshrl.u32 2102212464, %v6954
    %v6964 = vor.u32 %v6962, %v6963
    %v6965 = vshll.u32 2102212464, %v6953
    %v6966 = vshrl.u32 920167782, %v6954
    %v6967 = vor.u32 %v6965, %v6966
    %v6968 = vshll.u32 920167782, %v6953
    %v6969 = vshrl.u32 1326507024, %v6954
    %v6970 = vor.u32 %v6968, %v6969
    %vm6971 = vcmp.lt.s32.totalorder %v6952, 1
    %vm6972 = vcmp.lt.s32.totalorder %v6952, 2
    %vm6973 = vcmp.lt.s32.totalorder %v6952, 3
    %vm6974 = vcmp.lt.s32.totalorder %v6952, 4
    %v6975 = vsel %vm6971, %v6955, %v6958
    %v6976 = vsel %vm6974, %v6964, 2102212464
    %v6977 = vsel %vm6973, %v6961, %v6976
    %v6978 = vsel %vm6972, %v6975, %v6977
    %v6979 = vsel %vm6971, %v6958, %v6961
    %v6980 = vsel %vm6974, %v6967, 920167782
    %v6981 = vsel %vm6973, %v6964, %v6980
    %v6982 = vsel %vm6972, %v6979, %v6981
    %v6983 = vsel %vm6971, %v6961, %v6964
    %v6984 = vsel %vm6974, %v6970, 1326507024
    %v6985 = vsel %vm6973, %v6967, %v6984
    %v6986 = vsel %vm6972, %v6983, %v6985
    %v6987 = vshll.u32 %v6947, 8
    %v6988 = vmul.u32.u64.compose %v6987, %v6986
    %v6989 = vextract.low.u32 %v6988
    %v6990 = vextract.high.u32 %v6988
    %v6991 = vmul.u32.u64.compose %v6987, %v6982
    %v6992 = vextract.low.u32 %v6991
    %v6993 = vextract.high.u32 %v6991
    %v6994 = vmul.u32 %v6987, %v6978
    %v6995 = vadd.s32 %v6990, %v6992
    %vm6996 = vc.u32 %v6990, %v6992
    %v6997 = vadd.s32 %v6993, 1
    %v6998 = vsel %vm6996, %v6997, %v6993
    %v6999 = vadd.s32 %v6994, %v6998
    %v7000 = vadd.s32 %v6999, 536870912
    %v7001 = vshrl.u32 %v7000, 30
    %v7002 = vshll.u32 %v7001, 30
    %v7003 = vsub.s32 %v6999, %v7002
    %vm7004 = vcmp.lt.s32.totalorder %v7003, 0
    %v7005 = vsub.s32 0, %v7003
    %v7006 = vsel %vm7004, %v7005, %v7003
    %v7007 = vclz %v7006
    %v7008 = vsub.s32 %v7007, 2
    %vm7009 = vcmp.gt.s32.totalorder 0, %v7008
    %v7010 = vsel %vm7009, 0, %v7008
    %v7011 = vsub.s32 32, %v7010
    %v7012 = vshll.u32 %v7003, %v7010
    %v7013 = vshrl.u32 %v6995, %v7011
    %v7014 = vor.u32 %v7012, %v7013
    %v7015 = vsub.s32 4294967266, %v7010
    %v7016 = vadd.s32 %v7015, 127
    %v7017 = vshll.u32 %v7016, 23
    %v7018 = vor.u32 4788187, %v7017
    %v7019 = vand.u32 2147483647, %v7018
    %v7021 = vcvt.s32.f32 %v7014
    %v7022 = vmul.f32 %v7021, %v7019
    %v7023 = vxor.u32 %v7022, 2147483648
    %v7024 = vsel %vm6941, %v7023, %v7022
    %v7025 = vsub.s32 4, %v7001
    %v7026 = vsel %vm6941, %v7025, %v7001
    %v7027 = vsel %vm6940, %v3951, %v7024
    %v7028 = vsel %vm6940, 0, %v7026
    %v7029 = vcosq.f32.pop %v7027
    %v7030 = vsinq.f32.pop %v7027
    %vm7031 = vweird.f32 %v3951
    %v7032 = vadd.s32 %v7028, 3
    %v7033 = vand.u32 %v7032, 3
    %vm7034 = vcmp.lt.s32.totalorder %v7033, 2
    %vm7035 = vcmp.eq.s32.totalorder %v7033, 0
    %v7036 = vxor.u32 %v7030, 2147483648
    %v7037 = vsel %vm7035, %v7029, %v7036
    %vm7038 = vcmp.eq.s32.totalorder %v7033, 2
    %v7039 = vxor.u32 %v7029, 2147483648
    %v7040 = vsel %vm7038, %v7039, %v7030
    %v7041 = vsel %vm7034, %v7037, %v7040
    %v7042 = vsel %vm7031, nan, %v7041
    %v7043 = vand.u32 2147483647, %v4038
    %vm7044 = vcmp.le.f32.partialorder %v7043, 0.7853982
    %vm7045 = vcmp.lt.s32.totalorder %v4038, 0
    %v7046 = vand.u32 %v4038, 2139095040
    %v7047 = vshrl.u32 %v7046, 23
    %v7048 = vsub.s32 %v7047, 127
    %v7049 = vand.u32 2147483647, %v4038
    %v7050 = vand.u32 %v7049, 8388607
    %v7051 = vor.u32 %v7050, 8388608
    %v7052 = vsub.s32 0, %v7051
    %v7053 = vadd.s32 %v7048, 1
    %vm7054 = vcmp.gt.s32.totalorder %v7053, 0
    %v7055 = vsel %vm7054, %v7053, 0
    %v7056 = vshrl.u32 %v7055, 5
    %v7057 = vand.u32 %v7055, 31
    %v7058 = vsub.s32 32, %v7057
    %v7059 = vshrl.u32 683565275, %v7058
    %v7060 = vshll.u32 683565275, %v7057
    %v7061 = vshrl.u32 2475754826, %v7058
    %v7062 = vor.u32 %v7060, %v7061
    %v7063 = vshll.u32 2475754826, %v7057
    %v7064 = vshrl.u32 2131351028, %v7058
    %v7065 = vor.u32 %v7063, %v7064
    %v7066 = vshll.u32 2131351028, %v7057
    %v7067 = vshrl.u32 2102212464, %v7058
    %v7068 = vor.u32 %v7066, %v7067
    %v7069 = vshll.u32 2102212464, %v7057
    %v7070 = vshrl.u32 920167782, %v7058
    %v7071 = vor.u32 %v7069, %v7070
    %v7072 = vshll.u32 920167782, %v7057
    %v7073 = vshrl.u32 1326507024, %v7058
    %v7074 = vor.u32 %v7072, %v7073
    %vm7075 = vcmp.lt.s32.totalorder %v7056, 1
    %vm7076 = vcmp.lt.s32.totalorder %v7056, 2
    %vm7077 = vcmp.lt.s32.totalorder %v7056, 3
    %vm7078 = vcmp.lt.s32.totalorder %v7056, 4
    %v7079 = vsel %vm7075, %v7059, %v7062
    %v7080 = vsel %vm7078, %v7068, 2102212464
    %v7081 = vsel %vm7077, %v7065, %v7080
    %v7082 = vsel %vm7076, %v7079, %v7081
    %v7083 = vsel %vm7075, %v7062, %v7065
    %v7084 = vsel %vm7078, %v7071, 920167782
    %v7085 = vsel %vm7077, %v7068, %v7084
    %v7086 = vsel %vm7076, %v7083, %v7085
    %v7087 = vsel %vm7075, %v7065, %v7068
    %v7088 = vsel %vm7078, %v7074, 1326507024
    %v7089 = vsel %vm7077, %v7071, %v7088
    %v7090 = vsel %vm7076, %v7087, %v7089
    %v7091 = vshll.u32 %v7051, 8
    %v7092 = vmul.u32.u64.compose %v7091, %v7090
    %v7093 = vextract.low.u32 %v7092
    %v7094 = vextract.high.u32 %v7092
    %v7095 = vmul.u32.u64.compose %v7091, %v7086
    %v7096 = vextract.low.u32 %v7095
    %v7097 = vextract.high.u32 %v7095
    %v7098 = vmul.u32 %v7091, %v7082
    %v7099 = vadd.s32 %v7094, %v7096
    %vm7100 = vc.u32 %v7094, %v7096
    %v7101 = vadd.s32 %v7097, 1
    %v7102 = vsel %vm7100, %v7101, %v7097
    %v7103 = vadd.s32 %v7098, %v7102
    %v7104 = vadd.s32 %v7103, 536870912
    %v7105 = vshrl.u32 %v7104, 30
    %v7106 = vshll.u32 %v7105, 30
    %v7107 = vsub.s32 %v7103, %v7106
    %vm7108 = vcmp.lt.s32.totalorder %v7107, 0
    %v7109 = vsub.s32 0, %v7107
    %v7110 = vsel %vm7108, %v7109, %v7107
    %v7111 = vclz %v7110
    %v7112 = vsub.s32 %v7111, 2
    %vm7113 = vcmp.gt.s32.totalorder 0, %v7112
    %v7114 = vsel %vm7113, 0, %v7112
    %v7115 = vsub.s32 32, %v7114
    %v7116 = vshll.u32 %v7107, %v7114
    %v7117 = vshrl.u32 %v7099, %v7115
    %v7118 = vor.u32 %v7116, %v7117
    %v7119 = vsub.s32 4294967266, %v7114
    %v7120 = vadd.s32 %v7119, 127
    %v7121 = vshll.u32 %v7120, 23
    %v7122 = vor.u32 4788187, %v7121
    %v7123 = vand.u32 2147483647, %v7122
    %v7125 = vcvt.s32.f32 %v7118
    %v7126 = vmul.f32 %v7125, %v7123
    %v7127 = vxor.u32 %v7126, 2147483648
    %v7128 = vsel %vm7045, %v7127, %v7126
    %v7129 = vsub.s32 4, %v7105
    %v7130 = vsel %vm7045, %v7129, %v7105
    %v7131 = vsel %vm7044, %v4038, %v7128
    %v7132 = vsel %vm7044, 0, %v7130
    %v7133 = vcosq.f32.pop %v7131
    %v7134 = vsinq.f32.pop %v7131
    %vm7135 = vweird.f32 %v4038
    %v7136 = vadd.s32 %v7132, 3
    %v7137 = vand.u32 %v7136, 3
    %vm7138 = vcmp.lt.s32.totalorder %v7137, 2
    %vm7139 = vcmp.eq.s32.totalorder %v7137, 0
    %v7140 = vxor.u32 %v7134, 2147483648
    %v7141 = vsel %vm7139, %v7133, %v7140
    %vm7142 = vcmp.eq.s32.totalorder %v7137, 2
    %v7143 = vxor.u32 %v7133, 2147483648
    %v7144 = vsel %vm7142, %v7143, %v7134
    %v7145 = vsel %vm7138, %v7141, %v7144
    %v7146 = vsel %vm7135, nan, %v7145
    %v7147 = vand.u32 2147483647, %v4040
    %vm7148 = vcmp.le.f32.partialorder %v7147, 0.7853982
    %vm7149 = vcmp.lt.s32.totalorder %v4040, 0
    %v7150 = vand.u32 %v4040, 2139095040
    %v7151 = vshrl.u32 %v7150, 23
    %v7152 = vsub.s32 %v7151, 127
    %v7153 = vand.u32 2147483647, %v4040
    %v7154 = vand.u32 %v7153, 8388607
    %v7155 = vor.u32 %v7154, 8388608
    %v7156 = vsub.s32 0, %v7155
    %v7157 = vadd.s32 %v7152, 1
    %vm7158 = vcmp.gt.s32.totalorder %v7157, 0
    %v7159 = vsel %vm7158, %v7157, 0
    %v7160 = vshrl.u32 %v7159, 5
    %v7161 = vand.u32 %v7159, 31
    %v7162 = vsub.s32 32, %v7161
    %v7163 = vshrl.u32 683565275, %v7162
    %v7164 = vshll.u32 683565275, %v7161
    %v7165 = vshrl.u32 2475754826, %v7162
    %v7166 = vor.u32 %v7164, %v7165
    %v7167 = vshll.u32 2475754826, %v7161
    %v7168 = vshrl.u32 2131351028, %v7162
    %v7169 = vor.u32 %v7167, %v7168
    %v7170 = vshll.u32 2131351028, %v7161
    %v7171 = vshrl.u32 2102212464, %v7162
    %v7172 = vor.u32 %v7170, %v7171
    %v7173 = vshll.u32 2102212464, %v7161
    %v7174 = vshrl.u32 920167782, %v7162
    %v7175 = vor.u32 %v7173, %v7174
    %v7176 = vshll.u32 920167782, %v7161
    %v7177 = vshrl.u32 1326507024, %v7162
    %v7178 = vor.u32 %v7176, %v7177
    %vm7179 = vcmp.lt.s32.totalorder %v7160, 1
    %vm7180 = vcmp.lt.s32.totalorder %v7160, 2
    %vm7181 = vcmp.lt.s32.totalorder %v7160, 3
    %vm7182 = vcmp.lt.s32.totalorder %v7160, 4
    %v7183 = vsel %vm7179, %v7163, %v7166
    %v7184 = vsel %vm7182, %v7172, 2102212464
    %v7185 = vsel %vm7181, %v7169, %v7184
    %v7186 = vsel %vm7180, %v7183, %v7185
    %v7187 = vsel %vm7179, %v7166, %v7169
    %v7188 = vsel %vm7182, %v7175, 920167782
    %v7189 = vsel %vm7181, %v7172, %v7188
    %v7190 = vsel %vm7180, %v7187, %v7189
    %v7191 = vsel %vm7179, %v7169, %v7172
    %v7192 = vsel %vm7182, %v7178, 1326507024
    %v7193 = vsel %vm7181, %v7175, %v7192
    %v7194 = vsel %vm7180, %v7191, %v7193
    %v7195 = vshll.u32 %v7155, 8
    %v7196 = vmul.u32.u64.compose %v7195, %v7194
    %v7197 = vextract.low.u32 %v7196
    %v7198 = vextract.high.u32 %v7196
    %v7199 = vmul.u32.u64.compose %v7195, %v7190
    %v7200 = vextract.low.u32 %v7199
    %v7201 = vextract.high.u32 %v7199
    %v7202 = vmul.u32 %v7195, %v7186
    %v7203 = vadd.s32 %v7198, %v7200
    %vm7204 = vc.u32 %v7198, %v7200
    %v7205 = vadd.s32 %v7201, 1
    %v7206 = vsel %vm7204, %v7205, %v7201
    %v7207 = vadd.s32 %v7202, %v7206
    %v7208 = vadd.s32 %v7207, 536870912
    %v7209 = vshrl.u32 %v7208, 30
    %v7210 = vshll.u32 %v7209, 30
    %v7211 = vsub.s32 %v7207, %v7210
    %vm7212 = vcmp.lt.s32.totalorder %v7211, 0
    %v7213 = vsub.s32 0, %v7211
    %v7214 = vsel %vm7212, %v7213, %v7211
    %v7215 = vclz %v7214
    %v7216 = vsub.s32 %v7215, 2
    %vm7217 = vcmp.gt.s32.totalorder 0, %v7216
    %v7218 = vsel %vm7217, 0, %v7216
    %v7219 = vsub.s32 32, %v7218
    %v7220 = vshll.u32 %v7211, %v7218
    %v7221 = vshrl.u32 %v7203, %v7219
    %v7222 = vor.u32 %v7220, %v7221
    %v7223 = vsub.s32 4294967266, %v7218
    %v7224 = vadd.s32 %v7223, 127
    %v7225 = vshll.u32 %v7224, 23
    %v7226 = vor.u32 4788187, %v7225
    %v7227 = vand.u32 2147483647, %v7226
    %v7229 = vcvt.s32.f32 %v7222
    %v7230 = vmul.f32 %v7229, %v7227
    %v7231 = vxor.u32 %v7230, 2147483648
    %v7232 = vsel %vm7149, %v7231, %v7230
    %v7233 = vsub.s32 4, %v7209
    %v7234 = vsel %vm7149, %v7233, %v7209
    %v7235 = vsel %vm7148, %v4040, %v7232
    %v7236 = vsel %vm7148, 0, %v7234
    %v7237 = vcosq.f32.pop %v7235
    %v7238 = vsinq.f32.pop %v7235
    %vm7239 = vweird.f32 %v4040
    %v7240 = vadd.s32 %v7236, 3
    %v7241 = vand.u32 %v7240, 3
    %vm7242 = vcmp.lt.s32.totalorder %v7241, 2
    %vm7243 = vcmp.eq.s32.totalorder %v7241, 0
    %v7244 = vxor.u32 %v7238, 2147483648
    %v7245 = vsel %vm7243, %v7237, %v7244
    %vm7246 = vcmp.eq.s32.totalorder %v7241, 2
    %v7247 = vxor.u32 %v7237, 2147483648
    %v7248 = vsel %vm7246, %v7247, %v7238
    %v7249 = vsel %vm7242, %v7245, %v7248
    %v7250 = vsel %vm7239, nan, %v7249
    %v7251 = vand.u32 2147483647, %v4127
    %vm7252 = vcmp.le.f32.partialorder %v7251, 0.7853982
    %vm7253 = vcmp.lt.s32.totalorder %v4127, 0
    %v7254 = vand.u32 %v4127, 2139095040
    %v7255 = vshrl.u32 %v7254, 23
    %v7256 = vsub.s32 %v7255, 127
    %v7257 = vand.u32 2147483647, %v4127
    %v7258 = vand.u32 %v7257, 8388607
    %v7259 = vor.u32 %v7258, 8388608
    %v7260 = vsub.s32 0, %v7259
    %v7261 = vadd.s32 %v7256, 1
    %vm7262 = vcmp.gt.s32.totalorder %v7261, 0
    %v7263 = vsel %vm7262, %v7261, 0
    %v7264 = vshrl.u32 %v7263, 5
    %v7265 = vand.u32 %v7263, 31
    %v7266 = vsub.s32 32, %v7265
    %v7267 = vshrl.u32 683565275, %v7266
    %v7268 = vshll.u32 683565275, %v7265
    %v7269 = vshrl.u32 2475754826, %v7266
    %v7270 = vor.u32 %v7268, %v7269
    %v7271 = vshll.u32 2475754826, %v7265
    %v7272 = vshrl.u32 2131351028, %v7266
    %v7273 = vor.u32 %v7271, %v7272
    %v7274 = vshll.u32 2131351028, %v7265
    %v7275 = vshrl.u32 2102212464, %v7266
    %v7276 = vor.u32 %v7274, %v7275
    %v7277 = vshll.u32 2102212464, %v7265
    %v7278 = vshrl.u32 920167782, %v7266
    %v7279 = vor.u32 %v7277, %v7278
    %v7280 = vshll.u32 920167782, %v7265
    %v7281 = vshrl.u32 1326507024, %v7266
    %v7282 = vor.u32 %v7280, %v7281
    %vm7283 = vcmp.lt.s32.totalorder %v7264, 1
    %vm7284 = vcmp.lt.s32.totalorder %v7264, 2
    %vm7285 = vcmp.lt.s32.totalorder %v7264, 3
    %vm7286 = vcmp.lt.s32.totalorder %v7264, 4
    %v7287 = vsel %vm7283, %v7267, %v7270
    %v7288 = vsel %vm7286, %v7276, 2102212464
    %v7289 = vsel %vm7285, %v7273, %v7288
    %v7290 = vsel %vm7284, %v7287, %v7289
    %v7291 = vsel %vm7283, %v7270, %v7273
    %v7292 = vsel %vm7286, %v7279, 920167782
    %v7293 = vsel %vm7285, %v7276, %v7292
    %v7294 = vsel %vm7284, %v7291, %v7293
    %v7295 = vsel %vm7283, %v7273, %v7276
    %v7296 = vsel %vm7286, %v7282, 1326507024
    %v7297 = vsel %vm7285, %v7279, %v7296
    %v7298 = vsel %vm7284, %v7295, %v7297
    %v7299 = vshll.u32 %v7259, 8
    %v7300 = vmul.u32.u64.compose %v7299, %v7298
    %v7301 = vextract.low.u32 %v7300
    %v7302 = vextract.high.u32 %v7300
    %v7303 = vmul.u32.u64.compose %v7299, %v7294
    %v7304 = vextract.low.u32 %v7303
    %v7305 = vextract.high.u32 %v7303
    %v7306 = vmul.u32 %v7299, %v7290
    %v7307 = vadd.s32 %v7302, %v7304
    %vm7308 = vc.u32 %v7302, %v7304
    %v7309 = vadd.s32 %v7305, 1
    %v7310 = vsel %vm7308, %v7309, %v7305
    %v7311 = vadd.s32 %v7306, %v7310
    %v7312 = vadd.s32 %v7311, 536870912
    %v7313 = vshrl.u32 %v7312, 30
    %v7314 = vshll.u32 %v7313, 30
    %v7315 = vsub.s32 %v7311, %v7314
    %vm7316 = vcmp.lt.s32.totalorder %v7315, 0
    %v7317 = vsub.s32 0, %v7315
    %v7318 = vsel %vm7316, %v7317, %v7315
    %v7319 = vclz %v7318
    %v7320 = vsub.s32 %v7319, 2
    %vm7321 = vcmp.gt.s32.totalorder 0, %v7320
    %v7322 = vsel %vm7321, 0, %v7320
    %v7323 = vsub.s32 32, %v7322
    %v7324 = vshll.u32 %v7315, %v7322
    %v7325 = vshrl.u32 %v7307, %v7323
    %v7326 = vor.u32 %v7324, %v7325
    %v7327 = vsub.s32 4294967266, %v7322
    %v7328 = vadd.s32 %v7327, 127
    %v7329 = vshll.u32 %v7328, 23
    %v7330 = vor.u32 4788187, %v7329
    %v7331 = vand.u32 2147483647, %v7330
    %v7333 = vcvt.s32.f32 %v7326
    %v7334 = vmul.f32 %v7333, %v7331
    %v7335 = vxor.u32 %v7334, 2147483648
    %v7336 = vsel %vm7253, %v7335, %v7334
    %v7337 = vsub.s32 4, %v7313
    %v7338 = vsel %vm7253, %v7337, %v7313
    %v7339 = vsel %vm7252, %v4127, %v7336
    %v7340 = vsel %vm7252, 0, %v7338
    %v7341 = vcosq.f32.pop %v7339
    %v7342 = vsinq.f32.pop %v7339
    %vm7343 = vweird.f32 %v4127
    %v7344 = vadd.s32 %v7340, 3
    %v7345 = vand.u32 %v7344, 3
    %vm7346 = vcmp.lt.s32.totalorder %v7345, 2
    %vm7347 = vcmp.eq.s32.totalorder %v7345, 0
    %v7348 = vxor.u32 %v7342, 2147483648
    %v7349 = vsel %vm7347, %v7341, %v7348
    %vm7350 = vcmp.eq.s32.totalorder %v7345, 2
    %v7351 = vxor.u32 %v7341, 2147483648
    %v7352 = vsel %vm7350, %v7351, %v7342
    %v7353 = vsel %vm7346, %v7349, %v7352
    %v7354 = vsel %vm7343, nan, %v7353
    %v7355 = vand.u32 2147483647, %v4129
    %vm7356 = vcmp.le.f32.partialorder %v7355, 0.7853982
    %vm7357 = vcmp.lt.s32.totalorder %v4129, 0
    %v7358 = vand.u32 %v4129, 2139095040
    %v7359 = vshrl.u32 %v7358, 23
    %v7360 = vsub.s32 %v7359, 127
    %v7361 = vand.u32 2147483647, %v4129
    %v7362 = vand.u32 %v7361, 8388607
    %v7363 = vor.u32 %v7362, 8388608
    %v7364 = vsub.s32 0, %v7363
    %v7365 = vadd.s32 %v7360, 1
    %vm7366 = vcmp.gt.s32.totalorder %v7365, 0
    %v7367 = vsel %vm7366, %v7365, 0
    %v7368 = vshrl.u32 %v7367, 5
    %v7369 = vand.u32 %v7367, 31
    %v7370 = vsub.s32 32, %v7369
    %v7371 = vshrl.u32 683565275, %v7370
    %v7372 = vshll.u32 683565275, %v7369
    %v7373 = vshrl.u32 2475754826, %v7370
    %v7374 = vor.u32 %v7372, %v7373
    %v7375 = vshll.u32 2475754826, %v7369
    %v7376 = vshrl.u32 2131351028, %v7370
    %v7377 = vor.u32 %v7375, %v7376
    %v7378 = vshll.u32 2131351028, %v7369
    %v7379 = vshrl.u32 2102212464, %v7370
    %v7380 = vor.u32 %v7378, %v7379
    %v7381 = vshll.u32 2102212464, %v7369
    %v7382 = vshrl.u32 920167782, %v7370
    %v7383 = vor.u32 %v7381, %v7382
    %v7384 = vshll.u32 920167782, %v7369
    %v7385 = vshrl.u32 1326507024, %v7370
    %v7386 = vor.u32 %v7384, %v7385
    %vm7387 = vcmp.lt.s32.totalorder %v7368, 1
    %vm7388 = vcmp.lt.s32.totalorder %v7368, 2
    %vm7389 = vcmp.lt.s32.totalorder %v7368, 3
    %vm7390 = vcmp.lt.s32.totalorder %v7368, 4
    %v7391 = vsel %vm7387, %v7371, %v7374
    %v7392 = vsel %vm7390, %v7380, 2102212464
    %v7393 = vsel %vm7389, %v7377, %v7392
    %v7394 = vsel %vm7388, %v7391, %v7393
    %v7395 = vsel %vm7387, %v7374, %v7377
    %v7396 = vsel %vm7390, %v7383, 920167782
    %v7397 = vsel %vm7389, %v7380, %v7396
    %v7398 = vsel %vm7388, %v7395, %v7397
    %v7399 = vsel %vm7387, %v7377, %v7380
    %v7400 = vsel %vm7390, %v7386, 1326507024
    %v7401 = vsel %vm7389, %v7383, %v7400
    %v7402 = vsel %vm7388, %v7399, %v7401
    %v7403 = vshll.u32 %v7363, 8
    %v7404 = vmul.u32.u64.compose %v7403, %v7402
    %v7405 = vextract.low.u32 %v7404
    %v7406 = vextract.high.u32 %v7404
    %v7407 = vmul.u32.u64.compose %v7403, %v7398
    %v7408 = vextract.low.u32 %v7407
    %v7409 = vextract.high.u32 %v7407
    %v7410 = vmul.u32 %v7403, %v7394
    %v7411 = vadd.s32 %v7406, %v7408
    %vm7412 = vc.u32 %v7406, %v7408
    %v7413 = vadd.s32 %v7409, 1
    %v7414 = vsel %vm7412, %v7413, %v7409
    %v7415 = vadd.s32 %v7410, %v7414
    %v7416 = vadd.s32 %v7415, 536870912
    %v7417 = vshrl.u32 %v7416, 30
    %v7418 = vshll.u32 %v7417, 30
    %v7419 = vsub.s32 %v7415, %v7418
    %vm7420 = vcmp.lt.s32.totalorder %v7419, 0
    %v7421 = vsub.s32 0, %v7419
    %v7422 = vsel %vm7420, %v7421, %v7419
    %v7423 = vclz %v7422
    %v7424 = vsub.s32 %v7423, 2
    %vm7425 = vcmp.gt.s32.totalorder 0, %v7424
    %v7426 = vsel %vm7425, 0, %v7424
    %v7427 = vsub.s32 32, %v7426
    %v7428 = vshll.u32 %v7419, %v7426
    %v7429 = vshrl.u32 %v7411, %v7427
    %v7430 = vor.u32 %v7428, %v7429
    %v7431 = vsub.s32 4294967266, %v7426
    %v7432 = vadd.s32 %v7431, 127
    %v7433 = vshll.u32 %v7432, 23
    %v7434 = vor.u32 4788187, %v7433
    %v7435 = vand.u32 2147483647, %v7434
    %v7437 = vcvt.s32.f32 %v7430
    %v7438 = vmul.f32 %v7437, %v7435
    %v7439 = vxor.u32 %v7438, 2147483648
    %v7440 = vsel %vm7357, %v7439, %v7438
    %v7441 = vsub.s32 4, %v7417
    %v7442 = vsel %vm7357, %v7441, %v7417
    %v7443 = vsel %vm7356, %v4129, %v7440
    %v7444 = vsel %vm7356, 0, %v7442
    %v7445 = vcosq.f32.pop %v7443
    %v7446 = vsinq.f32.pop %v7443
    %vm7447 = vweird.f32 %v4129
    %v7448 = vadd.s32 %v7444, 3
    %v7449 = vand.u32 %v7448, 3
    %vm7450 = vcmp.lt.s32.totalorder %v7449, 2
    %vm7451 = vcmp.eq.s32.totalorder %v7449, 0
    %v7452 = vxor.u32 %v7446, 2147483648
    %v7453 = vsel %vm7451, %v7445, %v7452
    %vm7454 = vcmp.eq.s32.totalorder %v7449, 2
    %v7455 = vxor.u32 %v7445, 2147483648
    %v7456 = vsel %vm7454, %v7455, %v7446
    %v7457 = vsel %vm7450, %v7453, %v7456
    %v7458 = vsel %vm7447, nan, %v7457
    %v7459 = vld [vmem:[%s1 + $0x40] sm:$0xff]
    %v7460 = vld [vmem:[%s1 + $0x48] sm:$0xff]
    %v7461 = vld [vmem:[%s1 + $0x50] sm:$0xff]
    %v7462 = vld [vmem:[%s1 + $0x58] sm:$0xff]
    %7464 = vset.pattern.permute.xlu0 32
    %7465 = vperm.xlu0 %7464, %v7459
    %v7466 = vpop.permute.xlu0 %7465
    %7469 = vset.pattern.permute.xlu0 32
    %7470 = vperm.xlu0 %7469, %v7460
    %v7471 = vpop.permute.xlu0 %7470
    %7474 = vset.pattern.permute.xlu0 32
    %7475 = vperm.xlu0 %7474, %v7461
    %v7476 = vpop.permute.xlu0 %7475
    %7479 = vset.pattern.permute.xlu0 32
    %7480 = vperm.xlu0 %7479, %v7462
    %v7481 = vpop.permute.xlu0 %7480
    %v7483 = vsel %vm3766, %v7459, 0
    %v7485 = vsel %vm3766, %v7460, 0
    %v7487 = vsel %vm3766, %v7461, 0
    %v7489 = vsel %vm3766, %v7462, 0
    %7491 = vmatprep.subr.mxu0 0.0
    %7492 = vmatpush1.msra.mxu0 0.0
    %7493 = vmatprep.subr.mxu0 0.0
    %7494 = vmatpush1.msra.mxu0 0.0
    %7495 = vmatprep.subr.mxu0 0.0
    %7496 = vmatpush1.msra.mxu0 0.0
    %7497 = vmatprep.subr.mxu0 0.0
    %7498 = vmatpush1.msra.mxu0 0.0
    %7499 = vmatprep.subr.mxu0 0.0
    %7500 = vmatpush1.msra.mxu0 0.0
    %7501 = vmatprep.subr.mxu0 0.0
    %7502 = vmatpush1.msra.mxu0 0.0
    %7503 = vmatprep.subr.mxu0 0.0
    %7504 = vmatpush1.msra.mxu0 0.0
    %7505 = vmatprep.subr.mxu0 0.0
    %7506 = vmatpush1.msra.mxu0 0.0
    %7507 = vmatprep.subr.mxu0 0.0
    %7508 = vmatpush1.msra.mxu0 0.0
    %7509 = vmatprep.subr.mxu0 0.0
    %7510 = vmatpush1.msra.mxu0 0.0
    %7511 = vmatprep.subr.mxu0 0.0
    %7512 = vmatpush1.msra.mxu0 0.0
    %7513 = vmatprep.subr.mxu0 0.0
    %7514 = vmatpush1.msra.mxu0 0.0
    %7515 = vmatprep.subr.mxu0 %v6834
    %7516 = vmatpush1.msra.mxu0 %v6730
    %7517 = vmatprep.subr.mxu0 %v6002
    %7518 = vmatpush1.msra.mxu0 %v5898
    %7519 = vmatprep.subr.mxu0 %v5170
    %7520 = vmatpush1.msra.mxu0 %v5066
    %7521 = vmatprep.subr.mxu0 %v4338
    %7522 = vmatpush1.msra.mxu0 %v4234
    %7523 = vmatprep.subr.mxu0 0.0
    %7524 = vmatpush2.msra.mxu0 0.0
    %7525 = vmatprep.subr.mxu0 0.0
    %7526 = vmatpush2.msra.mxu0 0.0
    %7527 = vmatprep.subr.mxu0 0.0
    %7528 = vmatpush2.msra.mxu0 0.0
    %7529 = vmatprep.subr.mxu0 0.0
    %7530 = vmatpush2.msra.mxu0 0.0
    %7531 = vmatprep.subr.mxu0 0.0
    %7532 = vmatpush2.msra.mxu0 0.0
    %7533 = vmatprep.subr.mxu0 0.0
    %7534 = vmatpush2.msra.mxu0 0.0
    %7535 = vmatprep.subr.mxu0 0.0
    %7536 = vmatpush2.msra.mxu0 0.0
    %7537 = vmatprep.subr.mxu0 0.0
    %7538 = vmatpush2.msra.mxu0 0.0
    %7539 = vmatprep.subr.mxu0 0.0
    %7540 = vmatpush2.msra.mxu0 0.0
    %7541 = vmatprep.subr.mxu0 0.0
    %7542 = vmatpush2.msra.mxu0 0.0
    %7543 = vmatprep.subr.mxu0 0.0
    %7544 = vmatpush2.msra.mxu0 0.0
    %7545 = vmatprep.subr.mxu0 0.0
    %7546 = vmatpush2.msra.mxu0 0.0
    %7547 = vmatprep.subr.mxu0 0.0
    %7548 = vmatpush2.msra.mxu0 0.0
    %7549 = vmatprep.subr.mxu0 0.0
    %7550 = vmatpush2.msra.mxu0 0.0
    %7551 = vmatprep.subr.mxu0 0.0
    %7552 = vmatpush2.msra.mxu0 0.0
    %7553 = vmatprep.subr.mxu0 0.0
    %7554 = vmatpush2.msra.mxu0 0.0
    %7555 = vmatprep.mubr.f32.mxu0 0.0
    %7556 = vmatmul.mubr.f32.gmra.mxu0 %v7483
    %v7557 = vpop.f32.mrf.mxu0
    %v7558 = vadd.f32 %v7466, %v7557
    %v7559 = vpop.f32.mrf.mxu0
    %v7560 = vadd.f32 %v7466, %v7559
    %7561 = vmatprep.mubr.f32.mxu0 0.0
    %7562 = vmatmul.mubr.f32.gmra.mxu0 %v7485
    %v7563 = vpop.f32.mrf.mxu0
    %v7564 = vadd.f32 %v7471, %v7563
    %v7565 = vpop.f32.mrf.mxu0
    %v7566 = vadd.f32 %v7471, %v7565
    %7567 = vmatprep.mubr.f32.mxu0 0.0
    %7568 = vmatmul.mubr.f32.gmra.mxu0 %v7487
    %v7569 = vpop.f32.mrf.mxu0
    %v7570 = vadd.f32 %v7476, %v7569
    %v7571 = vpop.f32.mrf.mxu0
    %v7572 = vadd.f32 %v7476, %v7571
    %7573 = vmatprep.mubr.f32.mxu0 0.0
    %7574 = vmatmul.mubr.f32.gmra.mxu0 %v7489
    %v7575 = vpop.f32.mrf.mxu0
    %v7576 = vadd.f32 %v7481, %v7575
    %v7577 = vpop.f32.mrf.mxu0
    %v7578 = vadd.f32 %v7481, %v7577
    %7579 = vdwg.mxu0
    %7580 = vmatprep.subr.mxu0 0.0
    %7581 = vmatpush1.msra.mxu0 0.0
    %7582 = vmatprep.subr.mxu0 0.0
    %7583 = vmatpush1.msra.mxu0 0.0
    %7584 = vmatprep.subr.mxu0 0.0
    %7585 = vmatpush1.msra.mxu0 0.0
    %7586 = vmatprep.subr.mxu0 0.0
    %7587 = vmatpush1.msra.mxu0 0.0
    %7588 = vmatprep.subr.mxu0 0.0
    %7589 = vmatpush1.msra.mxu0 0.0
    %7590 = vmatprep.subr.mxu0 0.0
    %7591 = vmatpush1.msra.mxu0 0.0
    %7592 = vmatprep.subr.mxu0 0.0
    %7593 = vmatpush1.msra.mxu0 0.0
    %7594 = vmatprep.subr.mxu0 0.0
    %7595 = vmatpush1.msra.mxu0 0.0
    %7596 = vmatprep.subr.mxu0 0.0
    %7597 = vmatpush1.msra.mxu0 0.0
    %7598 = vmatprep.subr.mxu0 0.0
    %7599 = vmatpush1.msra.mxu0 0.0
    %7600 = vmatprep.subr.mxu0 0.0
    %7601 = vmatpush1.msra.mxu0 0.0
    %7602 = vmatprep.subr.mxu0 0.0
    %7603 = vmatpush1.msra.mxu0 0.0
    %7604 = vmatprep.subr.mxu0 %v7042
    %7605 = vmatpush1.msra.mxu0 %v6938
    %7606 = vmatprep.subr.mxu0 %v6210
    %7607 = vmatpush1.msra.mxu0 %v6106
    %7608 = vmatprep.subr.mxu0 %v5378
    %7609 = vmatpush1.msra.mxu0 %v5274
    %7610 = vmatprep.subr.mxu0 %v4546
    %7611 = vmatpush1.msra.mxu0 %v4442
    %7612 = vmatprep.subr.mxu0 0.0
    %7613 = vmatpush2.msra.mxu0 0.0
    %7614 = vmatprep.subr.mxu0 0.0
    %7615 = vmatpush2.msra.mxu0 0.0
    %7616 = vmatprep.subr.mxu0 0.0
    %7617 = vmatpush2.msra.mxu0 0.0
    %7618 = vmatprep.subr.mxu0 0.0
    %7619 = vmatpush2.msra.mxu0 0.0
    %7620 = vmatprep.subr.mxu0 0.0
    %7621 = vmatpush2.msra.mxu0 0.0
    %7622 = vmatprep.subr.mxu0 0.0
    %7623 = vmatpush2.msra.mxu0 0.0
    %7624 = vmatprep.subr.mxu0 0.0
    %7625 = vmatpush2.msra.mxu0 0.0
    %7626 = vmatprep.subr.mxu0 0.0
    %7627 = vmatpush2.msra.mxu0 0.0
    %7628 = vmatprep.subr.mxu0 0.0
    %7629 = vmatpush2.msra.mxu0 0.0
    %7630 = vmatprep.subr.mxu0 0.0
    %7631 = vmatpush2.msra.mxu0 0.0
    %7632 = vmatprep.subr.mxu0 0.0
    %7633 = vmatpush2.msra.mxu0 0.0
    %7634 = vmatprep.subr.mxu0 0.0
    %7635 = vmatpush2.msra.mxu0 0.0
    %7636 = vmatprep.subr.mxu0 0.0
    %7637 = vmatpush2.msra.mxu0 0.0
    %7638 = vmatprep.subr.mxu0 0.0
    %7639 = vmatpush2.msra.mxu0 0.0
    %7640 = vmatprep.subr.mxu0 0.0
    %7641 = vmatpush2.msra.mxu0 0.0
    %7642 = vmatprep.subr.mxu0 0.0
    %7643 = vmatpush2.msra.mxu0 0.0
    %7644 = vmatprep.mubr.f32.mxu0 0.0
    %7645 = vmatmul.mubr.f32.gmra.mxu0 %v7483
    %v7646 = vpop.f32.mrf.mxu0
    %v7647 = vadd.f32 %v7466, %v7646
    %v7648 = vpop.f32.mrf.mxu0
    %v7649 = vadd.f32 %v7466, %v7648
    %7650 = vmatprep.mubr.f32.mxu0 0.0
    %7651 = vmatmul.mubr.f32.gmra.mxu0 %v7485
    %v7652 = vpop.f32.mrf.mxu0
    %v7653 = vadd.f32 %v7471, %v7652
    %v7654 = vpop.f32.mrf.mxu0
    %v7655 = vadd.f32 %v7471, %v7654
    %7656 = vmatprep.mubr.f32.mxu0 0.0
    %7657 = vmatmul.mubr.f32.gmra.mxu0 %v7487
    %v7658 = vpop.f32.mrf.mxu0
    %v7659 = vadd.f32 %v7476, %v7658
    %v7660 = vpop.f32.mrf.mxu0
    %v7661 = vadd.f32 %v7476, %v7660
    %7662 = vmatprep.mubr.f32.mxu0 0.0
    %7663 = vmatmul.mubr.f32.gmra.mxu0 %v7489
    %v7664 = vpop.f32.mrf.mxu0
    %v7665 = vadd.f32 %v7481, %v7664
    %v7666 = vpop.f32.mrf.mxu0
    %v7667 = vadd.f32 %v7481, %v7666
    %7668 = vdwg.mxu0
    %7669 = vmatprep.subr.mxu0 0.0
    %7670 = vmatpush1.msra.mxu0 0.0
    %7671 = vmatprep.subr.mxu0 0.0
    %7672 = vmatpush1.msra.mxu0 0.0
    %7673 = vmatprep.subr.mxu0 0.0
    %7674 = vmatpush1.msra.mxu0 0.0
    %7675 = vmatprep.subr.mxu0 0.0
    %7676 = vmatpush1.msra.mxu0 0.0
    %7677 = vmatprep.subr.mxu0 0.0
    %7678 = vmatpush1.msra.mxu0 0.0
    %7679 = vmatprep.subr.mxu0 0.0
    %7680 = vmatpush1.msra.mxu0 0.0
    %7681 = vmatprep.subr.mxu0 0.0
    %7682 = vmatpush1.msra.mxu0 0.0
    %7683 = vmatprep.subr.mxu0 0.0
    %7684 = vmatpush1.msra.mxu0 0.0
    %7685 = vmatprep.subr.mxu0 0.0
    %7686 = vmatpush1.msra.mxu0 0.0
    %7687 = vmatprep.subr.mxu0 0.0
    %7688 = vmatpush1.msra.mxu0 0.0
    %7689 = vmatprep.subr.mxu0 0.0
    %7690 = vmatpush1.msra.mxu0 0.0
    %7691 = vmatprep.subr.mxu0 0.0
    %7692 = vmatpush1.msra.mxu0 0.0
    %7693 = vmatprep.subr.mxu0 %v7250
    %7694 = vmatpush1.msra.mxu0 %v7146
    %7695 = vmatprep.subr.mxu0 %v6418
    %7696 = vmatpush1.msra.mxu0 %v6314
    %7697 = vmatprep.subr.mxu0 %v5586
    %7698 = vmatpush1.msra.mxu0 %v5482
    %7699 = vmatprep.subr.mxu0 %v4754
    %7700 = vmatpush1.msra.mxu0 %v4650
    %7701 = vmatprep.subr.mxu0 0.0
    %7702 = vmatpush2.msra.mxu0 0.0
    %7703 = vmatprep.subr.mxu0 0.0
    %7704 = vmatpush2.msra.mxu0 0.0
    %7705 = vmatprep.subr.mxu0 0.0
    %7706 = vmatpush2.msra.mxu0 0.0
    %7707 = vmatprep.subr.mxu0 0.0
    %7708 = vmatpush2.msra.mxu0 0.0
    %7709 = vmatprep.subr.mxu0 0.0
    %7710 = vmatpush2.msra.mxu0 0.0
    %7711 = vmatprep.subr.mxu0 0.0
    %7712 = vmatpush2.msra.mxu0 0.0
    %7713 = vmatprep.subr.mxu0 0.0
    %7714 = vmatpush2.msra.mxu0 0.0
    %7715 = vmatprep.subr.mxu0 0.0
    %7716 = vmatpush2.msra.mxu0 0.0
    %7717 = vmatprep.subr.mxu0 0.0
    %7718 = vmatpush2.msra.mxu0 0.0
    %7719 = vmatprep.subr.mxu0 0.0
    %7720 = vmatpush2.msra.mxu0 0.0
    %7721 = vmatprep.subr.mxu0 0.0
    %7722 = vmatpush2.msra.mxu0 0.0
    %7723 = vmatprep.subr.mxu0 0.0
    %7724 = vmatpush2.msra.mxu0 0.0
    %7725 = vmatprep.subr.mxu0 0.0
    %7726 = vmatpush2.msra.mxu0 0.0
    %7727 = vmatprep.subr.mxu0 0.0
    %7728 = vmatpush2.msra.mxu0 0.0
    %7729 = vmatprep.subr.mxu0 0.0
    %7730 = vmatpush2.msra.mxu0 0.0
    %7731 = vmatprep.subr.mxu0 0.0
    %7732 = vmatpush2.msra.mxu0 0.0
    %7733 = vmatprep.mubr.f32.mxu0 0.0
    %7734 = vmatmul.mubr.f32.gmra.mxu0 %v7483
    %v7735 = vpop.f32.mrf.mxu0
    %v7736 = vadd.f32 %v7466, %v7735
    %v7737 = vpop.f32.mrf.mxu0
    %v7738 = vadd.f32 %v7466, %v7737
    %7739 = vmatprep.mubr.f32.mxu0 0.0
    %7740 = vmatmul.mubr.f32.gmra.mxu0 %v7485
    %v7741 = vpop.f32.mrf.mxu0
    %v7742 = vadd.f32 %v7471, %v7741
    %v7743 = vpop.f32.mrf.mxu0
    %v7744 = vadd.f32 %v7471, %v7743
    %7745 = vmatprep.mubr.f32.mxu0 0.0
    %7746 = vmatmul.mubr.f32.gmra.mxu0 %v7487
    %v7747 = vpop.f32.mrf.mxu0
    %v7748 = vadd.f32 %v7476, %v7747
    %v7749 = vpop.f32.mrf.mxu0
    %v7750 = vadd.f32 %v7476, %v7749
    %7751 = vmatprep.mubr.f32.mxu0 0.0
    %7752 = vmatmul.mubr.f32.gmra.mxu0 %v7489
    %v7753 = vpop.f32.mrf.mxu0
    %v7754 = vadd.f32 %v7481, %v7753
    %v7755 = vpop.f32.mrf.mxu0
    %v7756 = vadd.f32 %v7481, %v7755
    %7757 = vdwg.mxu0
    %7758 = vmatprep.subr.mxu0 0.0
    %7759 = vmatpush1.msra.mxu0 0.0
    %7760 = vmatprep.subr.mxu0 0.0
    %7761 = vmatpush1.msra.mxu0 0.0
    %7762 = vmatprep.subr.mxu0 0.0
    %7763 = vmatpush1.msra.mxu0 0.0
    %7764 = vmatprep.subr.mxu0 0.0
    %7765 = vmatpush1.msra.mxu0 0.0
    %7766 = vmatprep.subr.mxu0 0.0
    %7767 = vmatpush1.msra.mxu0 0.0
    %7768 = vmatprep.subr.mxu0 0.0
    %7769 = vmatpush1.msra.mxu0 0.0
    %7770 = vmatprep.subr.mxu0 0.0
    %7771 = vmatpush1.msra.mxu0 0.0
    %7772 = vmatprep.subr.mxu0 0.0
    %7773 = vmatpush1.msra.mxu0 0.0
    %7774 = vmatprep.subr.mxu0 0.0
    %7775 = vmatpush1.msra.mxu0 0.0
    %7776 = vmatprep.subr.mxu0 0.0
    %7777 = vmatpush1.msra.mxu0 0.0
    %7778 = vmatprep.subr.mxu0 0.0
    %7779 = vmatpush1.msra.mxu0 0.0
    %7780 = vmatprep.subr.mxu0 0.0
    %7781 = vmatpush1.msra.mxu0 0.0
    %7782 = vmatprep.subr.mxu0 %v7458
    %7783 = vmatpush1.msra.mxu0 %v7354
    %7784 = vmatprep.subr.mxu0 %v6626
    %7785 = vmatpush1.msra.mxu0 %v6522
    %7786 = vmatprep.subr.mxu0 %v5794
    %7787 = vmatpush1.msra.mxu0 %v5690
    %7788 = vmatprep.subr.mxu0 %v4962
    %7789 = vmatpush1.msra.mxu0 %v4858
    %7790 = vmatprep.subr.mxu0 0.0
    %7791 = vmatpush2.msra.mxu0 0.0
    %7792 = vmatprep.subr.mxu0 0.0
    %7793 = vmatpush2.msra.mxu0 0.0
    %7794 = vmatprep.subr.mxu0 0.0
    %7795 = vmatpush2.msra.mxu0 0.0
    %7796 = vmatprep.subr.mxu0 0.0
    %7797 = vmatpush2.msra.mxu0 0.0
    %7798 = vmatprep.subr.mxu0 0.0
    %7799 = vmatpush2.msra.mxu0 0.0
    %7800 = vmatprep.subr.mxu0 0.0
    %7801 = vmatpush2.msra.mxu0 0.0
    %7802 = vmatprep.subr.mxu0 0.0
    %7803 = vmatpush2.msra.mxu0 0.0
    %7804 = vmatprep.subr.mxu0 0.0
    %7805 = vmatpush2.msra.mxu0 0.0
    %7806 = vmatprep.subr.mxu0 0.0
    %7807 = vmatpush2.msra.mxu0 0.0
    %7808 = vmatprep.subr.mxu0 0.0
    %7809 = vmatpush2.msra.mxu0 0.0
    %7810 = vmatprep.subr.mxu0 0.0
    %7811 = vmatpush2.msra.mxu0 0.0
    %7812 = vmatprep.subr.mxu0 0.0
    %7813 = vmatpush2.msra.mxu0 0.0
    %7814 = vmatprep.subr.mxu0 0.0
    %7815 = vmatpush2.msra.mxu0 0.0
    %7816 = vmatprep.subr.mxu0 0.0
    %7817 = vmatpush2.msra.mxu0 0.0
    %7818 = vmatprep.subr.mxu0 0.0
    %7819 = vmatpush2.msra.mxu0 0.0
    %7820 = vmatprep.subr.mxu0 0.0
    %7821 = vmatpush2.msra.mxu0 0.0
    %7822 = vmatprep.mubr.f32.mxu0 0.0
    %7823 = vmatmul.mubr.f32.gmra.mxu0 %v7483
    %v7824 = vpop.f32.mrf.mxu0
    %v7825 = vadd.f32 %v7466, %v7824
    %v7826 = vpop.f32.mrf.mxu0
    %v7827 = vadd.f32 %v7466, %v7826
    %7828 = vmatprep.mubr.f32.mxu0 0.0
    %7829 = vmatmul.mubr.f32.gmra.mxu0 %v7485
    %v7830 = vpop.f32.mrf.mxu0
    %v7831 = vadd.f32 %v7471, %v7830
    %v7832 = vpop.f32.mrf.mxu0
    %v7833 = vadd.f32 %v7471, %v7832
    %7834 = vmatprep.mubr.f32.mxu0 0.0
    %7835 = vmatmul.mubr.f32.gmra.mxu0 %v7487
    %v7836 = vpop.f32.mrf.mxu0
    %v7837 = vadd.f32 %v7476, %v7836
    %v7838 = vpop.f32.mrf.mxu0
    %v7839 = vadd.f32 %v7476, %v7838
    %7840 = vmatprep.mubr.f32.mxu0 0.0
    %7841 = vmatmul.mubr.f32.gmra.mxu0 %v7489
    %v7842 = vpop.f32.mrf.mxu0
    %v7843 = vadd.f32 %v7481, %v7842
    %v7844 = vpop.f32.mrf.mxu0
    %v7845 = vadd.f32 %v7481, %v7844
    %7846 = vdwg.mxu0
    %v7847 = vand.u32 2147483647, %v7558
    %vm7848 = vcmp.le.f32.partialorder %v7847, 0.7853982
    %vm7849 = vcmp.lt.s32.totalorder %v7558, 0
    %v7850 = vand.u32 %v7558, 2139095040
    %v7851 = vshrl.u32 %v7850, 23
    %v7852 = vsub.s32 %v7851, 127
    %v7853 = vand.u32 2147483647, %v7558
    %v7854 = vand.u32 %v7853, 8388607
    %v7855 = vor.u32 %v7854, 8388608
    %v7856 = vsub.s32 0, %v7855
    %v7857 = vadd.s32 %v7852, 1
    %vm7858 = vcmp.gt.s32.totalorder %v7857, 0
    %v7859 = vsel %vm7858, %v7857, 0
    %v7860 = vshrl.u32 %v7859, 5
    %v7861 = vand.u32 %v7859, 31
    %v7862 = vsub.s32 32, %v7861
    %v7863 = vshrl.u32 683565275, %v7862
    %v7864 = vshll.u32 683565275, %v7861
    %v7865 = vshrl.u32 2475754826, %v7862
    %v7866 = vor.u32 %v7864, %v7865
    %v7867 = vshll.u32 2475754826, %v7861
    %v7868 = vshrl.u32 2131351028, %v7862
    %v7869 = vor.u32 %v7867, %v7868
    %v7870 = vshll.u32 2131351028, %v7861
    %v7871 = vshrl.u32 2102212464, %v7862
    %v7872 = vor.u32 %v7870, %v7871
    %v7873 = vshll.u32 2102212464, %v7861
    %v7874 = vshrl.u32 920167782, %v7862
    %v7875 = vor.u32 %v7873, %v7874
    %v7876 = vshll.u32 920167782, %v7861
    %v7877 = vshrl.u32 1326507024, %v7862
    %v7878 = vor.u32 %v7876, %v7877
    %vm7879 = vcmp.lt.s32.totalorder %v7860, 1
    %vm7880 = vcmp.lt.s32.totalorder %v7860, 2
    %vm7881 = vcmp.lt.s32.totalorder %v7860, 3
    %vm7882 = vcmp.lt.s32.totalorder %v7860, 4
    %v7883 = vsel %vm7879, %v7863, %v7866
    %v7884 = vsel %vm7882, %v7872, 2102212464
    %v7885 = vsel %vm7881, %v7869, %v7884
    %v7886 = vsel %vm7880, %v7883, %v7885
    %v7887 = vsel %vm7879, %v7866, %v7869
    %v7888 = vsel %vm7882, %v7875, 920167782
    %v7889 = vsel %vm7881, %v7872, %v7888
    %v7890 = vsel %vm7880, %v7887, %v7889
    %v7891 = vsel %vm7879, %v7869, %v7872
    %v7892 = vsel %vm7882, %v7878, 1326507024
    %v7893 = vsel %vm7881, %v7875, %v7892
    %v7894 = vsel %vm7880, %v7891, %v7893
    %v7895 = vshll.u32 %v7855, 8
    %v7896 = vmul.u32.u64.compose %v7895, %v7894
    %v7897 = vextract.low.u32 %v7896
    %v7898 = vextract.high.u32 %v7896
    %v7899 = vmul.u32.u64.compose %v7895, %v7890
    %v7900 = vextract.low.u32 %v7899
    %v7901 = vextract.high.u32 %v7899
    %v7902 = vmul.u32 %v7895, %v7886
    %v7903 = vadd.s32 %v7898, %v7900
    %vm7904 = vc.u32 %v7898, %v7900
    %v7905 = vadd.s32 %v7901, 1
    %v7906 = vsel %vm7904, %v7905, %v7901
    %v7907 = vadd.s32 %v7902, %v7906
    %v7908 = vadd.s32 %v7907, 536870912
    %v7909 = vshrl.u32 %v7908, 30
    %v7910 = vshll.u32 %v7909, 30
    %v7911 = vsub.s32 %v7907, %v7910
    %vm7912 = vcmp.lt.s32.totalorder %v7911, 0
    %v7913 = vsub.s32 0, %v7911
    %v7914 = vsel %vm7912, %v7913, %v7911
    %v7915 = vclz %v7914
    %v7916 = vsub.s32 %v7915, 2
    %vm7917 = vcmp.gt.s32.totalorder 0, %v7916
    %v7918 = vsel %vm7917, 0, %v7916
    %v7919 = vsub.s32 32, %v7918
    %v7920 = vshll.u32 %v7911, %v7918
    %v7921 = vshrl.u32 %v7903, %v7919
    %v7922 = vor.u32 %v7920, %v7921
    %v7923 = vsub.s32 4294967266, %v7918
    %v7924 = vadd.s32 %v7923, 127
    %v7925 = vshll.u32 %v7924, 23
    %v7926 = vor.u32 4788187, %v7925
    %v7927 = vand.u32 2147483647, %v7926
    %v7929 = vcvt.s32.f32 %v7922
    %v7930 = vmul.f32 %v7929, %v7927
    %v7931 = vxor.u32 %v7930, 2147483648
    %v7932 = vsel %vm7849, %v7931, %v7930
    %v7933 = vsub.s32 4, %v7909
    %v7934 = vsel %vm7849, %v7933, %v7909
    %v7935 = vsel %vm7848, %v7558, %v7932
    %v7936 = vsel %vm7848, 0, %v7934
    %v7937 = vcosq.f32.pop %v7935
    %v7938 = vsinq.f32.pop %v7935
    %vm7939 = vweird.f32 %v7558
    %v7940 = vadd.s32 %v7936, 3
    %v7941 = vand.u32 %v7940, 3
    %vm7942 = vcmp.lt.s32.totalorder %v7941, 2
    %vm7943 = vcmp.eq.s32.totalorder %v7941, 0
    %v7944 = vxor.u32 %v7938, 2147483648
    %v7945 = vsel %vm7943, %v7937, %v7944
    %vm7946 = vcmp.eq.s32.totalorder %v7941, 2
    %v7947 = vxor.u32 %v7937, 2147483648
    %v7948 = vsel %vm7946, %v7947, %v7938
    %v7949 = vsel %vm7942, %v7945, %v7948
    %v7950 = vsel %vm7939, nan, %v7949
    %v7951 = vand.u32 2147483647, %v7560
    %vm7952 = vcmp.le.f32.partialorder %v7951, 0.7853982
    %vm7953 = vcmp.lt.s32.totalorder %v7560, 0
    %v7954 = vand.u32 %v7560, 2139095040
    %v7955 = vshrl.u32 %v7954, 23
    %v7956 = vsub.s32 %v7955, 127
    %v7957 = vand.u32 2147483647, %v7560
    %v7958 = vand.u32 %v7957, 8388607
    %v7959 = vor.u32 %v7958, 8388608
    %v7960 = vsub.s32 0, %v7959
    %v7961 = vadd.s32 %v7956, 1
    %vm7962 = vcmp.gt.s32.totalorder %v7961, 0
    %v7963 = vsel %vm7962, %v7961, 0
    %v7964 = vshrl.u32 %v7963, 5
    %v7965 = vand.u32 %v7963, 31
    %v7966 = vsub.s32 32, %v7965
    %v7967 = vshrl.u32 683565275, %v7966
    %v7968 = vshll.u32 683565275, %v7965
    %v7969 = vshrl.u32 2475754826, %v7966
    %v7970 = vor.u32 %v7968, %v7969
    %v7971 = vshll.u32 2475754826, %v7965
    %v7972 = vshrl.u32 2131351028, %v7966
    %v7973 = vor.u32 %v7971, %v7972
    %v7974 = vshll.u32 2131351028, %v7965
    %v7975 = vshrl.u32 2102212464, %v7966
    %v7976 = vor.u32 %v7974, %v7975
    %v7977 = vshll.u32 2102212464, %v7965
    %v7978 = vshrl.u32 920167782, %v7966
    %v7979 = vor.u32 %v7977, %v7978
    %v7980 = vshll.u32 920167782, %v7965
    %v7981 = vshrl.u32 1326507024, %v7966
    %v7982 = vor.u32 %v7980, %v7981
    %vm7983 = vcmp.lt.s32.totalorder %v7964, 1
    %vm7984 = vcmp.lt.s32.totalorder %v7964, 2
    %vm7985 = vcmp.lt.s32.totalorder %v7964, 3
    %vm7986 = vcmp.lt.s32.totalorder %v7964, 4
    %v7987 = vsel %vm7983, %v7967, %v7970
    %v7988 = vsel %vm7986, %v7976, 2102212464
    %v7989 = vsel %vm7985, %v7973, %v7988
    %v7990 = vsel %vm7984, %v7987, %v7989
    %v7991 = vsel %vm7983, %v7970, %v7973
    %v7992 = vsel %vm7986, %v7979, 920167782
    %v7993 = vsel %vm7985, %v7976, %v7992
    %v7994 = vsel %vm7984, %v7991, %v7993
    %v7995 = vsel %vm7983, %v7973, %v7976
    %v7996 = vsel %vm7986, %v7982, 1326507024
    %v7997 = vsel %vm7985, %v7979, %v7996
    %v7998 = vsel %vm7984, %v7995, %v7997
    %v7999 = vshll.u32 %v7959, 8
    %v8000 = vmul.u32.u64.compose %v7999, %v7998
    %v8001 = vextract.low.u32 %v8000
    %v8002 = vextract.high.u32 %v8000
    %v8003 = vmul.u32.u64.compose %v7999, %v7994
    %v8004 = vextract.low.u32 %v8003
    %v8005 = vextract.high.u32 %v8003
    %v8006 = vmul.u32 %v7999, %v7990
    %v8007 = vadd.s32 %v8002, %v8004
    %vm8008 = vc.u32 %v8002, %v8004
    %v8009 = vadd.s32 %v8005, 1
    %v8010 = vsel %vm8008, %v8009, %v8005
    %v8011 = vadd.s32 %v8006, %v8010
    %v8012 = vadd.s32 %v8011, 536870912
    %v8013 = vshrl.u32 %v8012, 30
    %v8014 = vshll.u32 %v8013, 30
    %v8015 = vsub.s32 %v8011, %v8014
    %vm8016 = vcmp.lt.s32.totalorder %v8015, 0
    %v8017 = vsub.s32 0, %v8015
    %v8018 = vsel %vm8016, %v8017, %v8015
    %v8019 = vclz %v8018
    %v8020 = vsub.s32 %v8019, 2
    %vm8021 = vcmp.gt.s32.totalorder 0, %v8020
    %v8022 = vsel %vm8021, 0, %v8020
    %v8023 = vsub.s32 32, %v8022
    %v8024 = vshll.u32 %v8015, %v8022
    %v8025 = vshrl.u32 %v8007, %v8023
    %v8026 = vor.u32 %v8024, %v8025
    %v8027 = vsub.s32 4294967266, %v8022
    %v8028 = vadd.s32 %v8027, 127
    %v8029 = vshll.u32 %v8028, 23
    %v8030 = vor.u32 4788187, %v8029
    %v8031 = vand.u32 2147483647, %v8030
    %v8033 = vcvt.s32.f32 %v8026
    %v8034 = vmul.f32 %v8033, %v8031
    %v8035 = vxor.u32 %v8034, 2147483648
    %v8036 = vsel %vm7953, %v8035, %v8034
    %v8037 = vsub.s32 4, %v8013
    %v8038 = vsel %vm7953, %v8037, %v8013
    %v8039 = vsel %vm7952, %v7560, %v8036
    %v8040 = vsel %vm7952, 0, %v8038
    %v8041 = vcosq.f32.pop %v8039
    %v8042 = vsinq.f32.pop %v8039
    %vm8043 = vweird.f32 %v7560
    %v8044 = vadd.s32 %v8040, 3
    %v8045 = vand.u32 %v8044, 3
    %vm8046 = vcmp.lt.s32.totalorder %v8045, 2
    %vm8047 = vcmp.eq.s32.totalorder %v8045, 0
    %v8048 = vxor.u32 %v8042, 2147483648
    %v8049 = vsel %vm8047, %v8041, %v8048
    %vm8050 = vcmp.eq.s32.totalorder %v8045, 2
    %v8051 = vxor.u32 %v8041, 2147483648
    %v8052 = vsel %vm8050, %v8051, %v8042
    %v8053 = vsel %vm8046, %v8049, %v8052
    %v8054 = vsel %vm8043, nan, %v8053
    %v8055 = vand.u32 2147483647, %v7647
    %vm8056 = vcmp.le.f32.partialorder %v8055, 0.7853982
    %vm8057 = vcmp.lt.s32.totalorder %v7647, 0
    %v8058 = vand.u32 %v7647, 2139095040
    %v8059 = vshrl.u32 %v8058, 23
    %v8060 = vsub.s32 %v8059, 127
    %v8061 = vand.u32 2147483647, %v7647
    %v8062 = vand.u32 %v8061, 8388607
    %v8063 = vor.u32 %v8062, 8388608
    %v8064 = vsub.s32 0, %v8063
    %v8065 = vadd.s32 %v8060, 1
    %vm8066 = vcmp.gt.s32.totalorder %v8065, 0
    %v8067 = vsel %vm8066, %v8065, 0
    %v8068 = vshrl.u32 %v8067, 5
    %v8069 = vand.u32 %v8067, 31
    %v8070 = vsub.s32 32, %v8069
    %v8071 = vshrl.u32 683565275, %v8070
    %v8072 = vshll.u32 683565275, %v8069
    %v8073 = vshrl.u32 2475754826, %v8070
    %v8074 = vor.u32 %v8072, %v8073
    %v8075 = vshll.u32 2475754826, %v8069
    %v8076 = vshrl.u32 2131351028, %v8070
    %v8077 = vor.u32 %v8075, %v8076
    %v8078 = vshll.u32 2131351028, %v8069
    %v8079 = vshrl.u32 2102212464, %v8070
    %v8080 = vor.u32 %v8078, %v8079
    %v8081 = vshll.u32 2102212464, %v8069
    %v8082 = vshrl.u32 920167782, %v8070
    %v8083 = vor.u32 %v8081, %v8082
    %v8084 = vshll.u32 920167782, %v8069
    %v8085 = vshrl.u32 1326507024, %v8070
    %v8086 = vor.u32 %v8084, %v8085
    %vm8087 = vcmp.lt.s32.totalorder %v8068, 1
    %vm8088 = vcmp.lt.s32.totalorder %v8068, 2
    %vm8089 = vcmp.lt.s32.totalorder %v8068, 3
    %vm8090 = vcmp.lt.s32.totalorder %v8068, 4
    %v8091 = vsel %vm8087, %v8071, %v8074
    %v8092 = vsel %vm8090, %v8080, 2102212464
    %v8093 = vsel %vm8089, %v8077, %v8092
    %v8094 = vsel %vm8088, %v8091, %v8093
    %v8095 = vsel %vm8087, %v8074, %v8077
    %v8096 = vsel %vm8090, %v8083, 920167782
    %v8097 = vsel %vm8089, %v8080, %v8096
    %v8098 = vsel %vm8088, %v8095, %v8097
    %v8099 = vsel %vm8087, %v8077, %v8080
    %v8100 = vsel %vm8090, %v8086, 1326507024
    %v8101 = vsel %vm8089, %v8083, %v8100
    %v8102 = vsel %vm8088, %v8099, %v8101
    %v8103 = vshll.u32 %v8063, 8
    %v8104 = vmul.u32.u64.compose %v8103, %v8102
    %v8105 = vextract.low.u32 %v8104
    %v8106 = vextract.high.u32 %v8104
    %v8107 = vmul.u32.u64.compose %v8103, %v8098
    %v8108 = vextract.low.u32 %v8107
    %v8109 = vextract.high.u32 %v8107
    %v8110 = vmul.u32 %v8103, %v8094
    %v8111 = vadd.s32 %v8106, %v8108
    %vm8112 = vc.u32 %v8106, %v8108
    %v8113 = vadd.s32 %v8109, 1
    %v8114 = vsel %vm8112, %v8113, %v8109
    %v8115 = vadd.s32 %v8110, %v8114
    %v8116 = vadd.s32 %v8115, 536870912
    %v8117 = vshrl.u32 %v8116, 30
    %v8118 = vshll.u32 %v8117, 30
    %v8119 = vsub.s32 %v8115, %v8118
    %vm8120 = vcmp.lt.s32.totalorder %v8119, 0
    %v8121 = vsub.s32 0, %v8119
    %v8122 = vsel %vm8120, %v8121, %v8119
    %v8123 = vclz %v8122
    %v8124 = vsub.s32 %v8123, 2
    %vm8125 = vcmp.gt.s32.totalorder 0, %v8124
    %v8126 = vsel %vm8125, 0, %v8124
    %v8127 = vsub.s32 32, %v8126
    %v8128 = vshll.u32 %v8119, %v8126
    %v8129 = vshrl.u32 %v8111, %v8127
    %v8130 = vor.u32 %v8128, %v8129
    %v8131 = vsub.s32 4294967266, %v8126
    %v8132 = vadd.s32 %v8131, 127
    %v8133 = vshll.u32 %v8132, 23
    %v8134 = vor.u32 4788187, %v8133
    %v8135 = vand.u32 2147483647, %v8134
    %v8137 = vcvt.s32.f32 %v8130
    %v8138 = vmul.f32 %v8137, %v8135
    %v8139 = vxor.u32 %v8138, 2147483648
    %v8140 = vsel %vm8057, %v8139, %v8138
    %v8141 = vsub.s32 4, %v8117
    %v8142 = vsel %vm8057, %v8141, %v8117
    %v8143 = vsel %vm8056, %v7647, %v8140
    %v8144 = vsel %vm8056, 0, %v8142
    %v8145 = vcosq.f32.pop %v8143
    %v8146 = vsinq.f32.pop %v8143
    %vm8147 = vweird.f32 %v7647
    %v8148 = vadd.s32 %v8144, 3
    %v8149 = vand.u32 %v8148, 3
    %vm8150 = vcmp.lt.s32.totalorder %v8149, 2
    %vm8151 = vcmp.eq.s32.totalorder %v8149, 0
    %v8152 = vxor.u32 %v8146, 2147483648
    %v8153 = vsel %vm8151, %v8145, %v8152
    %vm8154 = vcmp.eq.s32.totalorder %v8149, 2
    %v8155 = vxor.u32 %v8145, 2147483648
    %v8156 = vsel %vm8154, %v8155, %v8146
    %v8157 = vsel %vm8150, %v8153, %v8156
    %v8158 = vsel %vm8147, nan, %v8157
    %v8159 = vand.u32 2147483647, %v7649
    %vm8160 = vcmp.le.f32.partialorder %v8159, 0.7853982
    %vm8161 = vcmp.lt.s32.totalorder %v7649, 0
    %v8162 = vand.u32 %v7649, 2139095040
    %v8163 = vshrl.u32 %v8162, 23
    %v8164 = vsub.s32 %v8163, 127
    %v8165 = vand.u32 2147483647, %v7649
    %v8166 = vand.u32 %v8165, 8388607
    %v8167 = vor.u32 %v8166, 8388608
    %v8168 = vsub.s32 0, %v8167
    %v8169 = vadd.s32 %v8164, 1
    %vm8170 = vcmp.gt.s32.totalorder %v8169, 0
    %v8171 = vsel %vm8170, %v8169, 0
    %v8172 = vshrl.u32 %v8171, 5
    %v8173 = vand.u32 %v8171, 31
    %v8174 = vsub.s32 32, %v8173
    %v8175 = vshrl.u32 683565275, %v8174
    %v8176 = vshll.u32 683565275, %v8173
    %v8177 = vshrl.u32 2475754826, %v8174
    %v8178 = vor.u32 %v8176, %v8177
    %v8179 = vshll.u32 2475754826, %v8173
    %v8180 = vshrl.u32 2131351028, %v8174
    %v8181 = vor.u32 %v8179, %v8180
    %v8182 = vshll.u32 2131351028, %v8173
    %v8183 = vshrl.u32 2102212464, %v8174
    %v8184 = vor.u32 %v8182, %v8183
    %v8185 = vshll.u32 2102212464, %v8173
    %v8186 = vshrl.u32 920167782, %v8174
    %v8187 = vor.u32 %v8185, %v8186
    %v8188 = vshll.u32 920167782, %v8173
    %v8189 = vshrl.u32 1326507024, %v8174
    %v8190 = vor.u32 %v8188, %v8189
    %vm8191 = vcmp.lt.s32.totalorder %v8172, 1
    %vm8192 = vcmp.lt.s32.totalorder %v8172, 2
    %vm8193 = vcmp.lt.s32.totalorder %v8172, 3
    %vm8194 = vcmp.lt.s32.totalorder %v8172, 4
    %v8195 = vsel %vm8191, %v8175, %v8178
    %v8196 = vsel %vm8194, %v8184, 2102212464
    %v8197 = vsel %vm8193, %v8181, %v8196
    %v8198 = vsel %vm8192, %v8195, %v8197
    %v8199 = vsel %vm8191, %v8178, %v8181
    %v8200 = vsel %vm8194, %v8187, 920167782
    %v8201 = vsel %vm8193, %v8184, %v8200
    %v8202 = vsel %vm8192, %v8199, %v8201
    %v8203 = vsel %vm8191, %v8181, %v8184
    %v8204 = vsel %vm8194, %v8190, 1326507024
    %v8205 = vsel %vm8193, %v8187, %v8204
    %v8206 = vsel %vm8192, %v8203, %v8205
    %v8207 = vshll.u32 %v8167, 8
    %v8208 = vmul.u32.u64.compose %v8207, %v8206
    %v8209 = vextract.low.u32 %v8208
    %v8210 = vextract.high.u32 %v8208
    %v8211 = vmul.u32.u64.compose %v8207, %v8202
    %v8212 = vextract.low.u32 %v8211
    %v8213 = vextract.high.u32 %v8211
    %v8214 = vmul.u32 %v8207, %v8198
    %v8215 = vadd.s32 %v8210, %v8212
    %vm8216 = vc.u32 %v8210, %v8212
    %v8217 = vadd.s32 %v8213, 1
    %v8218 = vsel %vm8216, %v8217, %v8213
    %v8219 = vadd.s32 %v8214, %v8218
    %v8220 = vadd.s32 %v8219, 536870912
    %v8221 = vshrl.u32 %v8220, 30
    %v8222 = vshll.u32 %v8221, 30
    %v8223 = vsub.s32 %v8219, %v8222
    %vm8224 = vcmp.lt.s32.totalorder %v8223, 0
    %v8225 = vsub.s32 0, %v8223
    %v8226 = vsel %vm8224, %v8225, %v8223
    %v8227 = vclz %v8226
    %v8228 = vsub.s32 %v8227, 2
    %vm8229 = vcmp.gt.s32.totalorder 0, %v8228
    %v8230 = vsel %vm8229, 0, %v8228
    %v8231 = vsub.s32 32, %v8230
    %v8232 = vshll.u32 %v8223, %v8230
    %v8233 = vshrl.u32 %v8215, %v8231
    %v8234 = vor.u32 %v8232, %v8233
    %v8235 = vsub.s32 4294967266, %v8230
    %v8236 = vadd.s32 %v8235, 127
    %v8237 = vshll.u32 %v8236, 23
    %v8238 = vor.u32 4788187, %v8237
    %v8239 = vand.u32 2147483647, %v8238
    %v8241 = vcvt.s32.f32 %v8234
    %v8242 = vmul.f32 %v8241, %v8239
    %v8243 = vxor.u32 %v8242, 2147483648
    %v8244 = vsel %vm8161, %v8243, %v8242
    %v8245 = vsub.s32 4, %v8221
    %v8246 = vsel %vm8161, %v8245, %v8221
    %v8247 = vsel %vm8160, %v7649, %v8244
    %v8248 = vsel %vm8160, 0, %v8246
    %v8249 = vcosq.f32.pop %v8247
    %v8250 = vsinq.f32.pop %v8247
    %vm8251 = vweird.f32 %v7649
    %v8252 = vadd.s32 %v8248, 3
    %v8253 = vand.u32 %v8252, 3
    %vm8254 = vcmp.lt.s32.totalorder %v8253, 2
    %vm8255 = vcmp.eq.s32.totalorder %v8253, 0
    %v8256 = vxor.u32 %v8250, 2147483648
    %v8257 = vsel %vm8255, %v8249, %v8256
    %vm8258 = vcmp.eq.s32.totalorder %v8253, 2
    %v8259 = vxor.u32 %v8249, 2147483648
    %v8260 = vsel %vm8258, %v8259, %v8250
    %v8261 = vsel %vm8254, %v8257, %v8260
    %v8262 = vsel %vm8251, nan, %v8261
    %v8263 = vand.u32 2147483647, %v7736
    %vm8264 = vcmp.le.f32.partialorder %v8263, 0.7853982
    %vm8265 = vcmp.lt.s32.totalorder %v7736, 0
    %v8266 = vand.u32 %v7736, 2139095040
    %v8267 = vshrl.u32 %v8266, 23
    %v8268 = vsub.s32 %v8267, 127
    %v8269 = vand.u32 2147483647, %v7736
    %v8270 = vand.u32 %v8269, 8388607
    %v8271 = vor.u32 %v8270, 8388608
    %v8272 = vsub.s32 0, %v8271
    %v8273 = vadd.s32 %v8268, 1
    %vm8274 = vcmp.gt.s32.totalorder %v8273, 0
    %v8275 = vsel %vm8274, %v8273, 0
    %v8276 = vshrl.u32 %v8275, 5
    %v8277 = vand.u32 %v8275, 31
    %v8278 = vsub.s32 32, %v8277
    %v8279 = vshrl.u32 683565275, %v8278
    %v8280 = vshll.u32 683565275, %v8277
    %v8281 = vshrl.u32 2475754826, %v8278
    %v8282 = vor.u32 %v8280, %v8281
    %v8283 = vshll.u32 2475754826, %v8277
    %v8284 = vshrl.u32 2131351028, %v8278
    %v8285 = vor.u32 %v8283, %v8284
    %v8286 = vshll.u32 2131351028, %v8277
    %v8287 = vshrl.u32 2102212464, %v8278
    %v8288 = vor.u32 %v8286, %v8287
    %v8289 = vshll.u32 2102212464, %v8277
    %v8290 = vshrl.u32 920167782, %v8278
    %v8291 = vor.u32 %v8289, %v8290
    %v8292 = vshll.u32 920167782, %v8277
    %v8293 = vshrl.u32 1326507024, %v8278
    %v8294 = vor.u32 %v8292, %v8293
    %vm8295 = vcmp.lt.s32.totalorder %v8276, 1
    %vm8296 = vcmp.lt.s32.totalorder %v8276, 2
    %vm8297 = vcmp.lt.s32.totalorder %v8276, 3
    %vm8298 = vcmp.lt.s32.totalorder %v8276, 4
    %v8299 = vsel %vm8295, %v8279, %v8282
    %v8300 = vsel %vm8298, %v8288, 2102212464
    %v8301 = vsel %vm8297, %v8285, %v8300
    %v8302 = vsel %vm8296, %v8299, %v8301
    %v8303 = vsel %vm8295, %v8282, %v8285
    %v8304 = vsel %vm8298, %v8291, 920167782
    %v8305 = vsel %vm8297, %v8288, %v8304
    %v8306 = vsel %vm8296, %v8303, %v8305
    %v8307 = vsel %vm8295, %v8285, %v8288
    %v8308 = vsel %vm8298, %v8294, 1326507024
    %v8309 = vsel %vm8297, %v8291, %v8308
    %v8310 = vsel %vm8296, %v8307, %v8309
    %v8311 = vshll.u32 %v8271, 8
    %v8312 = vmul.u32.u64.compose %v8311, %v8310
    %v8313 = vextract.low.u32 %v8312
    %v8314 = vextract.high.u32 %v8312
    %v8315 = vmul.u32.u64.compose %v8311, %v8306
    %v8316 = vextract.low.u32 %v8315
    %v8317 = vextract.high.u32 %v8315
    %v8318 = vmul.u32 %v8311, %v8302
    %v8319 = vadd.s32 %v8314, %v8316
    %vm8320 = vc.u32 %v8314, %v8316
    %v8321 = vadd.s32 %v8317, 1
    %v8322 = vsel %vm8320, %v8321, %v8317
    %v8323 = vadd.s32 %v8318, %v8322
    %v8324 = vadd.s32 %v8323, 536870912
    %v8325 = vshrl.u32 %v8324, 30
    %v8326 = vshll.u32 %v8325, 30
    %v8327 = vsub.s32 %v8323, %v8326
    %vm8328 = vcmp.lt.s32.totalorder %v8327, 0
    %v8329 = vsub.s32 0, %v8327
    %v8330 = vsel %vm8328, %v8329, %v8327
    %v8331 = vclz %v8330
    %v8332 = vsub.s32 %v8331, 2
    %vm8333 = vcmp.gt.s32.totalorder 0, %v8332
    %v8334 = vsel %vm8333, 0, %v8332
    %v8335 = vsub.s32 32, %v8334
    %v8336 = vshll.u32 %v8327, %v8334
    %v8337 = vshrl.u32 %v8319, %v8335
    %v8338 = vor.u32 %v8336, %v8337
    %v8339 = vsub.s32 4294967266, %v8334
    %v8340 = vadd.s32 %v8339, 127
    %v8341 = vshll.u32 %v8340, 23
    %v8342 = vor.u32 4788187, %v8341
    %v8343 = vand.u32 2147483647, %v8342
    %v8345 = vcvt.s32.f32 %v8338
    %v8346 = vmul.f32 %v8345, %v8343
    %v8347 = vxor.u32 %v8346, 2147483648
    %v8348 = vsel %vm8265, %v8347, %v8346
    %v8349 = vsub.s32 4, %v8325
    %v8350 = vsel %vm8265, %v8349, %v8325
    %v8351 = vsel %vm8264, %v7736, %v8348
    %v8352 = vsel %vm8264, 0, %v8350
    %v8353 = vcosq.f32.pop %v8351
    %v8354 = vsinq.f32.pop %v8351
    %vm8355 = vweird.f32 %v7736
    %v8356 = vadd.s32 %v8352, 3
    %v8357 = vand.u32 %v8356, 3
    %vm8358 = vcmp.lt.s32.totalorder %v8357, 2
    %vm8359 = vcmp.eq.s32.totalorder %v8357, 0
    %v8360 = vxor.u32 %v8354, 2147483648
    %v8361 = vsel %vm8359, %v8353, %v8360
    %vm8362 = vcmp.eq.s32.totalorder %v8357, 2
    %v8363 = vxor.u32 %v8353, 2147483648
    %v8364 = vsel %vm8362, %v8363, %v8354
    %v8365 = vsel %vm8358, %v8361, %v8364
    %v8366 = vsel %vm8355, nan, %v8365
    %v8367 = vand.u32 2147483647, %v7738
    %vm8368 = vcmp.le.f32.partialorder %v8367, 0.7853982
    %vm8369 = vcmp.lt.s32.totalorder %v7738, 0
    %v8370 = vand.u32 %v7738, 2139095040
    %v8371 = vshrl.u32 %v8370, 23
    %v8372 = vsub.s32 %v8371, 127
    %v8373 = vand.u32 2147483647, %v7738
    %v8374 = vand.u32 %v8373, 8388607
    %v8375 = vor.u32 %v8374, 8388608
    %v8376 = vsub.s32 0, %v8375
    %v8377 = vadd.s32 %v8372, 1
    %vm8378 = vcmp.gt.s32.totalorder %v8377, 0
    %v8379 = vsel %vm8378, %v8377, 0
    %v8380 = vshrl.u32 %v8379, 5
    %v8381 = vand.u32 %v8379, 31
    %v8382 = vsub.s32 32, %v8381
    %v8383 = vshrl.u32 683565275, %v8382
    %v8384 = vshll.u32 683565275, %v8381
    %v8385 = vshrl.u32 2475754826, %v8382
    %v8386 = vor.u32 %v8384, %v8385
    %v8387 = vshll.u32 2475754826, %v8381
    %v8388 = vshrl.u32 2131351028, %v8382
    %v8389 = vor.u32 %v8387, %v8388
    %v8390 = vshll.u32 2131351028, %v8381
    %v8391 = vshrl.u32 2102212464, %v8382
    %v8392 = vor.u32 %v8390, %v8391
    %v8393 = vshll.u32 2102212464, %v8381
    %v8394 = vshrl.u32 920167782, %v8382
    %v8395 = vor.u32 %v8393, %v8394
    %v8396 = vshll.u32 920167782, %v8381
    %v8397 = vshrl.u32 1326507024, %v8382
    %v8398 = vor.u32 %v8396, %v8397
    %vm8399 = vcmp.lt.s32.totalorder %v8380, 1
    %vm8400 = vcmp.lt.s32.totalorder %v8380, 2
    %vm8401 = vcmp.lt.s32.totalorder %v8380, 3
    %vm8402 = vcmp.lt.s32.totalorder %v8380, 4
    %v8403 = vsel %vm8399, %v8383, %v8386
    %v8404 = vsel %vm8402, %v8392, 2102212464
    %v8405 = vsel %vm8401, %v8389, %v8404
    %v8406 = vsel %vm8400, %v8403, %v8405
    %v8407 = vsel %vm8399, %v8386, %v8389
    %v8408 = vsel %vm8402, %v8395, 920167782
    %v8409 = vsel %vm8401, %v8392, %v8408
    %v8410 = vsel %vm8400, %v8407, %v8409
    %v8411 = vsel %vm8399, %v8389, %v8392
    %v8412 = vsel %vm8402, %v8398, 1326507024
    %v8413 = vsel %vm8401, %v8395, %v8412
    %v8414 = vsel %vm8400, %v8411, %v8413
    %v8415 = vshll.u32 %v8375, 8
    %v8416 = vmul.u32.u64.compose %v8415, %v8414
    %v8417 = vextract.low.u32 %v8416
    %v8418 = vextract.high.u32 %v8416
    %v8419 = vmul.u32.u64.compose %v8415, %v8410
    %v8420 = vextract.low.u32 %v8419
    %v8421 = vextract.high.u32 %v8419
    %v8422 = vmul.u32 %v8415, %v8406
    %v8423 = vadd.s32 %v8418, %v8420
    %vm8424 = vc.u32 %v8418, %v8420
    %v8425 = vadd.s32 %v8421, 1
    %v8426 = vsel %vm8424, %v8425, %v8421
    %v8427 = vadd.s32 %v8422, %v8426
    %v8428 = vadd.s32 %v8427, 536870912
    %v8429 = vshrl.u32 %v8428, 30
    %v8430 = vshll.u32 %v8429, 30
    %v8431 = vsub.s32 %v8427, %v8430
    %vm8432 = vcmp.lt.s32.totalorder %v8431, 0
    %v8433 = vsub.s32 0, %v8431
    %v8434 = vsel %vm8432, %v8433, %v8431
    %v8435 = vclz %v8434
    %v8436 = vsub.s32 %v8435, 2
    %vm8437 = vcmp.gt.s32.totalorder 0, %v8436
    %v8438 = vsel %vm8437, 0, %v8436
    %v8439 = vsub.s32 32, %v8438
    %v8440 = vshll.u32 %v8431, %v8438
    %v8441 = vshrl.u32 %v8423, %v8439
    %v8442 = vor.u32 %v8440, %v8441
    %v8443 = vsub.s32 4294967266, %v8438
    %v8444 = vadd.s32 %v8443, 127
    %v8445 = vshll.u32 %v8444, 23
    %v8446 = vor.u32 4788187, %v8445
    %v8447 = vand.u32 2147483647, %v8446
    %v8449 = vcvt.s32.f32 %v8442
    %v8450 = vmul.f32 %v8449, %v8447
    %v8451 = vxor.u32 %v8450, 2147483648
    %v8452 = vsel %vm8369, %v8451, %v8450
    %v8453 = vsub.s32 4, %v8429
    %v8454 = vsel %vm8369, %v8453, %v8429
    %v8455 = vsel %vm8368, %v7738, %v8452
    %v8456 = vsel %vm8368, 0, %v8454
    %v8457 = vcosq.f32.pop %v8455
    %v8458 = vsinq.f32.pop %v8455
    %vm8459 = vweird.f32 %v7738
    %v8460 = vadd.s32 %v8456, 3
    %v8461 = vand.u32 %v8460, 3
    %vm8462 = vcmp.lt.s32.totalorder %v8461, 2
    %vm8463 = vcmp.eq.s32.totalorder %v8461, 0
    %v8464 = vxor.u32 %v8458, 2147483648
    %v8465 = vsel %vm8463, %v8457, %v8464
    %vm8466 = vcmp.eq.s32.totalorder %v8461, 2
    %v8467 = vxor.u32 %v8457, 2147483648
    %v8468 = vsel %vm8466, %v8467, %v8458
    %v8469 = vsel %vm8462, %v8465, %v8468
    %v8470 = vsel %vm8459, nan, %v8469
    %v8471 = vand.u32 2147483647, %v7825
    %vm8472 = vcmp.le.f32.partialorder %v8471, 0.7853982
    %vm8473 = vcmp.lt.s32.totalorder %v7825, 0
    %v8474 = vand.u32 %v7825, 2139095040
    %v8475 = vshrl.u32 %v8474, 23
    %v8476 = vsub.s32 %v8475, 127
    %v8477 = vand.u32 2147483647, %v7825
    %v8478 = vand.u32 %v8477, 8388607
    %v8479 = vor.u32 %v8478, 8388608
    %v8480 = vsub.s32 0, %v8479
    %v8481 = vadd.s32 %v8476, 1
    %vm8482 = vcmp.gt.s32.totalorder %v8481, 0
    %v8483 = vsel %vm8482, %v8481, 0
    %v8484 = vshrl.u32 %v8483, 5
    %v8485 = vand.u32 %v8483, 31
    %v8486 = vsub.s32 32, %v8485
    %v8487 = vshrl.u32 683565275, %v8486
    %v8488 = vshll.u32 683565275, %v8485
    %v8489 = vshrl.u32 2475754826, %v8486
    %v8490 = vor.u32 %v8488, %v8489
    %v8491 = vshll.u32 2475754826, %v8485
    %v8492 = vshrl.u32 2131351028, %v8486
    %v8493 = vor.u32 %v8491, %v8492
    %v8494 = vshll.u32 2131351028, %v8485
    %v8495 = vshrl.u32 2102212464, %v8486
    %v8496 = vor.u32 %v8494, %v8495
    %v8497 = vshll.u32 2102212464, %v8485
    %v8498 = vshrl.u32 920167782, %v8486
    %v8499 = vor.u32 %v8497, %v8498
    %v8500 = vshll.u32 920167782, %v8485
    %v8501 = vshrl.u32 1326507024, %v8486
    %v8502 = vor.u32 %v8500, %v8501
    %vm8503 = vcmp.lt.s32.totalorder %v8484, 1
    %vm8504 = vcmp.lt.s32.totalorder %v8484, 2
    %vm8505 = vcmp.lt.s32.totalorder %v8484, 3
    %vm8506 = vcmp.lt.s32.totalorder %v8484, 4
    %v8507 = vsel %vm8503, %v8487, %v8490
    %v8508 = vsel %vm8506, %v8496, 2102212464
    %v8509 = vsel %vm8505, %v8493, %v8508
    %v8510 = vsel %vm8504, %v8507, %v8509
    %v8511 = vsel %vm8503, %v8490, %v8493
    %v8512 = vsel %vm8506, %v8499, 920167782
    %v8513 = vsel %vm8505, %v8496, %v8512
    %v8514 = vsel %vm8504, %v8511, %v8513
    %v8515 = vsel %vm8503, %v8493, %v8496
    %v8516 = vsel %vm8506, %v8502, 1326507024
    %v8517 = vsel %vm8505, %v8499, %v8516
    %v8518 = vsel %vm8504, %v8515, %v8517
    %v8519 = vshll.u32 %v8479, 8
    %v8520 = vmul.u32.u64.compose %v8519, %v8518
    %v8521 = vextract.low.u32 %v8520
    %v8522 = vextract.high.u32 %v8520
    %v8523 = vmul.u32.u64.compose %v8519, %v8514
    %v8524 = vextract.low.u32 %v8523
    %v8525 = vextract.high.u32 %v8523
    %v8526 = vmul.u32 %v8519, %v8510
    %v8527 = vadd.s32 %v8522, %v8524
    %vm8528 = vc.u32 %v8522, %v8524
    %v8529 = vadd.s32 %v8525, 1
    %v8530 = vsel %vm8528, %v8529, %v8525
    %v8531 = vadd.s32 %v8526, %v8530
    %v8532 = vadd.s32 %v8531, 536870912
    %v8533 = vshrl.u32 %v8532, 30
    %v8534 = vshll.u32 %v8533, 30
    %v8535 = vsub.s32 %v8531, %v8534
    %vm8536 = vcmp.lt.s32.totalorder %v8535, 0
    %v8537 = vsub.s32 0, %v8535
    %v8538 = vsel %vm8536, %v8537, %v8535
    %v8539 = vclz %v8538
    %v8540 = vsub.s32 %v8539, 2
    %vm8541 = vcmp.gt.s32.totalorder 0, %v8540
    %v8542 = vsel %vm8541, 0, %v8540
    %v8543 = vsub.s32 32, %v8542
    %v8544 = vshll.u32 %v8535, %v8542
    %v8545 = vshrl.u32 %v8527, %v8543
    %v8546 = vor.u32 %v8544, %v8545
    %v8547 = vsub.s32 4294967266, %v8542
    %v8548 = vadd.s32 %v8547, 127
    %v8549 = vshll.u32 %v8548, 23
    %v8550 = vor.u32 4788187, %v8549
    %v8551 = vand.u32 2147483647, %v8550
    %v8553 = vcvt.s32.f32 %v8546
    %v8554 = vmul.f32 %v8553, %v8551
    %v8555 = vxor.u32 %v8554, 2147483648
    %v8556 = vsel %vm8473, %v8555, %v8554
    %v8557 = vsub.s32 4, %v8533
    %v8558 = vsel %vm8473, %v8557, %v8533
    %v8559 = vsel %vm8472, %v7825, %v8556
    %v8560 = vsel %vm8472, 0, %v8558
    %v8561 = vcosq.f32.pop %v8559
    %v8562 = vsinq.f32.pop %v8559
    %vm8563 = vweird.f32 %v7825
    %v8564 = vadd.s32 %v8560, 3
    %v8565 = vand.u32 %v8564, 3
    %vm8566 = vcmp.lt.s32.totalorder %v8565, 2
    %vm8567 = vcmp.eq.s32.totalorder %v8565, 0
    %v8568 = vxor.u32 %v8562, 2147483648
    %v8569 = vsel %vm8567, %v8561, %v8568
    %vm8570 = vcmp.eq.s32.totalorder %v8565, 2
    %v8571 = vxor.u32 %v8561, 2147483648
    %v8572 = vsel %vm8570, %v8571, %v8562
    %v8573 = vsel %vm8566, %v8569, %v8572
    %v8574 = vsel %vm8563, nan, %v8573
    %v8575 = vand.u32 2147483647, %v7827
    %vm8576 = vcmp.le.f32.partialorder %v8575, 0.7853982
    %vm8577 = vcmp.lt.s32.totalorder %v7827, 0
    %v8578 = vand.u32 %v7827, 2139095040
    %v8579 = vshrl.u32 %v8578, 23
    %v8580 = vsub.s32 %v8579, 127
    %v8581 = vand.u32 2147483647, %v7827
    %v8582 = vand.u32 %v8581, 8388607
    %v8583 = vor.u32 %v8582, 8388608
    %v8584 = vsub.s32 0, %v8583
    %v8585 = vadd.s32 %v8580, 1
    %vm8586 = vcmp.gt.s32.totalorder %v8585, 0
    %v8587 = vsel %vm8586, %v8585, 0
    %v8588 = vshrl.u32 %v8587, 5
    %v8589 = vand.u32 %v8587, 31
    %v8590 = vsub.s32 32, %v8589
    %v8591 = vshrl.u32 683565275, %v8590
    %v8592 = vshll.u32 683565275, %v8589
    %v8593 = vshrl.u32 2475754826, %v8590
    %v8594 = vor.u32 %v8592, %v8593
    %v8595 = vshll.u32 2475754826, %v8589
    %v8596 = vshrl.u32 2131351028, %v8590
    %v8597 = vor.u32 %v8595, %v8596
    %v8598 = vshll.u32 2131351028, %v8589
    %v8599 = vshrl.u32 2102212464, %v8590
    %v8600 = vor.u32 %v8598, %v8599
    %v8601 = vshll.u32 2102212464, %v8589
    %v8602 = vshrl.u32 920167782, %v8590
    %v8603 = vor.u32 %v8601, %v8602
    %v8604 = vshll.u32 920167782, %v8589
    %v8605 = vshrl.u32 1326507024, %v8590
    %v8606 = vor.u32 %v8604, %v8605
    %vm8607 = vcmp.lt.s32.totalorder %v8588, 1
    %vm8608 = vcmp.lt.s32.totalorder %v8588, 2
    %vm8609 = vcmp.lt.s32.totalorder %v8588, 3
    %vm8610 = vcmp.lt.s32.totalorder %v8588, 4
    %v8611 = vsel %vm8607, %v8591, %v8594
    %v8612 = vsel %vm8610, %v8600, 2102212464
    %v8613 = vsel %vm8609, %v8597, %v8612
    %v8614 = vsel %vm8608, %v8611, %v8613
    %v8615 = vsel %vm8607, %v8594, %v8597
    %v8616 = vsel %vm8610, %v8603, 920167782
    %v8617 = vsel %vm8609, %v8600, %v8616
    %v8618 = vsel %vm8608, %v8615, %v8617
    %v8619 = vsel %vm8607, %v8597, %v8600
    %v8620 = vsel %vm8610, %v8606, 1326507024
    %v8621 = vsel %vm8609, %v8603, %v8620
    %v8622 = vsel %vm8608, %v8619, %v8621
    %v8623 = vshll.u32 %v8583, 8
    %v8624 = vmul.u32.u64.compose %v8623, %v8622
    %v8625 = vextract.low.u32 %v8624
    %v8626 = vextract.high.u32 %v8624
    %v8627 = vmul.u32.u64.compose %v8623, %v8618
    %v8628 = vextract.low.u32 %v8627
    %v8629 = vextract.high.u32 %v8627
    %v8630 = vmul.u32 %v8623, %v8614
    %v8631 = vadd.s32 %v8626, %v8628
    %vm8632 = vc.u32 %v8626, %v8628
    %v8633 = vadd.s32 %v8629, 1
    %v8634 = vsel %vm8632, %v8633, %v8629
    %v8635 = vadd.s32 %v8630, %v8634
    %v8636 = vadd.s32 %v8635, 536870912
    %v8637 = vshrl.u32 %v8636, 30
    %v8638 = vshll.u32 %v8637, 30
    %v8639 = vsub.s32 %v8635, %v8638
    %vm8640 = vcmp.lt.s32.totalorder %v8639, 0
    %v8641 = vsub.s32 0, %v8639
    %v8642 = vsel %vm8640, %v8641, %v8639
    %v8643 = vclz %v8642
    %v8644 = vsub.s32 %v8643, 2
    %vm8645 = vcmp.gt.s32.totalorder 0, %v8644
    %v8646 = vsel %vm8645, 0, %v8644
    %v8647 = vsub.s32 32, %v8646
    %v8648 = vshll.u32 %v8639, %v8646
    %v8649 = vshrl.u32 %v8631, %v8647
    %v8650 = vor.u32 %v8648, %v8649
    %v8651 = vsub.s32 4294967266, %v8646
    %v8652 = vadd.s32 %v8651, 127
    %v8653 = vshll.u32 %v8652, 23
    %v8654 = vor.u32 4788187, %v8653
    %v8655 = vand.u32 2147483647, %v8654
    %v8657 = vcvt.s32.f32 %v8650
    %v8658 = vmul.f32 %v8657, %v8655
    %v8659 = vxor.u32 %v8658, 2147483648
    %v8660 = vsel %vm8577, %v8659, %v8658
    %v8661 = vsub.s32 4, %v8637
    %v8662 = vsel %vm8577, %v8661, %v8637
    %v8663 = vsel %vm8576, %v7827, %v8660
    %v8664 = vsel %vm8576, 0, %v8662
    %v8665 = vcosq.f32.pop %v8663
    %v8666 = vsinq.f32.pop %v8663
    %vm8667 = vweird.f32 %v7827
    %v8668 = vadd.s32 %v8664, 3
    %v8669 = vand.u32 %v8668, 3
    %vm8670 = vcmp.lt.s32.totalorder %v8669, 2
    %vm8671 = vcmp.eq.s32.totalorder %v8669, 0
    %v8672 = vxor.u32 %v8666, 2147483648
    %v8673 = vsel %vm8671, %v8665, %v8672
    %vm8674 = vcmp.eq.s32.totalorder %v8669, 2
    %v8675 = vxor.u32 %v8665, 2147483648
    %v8676 = vsel %vm8674, %v8675, %v8666
    %v8677 = vsel %vm8670, %v8673, %v8676
    %v8678 = vsel %vm8667, nan, %v8677
    %v8679 = vand.u32 2147483647, %v7564
    %vm8680 = vcmp.le.f32.partialorder %v8679, 0.7853982
    %vm8681 = vcmp.lt.s32.totalorder %v7564, 0
    %v8682 = vand.u32 %v7564, 2139095040
    %v8683 = vshrl.u32 %v8682, 23
    %v8684 = vsub.s32 %v8683, 127
    %v8685 = vand.u32 2147483647, %v7564
    %v8686 = vand.u32 %v8685, 8388607
    %v8687 = vor.u32 %v8686, 8388608
    %v8688 = vsub.s32 0, %v8687
    %v8689 = vadd.s32 %v8684, 1
    %vm8690 = vcmp.gt.s32.totalorder %v8689, 0
    %v8691 = vsel %vm8690, %v8689, 0
    %v8692 = vshrl.u32 %v8691, 5
    %v8693 = vand.u32 %v8691, 31
    %v8694 = vsub.s32 32, %v8693
    %v8695 = vshrl.u32 683565275, %v8694
    %v8696 = vshll.u32 683565275, %v8693
    %v8697 = vshrl.u32 2475754826, %v8694
    %v8698 = vor.u32 %v8696, %v8697
    %v8699 = vshll.u32 2475754826, %v8693
    %v8700 = vshrl.u32 2131351028, %v8694
    %v8701 = vor.u32 %v8699, %v8700
    %v8702 = vshll.u32 2131351028, %v8693
    %v8703 = vshrl.u32 2102212464, %v8694
    %v8704 = vor.u32 %v8702, %v8703
    %v8705 = vshll.u32 2102212464, %v8693
    %v8706 = vshrl.u32 920167782, %v8694
    %v8707 = vor.u32 %v8705, %v8706
    %v8708 = vshll.u32 920167782, %v8693
    %v8709 = vshrl.u32 1326507024, %v8694
    %v8710 = vor.u32 %v8708, %v8709
    %vm8711 = vcmp.lt.s32.totalorder %v8692, 1
    %vm8712 = vcmp.lt.s32.totalorder %v8692, 2
    %vm8713 = vcmp.lt.s32.totalorder %v8692, 3
    %vm8714 = vcmp.lt.s32.totalorder %v8692, 4
    %v8715 = vsel %vm8711, %v8695, %v8698
    %v8716 = vsel %vm8714, %v8704, 2102212464
    %v8717 = vsel %vm8713, %v8701, %v8716
    %v8718 = vsel %vm8712, %v8715, %v8717
    %v8719 = vsel %vm8711, %v8698, %v8701
    %v8720 = vsel %vm8714, %v8707, 920167782
    %v8721 = vsel %vm8713, %v8704, %v8720
    %v8722 = vsel %vm8712, %v8719, %v8721
    %v8723 = vsel %vm8711, %v8701, %v8704
    %v8724 = vsel %vm8714, %v8710, 1326507024
    %v8725 = vsel %vm8713, %v8707, %v8724
    %v8726 = vsel %vm8712, %v8723, %v8725
    %v8727 = vshll.u32 %v8687, 8
    %v8728 = vmul.u32.u64.compose %v8727, %v8726
    %v8729 = vextract.low.u32 %v8728
    %v8730 = vextract.high.u32 %v8728
    %v8731 = vmul.u32.u64.compose %v8727, %v8722
    %v8732 = vextract.low.u32 %v8731
    %v8733 = vextract.high.u32 %v8731
    %v8734 = vmul.u32 %v8727, %v8718
    %v8735 = vadd.s32 %v8730, %v8732
    %vm8736 = vc.u32 %v8730, %v8732
    %v8737 = vadd.s32 %v8733, 1
    %v8738 = vsel %vm8736, %v8737, %v8733
    %v8739 = vadd.s32 %v8734, %v8738
    %v8740 = vadd.s32 %v8739, 536870912
    %v8741 = vshrl.u32 %v8740, 30
    %v8742 = vshll.u32 %v8741, 30
    %v8743 = vsub.s32 %v8739, %v8742
    %vm8744 = vcmp.lt.s32.totalorder %v8743, 0
    %v8745 = vsub.s32 0, %v8743
    %v8746 = vsel %vm8744, %v8745, %v8743
    %v8747 = vclz %v8746
    %v8748 = vsub.s32 %v8747, 2
    %vm8749 = vcmp.gt.s32.totalorder 0, %v8748
    %v8750 = vsel %vm8749, 0, %v8748
    %v8751 = vsub.s32 32, %v8750
    %v8752 = vshll.u32 %v8743, %v8750
    %v8753 = vshrl.u32 %v8735, %v8751
    %v8754 = vor.u32 %v8752, %v8753
    %v8755 = vsub.s32 4294967266, %v8750
    %v8756 = vadd.s32 %v8755, 127
    %v8757 = vshll.u32 %v8756, 23
    %v8758 = vor.u32 4788187, %v8757
    %v8759 = vand.u32 2147483647, %v8758
    %v8761 = vcvt.s32.f32 %v8754
    %v8762 = vmul.f32 %v8761, %v8759
    %v8763 = vxor.u32 %v8762, 2147483648
    %v8764 = vsel %vm8681, %v8763, %v8762
    %v8765 = vsub.s32 4, %v8741
    %v8766 = vsel %vm8681, %v8765, %v8741
    %v8767 = vsel %vm8680, %v7564, %v8764
    %v8768 = vsel %vm8680, 0, %v8766
    %v8769 = vcosq.f32.pop %v8767
    %v8770 = vsinq.f32.pop %v8767
    %vm8771 = vweird.f32 %v7564
    %v8772 = vadd.s32 %v8768, 3
    %v8773 = vand.u32 %v8772, 3
    %vm8774 = vcmp.lt.s32.totalorder %v8773, 2
    %vm8775 = vcmp.eq.s32.totalorder %v8773, 0
    %v8776 = vxor.u32 %v8770, 2147483648
    %v8777 = vsel %vm8775, %v8769, %v8776
    %vm8778 = vcmp.eq.s32.totalorder %v8773, 2
    %v8779 = vxor.u32 %v8769, 2147483648
    %v8780 = vsel %vm8778, %v8779, %v8770
    %v8781 = vsel %vm8774, %v8777, %v8780
    %v8782 = vsel %vm8771, nan, %v8781
    %v8783 = vand.u32 2147483647, %v7566
    %vm8784 = vcmp.le.f32.partialorder %v8783, 0.7853982
    %vm8785 = vcmp.lt.s32.totalorder %v7566, 0
    %v8786 = vand.u32 %v7566, 2139095040
    %v8787 = vshrl.u32 %v8786, 23
    %v8788 = vsub.s32 %v8787, 127
    %v8789 = vand.u32 2147483647, %v7566
    %v8790 = vand.u32 %v8789, 8388607
    %v8791 = vor.u32 %v8790, 8388608
    %v8792 = vsub.s32 0, %v8791
    %v8793 = vadd.s32 %v8788, 1
    %vm8794 = vcmp.gt.s32.totalorder %v8793, 0
    %v8795 = vsel %vm8794, %v8793, 0
    %v8796 = vshrl.u32 %v8795, 5
    %v8797 = vand.u32 %v8795, 31
    %v8798 = vsub.s32 32, %v8797
    %v8799 = vshrl.u32 683565275, %v8798
    %v8800 = vshll.u32 683565275, %v8797
    %v8801 = vshrl.u32 2475754826, %v8798
    %v8802 = vor.u32 %v8800, %v8801
    %v8803 = vshll.u32 2475754826, %v8797
    %v8804 = vshrl.u32 2131351028, %v8798
    %v8805 = vor.u32 %v8803, %v8804
    %v8806 = vshll.u32 2131351028, %v8797
    %v8807 = vshrl.u32 2102212464, %v8798
    %v8808 = vor.u32 %v8806, %v8807
    %v8809 = vshll.u32 2102212464, %v8797
    %v8810 = vshrl.u32 920167782, %v8798
    %v8811 = vor.u32 %v8809, %v8810
    %v8812 = vshll.u32 920167782, %v8797
    %v8813 = vshrl.u32 1326507024, %v8798
    %v8814 = vor.u32 %v8812, %v8813
    %vm8815 = vcmp.lt.s32.totalorder %v8796, 1
    %vm8816 = vcmp.lt.s32.totalorder %v8796, 2
    %vm8817 = vcmp.lt.s32.totalorder %v8796, 3
    %vm8818 = vcmp.lt.s32.totalorder %v8796, 4
    %v8819 = vsel %vm8815, %v8799, %v8802
    %v8820 = vsel %vm8818, %v8808, 2102212464
    %v8821 = vsel %vm8817, %v8805, %v8820
    %v8822 = vsel %vm8816, %v8819, %v8821
    %v8823 = vsel %vm8815, %v8802, %v8805
    %v8824 = vsel %vm8818, %v8811, 920167782
    %v8825 = vsel %vm8817, %v8808, %v8824
    %v8826 = vsel %vm8816, %v8823, %v8825
    %v8827 = vsel %vm8815, %v8805, %v8808
    %v8828 = vsel %vm8818, %v8814, 1326507024
    %v8829 = vsel %vm8817, %v8811, %v8828
    %v8830 = vsel %vm8816, %v8827, %v8829
    %v8831 = vshll.u32 %v8791, 8
    %v8832 = vmul.u32.u64.compose %v8831, %v8830
    %v8833 = vextract.low.u32 %v8832
    %v8834 = vextract.high.u32 %v8832
    %v8835 = vmul.u32.u64.compose %v8831, %v8826
    %v8836 = vextract.low.u32 %v8835
    %v8837 = vextract.high.u32 %v8835
    %v8838 = vmul.u32 %v8831, %v8822
    %v8839 = vadd.s32 %v8834, %v8836
    %vm8840 = vc.u32 %v8834, %v8836
    %v8841 = vadd.s32 %v8837, 1
    %v8842 = vsel %vm8840, %v8841, %v8837
    %v8843 = vadd.s32 %v8838, %v8842
    %v8844 = vadd.s32 %v8843, 536870912
    %v8845 = vshrl.u32 %v8844, 30
    %v8846 = vshll.u32 %v8845, 30
    %v8847 = vsub.s32 %v8843, %v8846
    %vm8848 = vcmp.lt.s32.totalorder %v8847, 0
    %v8849 = vsub.s32 0, %v8847
    %v8850 = vsel %vm8848, %v8849, %v8847
    %v8851 = vclz %v8850
    %v8852 = vsub.s32 %v8851, 2
    %vm8853 = vcmp.gt.s32.totalorder 0, %v8852
    %v8854 = vsel %vm8853, 0, %v8852
    %v8855 = vsub.s32 32, %v8854
    %v8856 = vshll.u32 %v8847, %v8854
    %v8857 = vshrl.u32 %v8839, %v8855
    %v8858 = vor.u32 %v8856, %v8857
    %v8859 = vsub.s32 4294967266, %v8854
    %v8860 = vadd.s32 %v8859, 127
    %v8861 = vshll.u32 %v8860, 23
    %v8862 = vor.u32 4788187, %v8861
    %v8863 = vand.u32 2147483647, %v8862
    %v8865 = vcvt.s32.f32 %v8858
    %v8866 = vmul.f32 %v8865, %v8863
    %v8867 = vxor.u32 %v8866, 2147483648
    %v8868 = vsel %vm8785, %v8867, %v8866
    %v8869 = vsub.s32 4, %v8845
    %v8870 = vsel %vm8785, %v8869, %v8845
    %v8871 = vsel %vm8784, %v7566, %v8868
    %v8872 = vsel %vm8784, 0, %v8870
    %v8873 = vcosq.f32.pop %v8871
    %v8874 = vsinq.f32.pop %v8871
    %vm8875 = vweird.f32 %v7566
    %v8876 = vadd.s32 %v8872, 3
    %v8877 = vand.u32 %v8876, 3
    %vm8878 = vcmp.lt.s32.totalorder %v8877, 2
    %vm8879 = vcmp.eq.s32.totalorder %v8877, 0
    %v8880 = vxor.u32 %v8874, 2147483648
    %v8881 = vsel %vm8879, %v8873, %v8880
    %vm8882 = vcmp.eq.s32.totalorder %v8877, 2
    %v8883 = vxor.u32 %v8873, 2147483648
    %v8884 = vsel %vm8882, %v8883, %v8874
    %v8885 = vsel %vm8878, %v8881, %v8884
    %v8886 = vsel %vm8875, nan, %v8885
    %v8887 = vand.u32 2147483647, %v7653
    %vm8888 = vcmp.le.f32.partialorder %v8887, 0.7853982
    %vm8889 = vcmp.lt.s32.totalorder %v7653, 0
    %v8890 = vand.u32 %v7653, 2139095040
    %v8891 = vshrl.u32 %v8890, 23
    %v8892 = vsub.s32 %v8891, 127
    %v8893 = vand.u32 2147483647, %v7653
    %v8894 = vand.u32 %v8893, 8388607
    %v8895 = vor.u32 %v8894, 8388608
    %v8896 = vsub.s32 0, %v8895
    %v8897 = vadd.s32 %v8892, 1
    %vm8898 = vcmp.gt.s32.totalorder %v8897, 0
    %v8899 = vsel %vm8898, %v8897, 0
    %v8900 = vshrl.u32 %v8899, 5
    %v8901 = vand.u32 %v8899, 31
    %v8902 = vsub.s32 32, %v8901
    %v8903 = vshrl.u32 683565275, %v8902
    %v8904 = vshll.u32 683565275, %v8901
    %v8905 = vshrl.u32 2475754826, %v8902
    %v8906 = vor.u32 %v8904, %v8905
    %v8907 = vshll.u32 2475754826, %v8901
    %v8908 = vshrl.u32 2131351028, %v8902
    %v8909 = vor.u32 %v8907, %v8908
    %v8910 = vshll.u32 2131351028, %v8901
    %v8911 = vshrl.u32 2102212464, %v8902
    %v8912 = vor.u32 %v8910, %v8911
    %v8913 = vshll.u32 2102212464, %v8901
    %v8914 = vshrl.u32 920167782, %v8902
    %v8915 = vor.u32 %v8913, %v8914
    %v8916 = vshll.u32 920167782, %v8901
    %v8917 = vshrl.u32 1326507024, %v8902
    %v8918 = vor.u32 %v8916, %v8917
    %vm8919 = vcmp.lt.s32.totalorder %v8900, 1
    %vm8920 = vcmp.lt.s32.totalorder %v8900, 2
    %vm8921 = vcmp.lt.s32.totalorder %v8900, 3
    %vm8922 = vcmp.lt.s32.totalorder %v8900, 4
    %v8923 = vsel %vm8919, %v8903, %v8906
    %v8924 = vsel %vm8922, %v8912, 2102212464
    %v8925 = vsel %vm8921, %v8909, %v8924
    %v8926 = vsel %vm8920, %v8923, %v8925
    %v8927 = vsel %vm8919, %v8906, %v8909
    %v8928 = vsel %vm8922, %v8915, 920167782
    %v8929 = vsel %vm8921, %v8912, %v8928
    %v8930 = vsel %vm8920, %v8927, %v8929
    %v8931 = vsel %vm8919, %v8909, %v8912
    %v8932 = vsel %vm8922, %v8918, 1326507024
    %v8933 = vsel %vm8921, %v8915, %v8932
    %v8934 = vsel %vm8920, %v8931, %v8933
    %v8935 = vshll.u32 %v8895, 8
    %v8936 = vmul.u32.u64.compose %v8935, %v8934
    %v8937 = vextract.low.u32 %v8936
    %v8938 = vextract.high.u32 %v8936
    %v8939 = vmul.u32.u64.compose %v8935, %v8930
    %v8940 = vextract.low.u32 %v8939
    %v8941 = vextract.high.u32 %v8939
    %v8942 = vmul.u32 %v8935, %v8926
    %v8943 = vadd.s32 %v8938, %v8940
    %vm8944 = vc.u32 %v8938, %v8940
    %v8945 = vadd.s32 %v8941, 1
    %v8946 = vsel %vm8944, %v8945, %v8941
    %v8947 = vadd.s32 %v8942, %v8946
    %v8948 = vadd.s32 %v8947, 536870912
    %v8949 = vshrl.u32 %v8948, 30
    %v8950 = vshll.u32 %v8949, 30
    %v8951 = vsub.s32 %v8947, %v8950
    %vm8952 = vcmp.lt.s32.totalorder %v8951, 0
    %v8953 = vsub.s32 0, %v8951
    %v8954 = vsel %vm8952, %v8953, %v8951
    %v8955 = vclz %v8954
    %v8956 = vsub.s32 %v8955, 2
    %vm8957 = vcmp.gt.s32.totalorder 0, %v8956
    %v8958 = vsel %vm8957, 0, %v8956
    %v8959 = vsub.s32 32, %v8958
    %v8960 = vshll.u32 %v8951, %v8958
    %v8961 = vshrl.u32 %v8943, %v8959
    %v8962 = vor.u32 %v8960, %v8961
    %v8963 = vsub.s32 4294967266, %v8958
    %v8964 = vadd.s32 %v8963, 127
    %v8965 = vshll.u32 %v8964, 23
    %v8966 = vor.u32 4788187, %v8965
    %v8967 = vand.u32 2147483647, %v8966
    %v8969 = vcvt.s32.f32 %v8962
    %v8970 = vmul.f32 %v8969, %v8967
    %v8971 = vxor.u32 %v8970, 2147483648
    %v8972 = vsel %vm8889, %v8971, %v8970
    %v8973 = vsub.s32 4, %v8949
    %v8974 = vsel %vm8889, %v8973, %v8949
    %v8975 = vsel %vm8888, %v7653, %v8972
    %v8976 = vsel %vm8888, 0, %v8974
    %v8977 = vcosq.f32.pop %v8975
    %v8978 = vsinq.f32.pop %v8975
    %vm8979 = vweird.f32 %v7653
    %v8980 = vadd.s32 %v8976, 3
    %v8981 = vand.u32 %v8980, 3
    %vm8982 = vcmp.lt.s32.totalorder %v8981, 2
    %vm8983 = vcmp.eq.s32.totalorder %v8981, 0
    %v8984 = vxor.u32 %v8978, 2147483648
    %v8985 = vsel %vm8983, %v8977, %v8984
    %vm8986 = vcmp.eq.s32.totalorder %v8981, 2
    %v8987 = vxor.u32 %v8977, 2147483648
    %v8988 = vsel %vm8986, %v8987, %v8978
    %v8989 = vsel %vm8982, %v8985, %v8988
    %v8990 = vsel %vm8979, nan, %v8989
    %v8991 = vand.u32 2147483647, %v7655
    %vm8992 = vcmp.le.f32.partialorder %v8991, 0.7853982
    %vm8993 = vcmp.lt.s32.totalorder %v7655, 0
    %v8994 = vand.u32 %v7655, 2139095040
    %v8995 = vshrl.u32 %v8994, 23
    %v8996 = vsub.s32 %v8995, 127
    %v8997 = vand.u32 2147483647, %v7655
    %v8998 = vand.u32 %v8997, 8388607
    %v8999 = vor.u32 %v8998, 8388608
    %v9000 = vsub.s32 0, %v8999
    %v9001 = vadd.s32 %v8996, 1
    %vm9002 = vcmp.gt.s32.totalorder %v9001, 0
    %v9003 = vsel %vm9002, %v9001, 0
    %v9004 = vshrl.u32 %v9003, 5
    %v9005 = vand.u32 %v9003, 31
    %v9006 = vsub.s32 32, %v9005
    %v9007 = vshrl.u32 683565275, %v9006
    %v9008 = vshll.u32 683565275, %v9005
    %v9009 = vshrl.u32 2475754826, %v9006
    %v9010 = vor.u32 %v9008, %v9009
    %v9011 = vshll.u32 2475754826, %v9005
    %v9012 = vshrl.u32 2131351028, %v9006
    %v9013 = vor.u32 %v9011, %v9012
    %v9014 = vshll.u32 2131351028, %v9005
    %v9015 = vshrl.u32 2102212464, %v9006
    %v9016 = vor.u32 %v9014, %v9015
    %v9017 = vshll.u32 2102212464, %v9005
    %v9018 = vshrl.u32 920167782, %v9006
    %v9019 = vor.u32 %v9017, %v9018
    %v9020 = vshll.u32 920167782, %v9005
    %v9021 = vshrl.u32 1326507024, %v9006
    %v9022 = vor.u32 %v9020, %v9021
    %vm9023 = vcmp.lt.s32.totalorder %v9004, 1
    %vm9024 = vcmp.lt.s32.totalorder %v9004, 2
    %vm9025 = vcmp.lt.s32.totalorder %v9004, 3
    %vm9026 = vcmp.lt.s32.totalorder %v9004, 4
    %v9027 = vsel %vm9023, %v9007, %v9010
    %v9028 = vsel %vm9026, %v9016, 2102212464
    %v9029 = vsel %vm9025, %v9013, %v9028
    %v9030 = vsel %vm9024, %v9027, %v9029
    %v9031 = vsel %vm9023, %v9010, %v9013
    %v9032 = vsel %vm9026, %v9019, 920167782
    %v9033 = vsel %vm9025, %v9016, %v9032
    %v9034 = vsel %vm9024, %v9031, %v9033
    %v9035 = vsel %vm9023, %v9013, %v9016
    %v9036 = vsel %vm9026, %v9022, 1326507024
    %v9037 = vsel %vm9025, %v9019, %v9036
    %v9038 = vsel %vm9024, %v9035, %v9037
    %v9039 = vshll.u32 %v8999, 8
    %v9040 = vmul.u32.u64.compose %v9039, %v9038
    %v9041 = vextract.low.u32 %v9040
    %v9042 = vextract.high.u32 %v9040
    %v9043 = vmul.u32.u64.compose %v9039, %v9034
    %v9044 = vextract.low.u32 %v9043
    %v9045 = vextract.high.u32 %v9043
    %v9046 = vmul.u32 %v9039, %v9030
    %v9047 = vadd.s32 %v9042, %v9044
    %vm9048 = vc.u32 %v9042, %v9044
    %v9049 = vadd.s32 %v9045, 1
    %v9050 = vsel %vm9048, %v9049, %v9045
    %v9051 = vadd.s32 %v9046, %v9050
    %v9052 = vadd.s32 %v9051, 536870912
    %v9053 = vshrl.u32 %v9052, 30
    %v9054 = vshll.u32 %v9053, 30
    %v9055 = vsub.s32 %v9051, %v9054
    %vm9056 = vcmp.lt.s32.totalorder %v9055, 0
    %v9057 = vsub.s32 0, %v9055
    %v9058 = vsel %vm9056, %v9057, %v9055
    %v9059 = vclz %v9058
    %v9060 = vsub.s32 %v9059, 2
    %vm9061 = vcmp.gt.s32.totalorder 0, %v9060
    %v9062 = vsel %vm9061, 0, %v9060
    %v9063 = vsub.s32 32, %v9062
    %v9064 = vshll.u32 %v9055, %v9062
    %v9065 = vshrl.u32 %v9047, %v9063
    %v9066 = vor.u32 %v9064, %v9065
    %v9067 = vsub.s32 4294967266, %v9062
    %v9068 = vadd.s32 %v9067, 127
    %v9069 = vshll.u32 %v9068, 23
    %v9070 = vor.u32 4788187, %v9069
    %v9071 = vand.u32 2147483647, %v9070
    %v9073 = vcvt.s32.f32 %v9066
    %v9074 = vmul.f32 %v9073, %v9071
    %v9075 = vxor.u32 %v9074, 2147483648
    %v9076 = vsel %vm8993, %v9075, %v9074
    %v9077 = vsub.s32 4, %v9053
    %v9078 = vsel %vm8993, %v9077, %v9053
    %v9079 = vsel %vm8992, %v7655, %v9076
    %v9080 = vsel %vm8992, 0, %v9078
    %v9081 = vcosq.f32.pop %v9079
    %v9082 = vsinq.f32.pop %v9079
    %vm9083 = vweird.f32 %v7655
    %v9084 = vadd.s32 %v9080, 3
    %v9085 = vand.u32 %v9084, 3
    %vm9086 = vcmp.lt.s32.totalorder %v9085, 2
    %vm9087 = vcmp.eq.s32.totalorder %v9085, 0
    %v9088 = vxor.u32 %v9082, 2147483648
    %v9089 = vsel %vm9087, %v9081, %v9088
    %vm9090 = vcmp.eq.s32.totalorder %v9085, 2
    %v9091 = vxor.u32 %v9081, 2147483648
    %v9092 = vsel %vm9090, %v9091, %v9082
    %v9093 = vsel %vm9086, %v9089, %v9092
    %v9094 = vsel %vm9083, nan, %v9093
    %v9095 = vand.u32 2147483647, %v7742
    %vm9096 = vcmp.le.f32.partialorder %v9095, 0.7853982
    %vm9097 = vcmp.lt.s32.totalorder %v7742, 0
    %v9098 = vand.u32 %v7742, 2139095040
    %v9099 = vshrl.u32 %v9098, 23
    %v9100 = vsub.s32 %v9099, 127
    %v9101 = vand.u32 2147483647, %v7742
    %v9102 = vand.u32 %v9101, 8388607
    %v9103 = vor.u32 %v9102, 8388608
    %v9104 = vsub.s32 0, %v9103
    %v9105 = vadd.s32 %v9100, 1
    %vm9106 = vcmp.gt.s32.totalorder %v9105, 0
    %v9107 = vsel %vm9106, %v9105, 0
    %v9108 = vshrl.u32 %v9107, 5
    %v9109 = vand.u32 %v9107, 31
    %v9110 = vsub.s32 32, %v9109
    %v9111 = vshrl.u32 683565275, %v9110
    %v9112 = vshll.u32 683565275, %v9109
    %v9113 = vshrl.u32 2475754826, %v9110
    %v9114 = vor.u32 %v9112, %v9113
    %v9115 = vshll.u32 2475754826, %v9109
    %v9116 = vshrl.u32 2131351028, %v9110
    %v9117 = vor.u32 %v9115, %v9116
    %v9118 = vshll.u32 2131351028, %v9109
    %v9119 = vshrl.u32 2102212464, %v9110
    %v9120 = vor.u32 %v9118, %v9119
    %v9121 = vshll.u32 2102212464, %v9109
    %v9122 = vshrl.u32 920167782, %v9110
    %v9123 = vor.u32 %v9121, %v9122
    %v9124 = vshll.u32 920167782, %v9109
    %v9125 = vshrl.u32 1326507024, %v9110
    %v9126 = vor.u32 %v9124, %v9125
    %vm9127 = vcmp.lt.s32.totalorder %v9108, 1
    %vm9128 = vcmp.lt.s32.totalorder %v9108, 2
    %vm9129 = vcmp.lt.s32.totalorder %v9108, 3
    %vm9130 = vcmp.lt.s32.totalorder %v9108, 4
    %v9131 = vsel %vm9127, %v9111, %v9114
    %v9132 = vsel %vm9130, %v9120, 2102212464
    %v9133 = vsel %vm9129, %v9117, %v9132
    %v9134 = vsel %vm9128, %v9131, %v9133
    %v9135 = vsel %vm9127, %v9114, %v9117
    %v9136 = vsel %vm9130, %v9123, 920167782
    %v9137 = vsel %vm9129, %v9120, %v9136
    %v9138 = vsel %vm9128, %v9135, %v9137
    %v9139 = vsel %vm9127, %v9117, %v9120
    %v9140 = vsel %vm9130, %v9126, 1326507024
    %v9141 = vsel %vm9129, %v9123, %v9140
    %v9142 = vsel %vm9128, %v9139, %v9141
    %v9143 = vshll.u32 %v9103, 8
    %v9144 = vmul.u32.u64.compose %v9143, %v9142
    %v9145 = vextract.low.u32 %v9144
    %v9146 = vextract.high.u32 %v9144
    %v9147 = vmul.u32.u64.compose %v9143, %v9138
    %v9148 = vextract.low.u32 %v9147
    %v9149 = vextract.high.u32 %v9147
    %v9150 = vmul.u32 %v9143, %v9134
    %v9151 = vadd.s32 %v9146, %v9148
    %vm9152 = vc.u32 %v9146, %v9148
    %v9153 = vadd.s32 %v9149, 1
    %v9154 = vsel %vm9152, %v9153, %v9149
    %v9155 = vadd.s32 %v9150, %v9154
    %v9156 = vadd.s32 %v9155, 536870912
    %v9157 = vshrl.u32 %v9156, 30
    %v9158 = vshll.u32 %v9157, 30
    %v9159 = vsub.s32 %v9155, %v9158
    %vm9160 = vcmp.lt.s32.totalorder %v9159, 0
    %v9161 = vsub.s32 0, %v9159
    %v9162 = vsel %vm9160, %v9161, %v9159
    %v9163 = vclz %v9162
    %v9164 = vsub.s32 %v9163, 2
    %vm9165 = vcmp.gt.s32.totalorder 0, %v9164
    %v9166 = vsel %vm9165, 0, %v9164
    %v9167 = vsub.s32 32, %v9166
    %v9168 = vshll.u32 %v9159, %v9166
    %v9169 = vshrl.u32 %v9151, %v9167
    %v9170 = vor.u32 %v9168, %v9169
    %v9171 = vsub.s32 4294967266, %v9166
    %v9172 = vadd.s32 %v9171, 127
    %v9173 = vshll.u32 %v9172, 23
    %v9174 = vor.u32 4788187, %v9173
    %v9175 = vand.u32 2147483647, %v9174
    %v9177 = vcvt.s32.f32 %v9170
    %v9178 = vmul.f32 %v9177, %v9175
    %v9179 = vxor.u32 %v9178, 2147483648
    %v9180 = vsel %vm9097, %v9179, %v9178
    %v9181 = vsub.s32 4, %v9157
    %v9182 = vsel %vm9097, %v9181, %v9157
    %v9183 = vsel %vm9096, %v7742, %v9180
    %v9184 = vsel %vm9096, 0, %v9182
    %v9185 = vcosq.f32.pop %v9183
    %v9186 = vsinq.f32.pop %v9183
    %vm9187 = vweird.f32 %v7742
    %v9188 = vadd.s32 %v9184, 3
    %v9189 = vand.u32 %v9188, 3
    %vm9190 = vcmp.lt.s32.totalorder %v9189, 2
    %vm9191 = vcmp.eq.s32.totalorder %v9189, 0
    %v9192 = vxor.u32 %v9186, 2147483648
    %v9193 = vsel %vm9191, %v9185, %v9192
    %vm9194 = vcmp.eq.s32.totalorder %v9189, 2
    %v9195 = vxor.u32 %v9185, 2147483648
    %v9196 = vsel %vm9194, %v9195, %v9186
    %v9197 = vsel %vm9190, %v9193, %v9196
    %v9198 = vsel %vm9187, nan, %v9197
    %v9199 = vand.u32 2147483647, %v7744
    %vm9200 = vcmp.le.f32.partialorder %v9199, 0.7853982
    %vm9201 = vcmp.lt.s32.totalorder %v7744, 0
    %v9202 = vand.u32 %v7744, 2139095040
    %v9203 = vshrl.u32 %v9202, 23
    %v9204 = vsub.s32 %v9203, 127
    %v9205 = vand.u32 2147483647, %v7744
    %v9206 = vand.u32 %v9205, 8388607
    %v9207 = vor.u32 %v9206, 8388608
    %v9208 = vsub.s32 0, %v9207
    %v9209 = vadd.s32 %v9204, 1
    %vm9210 = vcmp.gt.s32.totalorder %v9209, 0
    %v9211 = vsel %vm9210, %v9209, 0
    %v9212 = vshrl.u32 %v9211, 5
    %v9213 = vand.u32 %v9211, 31
    %v9214 = vsub.s32 32, %v9213
    %v9215 = vshrl.u32 683565275, %v9214
    %v9216 = vshll.u32 683565275, %v9213
    %v9217 = vshrl.u32 2475754826, %v9214
    %v9218 = vor.u32 %v9216, %v9217
    %v9219 = vshll.u32 2475754826, %v9213
    %v9220 = vshrl.u32 2131351028, %v9214
    %v9221 = vor.u32 %v9219, %v9220
    %v9222 = vshll.u32 2131351028, %v9213
    %v9223 = vshrl.u32 2102212464, %v9214
    %v9224 = vor.u32 %v9222, %v9223
    %v9225 = vshll.u32 2102212464, %v9213
    %v9226 = vshrl.u32 920167782, %v9214
    %v9227 = vor.u32 %v9225, %v9226
    %v9228 = vshll.u32 920167782, %v9213
    %v9229 = vshrl.u32 1326507024, %v9214
    %v9230 = vor.u32 %v9228, %v9229
    %vm9231 = vcmp.lt.s32.totalorder %v9212, 1
    %vm9232 = vcmp.lt.s32.totalorder %v9212, 2
    %vm9233 = vcmp.lt.s32.totalorder %v9212, 3
    %vm9234 = vcmp.lt.s32.totalorder %v9212, 4
    %v9235 = vsel %vm9231, %v9215, %v9218
    %v9236 = vsel %vm9234, %v9224, 2102212464
    %v9237 = vsel %vm9233, %v9221, %v9236
    %v9238 = vsel %vm9232, %v9235, %v9237
    %v9239 = vsel %vm9231, %v9218, %v9221
    %v9240 = vsel %vm9234, %v9227, 920167782
    %v9241 = vsel %vm9233, %v9224, %v9240
    %v9242 = vsel %vm9232, %v9239, %v9241
    %v9243 = vsel %vm9231, %v9221, %v9224
    %v9244 = vsel %vm9234, %v9230, 1326507024
    %v9245 = vsel %vm9233, %v9227, %v9244
    %v9246 = vsel %vm9232, %v9243, %v9245
    %v9247 = vshll.u32 %v9207, 8
    %v9248 = vmul.u32.u64.compose %v9247, %v9246
    %v9249 = vextract.low.u32 %v9248
    %v9250 = vextract.high.u32 %v9248
    %v9251 = vmul.u32.u64.compose %v9247, %v9242
    %v9252 = vextract.low.u32 %v9251
    %v9253 = vextract.high.u32 %v9251
    %v9254 = vmul.u32 %v9247, %v9238
    %v9255 = vadd.s32 %v9250, %v9252
    %vm9256 = vc.u32 %v9250, %v9252
    %v9257 = vadd.s32 %v9253, 1
    %v9258 = vsel %vm9256, %v9257, %v9253
    %v9259 = vadd.s32 %v9254, %v9258
    %v9260 = vadd.s32 %v9259, 536870912
    %v9261 = vshrl.u32 %v9260, 30
    %v9262 = vshll.u32 %v9261, 30
    %v9263 = vsub.s32 %v9259, %v9262
    %vm9264 = vcmp.lt.s32.totalorder %v9263, 0
    %v9265 = vsub.s32 0, %v9263
    %v9266 = vsel %vm9264, %v9265, %v9263
    %v9267 = vclz %v9266
    %v9268 = vsub.s32 %v9267, 2
    %vm9269 = vcmp.gt.s32.totalorder 0, %v9268
    %v9270 = vsel %vm9269, 0, %v9268
    %v9271 = vsub.s32 32, %v9270
    %v9272 = vshll.u32 %v9263, %v9270
    %v9273 = vshrl.u32 %v9255, %v9271
    %v9274 = vor.u32 %v9272, %v9273
    %v9275 = vsub.s32 4294967266, %v9270
    %v9276 = vadd.s32 %v9275, 127
    %v9277 = vshll.u32 %v9276, 23
    %v9278 = vor.u32 4788187, %v9277
    %v9279 = vand.u32 2147483647, %v9278
    %v9281 = vcvt.s32.f32 %v9274
    %v9282 = vmul.f32 %v9281, %v9279
    %v9283 = vxor.u32 %v9282, 2147483648
    %v9284 = vsel %vm9201, %v9283, %v9282
    %v9285 = vsub.s32 4, %v9261
    %v9286 = vsel %vm9201, %v9285, %v9261
    %v9287 = vsel %vm9200, %v7744, %v9284
    %v9288 = vsel %vm9200, 0, %v9286
    %v9289 = vcosq.f32.pop %v9287
    %v9290 = vsinq.f32.pop %v9287
    %vm9291 = vweird.f32 %v7744
    %v9292 = vadd.s32 %v9288, 3
    %v9293 = vand.u32 %v9292, 3
    %vm9294 = vcmp.lt.s32.totalorder %v9293, 2
    %vm9295 = vcmp.eq.s32.totalorder %v9293, 0
    %v9296 = vxor.u32 %v9290, 2147483648
    %v9297 = vsel %vm9295, %v9289, %v9296
    %vm9298 = vcmp.eq.s32.totalorder %v9293, 2
    %v9299 = vxor.u32 %v9289, 2147483648
    %v9300 = vsel %vm9298, %v9299, %v9290
    %v9301 = vsel %vm9294, %v9297, %v9300
    %v9302 = vsel %vm9291, nan, %v9301
    %v9303 = vand.u32 2147483647, %v7831
    %vm9304 = vcmp.le.f32.partialorder %v9303, 0.7853982
    %vm9305 = vcmp.lt.s32.totalorder %v7831, 0
    %v9306 = vand.u32 %v7831, 2139095040
    %v9307 = vshrl.u32 %v9306, 23
    %v9308 = vsub.s32 %v9307, 127
    %v9309 = vand.u32 2147483647, %v7831
    %v9310 = vand.u32 %v9309, 8388607
    %v9311 = vor.u32 %v9310, 8388608
    %v9312 = vsub.s32 0, %v9311
    %v9313 = vadd.s32 %v9308, 1
    %vm9314 = vcmp.gt.s32.totalorder %v9313, 0
    %v9315 = vsel %vm9314, %v9313, 0
    %v9316 = vshrl.u32 %v9315, 5
    %v9317 = vand.u32 %v9315, 31
    %v9318 = vsub.s32 32, %v9317
    %v9319 = vshrl.u32 683565275, %v9318
    %v9320 = vshll.u32 683565275, %v9317
    %v9321 = vshrl.u32 2475754826, %v9318
    %v9322 = vor.u32 %v9320, %v9321
    %v9323 = vshll.u32 2475754826, %v9317
    %v9324 = vshrl.u32 2131351028, %v9318
    %v9325 = vor.u32 %v9323, %v9324
    %v9326 = vshll.u32 2131351028, %v9317
    %v9327 = vshrl.u32 2102212464, %v9318
    %v9328 = vor.u32 %v9326, %v9327
    %v9329 = vshll.u32 2102212464, %v9317
    %v9330 = vshrl.u32 920167782, %v9318
    %v9331 = vor.u32 %v9329, %v9330
    %v9332 = vshll.u32 920167782, %v9317
    %v9333 = vshrl.u32 1326507024, %v9318
    %v9334 = vor.u32 %v9332, %v9333
    %vm9335 = vcmp.lt.s32.totalorder %v9316, 1
    %vm9336 = vcmp.lt.s32.totalorder %v9316, 2
    %vm9337 = vcmp.lt.s32.totalorder %v9316, 3
    %vm9338 = vcmp.lt.s32.totalorder %v9316, 4
    %v9339 = vsel %vm9335, %v9319, %v9322
    %v9340 = vsel %vm9338, %v9328, 2102212464
    %v9341 = vsel %vm9337, %v9325, %v9340
    %v9342 = vsel %vm9336, %v9339, %v9341
    %v9343 = vsel %vm9335, %v9322, %v9325
    %v9344 = vsel %vm9338, %v9331, 920167782
    %v9345 = vsel %vm9337, %v9328, %v9344
    %v9346 = vsel %vm9336, %v9343, %v9345
    %v9347 = vsel %vm9335, %v9325, %v9328
    %v9348 = vsel %vm9338, %v9334, 1326507024
    %v9349 = vsel %vm9337, %v9331, %v9348
    %v9350 = vsel %vm9336, %v9347, %v9349
    %v9351 = vshll.u32 %v9311, 8
    %v9352 = vmul.u32.u64.compose %v9351, %v9350
    %v9353 = vextract.low.u32 %v9352
    %v9354 = vextract.high.u32 %v9352
    %v9355 = vmul.u32.u64.compose %v9351, %v9346
    %v9356 = vextract.low.u32 %v9355
    %v9357 = vextract.high.u32 %v9355
    %v9358 = vmul.u32 %v9351, %v9342
    %v9359 = vadd.s32 %v9354, %v9356
    %vm9360 = vc.u32 %v9354, %v9356
    %v9361 = vadd.s32 %v9357, 1
    %v9362 = vsel %vm9360, %v9361, %v9357
    %v9363 = vadd.s32 %v9358, %v9362
    %v9364 = vadd.s32 %v9363, 536870912
    %v9365 = vshrl.u32 %v9364, 30
    %v9366 = vshll.u32 %v9365, 30
    %v9367 = vsub.s32 %v9363, %v9366
    %vm9368 = vcmp.lt.s32.totalorder %v9367, 0
    %v9369 = vsub.s32 0, %v9367
    %v9370 = vsel %vm9368, %v9369, %v9367
    %v9371 = vclz %v9370
    %v9372 = vsub.s32 %v9371, 2
    %vm9373 = vcmp.gt.s32.totalorder 0, %v9372
    %v9374 = vsel %vm9373, 0, %v9372
    %v9375 = vsub.s32 32, %v9374
    %v9376 = vshll.u32 %v9367, %v9374
    %v9377 = vshrl.u32 %v9359, %v9375
    %v9378 = vor.u32 %v9376, %v9377
    %v9379 = vsub.s32 4294967266, %v9374
    %v9380 = vadd.s32 %v9379, 127
    %v9381 = vshll.u32 %v9380, 23
    %v9382 = vor.u32 4788187, %v9381
    %v9383 = vand.u32 2147483647, %v9382
    %v9385 = vcvt.s32.f32 %v9378
    %v9386 = vmul.f32 %v9385, %v9383
    %v9387 = vxor.u32 %v9386, 2147483648
    %v9388 = vsel %vm9305, %v9387, %v9386
    %v9389 = vsub.s32 4, %v9365
    %v9390 = vsel %vm9305, %v9389, %v9365
    %v9391 = vsel %vm9304, %v7831, %v9388
    %v9392 = vsel %vm9304, 0, %v9390
    %v9393 = vcosq.f32.pop %v9391
    %v9394 = vsinq.f32.pop %v9391
    %vm9395 = vweird.f32 %v7831
    %v9396 = vadd.s32 %v9392, 3
    %v9397 = vand.u32 %v9396, 3
    %vm9398 = vcmp.lt.s32.totalorder %v9397, 2
    %vm9399 = vcmp.eq.s32.totalorder %v9397, 0
    %v9400 = vxor.u32 %v9394, 2147483648
    %v9401 = vsel %vm9399, %v9393, %v9400
    %vm9402 = vcmp.eq.s32.totalorder %v9397, 2
    %v9403 = vxor.u32 %v9393, 2147483648
    %v9404 = vsel %vm9402, %v9403, %v9394
    %v9405 = vsel %vm9398, %v9401, %v9404
    %v9406 = vsel %vm9395, nan, %v9405
    %v9407 = vand.u32 2147483647, %v7833
    %vm9408 = vcmp.le.f32.partialorder %v9407, 0.7853982
    %vm9409 = vcmp.lt.s32.totalorder %v7833, 0
    %v9410 = vand.u32 %v7833, 2139095040
    %v9411 = vshrl.u32 %v9410, 23
    %v9412 = vsub.s32 %v9411, 127
    %v9413 = vand.u32 2147483647, %v7833
    %v9414 = vand.u32 %v9413, 8388607
    %v9415 = vor.u32 %v9414, 8388608
    %v9416 = vsub.s32 0, %v9415
    %v9417 = vadd.s32 %v9412, 1
    %vm9418 = vcmp.gt.s32.totalorder %v9417, 0
    %v9419 = vsel %vm9418, %v9417, 0
    %v9420 = vshrl.u32 %v9419, 5
    %v9421 = vand.u32 %v9419, 31
    %v9422 = vsub.s32 32, %v9421
    %v9423 = vshrl.u32 683565275, %v9422
    %v9424 = vshll.u32 683565275, %v9421
    %v9425 = vshrl.u32 2475754826, %v9422
    %v9426 = vor.u32 %v9424, %v9425
    %v9427 = vshll.u32 2475754826, %v9421
    %v9428 = vshrl.u32 2131351028, %v9422
    %v9429 = vor.u32 %v9427, %v9428
    %v9430 = vshll.u32 2131351028, %v9421
    %v9431 = vshrl.u32 2102212464, %v9422
    %v9432 = vor.u32 %v9430, %v9431
    %v9433 = vshll.u32 2102212464, %v9421
    %v9434 = vshrl.u32 920167782, %v9422
    %v9435 = vor.u32 %v9433, %v9434
    %v9436 = vshll.u32 920167782, %v9421
    %v9437 = vshrl.u32 1326507024, %v9422
    %v9438 = vor.u32 %v9436, %v9437
    %vm9439 = vcmp.lt.s32.totalorder %v9420, 1
    %vm9440 = vcmp.lt.s32.totalorder %v9420, 2
    %vm9441 = vcmp.lt.s32.totalorder %v9420, 3
    %vm9442 = vcmp.lt.s32.totalorder %v9420, 4
    %v9443 = vsel %vm9439, %v9423, %v9426
    %v9444 = vsel %vm9442, %v9432, 2102212464
    %v9445 = vsel %vm9441, %v9429, %v9444
    %v9446 = vsel %vm9440, %v9443, %v9445
    %v9447 = vsel %vm9439, %v9426, %v9429
    %v9448 = vsel %vm9442, %v9435, 920167782
    %v9449 = vsel %vm9441, %v9432, %v9448
    %v9450 = vsel %vm9440, %v9447, %v9449
    %v9451 = vsel %vm9439, %v9429, %v9432
    %v9452 = vsel %vm9442, %v9438, 1326507024
    %v9453 = vsel %vm9441, %v9435, %v9452
    %v9454 = vsel %vm9440, %v9451, %v9453
    %v9455 = vshll.u32 %v9415, 8
    %v9456 = vmul.u32.u64.compose %v9455, %v9454
    %v9457 = vextract.low.u32 %v9456
    %v9458 = vextract.high.u32 %v9456
    %v9459 = vmul.u32.u64.compose %v9455, %v9450
    %v9460 = vextract.low.u32 %v9459
    %v9461 = vextract.high.u32 %v9459
    %v9462 = vmul.u32 %v9455, %v9446
    %v9463 = vadd.s32 %v9458, %v9460
    %vm9464 = vc.u32 %v9458, %v9460
    %v9465 = vadd.s32 %v9461, 1
    %v9466 = vsel %vm9464, %v9465, %v9461
    %v9467 = vadd.s32 %v9462, %v9466
    %v9468 = vadd.s32 %v9467, 536870912
    %v9469 = vshrl.u32 %v9468, 30
    %v9470 = vshll.u32 %v9469, 30
    %v9471 = vsub.s32 %v9467, %v9470
    %vm9472 = vcmp.lt.s32.totalorder %v9471, 0
    %v9473 = vsub.s32 0, %v9471
    %v9474 = vsel %vm9472, %v9473, %v9471
    %v9475 = vclz %v9474
    %v9476 = vsub.s32 %v9475, 2
    %vm9477 = vcmp.gt.s32.totalorder 0, %v9476
    %v9478 = vsel %vm9477, 0, %v9476
    %v9479 = vsub.s32 32, %v9478
    %v9480 = vshll.u32 %v9471, %v9478
    %v9481 = vshrl.u32 %v9463, %v9479
    %v9482 = vor.u32 %v9480, %v9481
    %v9483 = vsub.s32 4294967266, %v9478
    %v9484 = vadd.s32 %v9483, 127
    %v9485 = vshll.u32 %v9484, 23
    %v9486 = vor.u32 4788187, %v9485
    %v9487 = vand.u32 2147483647, %v9486
    %v9489 = vcvt.s32.f32 %v9482
    %v9490 = vmul.f32 %v9489, %v9487
    %v9491 = vxor.u32 %v9490, 2147483648
    %v9492 = vsel %vm9409, %v9491, %v9490
    %v9493 = vsub.s32 4, %v9469
    %v9494 = vsel %vm9409, %v9493, %v9469
    %v9495 = vsel %vm9408, %v7833, %v9492
    %v9496 = vsel %vm9408, 0, %v9494
    %v9497 = vcosq.f32.pop %v9495
    %v9498 = vsinq.f32.pop %v9495
    %vm9499 = vweird.f32 %v7833
    %v9500 = vadd.s32 %v9496, 3
    %v9501 = vand.u32 %v9500, 3
    %vm9502 = vcmp.lt.s32.totalorder %v9501, 2
    %vm9503 = vcmp.eq.s32.totalorder %v9501, 0
    %v9504 = vxor.u32 %v9498, 2147483648
    %v9505 = vsel %vm9503, %v9497, %v9504
    %vm9506 = vcmp.eq.s32.totalorder %v9501, 2
    %v9507 = vxor.u32 %v9497, 2147483648
    %v9508 = vsel %vm9506, %v9507, %v9498
    %v9509 = vsel %vm9502, %v9505, %v9508
    %v9510 = vsel %vm9499, nan, %v9509
    %v9511 = vand.u32 2147483647, %v7570
    %vm9512 = vcmp.le.f32.partialorder %v9511, 0.7853982
    %vm9513 = vcmp.lt.s32.totalorder %v7570, 0
    %v9514 = vand.u32 %v7570, 2139095040
    %v9515 = vshrl.u32 %v9514, 23
    %v9516 = vsub.s32 %v9515, 127
    %v9517 = vand.u32 2147483647, %v7570
    %v9518 = vand.u32 %v9517, 8388607
    %v9519 = vor.u32 %v9518, 8388608
    %v9520 = vsub.s32 0, %v9519
    %v9521 = vadd.s32 %v9516, 1
    %vm9522 = vcmp.gt.s32.totalorder %v9521, 0
    %v9523 = vsel %vm9522, %v9521, 0
    %v9524 = vshrl.u32 %v9523, 5
    %v9525 = vand.u32 %v9523, 31
    %v9526 = vsub.s32 32, %v9525
    %v9527 = vshrl.u32 683565275, %v9526
    %v9528 = vshll.u32 683565275, %v9525
    %v9529 = vshrl.u32 2475754826, %v9526
    %v9530 = vor.u32 %v9528, %v9529
    %v9531 = vshll.u32 2475754826, %v9525
    %v9532 = vshrl.u32 2131351028, %v9526
    %v9533 = vor.u32 %v9531, %v9532
    %v9534 = vshll.u32 2131351028, %v9525
    %v9535 = vshrl.u32 2102212464, %v9526
    %v9536 = vor.u32 %v9534, %v9535
    %v9537 = vshll.u32 2102212464, %v9525
    %v9538 = vshrl.u32 920167782, %v9526
    %v9539 = vor.u32 %v9537, %v9538
    %v9540 = vshll.u32 920167782, %v9525
    %v9541 = vshrl.u32 1326507024, %v9526
    %v9542 = vor.u32 %v9540, %v9541
    %vm9543 = vcmp.lt.s32.totalorder %v9524, 1
    %vm9544 = vcmp.lt.s32.totalorder %v9524, 2
    %vm9545 = vcmp.lt.s32.totalorder %v9524, 3
    %vm9546 = vcmp.lt.s32.totalorder %v9524, 4
    %v9547 = vsel %vm9543, %v9527, %v9530
    %v9548 = vsel %vm9546, %v9536, 2102212464
    %v9549 = vsel %vm9545, %v9533, %v9548
    %v9550 = vsel %vm9544, %v9547, %v9549
    %v9551 = vsel %vm9543, %v9530, %v9533
    %v9552 = vsel %vm9546, %v9539, 920167782
    %v9553 = vsel %vm9545, %v9536, %v9552
    %v9554 = vsel %vm9544, %v9551, %v9553
    %v9555 = vsel %vm9543, %v9533, %v9536
    %v9556 = vsel %vm9546, %v9542, 1326507024
    %v9557 = vsel %vm9545, %v9539, %v9556
    %v9558 = vsel %vm9544, %v9555, %v9557
    %v9559 = vshll.u32 %v9519, 8
    %v9560 = vmul.u32.u64.compose %v9559, %v9558
    %v9561 = vextract.low.u32 %v9560
    %v9562 = vextract.high.u32 %v9560
    %v9563 = vmul.u32.u64.compose %v9559, %v9554
    %v9564 = vextract.low.u32 %v9563
    %v9565 = vextract.high.u32 %v9563
    %v9566 = vmul.u32 %v9559, %v9550
    %v9567 = vadd.s32 %v9562, %v9564
    %vm9568 = vc.u32 %v9562, %v9564
    %v9569 = vadd.s32 %v9565, 1
    %v9570 = vsel %vm9568, %v9569, %v9565
    %v9571 = vadd.s32 %v9566, %v9570
    %v9572 = vadd.s32 %v9571, 536870912
    %v9573 = vshrl.u32 %v9572, 30
    %v9574 = vshll.u32 %v9573, 30
    %v9575 = vsub.s32 %v9571, %v9574
    %vm9576 = vcmp.lt.s32.totalorder %v9575, 0
    %v9577 = vsub.s32 0, %v9575
    %v9578 = vsel %vm9576, %v9577, %v9575
    %v9579 = vclz %v9578
    %v9580 = vsub.s32 %v9579, 2
    %vm9581 = vcmp.gt.s32.totalorder 0, %v9580
    %v9582 = vsel %vm9581, 0, %v9580
    %v9583 = vsub.s32 32, %v9582
    %v9584 = vshll.u32 %v9575, %v9582
    %v9585 = vshrl.u32 %v9567, %v9583
    %v9586 = vor.u32 %v9584, %v9585
    %v9587 = vsub.s32 4294967266, %v9582
    %v9588 = vadd.s32 %v9587, 127
    %v9589 = vshll.u32 %v9588, 23
    %v9590 = vor.u32 4788187, %v9589
    %v9591 = vand.u32 2147483647, %v9590
    %v9593 = vcvt.s32.f32 %v9586
    %v9594 = vmul.f32 %v9593, %v9591
    %v9595 = vxor.u32 %v9594, 2147483648
    %v9596 = vsel %vm9513, %v9595, %v9594
    %v9597 = vsub.s32 4, %v9573
    %v9598 = vsel %vm9513, %v9597, %v9573
    %v9599 = vsel %vm9512, %v7570, %v9596
    %v9600 = vsel %vm9512, 0, %v9598
    %v9601 = vcosq.f32.pop %v9599
    %v9602 = vsinq.f32.pop %v9599
    %vm9603 = vweird.f32 %v7570
    %v9604 = vadd.s32 %v9600, 3
    %v9605 = vand.u32 %v9604, 3
    %vm9606 = vcmp.lt.s32.totalorder %v9605, 2
    %vm9607 = vcmp.eq.s32.totalorder %v9605, 0
    %v9608 = vxor.u32 %v9602, 2147483648
    %v9609 = vsel %vm9607, %v9601, %v9608
    %vm9610 = vcmp.eq.s32.totalorder %v9605, 2
    %v9611 = vxor.u32 %v9601, 2147483648
    %v9612 = vsel %vm9610, %v9611, %v9602
    %v9613 = vsel %vm9606, %v9609, %v9612
    %v9614 = vsel %vm9603, nan, %v9613
    %v9615 = vand.u32 2147483647, %v7572
    %vm9616 = vcmp.le.f32.partialorder %v9615, 0.7853982
    %vm9617 = vcmp.lt.s32.totalorder %v7572, 0
    %v9618 = vand.u32 %v7572, 2139095040
    %v9619 = vshrl.u32 %v9618, 23
    %v9620 = vsub.s32 %v9619, 127
    %v9621 = vand.u32 2147483647, %v7572
    %v9622 = vand.u32 %v9621, 8388607
    %v9623 = vor.u32 %v9622, 8388608
    %v9624 = vsub.s32 0, %v9623
    %v9625 = vadd.s32 %v9620, 1
    %vm9626 = vcmp.gt.s32.totalorder %v9625, 0
    %v9627 = vsel %vm9626, %v9625, 0
    %v9628 = vshrl.u32 %v9627, 5
    %v9629 = vand.u32 %v9627, 31
    %v9630 = vsub.s32 32, %v9629
    %v9631 = vshrl.u32 683565275, %v9630
    %v9632 = vshll.u32 683565275, %v9629
    %v9633 = vshrl.u32 2475754826, %v9630
    %v9634 = vor.u32 %v9632, %v9633
    %v9635 = vshll.u32 2475754826, %v9629
    %v9636 = vshrl.u32 2131351028, %v9630
    %v9637 = vor.u32 %v9635, %v9636
    %v9638 = vshll.u32 2131351028, %v9629
    %v9639 = vshrl.u32 2102212464, %v9630
    %v9640 = vor.u32 %v9638, %v9639
    %v9641 = vshll.u32 2102212464, %v9629
    %v9642 = vshrl.u32 920167782, %v9630
    %v9643 = vor.u32 %v9641, %v9642
    %v9644 = vshll.u32 920167782, %v9629
    %v9645 = vshrl.u32 1326507024, %v9630
    %v9646 = vor.u32 %v9644, %v9645
    %vm9647 = vcmp.lt.s32.totalorder %v9628, 1
    %vm9648 = vcmp.lt.s32.totalorder %v9628, 2
    %vm9649 = vcmp.lt.s32.totalorder %v9628, 3
    %vm9650 = vcmp.lt.s32.totalorder %v9628, 4
    %v9651 = vsel %vm9647, %v9631, %v9634
    %v9652 = vsel %vm9650, %v9640, 2102212464
    %v9653 = vsel %vm9649, %v9637, %v9652
    %v9654 = vsel %vm9648, %v9651, %v9653
    %v9655 = vsel %vm9647, %v9634, %v9637
    %v9656 = vsel %vm9650, %v9643, 920167782
    %v9657 = vsel %vm9649, %v9640, %v9656
    %v9658 = vsel %vm9648, %v9655, %v9657
    %v9659 = vsel %vm9647, %v9637, %v9640
    %v9660 = vsel %vm9650, %v9646, 1326507024
    %v9661 = vsel %vm9649, %v9643, %v9660
    %v9662 = vsel %vm9648, %v9659, %v9661
    %v9663 = vshll.u32 %v9623, 8
    %v9664 = vmul.u32.u64.compose %v9663, %v9662
    %v9665 = vextract.low.u32 %v9664
    %v9666 = vextract.high.u32 %v9664
    %v9667 = vmul.u32.u64.compose %v9663, %v9658
    %v9668 = vextract.low.u32 %v9667
    %v9669 = vextract.high.u32 %v9667
    %v9670 = vmul.u32 %v9663, %v9654
    %v9671 = vadd.s32 %v9666, %v9668
    %vm9672 = vc.u32 %v9666, %v9668
    %v9673 = vadd.s32 %v9669, 1
    %v9674 = vsel %vm9672, %v9673, %v9669
    %v9675 = vadd.s32 %v9670, %v9674
    %v9676 = vadd.s32 %v9675, 536870912
    %v9677 = vshrl.u32 %v9676, 30
    %v9678 = vshll.u32 %v9677, 30
    %v9679 = vsub.s32 %v9675, %v9678
    %vm9680 = vcmp.lt.s32.totalorder %v9679, 0
    %v9681 = vsub.s32 0, %v9679
    %v9682 = vsel %vm9680, %v9681, %v9679
    %v9683 = vclz %v9682
    %v9684 = vsub.s32 %v9683, 2
    %vm9685 = vcmp.gt.s32.totalorder 0, %v9684
    %v9686 = vsel %vm9685, 0, %v9684
    %v9687 = vsub.s32 32, %v9686
    %v9688 = vshll.u32 %v9679, %v9686
    %v9689 = vshrl.u32 %v9671, %v9687
    %v9690 = vor.u32 %v9688, %v9689
    %v9691 = vsub.s32 4294967266, %v9686
    %v9692 = vadd.s32 %v9691, 127
    %v9693 = vshll.u32 %v9692, 23
    %v9694 = vor.u32 4788187, %v9693
    %v9695 = vand.u32 2147483647, %v9694
    %v9697 = vcvt.s32.f32 %v9690
    %v9698 = vmul.f32 %v9697, %v9695
    %v9699 = vxor.u32 %v9698, 2147483648
    %v9700 = vsel %vm9617, %v9699, %v9698
    %v9701 = vsub.s32 4, %v9677
    %v9702 = vsel %vm9617, %v9701, %v9677
    %v9703 = vsel %vm9616, %v7572, %v9700
    %v9704 = vsel %vm9616, 0, %v9702
    %v9705 = vcosq.f32.pop %v9703
    %v9706 = vsinq.f32.pop %v9703
    %vm9707 = vweird.f32 %v7572
    %v9708 = vadd.s32 %v9704, 3
    %v9709 = vand.u32 %v9708, 3
    %vm9710 = vcmp.lt.s32.totalorder %v9709, 2
    %vm9711 = vcmp.eq.s32.totalorder %v9709, 0
    %v9712 = vxor.u32 %v9706, 2147483648
    %v9713 = vsel %vm9711, %v9705, %v9712
    %vm9714 = vcmp.eq.s32.totalorder %v9709, 2
    %v9715 = vxor.u32 %v9705, 2147483648
    %v9716 = vsel %vm9714, %v9715, %v9706
    %v9717 = vsel %vm9710, %v9713, %v9716
    %v9718 = vsel %vm9707, nan, %v9717
    %v9719 = vand.u32 2147483647, %v7659
    %vm9720 = vcmp.le.f32.partialorder %v9719, 0.7853982
    %vm9721 = vcmp.lt.s32.totalorder %v7659, 0
    %v9722 = vand.u32 %v7659, 2139095040
    %v9723 = vshrl.u32 %v9722, 23
    %v9724 = vsub.s32 %v9723, 127
    %v9725 = vand.u32 2147483647, %v7659
    %v9726 = vand.u32 %v9725, 8388607
    %v9727 = vor.u32 %v9726, 8388608
    %v9728 = vsub.s32 0, %v9727
    %v9729 = vadd.s32 %v9724, 1
    %vm9730 = vcmp.gt.s32.totalorder %v9729, 0
    %v9731 = vsel %vm9730, %v9729, 0
    %v9732 = vshrl.u32 %v9731, 5
    %v9733 = vand.u32 %v9731, 31
    %v9734 = vsub.s32 32, %v9733
    %v9735 = vshrl.u32 683565275, %v9734
    %v9736 = vshll.u32 683565275, %v9733
    %v9737 = vshrl.u32 2475754826, %v9734
    %v9738 = vor.u32 %v9736, %v9737
    %v9739 = vshll.u32 2475754826, %v9733
    %v9740 = vshrl.u32 2131351028, %v9734
    %v9741 = vor.u32 %v9739, %v9740
    %v9742 = vshll.u32 2131351028, %v9733
    %v9743 = vshrl.u32 2102212464, %v9734
    %v9744 = vor.u32 %v9742, %v9743
    %v9745 = vshll.u32 2102212464, %v9733
    %v9746 = vshrl.u32 920167782, %v9734
    %v9747 = vor.u32 %v9745, %v9746
    %v9748 = vshll.u32 920167782, %v9733
    %v9749 = vshrl.u32 1326507024, %v9734
    %v9750 = vor.u32 %v9748, %v9749
    %vm9751 = vcmp.lt.s32.totalorder %v9732, 1
    %vm9752 = vcmp.lt.s32.totalorder %v9732, 2
    %vm9753 = vcmp.lt.s32.totalorder %v9732, 3
    %vm9754 = vcmp.lt.s32.totalorder %v9732, 4
    %v9755 = vsel %vm9751, %v9735, %v9738
    %v9756 = vsel %vm9754, %v9744, 2102212464
    %v9757 = vsel %vm9753, %v9741, %v9756
    %v9758 = vsel %vm9752, %v9755, %v9757
    %v9759 = vsel %vm9751, %v9738, %v9741
    %v9760 = vsel %vm9754, %v9747, 920167782
    %v9761 = vsel %vm9753, %v9744, %v9760
    %v9762 = vsel %vm9752, %v9759, %v9761
    %v9763 = vsel %vm9751, %v9741, %v9744
    %v9764 = vsel %vm9754, %v9750, 1326507024
    %v9765 = vsel %vm9753, %v9747, %v9764
    %v9766 = vsel %vm9752, %v9763, %v9765
    %v9767 = vshll.u32 %v9727, 8
    %v9768 = vmul.u32.u64.compose %v9767, %v9766
    %v9769 = vextract.low.u32 %v9768
    %v9770 = vextract.high.u32 %v9768
    %v9771 = vmul.u32.u64.compose %v9767, %v9762
    %v9772 = vextract.low.u32 %v9771
    %v9773 = vextract.high.u32 %v9771
    %v9774 = vmul.u32 %v9767, %v9758
    %v9775 = vadd.s32 %v9770, %v9772
    %vm9776 = vc.u32 %v9770, %v9772
    %v9777 = vadd.s32 %v9773, 1
    %v9778 = vsel %vm9776, %v9777, %v9773
    %v9779 = vadd.s32 %v9774, %v9778
    %v9780 = vadd.s32 %v9779, 536870912
    %v9781 = vshrl.u32 %v9780, 30
    %v9782 = vshll.u32 %v9781, 30
    %v9783 = vsub.s32 %v9779, %v9782
    %vm9784 = vcmp.lt.s32.totalorder %v9783, 0
    %v9785 = vsub.s32 0, %v9783
    %v9786 = vsel %vm9784, %v9785, %v9783
    %v9787 = vclz %v9786
    %v9788 = vsub.s32 %v9787, 2
    %vm9789 = vcmp.gt.s32.totalorder 0, %v9788
    %v9790 = vsel %vm9789, 0, %v9788
    %v9791 = vsub.s32 32, %v9790
    %v9792 = vshll.u32 %v9783, %v9790
    %v9793 = vshrl.u32 %v9775, %v9791
    %v9794 = vor.u32 %v9792, %v9793
    %v9795 = vsub.s32 4294967266, %v9790
    %v9796 = vadd.s32 %v9795, 127
    %v9797 = vshll.u32 %v9796, 23
    %v9798 = vor.u32 4788187, %v9797
    %v9799 = vand.u32 2147483647, %v9798
    %v9801 = vcvt.s32.f32 %v9794
    %v9802 = vmul.f32 %v9801, %v9799
    %v9803 = vxor.u32 %v9802, 2147483648
    %v9804 = vsel %vm9721, %v9803, %v9802
    %v9805 = vsub.s32 4, %v9781
    %v9806 = vsel %vm9721, %v9805, %v9781
    %v9807 = vsel %vm9720, %v7659, %v9804
    %v9808 = vsel %vm9720, 0, %v9806
    %v9809 = vcosq.f32.pop %v9807
    %v9810 = vsinq.f32.pop %v9807
    %vm9811 = vweird.f32 %v7659
    %v9812 = vadd.s32 %v9808, 3
    %v9813 = vand.u32 %v9812, 3
    %vm9814 = vcmp.lt.s32.totalorder %v9813, 2
    %vm9815 = vcmp.eq.s32.totalorder %v9813, 0
    %v9816 = vxor.u32 %v9810, 2147483648
    %v9817 = vsel %vm9815, %v9809, %v9816
    %vm9818 = vcmp.eq.s32.totalorder %v9813, 2
    %v9819 = vxor.u32 %v9809, 2147483648
    %v9820 = vsel %vm9818, %v9819, %v9810
    %v9821 = vsel %vm9814, %v9817, %v9820
    %v9822 = vsel %vm9811, nan, %v9821
    %v9823 = vand.u32 2147483647, %v7661
    %vm9824 = vcmp.le.f32.partialorder %v9823, 0.7853982
    %vm9825 = vcmp.lt.s32.totalorder %v7661, 0
    %v9826 = vand.u32 %v7661, 2139095040
    %v9827 = vshrl.u32 %v9826, 23
    %v9828 = vsub.s32 %v9827, 127
    %v9829 = vand.u32 2147483647, %v7661
    %v9830 = vand.u32 %v9829, 8388607
    %v9831 = vor.u32 %v9830, 8388608
    %v9832 = vsub.s32 0, %v9831
    %v9833 = vadd.s32 %v9828, 1
    %vm9834 = vcmp.gt.s32.totalorder %v9833, 0
    %v9835 = vsel %vm9834, %v9833, 0
    %v9836 = vshrl.u32 %v9835, 5
    %v9837 = vand.u32 %v9835, 31
    %v9838 = vsub.s32 32, %v9837
    %v9839 = vshrl.u32 683565275, %v9838
    %v9840 = vshll.u32 683565275, %v9837
    %v9841 = vshrl.u32 2475754826, %v9838
    %v9842 = vor.u32 %v9840, %v9841
    %v9843 = vshll.u32 2475754826, %v9837
    %v9844 = vshrl.u32 2131351028, %v9838
    %v9845 = vor.u32 %v9843, %v9844
    %v9846 = vshll.u32 2131351028, %v9837
    %v9847 = vshrl.u32 2102212464, %v9838
    %v9848 = vor.u32 %v9846, %v9847
    %v9849 = vshll.u32 2102212464, %v9837
    %v9850 = vshrl.u32 920167782, %v9838
    %v9851 = vor.u32 %v9849, %v9850
    %v9852 = vshll.u32 920167782, %v9837
    %v9853 = vshrl.u32 1326507024, %v9838
    %v9854 = vor.u32 %v9852, %v9853
    %vm9855 = vcmp.lt.s32.totalorder %v9836, 1
    %vm9856 = vcmp.lt.s32.totalorder %v9836, 2
    %vm9857 = vcmp.lt.s32.totalorder %v9836, 3
    %vm9858 = vcmp.lt.s32.totalorder %v9836, 4
    %v9859 = vsel %vm9855, %v9839, %v9842
    %v9860 = vsel %vm9858, %v9848, 2102212464
    %v9861 = vsel %vm9857, %v9845, %v9860
    %v9862 = vsel %vm9856, %v9859, %v9861
    %v9863 = vsel %vm9855, %v9842, %v9845
    %v9864 = vsel %vm9858, %v9851, 920167782
    %v9865 = vsel %vm9857, %v9848, %v9864
    %v9866 = vsel %vm9856, %v9863, %v9865
    %v9867 = vsel %vm9855, %v9845, %v9848
    %v9868 = vsel %vm9858, %v9854, 1326507024
    %v9869 = vsel %vm9857, %v9851, %v9868
    %v9870 = vsel %vm9856, %v9867, %v9869
    %v9871 = vshll.u32 %v9831, 8
    %v9872 = vmul.u32.u64.compose %v9871, %v9870
    %v9873 = vextract.low.u32 %v9872
    %v9874 = vextract.high.u32 %v9872
    %v9875 = vmul.u32.u64.compose %v9871, %v9866
    %v9876 = vextract.low.u32 %v9875
    %v9877 = vextract.high.u32 %v9875
    %v9878 = vmul.u32 %v9871, %v9862
    %v9879 = vadd.s32 %v9874, %v9876
    %vm9880 = vc.u32 %v9874, %v9876
    %v9881 = vadd.s32 %v9877, 1
    %v9882 = vsel %vm9880, %v9881, %v9877
    %v9883 = vadd.s32 %v9878, %v9882
    %v9884 = vadd.s32 %v9883, 536870912
    %v9885 = vshrl.u32 %v9884, 30
    %v9886 = vshll.u32 %v9885, 30
    %v9887 = vsub.s32 %v9883, %v9886
    %vm9888 = vcmp.lt.s32.totalorder %v9887, 0
    %v9889 = vsub.s32 0, %v9887
    %v9890 = vsel %vm9888, %v9889, %v9887
    %v9891 = vclz %v9890
    %v9892 = vsub.s32 %v9891, 2
    %vm9893 = vcmp.gt.s32.totalorder 0, %v9892
    %v9894 = vsel %vm9893, 0, %v9892
    %v9895 = vsub.s32 32, %v9894
    %v9896 = vshll.u32 %v9887, %v9894
    %v9897 = vshrl.u32 %v9879, %v9895
    %v9898 = vor.u32 %v9896, %v9897
    %v9899 = vsub.s32 4294967266, %v9894
    %v9900 = vadd.s32 %v9899, 127
    %v9901 = vshll.u32 %v9900, 23
    %v9902 = vor.u32 4788187, %v9901
    %v9903 = vand.u32 2147483647, %v9902
    %v9905 = vcvt.s32.f32 %v9898
    %v9906 = vmul.f32 %v9905, %v9903
    %v9907 = vxor.u32 %v9906, 2147483648
    %v9908 = vsel %vm9825, %v9907, %v9906
    %v9909 = vsub.s32 4, %v9885
    %v9910 = vsel %vm9825, %v9909, %v9885
    %v9911 = vsel %vm9824, %v7661, %v9908
    %v9912 = vsel %vm9824, 0, %v9910
    %v9913 = vcosq.f32.pop %v9911
    %v9914 = vsinq.f32.pop %v9911
    %vm9915 = vweird.f32 %v7661
    %v9916 = vadd.s32 %v9912, 3
    %v9917 = vand.u32 %v9916, 3
    %vm9918 = vcmp.lt.s32.totalorder %v9917, 2
    %vm9919 = vcmp.eq.s32.totalorder %v9917, 0
    %v9920 = vxor.u32 %v9914, 2147483648
    %v9921 = vsel %vm9919, %v9913, %v9920
    %vm9922 = vcmp.eq.s32.totalorder %v9917, 2
    %v9923 = vxor.u32 %v9913, 2147483648
    %v9924 = vsel %vm9922, %v9923, %v9914
    %v9925 = vsel %vm9918, %v9921, %v9924
    %v9926 = vsel %vm9915, nan, %v9925
    %v9927 = vand.u32 2147483647, %v7748
    %vm9928 = vcmp.le.f32.partialorder %v9927, 0.7853982
    %vm9929 = vcmp.lt.s32.totalorder %v7748, 0
    %v9930 = vand.u32 %v7748, 2139095040
    %v9931 = vshrl.u32 %v9930, 23
    %v9932 = vsub.s32 %v9931, 127
    %v9933 = vand.u32 2147483647, %v7748
    %v9934 = vand.u32 %v9933, 8388607
    %v9935 = vor.u32 %v9934, 8388608
    %v9936 = vsub.s32 0, %v9935
    %v9937 = vadd.s32 %v9932, 1
    %vm9938 = vcmp.gt.s32.totalorder %v9937, 0
    %v9939 = vsel %vm9938, %v9937, 0
    %v9940 = vshrl.u32 %v9939, 5
    %v9941 = vand.u32 %v9939, 31
    %v9942 = vsub.s32 32, %v9941
    %v9943 = vshrl.u32 683565275, %v9942
    %v9944 = vshll.u32 683565275, %v9941
    %v9945 = vshrl.u32 2475754826, %v9942
    %v9946 = vor.u32 %v9944, %v9945
    %v9947 = vshll.u32 2475754826, %v9941
    %v9948 = vshrl.u32 2131351028, %v9942
    %v9949 = vor.u32 %v9947, %v9948
    %v9950 = vshll.u32 2131351028, %v9941
    %v9951 = vshrl.u32 2102212464, %v9942
    %v9952 = vor.u32 %v9950, %v9951
    %v9953 = vshll.u32 2102212464, %v9941
    %v9954 = vshrl.u32 920167782, %v9942
    %v9955 = vor.u32 %v9953, %v9954
    %v9956 = vshll.u32 920167782, %v9941
    %v9957 = vshrl.u32 1326507024, %v9942
    %v9958 = vor.u32 %v9956, %v9957
    %vm9959 = vcmp.lt.s32.totalorder %v9940, 1
    %vm9960 = vcmp.lt.s32.totalorder %v9940, 2
    %vm9961 = vcmp.lt.s32.totalorder %v9940, 3
    %vm9962 = vcmp.lt.s32.totalorder %v9940, 4
    %v9963 = vsel %vm9959, %v9943, %v9946
    %v9964 = vsel %vm9962, %v9952, 2102212464
    %v9965 = vsel %vm9961, %v9949, %v9964
    %v9966 = vsel %vm9960, %v9963, %v9965
    %v9967 = vsel %vm9959, %v9946, %v9949
    %v9968 = vsel %vm9962, %v9955, 920167782
    %v9969 = vsel %vm9961, %v9952, %v9968
    %v9970 = vsel %vm9960, %v9967, %v9969
    %v9971 = vsel %vm9959, %v9949, %v9952
    %v9972 = vsel %vm9962, %v9958, 1326507024
    %v9973 = vsel %vm9961, %v9955, %v9972
    %v9974 = vsel %vm9960, %v9971, %v9973
    %v9975 = vshll.u32 %v9935, 8
    %v9976 = vmul.u32.u64.compose %v9975, %v9974
    %v9977 = vextract.low.u32 %v9976
    %v9978 = vextract.high.u32 %v9976
    %v9979 = vmul.u32.u64.compose %v9975, %v9970
    %v9980 = vextract.low.u32 %v9979
    %v9981 = vextract.high.u32 %v9979
    %v9982 = vmul.u32 %v9975, %v9966
    %v9983 = vadd.s32 %v9978, %v9980
    %vm9984 = vc.u32 %v9978, %v9980
    %v9985 = vadd.s32 %v9981, 1
    %v9986 = vsel %vm9984, %v9985, %v9981
    %v9987 = vadd.s32 %v9982, %v9986
    %v9988 = vadd.s32 %v9987, 536870912
    %v9989 = vshrl.u32 %v9988, 30
    %v9990 = vshll.u32 %v9989, 30
    %v9991 = vsub.s32 %v9987, %v9990
    %vm9992 = vcmp.lt.s32.totalorder %v9991, 0
    %v9993 = vsub.s32 0, %v9991
    %v9994 = vsel %vm9992, %v9993, %v9991
    %v9995 = vclz %v9994
    %v9996 = vsub.s32 %v9995, 2
    %vm9997 = vcmp.gt.s32.totalorder 0, %v9996
    %v9998 = vsel %vm9997, 0, %v9996
    %v9999 = vsub.s32 32, %v9998
    %v10000 = vshll.u32 %v9991, %v9998
    %v10001 = vshrl.u32 %v9983, %v9999
    %v10002 = vor.u32 %v10000, %v10001
    %v10003 = vsub.s32 4294967266, %v9998
    %v10004 = vadd.s32 %v10003, 127
    %v10005 = vshll.u32 %v10004, 23
    %v10006 = vor.u32 4788187, %v10005
    %v10007 = vand.u32 2147483647, %v10006
    %v10009 = vcvt.s32.f32 %v10002
    %v10010 = vmul.f32 %v10009, %v10007
    %v10011 = vxor.u32 %v10010, 2147483648
    %v10012 = vsel %vm9929, %v10011, %v10010
    %v10013 = vsub.s32 4, %v9989
    %v10014 = vsel %vm9929, %v10013, %v9989
    %v10015 = vsel %vm9928, %v7748, %v10012
    %v10016 = vsel %vm9928, 0, %v10014
    %v10017 = vcosq.f32.pop %v10015
    %v10018 = vsinq.f32.pop %v10015
    %vm10019 = vweird.f32 %v7748
    %v10020 = vadd.s32 %v10016, 3
    %v10021 = vand.u32 %v10020, 3
    %vm10022 = vcmp.lt.s32.totalorder %v10021, 2
    %vm10023 = vcmp.eq.s32.totalorder %v10021, 0
    %v10024 = vxor.u32 %v10018, 2147483648
    %v10025 = vsel %vm10023, %v10017, %v10024
    %vm10026 = vcmp.eq.s32.totalorder %v10021, 2
    %v10027 = vxor.u32 %v10017, 2147483648
    %v10028 = vsel %vm10026, %v10027, %v10018
    %v10029 = vsel %vm10022, %v10025, %v10028
    %v10030 = vsel %vm10019, nan, %v10029
    %v10031 = vand.u32 2147483647, %v7750
    %vm10032 = vcmp.le.f32.partialorder %v10031, 0.7853982
    %vm10033 = vcmp.lt.s32.totalorder %v7750, 0
    %v10034 = vand.u32 %v7750, 2139095040
    %v10035 = vshrl.u32 %v10034, 23
    %v10036 = vsub.s32 %v10035, 127
    %v10037 = vand.u32 2147483647, %v7750
    %v10038 = vand.u32 %v10037, 8388607
    %v10039 = vor.u32 %v10038, 8388608
    %v10040 = vsub.s32 0, %v10039
    %v10041 = vadd.s32 %v10036, 1
    %vm10042 = vcmp.gt.s32.totalorder %v10041, 0
    %v10043 = vsel %vm10042, %v10041, 0
    %v10044 = vshrl.u32 %v10043, 5
    %v10045 = vand.u32 %v10043, 31
    %v10046 = vsub.s32 32, %v10045
    %v10047 = vshrl.u32 683565275, %v10046
    %v10048 = vshll.u32 683565275, %v10045
    %v10049 = vshrl.u32 2475754826, %v10046
    %v10050 = vor.u32 %v10048, %v10049
    %v10051 = vshll.u32 2475754826, %v10045
    %v10052 = vshrl.u32 2131351028, %v10046
    %v10053 = vor.u32 %v10051, %v10052
    %v10054 = vshll.u32 2131351028, %v10045
    %v10055 = vshrl.u32 2102212464, %v10046
    %v10056 = vor.u32 %v10054, %v10055
    %v10057 = vshll.u32 2102212464, %v10045
    %v10058 = vshrl.u32 920167782, %v10046
    %v10059 = vor.u32 %v10057, %v10058
    %v10060 = vshll.u32 920167782, %v10045
    %v10061 = vshrl.u32 1326507024, %v10046
    %v10062 = vor.u32 %v10060, %v10061
    %vm10063 = vcmp.lt.s32.totalorder %v10044, 1
    %vm10064 = vcmp.lt.s32.totalorder %v10044, 2
    %vm10065 = vcmp.lt.s32.totalorder %v10044, 3
    %vm10066 = vcmp.lt.s32.totalorder %v10044, 4
    %v10067 = vsel %vm10063, %v10047, %v10050
    %v10068 = vsel %vm10066, %v10056, 2102212464
    %v10069 = vsel %vm10065, %v10053, %v10068
    %v10070 = vsel %vm10064, %v10067, %v10069
    %v10071 = vsel %vm10063, %v10050, %v10053
    %v10072 = vsel %vm10066, %v10059, 920167782
    %v10073 = vsel %vm10065, %v10056, %v10072
    %v10074 = vsel %vm10064, %v10071, %v10073
    %v10075 = vsel %vm10063, %v10053, %v10056
    %v10076 = vsel %vm10066, %v10062, 1326507024
    %v10077 = vsel %vm10065, %v10059, %v10076
    %v10078 = vsel %vm10064, %v10075, %v10077
    %v10079 = vshll.u32 %v10039, 8
    %v10080 = vmul.u32.u64.compose %v10079, %v10078
    %v10081 = vextract.low.u32 %v10080
    %v10082 = vextract.high.u32 %v10080
    %v10083 = vmul.u32.u64.compose %v10079, %v10074
    %v10084 = vextract.low.u32 %v10083
    %v10085 = vextract.high.u32 %v10083
    %v10086 = vmul.u32 %v10079, %v10070
    %v10087 = vadd.s32 %v10082, %v10084
    %vm10088 = vc.u32 %v10082, %v10084
    %v10089 = vadd.s32 %v10085, 1
    %v10090 = vsel %vm10088, %v10089, %v10085
    %v10091 = vadd.s32 %v10086, %v10090
    %v10092 = vadd.s32 %v10091, 536870912
    %v10093 = vshrl.u32 %v10092, 30
    %v10094 = vshll.u32 %v10093, 30
    %v10095 = vsub.s32 %v10091, %v10094
    %vm10096 = vcmp.lt.s32.totalorder %v10095, 0
    %v10097 = vsub.s32 0, %v10095
    %v10098 = vsel %vm10096, %v10097, %v10095
    %v10099 = vclz %v10098
    %v10100 = vsub.s32 %v10099, 2
    %vm10101 = vcmp.gt.s32.totalorder 0, %v10100
    %v10102 = vsel %vm10101, 0, %v10100
    %v10103 = vsub.s32 32, %v10102
    %v10104 = vshll.u32 %v10095, %v10102
    %v10105 = vshrl.u32 %v10087, %v10103
    %v10106 = vor.u32 %v10104, %v10105
    %v10107 = vsub.s32 4294967266, %v10102
    %v10108 = vadd.s32 %v10107, 127
    %v10109 = vshll.u32 %v10108, 23
    %v10110 = vor.u32 4788187, %v10109
    %v10111 = vand.u32 2147483647, %v10110
    %v10113 = vcvt.s32.f32 %v10106
    %v10114 = vmul.f32 %v10113, %v10111
    %v10115 = vxor.u32 %v10114, 2147483648
    %v10116 = vsel %vm10033, %v10115, %v10114
    %v10117 = vsub.s32 4, %v10093
    %v10118 = vsel %vm10033, %v10117, %v10093
    %v10119 = vsel %vm10032, %v7750, %v10116
    %v10120 = vsel %vm10032, 0, %v10118
    %v10121 = vcosq.f32.pop %v10119
    %v10122 = vsinq.f32.pop %v10119
    %vm10123 = vweird.f32 %v7750
    %v10124 = vadd.s32 %v10120, 3
    %v10125 = vand.u32 %v10124, 3
    %vm10126 = vcmp.lt.s32.totalorder %v10125, 2
    %vm10127 = vcmp.eq.s32.totalorder %v10125, 0
    %v10128 = vxor.u32 %v10122, 2147483648
    %v10129 = vsel %vm10127, %v10121, %v10128
    %vm10130 = vcmp.eq.s32.totalorder %v10125, 2
    %v10131 = vxor.u32 %v10121, 2147483648
    %v10132 = vsel %vm10130, %v10131, %v10122
    %v10133 = vsel %vm10126, %v10129, %v10132
    %v10134 = vsel %vm10123, nan, %v10133
    %v10135 = vand.u32 2147483647, %v7837
    %vm10136 = vcmp.le.f32.partialorder %v10135, 0.7853982
    %vm10137 = vcmp.lt.s32.totalorder %v7837, 0
    %v10138 = vand.u32 %v7837, 2139095040
    %v10139 = vshrl.u32 %v10138, 23
    %v10140 = vsub.s32 %v10139, 127
    %v10141 = vand.u32 2147483647, %v7837
    %v10142 = vand.u32 %v10141, 8388607
    %v10143 = vor.u32 %v10142, 8388608
    %v10144 = vsub.s32 0, %v10143
    %v10145 = vadd.s32 %v10140, 1
    %vm10146 = vcmp.gt.s32.totalorder %v10145, 0
    %v10147 = vsel %vm10146, %v10145, 0
    %v10148 = vshrl.u32 %v10147, 5
    %v10149 = vand.u32 %v10147, 31
    %v10150 = vsub.s32 32, %v10149
    %v10151 = vshrl.u32 683565275, %v10150
    %v10152 = vshll.u32 683565275, %v10149
    %v10153 = vshrl.u32 2475754826, %v10150
    %v10154 = vor.u32 %v10152, %v10153
    %v10155 = vshll.u32 2475754826, %v10149
    %v10156 = vshrl.u32 2131351028, %v10150
    %v10157 = vor.u32 %v10155, %v10156
    %v10158 = vshll.u32 2131351028, %v10149
    %v10159 = vshrl.u32 2102212464, %v10150
    %v10160 = vor.u32 %v10158, %v10159
    %v10161 = vshll.u32 2102212464, %v10149
    %v10162 = vshrl.u32 920167782, %v10150
    %v10163 = vor.u32 %v10161, %v10162
    %v10164 = vshll.u32 920167782, %v10149
    %v10165 = vshrl.u32 1326507024, %v10150
    %v10166 = vor.u32 %v10164, %v10165
    %vm10167 = vcmp.lt.s32.totalorder %v10148, 1
    %vm10168 = vcmp.lt.s32.totalorder %v10148, 2
    %vm10169 = vcmp.lt.s32.totalorder %v10148, 3
    %vm10170 = vcmp.lt.s32.totalorder %v10148, 4
    %v10171 = vsel %vm10167, %v10151, %v10154
    %v10172 = vsel %vm10170, %v10160, 2102212464
    %v10173 = vsel %vm10169, %v10157, %v10172
    %v10174 = vsel %vm10168, %v10171, %v10173
    %v10175 = vsel %vm10167, %v10154, %v10157
    %v10176 = vsel %vm10170, %v10163, 920167782
    %v10177 = vsel %vm10169, %v10160, %v10176
    %v10178 = vsel %vm10168, %v10175, %v10177
    %v10179 = vsel %vm10167, %v10157, %v10160
    %v10180 = vsel %vm10170, %v10166, 1326507024
    %v10181 = vsel %vm10169, %v10163, %v10180
    %v10182 = vsel %vm10168, %v10179, %v10181
    %v10183 = vshll.u32 %v10143, 8
    %v10184 = vmul.u32.u64.compose %v10183, %v10182
    %v10185 = vextract.low.u32 %v10184
    %v10186 = vextract.high.u32 %v10184
    %v10187 = vmul.u32.u64.compose %v10183, %v10178
    %v10188 = vextract.low.u32 %v10187
    %v10189 = vextract.high.u32 %v10187
    %v10190 = vmul.u32 %v10183, %v10174
    %v10191 = vadd.s32 %v10186, %v10188
    %vm10192 = vc.u32 %v10186, %v10188
    %v10193 = vadd.s32 %v10189, 1
    %v10194 = vsel %vm10192, %v10193, %v10189
    %v10195 = vadd.s32 %v10190, %v10194
    %v10196 = vadd.s32 %v10195, 536870912
    %v10197 = vshrl.u32 %v10196, 30
    %v10198 = vshll.u32 %v10197, 30
    %v10199 = vsub.s32 %v10195, %v10198
    %vm10200 = vcmp.lt.s32.totalorder %v10199, 0
    %v10201 = vsub.s32 0, %v10199
    %v10202 = vsel %vm10200, %v10201, %v10199
    %v10203 = vclz %v10202
    %v10204 = vsub.s32 %v10203, 2
    %vm10205 = vcmp.gt.s32.totalorder 0, %v10204
    %v10206 = vsel %vm10205, 0, %v10204
    %v10207 = vsub.s32 32, %v10206
    %v10208 = vshll.u32 %v10199, %v10206
    %v10209 = vshrl.u32 %v10191, %v10207
    %v10210 = vor.u32 %v10208, %v10209
    %v10211 = vsub.s32 4294967266, %v10206
    %v10212 = vadd.s32 %v10211, 127
    %v10213 = vshll.u32 %v10212, 23
    %v10214 = vor.u32 4788187, %v10213
    %v10215 = vand.u32 2147483647, %v10214
    %v10217 = vcvt.s32.f32 %v10210
    %v10218 = vmul.f32 %v10217, %v10215
    %v10219 = vxor.u32 %v10218, 2147483648
    %v10220 = vsel %vm10137, %v10219, %v10218
    %v10221 = vsub.s32 4, %v10197
    %v10222 = vsel %vm10137, %v10221, %v10197
    %v10223 = vsel %vm10136, %v7837, %v10220
    %v10224 = vsel %vm10136, 0, %v10222
    %v10225 = vcosq.f32.pop %v10223
    %v10226 = vsinq.f32.pop %v10223
    %vm10227 = vweird.f32 %v7837
    %v10228 = vadd.s32 %v10224, 3
    %v10229 = vand.u32 %v10228, 3
    %vm10230 = vcmp.lt.s32.totalorder %v10229, 2
    %vm10231 = vcmp.eq.s32.totalorder %v10229, 0
    %v10232 = vxor.u32 %v10226, 2147483648
    %v10233 = vsel %vm10231, %v10225, %v10232
    %vm10234 = vcmp.eq.s32.totalorder %v10229, 2
    %v10235 = vxor.u32 %v10225, 2147483648
    %v10236 = vsel %vm10234, %v10235, %v10226
    %v10237 = vsel %vm10230, %v10233, %v10236
    %v10238 = vsel %vm10227, nan, %v10237
    %v10239 = vand.u32 2147483647, %v7839
    %vm10240 = vcmp.le.f32.partialorder %v10239, 0.7853982
    %vm10241 = vcmp.lt.s32.totalorder %v7839, 0
    %v10242 = vand.u32 %v7839, 2139095040
    %v10243 = vshrl.u32 %v10242, 23
    %v10244 = vsub.s32 %v10243, 127
    %v10245 = vand.u32 2147483647, %v7839
    %v10246 = vand.u32 %v10245, 8388607
    %v10247 = vor.u32 %v10246, 8388608
    %v10248 = vsub.s32 0, %v10247
    %v10249 = vadd.s32 %v10244, 1
    %vm10250 = vcmp.gt.s32.totalorder %v10249, 0
    %v10251 = vsel %vm10250, %v10249, 0
    %v10252 = vshrl.u32 %v10251, 5
    %v10253 = vand.u32 %v10251, 31
    %v10254 = vsub.s32 32, %v10253
    %v10255 = vshrl.u32 683565275, %v10254
    %v10256 = vshll.u32 683565275, %v10253
    %v10257 = vshrl.u32 2475754826, %v10254
    %v10258 = vor.u32 %v10256, %v10257
    %v10259 = vshll.u32 2475754826, %v10253
    %v10260 = vshrl.u32 2131351028, %v10254
    %v10261 = vor.u32 %v10259, %v10260
    %v10262 = vshll.u32 2131351028, %v10253
    %v10263 = vshrl.u32 2102212464, %v10254
    %v10264 = vor.u32 %v10262, %v10263
    %v10265 = vshll.u32 2102212464, %v10253
    %v10266 = vshrl.u32 920167782, %v10254
    %v10267 = vor.u32 %v10265, %v10266
    %v10268 = vshll.u32 920167782, %v10253
    %v10269 = vshrl.u32 1326507024, %v10254
    %v10270 = vor.u32 %v10268, %v10269
    %vm10271 = vcmp.lt.s32.totalorder %v10252, 1
    %vm10272 = vcmp.lt.s32.totalorder %v10252, 2
    %vm10273 = vcmp.lt.s32.totalorder %v10252, 3
    %vm10274 = vcmp.lt.s32.totalorder %v10252, 4
    %v10275 = vsel %vm10271, %v10255, %v10258
    %v10276 = vsel %vm10274, %v10264, 2102212464
    %v10277 = vsel %vm10273, %v10261, %v10276
    %v10278 = vsel %vm10272, %v10275, %v10277
    %v10279 = vsel %vm10271, %v10258, %v10261
    %v10280 = vsel %vm10274, %v10267, 920167782
    %v10281 = vsel %vm10273, %v10264, %v10280
    %v10282 = vsel %vm10272, %v10279, %v10281
    %v10283 = vsel %vm10271, %v10261, %v10264
    %v10284 = vsel %vm10274, %v10270, 1326507024
    %v10285 = vsel %vm10273, %v10267, %v10284
    %v10286 = vsel %vm10272, %v10283, %v10285
    %v10287 = vshll.u32 %v10247, 8
    %v10288 = vmul.u32.u64.compose %v10287, %v10286
    %v10289 = vextract.low.u32 %v10288
    %v10290 = vextract.high.u32 %v10288
    %v10291 = vmul.u32.u64.compose %v10287, %v10282
    %v10292 = vextract.low.u32 %v10291
    %v10293 = vextract.high.u32 %v10291
    %v10294 = vmul.u32 %v10287, %v10278
    %v10295 = vadd.s32 %v10290, %v10292
    %vm10296 = vc.u32 %v10290, %v10292
    %v10297 = vadd.s32 %v10293, 1
    %v10298 = vsel %vm10296, %v10297, %v10293
    %v10299 = vadd.s32 %v10294, %v10298
    %v10300 = vadd.s32 %v10299, 536870912
    %v10301 = vshrl.u32 %v10300, 30
    %v10302 = vshll.u32 %v10301, 30
    %v10303 = vsub.s32 %v10299, %v10302
    %vm10304 = vcmp.lt.s32.totalorder %v10303, 0
    %v10305 = vsub.s32 0, %v10303
    %v10306 = vsel %vm10304, %v10305, %v10303
    %v10307 = vclz %v10306
    %v10308 = vsub.s32 %v10307, 2
    %vm10309 = vcmp.gt.s32.totalorder 0, %v10308
    %v10310 = vsel %vm10309, 0, %v10308
    %v10311 = vsub.s32 32, %v10310
    %v10312 = vshll.u32 %v10303, %v10310
    %v10313 = vshrl.u32 %v10295, %v10311
    %v10314 = vor.u32 %v10312, %v10313
    %v10315 = vsub.s32 4294967266, %v10310
    %v10316 = vadd.s32 %v10315, 127
    %v10317 = vshll.u32 %v10316, 23
    %v10318 = vor.u32 4788187, %v10317
    %v10319 = vand.u32 2147483647, %v10318
    %v10321 = vcvt.s32.f32 %v10314
    %v10322 = vmul.f32 %v10321, %v10319
    %v10323 = vxor.u32 %v10322, 2147483648
    %v10324 = vsel %vm10241, %v10323, %v10322
    %v10325 = vsub.s32 4, %v10301
    %v10326 = vsel %vm10241, %v10325, %v10301
    %v10327 = vsel %vm10240, %v7839, %v10324
    %v10328 = vsel %vm10240, 0, %v10326
    %v10329 = vcosq.f32.pop %v10327
    %v10330 = vsinq.f32.pop %v10327
    %vm10331 = vweird.f32 %v7839
    %v10332 = vadd.s32 %v10328, 3
    %v10333 = vand.u32 %v10332, 3
    %vm10334 = vcmp.lt.s32.totalorder %v10333, 2
    %vm10335 = vcmp.eq.s32.totalorder %v10333, 0
    %v10336 = vxor.u32 %v10330, 2147483648
    %v10337 = vsel %vm10335, %v10329, %v10336
    %vm10338 = vcmp.eq.s32.totalorder %v10333, 2
    %v10339 = vxor.u32 %v10329, 2147483648
    %v10340 = vsel %vm10338, %v10339, %v10330
    %v10341 = vsel %vm10334, %v10337, %v10340
    %v10342 = vsel %vm10331, nan, %v10341
    %v10343 = vand.u32 2147483647, %v7576
    %vm10344 = vcmp.le.f32.partialorder %v10343, 0.7853982
    %vm10345 = vcmp.lt.s32.totalorder %v7576, 0
    %v10346 = vand.u32 %v7576, 2139095040
    %v10347 = vshrl.u32 %v10346, 23
    %v10348 = vsub.s32 %v10347, 127
    %v10349 = vand.u32 2147483647, %v7576
    %v10350 = vand.u32 %v10349, 8388607
    %v10351 = vor.u32 %v10350, 8388608
    %v10352 = vsub.s32 0, %v10351
    %v10353 = vadd.s32 %v10348, 1
    %vm10354 = vcmp.gt.s32.totalorder %v10353, 0
    %v10355 = vsel %vm10354, %v10353, 0
    %v10356 = vshrl.u32 %v10355, 5
    %v10357 = vand.u32 %v10355, 31
    %v10358 = vsub.s32 32, %v10357
    %v10359 = vshrl.u32 683565275, %v10358
    %v10360 = vshll.u32 683565275, %v10357
    %v10361 = vshrl.u32 2475754826, %v10358
    %v10362 = vor.u32 %v10360, %v10361
    %v10363 = vshll.u32 2475754826, %v10357
    %v10364 = vshrl.u32 2131351028, %v10358
    %v10365 = vor.u32 %v10363, %v10364
    %v10366 = vshll.u32 2131351028, %v10357
    %v10367 = vshrl.u32 2102212464, %v10358
    %v10368 = vor.u32 %v10366, %v10367
    %v10369 = vshll.u32 2102212464, %v10357
    %v10370 = vshrl.u32 920167782, %v10358
    %v10371 = vor.u32 %v10369, %v10370
    %v10372 = vshll.u32 920167782, %v10357
    %v10373 = vshrl.u32 1326507024, %v10358
    %v10374 = vor.u32 %v10372, %v10373
    %vm10375 = vcmp.lt.s32.totalorder %v10356, 1
    %vm10376 = vcmp.lt.s32.totalorder %v10356, 2
    %vm10377 = vcmp.lt.s32.totalorder %v10356, 3
    %vm10378 = vcmp.lt.s32.totalorder %v10356, 4
    %v10379 = vsel %vm10375, %v10359, %v10362
    %v10380 = vsel %vm10378, %v10368, 2102212464
    %v10381 = vsel %vm10377, %v10365, %v10380
    %v10382 = vsel %vm10376, %v10379, %v10381
    %v10383 = vsel %vm10375, %v10362, %v10365
    %v10384 = vsel %vm10378, %v10371, 920167782
    %v10385 = vsel %vm10377, %v10368, %v10384
    %v10386 = vsel %vm10376, %v10383, %v10385
    %v10387 = vsel %vm10375, %v10365, %v10368
    %v10388 = vsel %vm10378, %v10374, 1326507024
    %v10389 = vsel %vm10377, %v10371, %v10388
    %v10390 = vsel %vm10376, %v10387, %v10389
    %v10391 = vshll.u32 %v10351, 8
    %v10392 = vmul.u32.u64.compose %v10391, %v10390
    %v10393 = vextract.low.u32 %v10392
    %v10394 = vextract.high.u32 %v10392
    %v10395 = vmul.u32.u64.compose %v10391, %v10386
    %v10396 = vextract.low.u32 %v10395
    %v10397 = vextract.high.u32 %v10395
    %v10398 = vmul.u32 %v10391, %v10382
    %v10399 = vadd.s32 %v10394, %v10396
    %vm10400 = vc.u32 %v10394, %v10396
    %v10401 = vadd.s32 %v10397, 1
    %v10402 = vsel %vm10400, %v10401, %v10397
    %v10403 = vadd.s32 %v10398, %v10402
    %v10404 = vadd.s32 %v10403, 536870912
    %v10405 = vshrl.u32 %v10404, 30
    %v10406 = vshll.u32 %v10405, 30
    %v10407 = vsub.s32 %v10403, %v10406
    %vm10408 = vcmp.lt.s32.totalorder %v10407, 0
    %v10409 = vsub.s32 0, %v10407
    %v10410 = vsel %vm10408, %v10409, %v10407
    %v10411 = vclz %v10410
    %v10412 = vsub.s32 %v10411, 2
    %vm10413 = vcmp.gt.s32.totalorder 0, %v10412
    %v10414 = vsel %vm10413, 0, %v10412
    %v10415 = vsub.s32 32, %v10414
    %v10416 = vshll.u32 %v10407, %v10414
    %v10417 = vshrl.u32 %v10399, %v10415
    %v10418 = vor.u32 %v10416, %v10417
    %v10419 = vsub.s32 4294967266, %v10414
    %v10420 = vadd.s32 %v10419, 127
    %v10421 = vshll.u32 %v10420, 23
    %v10422 = vor.u32 4788187, %v10421
    %v10423 = vand.u32 2147483647, %v10422
    %v10425 = vcvt.s32.f32 %v10418
    %v10426 = vmul.f32 %v10425, %v10423
    %v10427 = vxor.u32 %v10426, 2147483648
    %v10428 = vsel %vm10345, %v10427, %v10426
    %v10429 = vsub.s32 4, %v10405
    %v10430 = vsel %vm10345, %v10429, %v10405
    %v10431 = vsel %vm10344, %v7576, %v10428
    %v10432 = vsel %vm10344, 0, %v10430
    %v10433 = vcosq.f32.pop %v10431
    %v10434 = vsinq.f32.pop %v10431
    %vm10435 = vweird.f32 %v7576
    %v10436 = vadd.s32 %v10432, 3
    %v10437 = vand.u32 %v10436, 3
    %vm10438 = vcmp.lt.s32.totalorder %v10437, 2
    %vm10439 = vcmp.eq.s32.totalorder %v10437, 0
    %v10440 = vxor.u32 %v10434, 2147483648
    %v10441 = vsel %vm10439, %v10433, %v10440
    %vm10442 = vcmp.eq.s32.totalorder %v10437, 2
    %v10443 = vxor.u32 %v10433, 2147483648
    %v10444 = vsel %vm10442, %v10443, %v10434
    %v10445 = vsel %vm10438, %v10441, %v10444
    %v10446 = vsel %vm10435, nan, %v10445
    %v10447 = vand.u32 2147483647, %v7578
    %vm10448 = vcmp.le.f32.partialorder %v10447, 0.7853982
    %vm10449 = vcmp.lt.s32.totalorder %v7578, 0
    %v10450 = vand.u32 %v7578, 2139095040
    %v10451 = vshrl.u32 %v10450, 23
    %v10452 = vsub.s32 %v10451, 127
    %v10453 = vand.u32 2147483647, %v7578
    %v10454 = vand.u32 %v10453, 8388607
    %v10455 = vor.u32 %v10454, 8388608
    %v10456 = vsub.s32 0, %v10455
    %v10457 = vadd.s32 %v10452, 1
    %vm10458 = vcmp.gt.s32.totalorder %v10457, 0
    %v10459 = vsel %vm10458, %v10457, 0
    %v10460 = vshrl.u32 %v10459, 5
    %v10461 = vand.u32 %v10459, 31
    %v10462 = vsub.s32 32, %v10461
    %v10463 = vshrl.u32 683565275, %v10462
    %v10464 = vshll.u32 683565275, %v10461
    %v10465 = vshrl.u32 2475754826, %v10462
    %v10466 = vor.u32 %v10464, %v10465
    %v10467 = vshll.u32 2475754826, %v10461
    %v10468 = vshrl.u32 2131351028, %v10462
    %v10469 = vor.u32 %v10467, %v10468
    %v10470 = vshll.u32 2131351028, %v10461
    %v10471 = vshrl.u32 2102212464, %v10462
    %v10472 = vor.u32 %v10470, %v10471
    %v10473 = vshll.u32 2102212464, %v10461
    %v10474 = vshrl.u32 920167782, %v10462
    %v10475 = vor.u32 %v10473, %v10474
    %v10476 = vshll.u32 920167782, %v10461
    %v10477 = vshrl.u32 1326507024, %v10462
    %v10478 = vor.u32 %v10476, %v10477
    %vm10479 = vcmp.lt.s32.totalorder %v10460, 1
    %vm10480 = vcmp.lt.s32.totalorder %v10460, 2
    %vm10481 = vcmp.lt.s32.totalorder %v10460, 3
    %vm10482 = vcmp.lt.s32.totalorder %v10460, 4
    %v10483 = vsel %vm10479, %v10463, %v10466
    %v10484 = vsel %vm10482, %v10472, 2102212464
    %v10485 = vsel %vm10481, %v10469, %v10484
    %v10486 = vsel %vm10480, %v10483, %v10485
    %v10487 = vsel %vm10479, %v10466, %v10469
    %v10488 = vsel %vm10482, %v10475, 920167782
    %v10489 = vsel %vm10481, %v10472, %v10488
    %v10490 = vsel %vm10480, %v10487, %v10489
    %v10491 = vsel %vm10479, %v10469, %v10472
    %v10492 = vsel %vm10482, %v10478, 1326507024
    %v10493 = vsel %vm10481, %v10475, %v10492
    %v10494 = vsel %vm10480, %v10491, %v10493
    %v10495 = vshll.u32 %v10455, 8
    %v10496 = vmul.u32.u64.compose %v10495, %v10494
    %v10497 = vextract.low.u32 %v10496
    %v10498 = vextract.high.u32 %v10496
    %v10499 = vmul.u32.u64.compose %v10495, %v10490
    %v10500 = vextract.low.u32 %v10499
    %v10501 = vextract.high.u32 %v10499
    %v10502 = vmul.u32 %v10495, %v10486
    %v10503 = vadd.s32 %v10498, %v10500
    %vm10504 = vc.u32 %v10498, %v10500
    %v10505 = vadd.s32 %v10501, 1
    %v10506 = vsel %vm10504, %v10505, %v10501
    %v10507 = vadd.s32 %v10502, %v10506
    %v10508 = vadd.s32 %v10507, 536870912
    %v10509 = vshrl.u32 %v10508, 30
    %v10510 = vshll.u32 %v10509, 30
    %v10511 = vsub.s32 %v10507, %v10510
    %vm10512 = vcmp.lt.s32.totalorder %v10511, 0
    %v10513 = vsub.s32 0, %v10511
    %v10514 = vsel %vm10512, %v10513, %v10511
    %v10515 = vclz %v10514
    %v10516 = vsub.s32 %v10515, 2
    %vm10517 = vcmp.gt.s32.totalorder 0, %v10516
    %v10518 = vsel %vm10517, 0, %v10516
    %v10519 = vsub.s32 32, %v10518
    %v10520 = vshll.u32 %v10511, %v10518
    %v10521 = vshrl.u32 %v10503, %v10519
    %v10522 = vor.u32 %v10520, %v10521
    %v10523 = vsub.s32 4294967266, %v10518
    %v10524 = vadd.s32 %v10523, 127
    %v10525 = vshll.u32 %v10524, 23
    %v10526 = vor.u32 4788187, %v10525
    %v10527 = vand.u32 2147483647, %v10526
    %v10529 = vcvt.s32.f32 %v10522
    %v10530 = vmul.f32 %v10529, %v10527
    %v10531 = vxor.u32 %v10530, 2147483648
    %v10532 = vsel %vm10449, %v10531, %v10530
    %v10533 = vsub.s32 4, %v10509
    %v10534 = vsel %vm10449, %v10533, %v10509
    %v10535 = vsel %vm10448, %v7578, %v10532
    %v10536 = vsel %vm10448, 0, %v10534
    %v10537 = vcosq.f32.pop %v10535
    %v10538 = vsinq.f32.pop %v10535
    %vm10539 = vweird.f32 %v7578
    %v10540 = vadd.s32 %v10536, 3
    %v10541 = vand.u32 %v10540, 3
    %vm10542 = vcmp.lt.s32.totalorder %v10541, 2
    %vm10543 = vcmp.eq.s32.totalorder %v10541, 0
    %v10544 = vxor.u32 %v10538, 2147483648
    %v10545 = vsel %vm10543, %v10537, %v10544
    %vm10546 = vcmp.eq.s32.totalorder %v10541, 2
    %v10547 = vxor.u32 %v10537, 2147483648
    %v10548 = vsel %vm10546, %v10547, %v10538
    %v10549 = vsel %vm10542, %v10545, %v10548
    %v10550 = vsel %vm10539, nan, %v10549
    %v10551 = vand.u32 2147483647, %v7665
    %vm10552 = vcmp.le.f32.partialorder %v10551, 0.7853982
    %vm10553 = vcmp.lt.s32.totalorder %v7665, 0
    %v10554 = vand.u32 %v7665, 2139095040
    %v10555 = vshrl.u32 %v10554, 23
    %v10556 = vsub.s32 %v10555, 127
    %v10557 = vand.u32 2147483647, %v7665
    %v10558 = vand.u32 %v10557, 8388607
    %v10559 = vor.u32 %v10558, 8388608
    %v10560 = vsub.s32 0, %v10559
    %v10561 = vadd.s32 %v10556, 1
    %vm10562 = vcmp.gt.s32.totalorder %v10561, 0
    %v10563 = vsel %vm10562, %v10561, 0
    %v10564 = vshrl.u32 %v10563, 5
    %v10565 = vand.u32 %v10563, 31
    %v10566 = vsub.s32 32, %v10565
    %v10567 = vshrl.u32 683565275, %v10566
    %v10568 = vshll.u32 683565275, %v10565
    %v10569 = vshrl.u32 2475754826, %v10566
    %v10570 = vor.u32 %v10568, %v10569
    %v10571 = vshll.u32 2475754826, %v10565
    %v10572 = vshrl.u32 2131351028, %v10566
    %v10573 = vor.u32 %v10571, %v10572
    %v10574 = vshll.u32 2131351028, %v10565
    %v10575 = vshrl.u32 2102212464, %v10566
    %v10576 = vor.u32 %v10574, %v10575
    %v10577 = vshll.u32 2102212464, %v10565
    %v10578 = vshrl.u32 920167782, %v10566
    %v10579 = vor.u32 %v10577, %v10578
    %v10580 = vshll.u32 920167782, %v10565
    %v10581 = vshrl.u32 1326507024, %v10566
    %v10582 = vor.u32 %v10580, %v10581
    %vm10583 = vcmp.lt.s32.totalorder %v10564, 1
    %vm10584 = vcmp.lt.s32.totalorder %v10564, 2
    %vm10585 = vcmp.lt.s32.totalorder %v10564, 3
    %vm10586 = vcmp.lt.s32.totalorder %v10564, 4
    %v10587 = vsel %vm10583, %v10567, %v10570
    %v10588 = vsel %vm10586, %v10576, 2102212464
    %v10589 = vsel %vm10585, %v10573, %v10588
    %v10590 = vsel %vm10584, %v10587, %v10589
    %v10591 = vsel %vm10583, %v10570, %v10573
    %v10592 = vsel %vm10586, %v10579, 920167782
    %v10593 = vsel %vm10585, %v10576, %v10592
    %v10594 = vsel %vm10584, %v10591, %v10593
    %v10595 = vsel %vm10583, %v10573, %v10576
    %v10596 = vsel %vm10586, %v10582, 1326507024
    %v10597 = vsel %vm10585, %v10579, %v10596
    %v10598 = vsel %vm10584, %v10595, %v10597
    %v10599 = vshll.u32 %v10559, 8
    %v10600 = vmul.u32.u64.compose %v10599, %v10598
    %v10601 = vextract.low.u32 %v10600
    %v10602 = vextract.high.u32 %v10600
    %v10603 = vmul.u32.u64.compose %v10599, %v10594
    %v10604 = vextract.low.u32 %v10603
    %v10605 = vextract.high.u32 %v10603
    %v10606 = vmul.u32 %v10599, %v10590
    %v10607 = vadd.s32 %v10602, %v10604
    %vm10608 = vc.u32 %v10602, %v10604
    %v10609 = vadd.s32 %v10605, 1
    %v10610 = vsel %vm10608, %v10609, %v10605
    %v10611 = vadd.s32 %v10606, %v10610
    %v10612 = vadd.s32 %v10611, 536870912
    %v10613 = vshrl.u32 %v10612, 30
    %v10614 = vshll.u32 %v10613, 30
    %v10615 = vsub.s32 %v10611, %v10614
    %vm10616 = vcmp.lt.s32.totalorder %v10615, 0
    %v10617 = vsub.s32 0, %v10615
    %v10618 = vsel %vm10616, %v10617, %v10615
    %v10619 = vclz %v10618
    %v10620 = vsub.s32 %v10619, 2
    %vm10621 = vcmp.gt.s32.totalorder 0, %v10620
    %v10622 = vsel %vm10621, 0, %v10620
    %v10623 = vsub.s32 32, %v10622
    %v10624 = vshll.u32 %v10615, %v10622
    %v10625 = vshrl.u32 %v10607, %v10623
    %v10626 = vor.u32 %v10624, %v10625
    %v10627 = vsub.s32 4294967266, %v10622
    %v10628 = vadd.s32 %v10627, 127
    %v10629 = vshll.u32 %v10628, 23
    %v10630 = vor.u32 4788187, %v10629
    %v10631 = vand.u32 2147483647, %v10630
    %v10633 = vcvt.s32.f32 %v10626
    %v10634 = vmul.f32 %v10633, %v10631
    %v10635 = vxor.u32 %v10634, 2147483648
    %v10636 = vsel %vm10553, %v10635, %v10634
    %v10637 = vsub.s32 4, %v10613
    %v10638 = vsel %vm10553, %v10637, %v10613
    %v10639 = vsel %vm10552, %v7665, %v10636
    %v10640 = vsel %vm10552, 0, %v10638
    %v10641 = vcosq.f32.pop %v10639
    %v10642 = vsinq.f32.pop %v10639
    %vm10643 = vweird.f32 %v7665
    %v10644 = vadd.s32 %v10640, 3
    %v10645 = vand.u32 %v10644, 3
    %vm10646 = vcmp.lt.s32.totalorder %v10645, 2
    %vm10647 = vcmp.eq.s32.totalorder %v10645, 0
    %v10648 = vxor.u32 %v10642, 2147483648
    %v10649 = vsel %vm10647, %v10641, %v10648
    %vm10650 = vcmp.eq.s32.totalorder %v10645, 2
    %v10651 = vxor.u32 %v10641, 2147483648
    %v10652 = vsel %vm10650, %v10651, %v10642
    %v10653 = vsel %vm10646, %v10649, %v10652
    %v10654 = vsel %vm10643, nan, %v10653
    %v10655 = vand.u32 2147483647, %v7667
    %vm10656 = vcmp.le.f32.partialorder %v10655, 0.7853982
    %vm10657 = vcmp.lt.s32.totalorder %v7667, 0
    %v10658 = vand.u32 %v7667, 2139095040
    %v10659 = vshrl.u32 %v10658, 23
    %v10660 = vsub.s32 %v10659, 127
    %v10661 = vand.u32 2147483647, %v7667
    %v10662 = vand.u32 %v10661, 8388607
    %v10663 = vor.u32 %v10662, 8388608
    %v10664 = vsub.s32 0, %v10663
    %v10665 = vadd.s32 %v10660, 1
    %vm10666 = vcmp.gt.s32.totalorder %v10665, 0
    %v10667 = vsel %vm10666, %v10665, 0
    %v10668 = vshrl.u32 %v10667, 5
    %v10669 = vand.u32 %v10667, 31
    %v10670 = vsub.s32 32, %v10669
    %v10671 = vshrl.u32 683565275, %v10670
    %v10672 = vshll.u32 683565275, %v10669
    %v10673 = vshrl.u32 2475754826, %v10670
    %v10674 = vor.u32 %v10672, %v10673
    %v10675 = vshll.u32 2475754826, %v10669
    %v10676 = vshrl.u32 2131351028, %v10670
    %v10677 = vor.u32 %v10675, %v10676
    %v10678 = vshll.u32 2131351028, %v10669
    %v10679 = vshrl.u32 2102212464, %v10670
    %v10680 = vor.u32 %v10678, %v10679
    %v10681 = vshll.u32 2102212464, %v10669
    %v10682 = vshrl.u32 920167782, %v10670
    %v10683 = vor.u32 %v10681, %v10682
    %v10684 = vshll.u32 920167782, %v10669
    %v10685 = vshrl.u32 1326507024, %v10670
    %v10686 = vor.u32 %v10684, %v10685
    %vm10687 = vcmp.lt.s32.totalorder %v10668, 1
    %vm10688 = vcmp.lt.s32.totalorder %v10668, 2
    %vm10689 = vcmp.lt.s32.totalorder %v10668, 3
    %vm10690 = vcmp.lt.s32.totalorder %v10668, 4
    %v10691 = vsel %vm10687, %v10671, %v10674
    %v10692 = vsel %vm10690, %v10680, 2102212464
    %v10693 = vsel %vm10689, %v10677, %v10692
    %v10694 = vsel %vm10688, %v10691, %v10693
    %v10695 = vsel %vm10687, %v10674, %v10677
    %v10696 = vsel %vm10690, %v10683, 920167782
    %v10697 = vsel %vm10689, %v10680, %v10696
    %v10698 = vsel %vm10688, %v10695, %v10697
    %v10699 = vsel %vm10687, %v10677, %v10680
    %v10700 = vsel %vm10690, %v10686, 1326507024
    %v10701 = vsel %vm10689, %v10683, %v10700
    %v10702 = vsel %vm10688, %v10699, %v10701
    %v10703 = vshll.u32 %v10663, 8
    %v10704 = vmul.u32.u64.compose %v10703, %v10702
    %v10705 = vextract.low.u32 %v10704
    %v10706 = vextract.high.u32 %v10704
    %v10707 = vmul.u32.u64.compose %v10703, %v10698
    %v10708 = vextract.low.u32 %v10707
    %v10709 = vextract.high.u32 %v10707
    %v10710 = vmul.u32 %v10703, %v10694
    %v10711 = vadd.s32 %v10706, %v10708
    %vm10712 = vc.u32 %v10706, %v10708
    %v10713 = vadd.s32 %v10709, 1
    %v10714 = vsel %vm10712, %v10713, %v10709
    %v10715 = vadd.s32 %v10710, %v10714
    %v10716 = vadd.s32 %v10715, 536870912
    %v10717 = vshrl.u32 %v10716, 30
    %v10718 = vshll.u32 %v10717, 30
    %v10719 = vsub.s32 %v10715, %v10718
    %vm10720 = vcmp.lt.s32.totalorder %v10719, 0
    %v10721 = vsub.s32 0, %v10719
    %v10722 = vsel %vm10720, %v10721, %v10719
    %v10723 = vclz %v10722
    %v10724 = vsub.s32 %v10723, 2
    %vm10725 = vcmp.gt.s32.totalorder 0, %v10724
    %v10726 = vsel %vm10725, 0, %v10724
    %v10727 = vsub.s32 32, %v10726
    %v10728 = vshll.u32 %v10719, %v10726
    %v10729 = vshrl.u32 %v10711, %v10727
    %v10730 = vor.u32 %v10728, %v10729
    %v10731 = vsub.s32 4294967266, %v10726
    %v10732 = vadd.s32 %v10731, 127
    %v10733 = vshll.u32 %v10732, 23
    %v10734 = vor.u32 4788187, %v10733
    %v10735 = vand.u32 2147483647, %v10734
    %v10737 = vcvt.s32.f32 %v10730
    %v10738 = vmul.f32 %v10737, %v10735
    %v10739 = vxor.u32 %v10738, 2147483648
    %v10740 = vsel %vm10657, %v10739, %v10738
    %v10741 = vsub.s32 4, %v10717
    %v10742 = vsel %vm10657, %v10741, %v10717
    %v10743 = vsel %vm10656, %v7667, %v10740
    %v10744 = vsel %vm10656, 0, %v10742
    %v10745 = vcosq.f32.pop %v10743
    %v10746 = vsinq.f32.pop %v10743
    %vm10747 = vweird.f32 %v7667
    %v10748 = vadd.s32 %v10744, 3
    %v10749 = vand.u32 %v10748, 3
    %vm10750 = vcmp.lt.s32.totalorder %v10749, 2
    %vm10751 = vcmp.eq.s32.totalorder %v10749, 0
    %v10752 = vxor.u32 %v10746, 2147483648
    %v10753 = vsel %vm10751, %v10745, %v10752
    %vm10754 = vcmp.eq.s32.totalorder %v10749, 2
    %v10755 = vxor.u32 %v10745, 2147483648
    %v10756 = vsel %vm10754, %v10755, %v10746
    %v10757 = vsel %vm10750, %v10753, %v10756
    %v10758 = vsel %vm10747, nan, %v10757
    %v10759 = vand.u32 2147483647, %v7754
    %vm10760 = vcmp.le.f32.partialorder %v10759, 0.7853982
    %vm10761 = vcmp.lt.s32.totalorder %v7754, 0
    %v10762 = vand.u32 %v7754, 2139095040
    %v10763 = vshrl.u32 %v10762, 23
    %v10764 = vsub.s32 %v10763, 127
    %v10765 = vand.u32 2147483647, %v7754
    %v10766 = vand.u32 %v10765, 8388607
    %v10767 = vor.u32 %v10766, 8388608
    %v10768 = vsub.s32 0, %v10767
    %v10769 = vadd.s32 %v10764, 1
    %vm10770 = vcmp.gt.s32.totalorder %v10769, 0
    %v10771 = vsel %vm10770, %v10769, 0
    %v10772 = vshrl.u32 %v10771, 5
    %v10773 = vand.u32 %v10771, 31
    %v10774 = vsub.s32 32, %v10773
    %v10775 = vshrl.u32 683565275, %v10774
    %v10776 = vshll.u32 683565275, %v10773
    %v10777 = vshrl.u32 2475754826, %v10774
    %v10778 = vor.u32 %v10776, %v10777
    %v10779 = vshll.u32 2475754826, %v10773
    %v10780 = vshrl.u32 2131351028, %v10774
    %v10781 = vor.u32 %v10779, %v10780
    %v10782 = vshll.u32 2131351028, %v10773
    %v10783 = vshrl.u32 2102212464, %v10774
    %v10784 = vor.u32 %v10782, %v10783
    %v10785 = vshll.u32 2102212464, %v10773
    %v10786 = vshrl.u32 920167782, %v10774
    %v10787 = vor.u32 %v10785, %v10786
    %v10788 = vshll.u32 920167782, %v10773
    %v10789 = vshrl.u32 1326507024, %v10774
    %v10790 = vor.u32 %v10788, %v10789
    %vm10791 = vcmp.lt.s32.totalorder %v10772, 1
    %vm10792 = vcmp.lt.s32.totalorder %v10772, 2
    %vm10793 = vcmp.lt.s32.totalorder %v10772, 3
    %vm10794 = vcmp.lt.s32.totalorder %v10772, 4
    %v10795 = vsel %vm10791, %v10775, %v10778
    %v10796 = vsel %vm10794, %v10784, 2102212464
    %v10797 = vsel %vm10793, %v10781, %v10796
    %v10798 = vsel %vm10792, %v10795, %v10797
    %v10799 = vsel %vm10791, %v10778, %v10781
    %v10800 = vsel %vm10794, %v10787, 920167782
    %v10801 = vsel %vm10793, %v10784, %v10800
    %v10802 = vsel %vm10792, %v10799, %v10801
    %v10803 = vsel %vm10791, %v10781, %v10784
    %v10804 = vsel %vm10794, %v10790, 1326507024
    %v10805 = vsel %vm10793, %v10787, %v10804
    %v10806 = vsel %vm10792, %v10803, %v10805
    %v10807 = vshll.u32 %v10767, 8
    %v10808 = vmul.u32.u64.compose %v10807, %v10806
    %v10809 = vextract.low.u32 %v10808
    %v10810 = vextract.high.u32 %v10808
    %v10811 = vmul.u32.u64.compose %v10807, %v10802
    %v10812 = vextract.low.u32 %v10811
    %v10813 = vextract.high.u32 %v10811
    %v10814 = vmul.u32 %v10807, %v10798
    %v10815 = vadd.s32 %v10810, %v10812
    %vm10816 = vc.u32 %v10810, %v10812
    %v10817 = vadd.s32 %v10813, 1
    %v10818 = vsel %vm10816, %v10817, %v10813
    %v10819 = vadd.s32 %v10814, %v10818
    %v10820 = vadd.s32 %v10819, 536870912
    %v10821 = vshrl.u32 %v10820, 30
    %v10822 = vshll.u32 %v10821, 30
    %v10823 = vsub.s32 %v10819, %v10822
    %vm10824 = vcmp.lt.s32.totalorder %v10823, 0
    %v10825 = vsub.s32 0, %v10823
    %v10826 = vsel %vm10824, %v10825, %v10823
    %v10827 = vclz %v10826
    %v10828 = vsub.s32 %v10827, 2
    %vm10829 = vcmp.gt.s32.totalorder 0, %v10828
    %v10830 = vsel %vm10829, 0, %v10828
    %v10831 = vsub.s32 32, %v10830
    %v10832 = vshll.u32 %v10823, %v10830
    %v10833 = vshrl.u32 %v10815, %v10831
    %v10834 = vor.u32 %v10832, %v10833
    %v10835 = vsub.s32 4294967266, %v10830
    %v10836 = vadd.s32 %v10835, 127
    %v10837 = vshll.u32 %v10836, 23
    %v10838 = vor.u32 4788187, %v10837
    %v10839 = vand.u32 2147483647, %v10838
    %v10841 = vcvt.s32.f32 %v10834
    %v10842 = vmul.f32 %v10841, %v10839
    %v10843 = vxor.u32 %v10842, 2147483648
    %v10844 = vsel %vm10761, %v10843, %v10842
    %v10845 = vsub.s32 4, %v10821
    %v10846 = vsel %vm10761, %v10845, %v10821
    %v10847 = vsel %vm10760, %v7754, %v10844
    %v10848 = vsel %vm10760, 0, %v10846
    %v10849 = vcosq.f32.pop %v10847
    %v10850 = vsinq.f32.pop %v10847
    %vm10851 = vweird.f32 %v7754
    %v10852 = vadd.s32 %v10848, 3
    %v10853 = vand.u32 %v10852, 3
    %vm10854 = vcmp.lt.s32.totalorder %v10853, 2
    %vm10855 = vcmp.eq.s32.totalorder %v10853, 0
    %v10856 = vxor.u32 %v10850, 2147483648
    %v10857 = vsel %vm10855, %v10849, %v10856
    %vm10858 = vcmp.eq.s32.totalorder %v10853, 2
    %v10859 = vxor.u32 %v10849, 2147483648
    %v10860 = vsel %vm10858, %v10859, %v10850
    %v10861 = vsel %vm10854, %v10857, %v10860
    %v10862 = vsel %vm10851, nan, %v10861
    %v10863 = vand.u32 2147483647, %v7756
    %vm10864 = vcmp.le.f32.partialorder %v10863, 0.7853982
    %vm10865 = vcmp.lt.s32.totalorder %v7756, 0
    %v10866 = vand.u32 %v7756, 2139095040
    %v10867 = vshrl.u32 %v10866, 23
    %v10868 = vsub.s32 %v10867, 127
    %v10869 = vand.u32 2147483647, %v7756
    %v10870 = vand.u32 %v10869, 8388607
    %v10871 = vor.u32 %v10870, 8388608
    %v10872 = vsub.s32 0, %v10871
    %v10873 = vadd.s32 %v10868, 1
    %vm10874 = vcmp.gt.s32.totalorder %v10873, 0
    %v10875 = vsel %vm10874, %v10873, 0
    %v10876 = vshrl.u32 %v10875, 5
    %v10877 = vand.u32 %v10875, 31
    %v10878 = vsub.s32 32, %v10877
    %v10879 = vshrl.u32 683565275, %v10878
    %v10880 = vshll.u32 683565275, %v10877
    %v10881 = vshrl.u32 2475754826, %v10878
    %v10882 = vor.u32 %v10880, %v10881
    %v10883 = vshll.u32 2475754826, %v10877
    %v10884 = vshrl.u32 2131351028, %v10878
    %v10885 = vor.u32 %v10883, %v10884
    %v10886 = vshll.u32 2131351028, %v10877
    %v10887 = vshrl.u32 2102212464, %v10878
    %v10888 = vor.u32 %v10886, %v10887
    %v10889 = vshll.u32 2102212464, %v10877
    %v10890 = vshrl.u32 920167782, %v10878
    %v10891 = vor.u32 %v10889, %v10890
    %v10892 = vshll.u32 920167782, %v10877
    %v10893 = vshrl.u32 1326507024, %v10878
    %v10894 = vor.u32 %v10892, %v10893
    %vm10895 = vcmp.lt.s32.totalorder %v10876, 1
    %vm10896 = vcmp.lt.s32.totalorder %v10876, 2
    %vm10897 = vcmp.lt.s32.totalorder %v10876, 3
    %vm10898 = vcmp.lt.s32.totalorder %v10876, 4
    %v10899 = vsel %vm10895, %v10879, %v10882
    %v10900 = vsel %vm10898, %v10888, 2102212464
    %v10901 = vsel %vm10897, %v10885, %v10900
    %v10902 = vsel %vm10896, %v10899, %v10901
    %v10903 = vsel %vm10895, %v10882, %v10885
    %v10904 = vsel %vm10898, %v10891, 920167782
    %v10905 = vsel %vm10897, %v10888, %v10904
    %v10906 = vsel %vm10896, %v10903, %v10905
    %v10907 = vsel %vm10895, %v10885, %v10888
    %v10908 = vsel %vm10898, %v10894, 1326507024
    %v10909 = vsel %vm10897, %v10891, %v10908
    %v10910 = vsel %vm10896, %v10907, %v10909
    %v10911 = vshll.u32 %v10871, 8
    %v10912 = vmul.u32.u64.compose %v10911, %v10910
    %v10913 = vextract.low.u32 %v10912
    %v10914 = vextract.high.u32 %v10912
    %v10915 = vmul.u32.u64.compose %v10911, %v10906
    %v10916 = vextract.low.u32 %v10915
    %v10917 = vextract.high.u32 %v10915
    %v10918 = vmul.u32 %v10911, %v10902
    %v10919 = vadd.s32 %v10914, %v10916
    %vm10920 = vc.u32 %v10914, %v10916
    %v10921 = vadd.s32 %v10917, 1
    %v10922 = vsel %vm10920, %v10921, %v10917
    %v10923 = vadd.s32 %v10918, %v10922
    %v10924 = vadd.s32 %v10923, 536870912
    %v10925 = vshrl.u32 %v10924, 30
    %v10926 = vshll.u32 %v10925, 30
    %v10927 = vsub.s32 %v10923, %v10926
    %vm10928 = vcmp.lt.s32.totalorder %v10927, 0
    %v10929 = vsub.s32 0, %v10927
    %v10930 = vsel %vm10928, %v10929, %v10927
    %v10931 = vclz %v10930
    %v10932 = vsub.s32 %v10931, 2
    %vm10933 = vcmp.gt.s32.totalorder 0, %v10932
    %v10934 = vsel %vm10933, 0, %v10932
    %v10935 = vsub.s32 32, %v10934
    %v10936 = vshll.u32 %v10927, %v10934
    %v10937 = vshrl.u32 %v10919, %v10935
    %v10938 = vor.u32 %v10936, %v10937
    %v10939 = vsub.s32 4294967266, %v10934
    %v10940 = vadd.s32 %v10939, 127
    %v10941 = vshll.u32 %v10940, 23
    %v10942 = vor.u32 4788187, %v10941
    %v10943 = vand.u32 2147483647, %v10942
    %v10945 = vcvt.s32.f32 %v10938
    %v10946 = vmul.f32 %v10945, %v10943
    %v10947 = vxor.u32 %v10946, 2147483648
    %v10948 = vsel %vm10865, %v10947, %v10946
    %v10949 = vsub.s32 4, %v10925
    %v10950 = vsel %vm10865, %v10949, %v10925
    %v10951 = vsel %vm10864, %v7756, %v10948
    %v10952 = vsel %vm10864, 0, %v10950
    %v10953 = vcosq.f32.pop %v10951
    %v10954 = vsinq.f32.pop %v10951
    %vm10955 = vweird.f32 %v7756
    %v10956 = vadd.s32 %v10952, 3
    %v10957 = vand.u32 %v10956, 3
    %vm10958 = vcmp.lt.s32.totalorder %v10957, 2
    %vm10959 = vcmp.eq.s32.totalorder %v10957, 0
    %v10960 = vxor.u32 %v10954, 2147483648
    %v10961 = vsel %vm10959, %v10953, %v10960
    %vm10962 = vcmp.eq.s32.totalorder %v10957, 2
    %v10963 = vxor.u32 %v10953, 2147483648
    %v10964 = vsel %vm10962, %v10963, %v10954
    %v10965 = vsel %vm10958, %v10961, %v10964
    %v10966 = vsel %vm10955, nan, %v10965
    %v10967 = vand.u32 2147483647, %v7843
    %vm10968 = vcmp.le.f32.partialorder %v10967, 0.7853982
    %vm10969 = vcmp.lt.s32.totalorder %v7843, 0
    %v10970 = vand.u32 %v7843, 2139095040
    %v10971 = vshrl.u32 %v10970, 23
    %v10972 = vsub.s32 %v10971, 127
    %v10973 = vand.u32 2147483647, %v7843
    %v10974 = vand.u32 %v10973, 8388607
    %v10975 = vor.u32 %v10974, 8388608
    %v10976 = vsub.s32 0, %v10975
    %v10977 = vadd.s32 %v10972, 1
    %vm10978 = vcmp.gt.s32.totalorder %v10977, 0
    %v10979 = vsel %vm10978, %v10977, 0
    %v10980 = vshrl.u32 %v10979, 5
    %v10981 = vand.u32 %v10979, 31
    %v10982 = vsub.s32 32, %v10981
    %v10983 = vshrl.u32 683565275, %v10982
    %v10984 = vshll.u32 683565275, %v10981
    %v10985 = vshrl.u32 2475754826, %v10982
    %v10986 = vor.u32 %v10984, %v10985
    %v10987 = vshll.u32 2475754826, %v10981
    %v10988 = vshrl.u32 2131351028, %v10982
    %v10989 = vor.u32 %v10987, %v10988
    %v10990 = vshll.u32 2131351028, %v10981
    %v10991 = vshrl.u32 2102212464, %v10982
    %v10992 = vor.u32 %v10990, %v10991
    %v10993 = vshll.u32 2102212464, %v10981
    %v10994 = vshrl.u32 920167782, %v10982
    %v10995 = vor.u32 %v10993, %v10994
    %v10996 = vshll.u32 920167782, %v10981
    %v10997 = vshrl.u32 1326507024, %v10982
    %v10998 = vor.u32 %v10996, %v10997
    %vm10999 = vcmp.lt.s32.totalorder %v10980, 1
    %vm11000 = vcmp.lt.s32.totalorder %v10980, 2
    %vm11001 = vcmp.lt.s32.totalorder %v10980, 3
    %vm11002 = vcmp.lt.s32.totalorder %v10980, 4
    %v11003 = vsel %vm10999, %v10983, %v10986
    %v11004 = vsel %vm11002, %v10992, 2102212464
    %v11005 = vsel %vm11001, %v10989, %v11004
    %v11006 = vsel %vm11000, %v11003, %v11005
    %v11007 = vsel %vm10999, %v10986, %v10989
    %v11008 = vsel %vm11002, %v10995, 920167782
    %v11009 = vsel %vm11001, %v10992, %v11008
    %v11010 = vsel %vm11000, %v11007, %v11009
    %v11011 = vsel %vm10999, %v10989, %v10992
    %v11012 = vsel %vm11002, %v10998, 1326507024
    %v11013 = vsel %vm11001, %v10995, %v11012
    %v11014 = vsel %vm11000, %v11011, %v11013
    %v11015 = vshll.u32 %v10975, 8
    %v11016 = vmul.u32.u64.compose %v11015, %v11014
    %v11017 = vextract.low.u32 %v11016
    %v11018 = vextract.high.u32 %v11016
    %v11019 = vmul.u32.u64.compose %v11015, %v11010
    %v11020 = vextract.low.u32 %v11019
    %v11021 = vextract.high.u32 %v11019
    %v11022 = vmul.u32 %v11015, %v11006
    %v11023 = vadd.s32 %v11018, %v11020
    %vm11024 = vc.u32 %v11018, %v11020
    %v11025 = vadd.s32 %v11021, 1
    %v11026 = vsel %vm11024, %v11025, %v11021
    %v11027 = vadd.s32 %v11022, %v11026
    %v11028 = vadd.s32 %v11027, 536870912
    %v11029 = vshrl.u32 %v11028, 30
    %v11030 = vshll.u32 %v11029, 30
    %v11031 = vsub.s32 %v11027, %v11030
    %vm11032 = vcmp.lt.s32.totalorder %v11031, 0
    %v11033 = vsub.s32 0, %v11031
    %v11034 = vsel %vm11032, %v11033, %v11031
    %v11035 = vclz %v11034
    %v11036 = vsub.s32 %v11035, 2
    %vm11037 = vcmp.gt.s32.totalorder 0, %v11036
    %v11038 = vsel %vm11037, 0, %v11036
    %v11039 = vsub.s32 32, %v11038
    %v11040 = vshll.u32 %v11031, %v11038
    %v11041 = vshrl.u32 %v11023, %v11039
    %v11042 = vor.u32 %v11040, %v11041
    %v11043 = vsub.s32 4294967266, %v11038
    %v11044 = vadd.s32 %v11043, 127
    %v11045 = vshll.u32 %v11044, 23
    %v11046 = vor.u32 4788187, %v11045
    %v11047 = vand.u32 2147483647, %v11046
    %v11049 = vcvt.s32.f32 %v11042
    %v11050 = vmul.f32 %v11049, %v11047
    %v11051 = vxor.u32 %v11050, 2147483648
    %v11052 = vsel %vm10969, %v11051, %v11050
    %v11053 = vsub.s32 4, %v11029
    %v11054 = vsel %vm10969, %v11053, %v11029
    %v11055 = vsel %vm10968, %v7843, %v11052
    %v11056 = vsel %vm10968, 0, %v11054
    %v11057 = vcosq.f32.pop %v11055
    %v11058 = vsinq.f32.pop %v11055
    %vm11059 = vweird.f32 %v7843
    %v11060 = vadd.s32 %v11056, 3
    %v11061 = vand.u32 %v11060, 3
    %vm11062 = vcmp.lt.s32.totalorder %v11061, 2
    %vm11063 = vcmp.eq.s32.totalorder %v11061, 0
    %v11064 = vxor.u32 %v11058, 2147483648
    %v11065 = vsel %vm11063, %v11057, %v11064
    %vm11066 = vcmp.eq.s32.totalorder %v11061, 2
    %v11067 = vxor.u32 %v11057, 2147483648
    %v11068 = vsel %vm11066, %v11067, %v11058
    %v11069 = vsel %vm11062, %v11065, %v11068
    %v11070 = vsel %vm11059, nan, %v11069
    %v11071 = vand.u32 2147483647, %v7845
    %vm11072 = vcmp.le.f32.partialorder %v11071, 0.7853982
    %vm11073 = vcmp.lt.s32.totalorder %v7845, 0
    %v11074 = vand.u32 %v7845, 2139095040
    %v11075 = vshrl.u32 %v11074, 23
    %v11076 = vsub.s32 %v11075, 127
    %v11077 = vand.u32 2147483647, %v7845
    %v11078 = vand.u32 %v11077, 8388607
    %v11079 = vor.u32 %v11078, 8388608
    %v11080 = vsub.s32 0, %v11079
    %v11081 = vadd.s32 %v11076, 1
    %vm11082 = vcmp.gt.s32.totalorder %v11081, 0
    %v11083 = vsel %vm11082, %v11081, 0
    %v11084 = vshrl.u32 %v11083, 5
    %v11085 = vand.u32 %v11083, 31
    %v11086 = vsub.s32 32, %v11085
    %v11087 = vshrl.u32 683565275, %v11086
    %v11088 = vshll.u32 683565275, %v11085
    %v11089 = vshrl.u32 2475754826, %v11086
    %v11090 = vor.u32 %v11088, %v11089
    %v11091 = vshll.u32 2475754826, %v11085
    %v11092 = vshrl.u32 2131351028, %v11086
    %v11093 = vor.u32 %v11091, %v11092
    %v11094 = vshll.u32 2131351028, %v11085
    %v11095 = vshrl.u32 2102212464, %v11086
    %v11096 = vor.u32 %v11094, %v11095
    %v11097 = vshll.u32 2102212464, %v11085
    %v11098 = vshrl.u32 920167782, %v11086
    %v11099 = vor.u32 %v11097, %v11098
    %v11100 = vshll.u32 920167782, %v11085
    %v11101 = vshrl.u32 1326507024, %v11086
    %v11102 = vor.u32 %v11100, %v11101
    %vm11103 = vcmp.lt.s32.totalorder %v11084, 1
    %vm11104 = vcmp.lt.s32.totalorder %v11084, 2
    %vm11105 = vcmp.lt.s32.totalorder %v11084, 3
    %vm11106 = vcmp.lt.s32.totalorder %v11084, 4
    %v11107 = vsel %vm11103, %v11087, %v11090
    %v11108 = vsel %vm11106, %v11096, 2102212464
    %v11109 = vsel %vm11105, %v11093, %v11108
    %v11110 = vsel %vm11104, %v11107, %v11109
    %v11111 = vsel %vm11103, %v11090, %v11093
    %v11112 = vsel %vm11106, %v11099, 920167782
    %v11113 = vsel %vm11105, %v11096, %v11112
    %v11114 = vsel %vm11104, %v11111, %v11113
    %v11115 = vsel %vm11103, %v11093, %v11096
    %v11116 = vsel %vm11106, %v11102, 1326507024
    %v11117 = vsel %vm11105, %v11099, %v11116
    %v11118 = vsel %vm11104, %v11115, %v11117
    %v11119 = vshll.u32 %v11079, 8
    %v11120 = vmul.u32.u64.compose %v11119, %v11118
    %v11121 = vextract.low.u32 %v11120
    %v11122 = vextract.high.u32 %v11120
    %v11123 = vmul.u32.u64.compose %v11119, %v11114
    %v11124 = vextract.low.u32 %v11123
    %v11125 = vextract.high.u32 %v11123
    %v11126 = vmul.u32 %v11119, %v11110
    %v11127 = vadd.s32 %v11122, %v11124
    %vm11128 = vc.u32 %v11122, %v11124
    %v11129 = vadd.s32 %v11125, 1
    %v11130 = vsel %vm11128, %v11129, %v11125
    %v11131 = vadd.s32 %v11126, %v11130
    %v11132 = vadd.s32 %v11131, 536870912
    %v11133 = vshrl.u32 %v11132, 30
    %v11134 = vshll.u32 %v11133, 30
    %v11135 = vsub.s32 %v11131, %v11134
    %vm11136 = vcmp.lt.s32.totalorder %v11135, 0
    %v11137 = vsub.s32 0, %v11135
    %v11138 = vsel %vm11136, %v11137, %v11135
    %v11139 = vclz %v11138
    %v11140 = vsub.s32 %v11139, 2
    %vm11141 = vcmp.gt.s32.totalorder 0, %v11140
    %v11142 = vsel %vm11141, 0, %v11140
    %v11143 = vsub.s32 32, %v11142
    %v11144 = vshll.u32 %v11135, %v11142
    %v11145 = vshrl.u32 %v11127, %v11143
    %v11146 = vor.u32 %v11144, %v11145
    %v11147 = vsub.s32 4294967266, %v11142
    %v11148 = vadd.s32 %v11147, 127
    %v11149 = vshll.u32 %v11148, 23
    %v11150 = vor.u32 4788187, %v11149
    %v11151 = vand.u32 2147483647, %v11150
    %v11153 = vcvt.s32.f32 %v11146
    %v11154 = vmul.f32 %v11153, %v11151
    %v11155 = vxor.u32 %v11154, 2147483648
    %v11156 = vsel %vm11073, %v11155, %v11154
    %v11157 = vsub.s32 4, %v11133
    %v11158 = vsel %vm11073, %v11157, %v11133
    %v11159 = vsel %vm11072, %v7845, %v11156
    %v11160 = vsel %vm11072, 0, %v11158
    %v11161 = vcosq.f32.pop %v11159
    %v11162 = vsinq.f32.pop %v11159
    %vm11163 = vweird.f32 %v7845
    %v11164 = vadd.s32 %v11160, 3
    %v11165 = vand.u32 %v11164, 3
    %vm11166 = vcmp.lt.s32.totalorder %v11165, 2
    %vm11167 = vcmp.eq.s32.totalorder %v11165, 0
    %v11168 = vxor.u32 %v11162, 2147483648
    %v11169 = vsel %vm11167, %v11161, %v11168
    %vm11170 = vcmp.eq.s32.totalorder %v11165, 2
    %v11171 = vxor.u32 %v11161, 2147483648
    %v11172 = vsel %vm11170, %v11171, %v11162
    %v11173 = vsel %vm11166, %v11169, %v11172
    %v11174 = vsel %vm11163, nan, %v11173
    %v11175 = vld [vmem:[%s1 + $0x60] sm:$0x7]
    %11177 = vset.pattern.permute.xlu0 32
    %11178 = vperm.xlu0 %11177, %v11175
    %v11179 = vpop.permute.xlu0 %11178
    %v11181 = vsel %vm3766, %v11175, 0
    %11183 = vmatprep.subr.mxu0 0.0
    %11184 = vmatpush1.msra.mxu0 0.0
    %11185 = vmatprep.subr.mxu0 0.0
    %11186 = vmatpush1.msra.mxu0 0.0
    %11187 = vmatprep.subr.mxu0 0.0
    %11188 = vmatpush1.msra.mxu0 0.0
    %11189 = vmatprep.subr.mxu0 0.0
    %11190 = vmatpush1.msra.mxu0 0.0
    %11191 = vmatprep.subr.mxu0 0.0
    %11192 = vmatpush1.msra.mxu0 0.0
    %11193 = vmatprep.subr.mxu0 0.0
    %11194 = vmatpush1.msra.mxu0 0.0
    %11195 = vmatprep.subr.mxu0 0.0
    %11196 = vmatpush1.msra.mxu0 0.0
    %11197 = vmatprep.subr.mxu0 0.0
    %11198 = vmatpush1.msra.mxu0 0.0
    %11199 = vmatprep.subr.mxu0 0.0
    %11200 = vmatpush1.msra.mxu0 0.0
    %11201 = vmatprep.subr.mxu0 0.0
    %11202 = vmatpush1.msra.mxu0 0.0
    %11203 = vmatprep.subr.mxu0 0.0
    %11204 = vmatpush1.msra.mxu0 0.0
    %11205 = vmatprep.subr.mxu0 0.0
    %11206 = vmatpush1.msra.mxu0 0.0
    %11207 = vmatprep.subr.mxu0 %v10550
    %11208 = vmatpush1.msra.mxu0 %v10446
    %11209 = vmatprep.subr.mxu0 %v9718
    %11210 = vmatpush1.msra.mxu0 %v9614
    %11211 = vmatprep.subr.mxu0 %v8886
    %11212 = vmatpush1.msra.mxu0 %v8782
    %11213 = vmatprep.subr.mxu0 %v8054
    %11214 = vmatpush1.msra.mxu0 %v7950
    %11215 = vmatprep.subr.mxu0 0.0
    %11216 = vmatpush2.msra.mxu0 0.0
    %11217 = vmatprep.subr.mxu0 0.0
    %11218 = vmatpush2.msra.mxu0 0.0
    %11219 = vmatprep.subr.mxu0 0.0
    %11220 = vmatpush2.msra.mxu0 0.0
    %11221 = vmatprep.subr.mxu0 0.0
    %11222 = vmatpush2.msra.mxu0 0.0
    %11223 = vmatprep.subr.mxu0 0.0
    %11224 = vmatpush2.msra.mxu0 0.0
    %11225 = vmatprep.subr.mxu0 0.0
    %11226 = vmatpush2.msra.mxu0 0.0
    %11227 = vmatprep.subr.mxu0 0.0
    %11228 = vmatpush2.msra.mxu0 0.0
    %11229 = vmatprep.subr.mxu0 0.0
    %11230 = vmatpush2.msra.mxu0 0.0
    %11231 = vmatprep.subr.mxu0 0.0
    %11232 = vmatpush2.msra.mxu0 0.0
    %11233 = vmatprep.subr.mxu0 0.0
    %11234 = vmatpush2.msra.mxu0 0.0
    %11235 = vmatprep.subr.mxu0 0.0
    %11236 = vmatpush2.msra.mxu0 0.0
    %11237 = vmatprep.subr.mxu0 0.0
    %11238 = vmatpush2.msra.mxu0 0.0
    %11239 = vmatprep.subr.mxu0 0.0
    %11240 = vmatpush2.msra.mxu0 0.0
    %11241 = vmatprep.subr.mxu0 0.0
    %11242 = vmatpush2.msra.mxu0 0.0
    %11243 = vmatprep.subr.mxu0 0.0
    %11244 = vmatpush2.msra.mxu0 0.0
    %11245 = vmatprep.subr.mxu0 0.0
    %11246 = vmatpush2.msra.mxu0 0.0
    %11247 = vmatprep.mubr.f32.mxu0 0.0
    %11248 = vmatmul.mubr.f32.gmra.mxu0 %v11181
    %v11249 = vpop.f32.mrf.mxu0
    %v11250 = vadd.f32 %v11179, %v11249
    %v11251 = vpop.f32.mrf.mxu0
    %v11252 = vadd.f32 %v11179, %v11251
    %11253 = vdwg.mxu0
    %11254 = vmatprep.subr.mxu0 0.0
    %11255 = vmatpush1.msra.mxu0 0.0
    %11256 = vmatprep.subr.mxu0 0.0
    %11257 = vmatpush1.msra.mxu0 0.0
    %11258 = vmatprep.subr.mxu0 0.0
    %11259 = vmatpush1.msra.mxu0 0.0
    %11260 = vmatprep.subr.mxu0 0.0
    %11261 = vmatpush1.msra.mxu0 0.0
    %11262 = vmatprep.subr.mxu0 0.0
    %11263 = vmatpush1.msra.mxu0 0.0
    %11264 = vmatprep.subr.mxu0 0.0
    %11265 = vmatpush1.msra.mxu0 0.0
    %11266 = vmatprep.subr.mxu0 0.0
    %11267 = vmatpush1.msra.mxu0 0.0
    %11268 = vmatprep.subr.mxu0 0.0
    %11269 = vmatpush1.msra.mxu0 0.0
    %11270 = vmatprep.subr.mxu0 0.0
    %11271 = vmatpush1.msra.mxu0 0.0
    %11272 = vmatprep.subr.mxu0 0.0
    %11273 = vmatpush1.msra.mxu0 0.0
    %11274 = vmatprep.subr.mxu0 0.0
    %11275 = vmatpush1.msra.mxu0 0.0
    %11276 = vmatprep.subr.mxu0 0.0
    %11277 = vmatpush1.msra.mxu0 0.0
    %11278 = vmatprep.subr.mxu0 %v10758
    %11279 = vmatpush1.msra.mxu0 %v10654
    %11280 = vmatprep.subr.mxu0 %v9926
    %11281 = vmatpush1.msra.mxu0 %v9822
    %11282 = vmatprep.subr.mxu0 %v9094
    %11283 = vmatpush1.msra.mxu0 %v8990
    %11284 = vmatprep.subr.mxu0 %v8262
    %11285 = vmatpush1.msra.mxu0 %v8158
    %11286 = vmatprep.subr.mxu0 0.0
    %11287 = vmatpush2.msra.mxu0 0.0
    %11288 = vmatprep.subr.mxu0 0.0
    %11289 = vmatpush2.msra.mxu0 0.0
    %11290 = vmatprep.subr.mxu0 0.0
    %11291 = vmatpush2.msra.mxu0 0.0
    %11292 = vmatprep.subr.mxu0 0.0
    %11293 = vmatpush2.msra.mxu0 0.0
    %11294 = vmatprep.subr.mxu0 0.0
    %11295 = vmatpush2.msra.mxu0 0.0
    %11296 = vmatprep.subr.mxu0 0.0
    %11297 = vmatpush2.msra.mxu0 0.0
    %11298 = vmatprep.subr.mxu0 0.0
    %11299 = vmatpush2.msra.mxu0 0.0
    %11300 = vmatprep.subr.mxu0 0.0
    %11301 = vmatpush2.msra.mxu0 0.0
    %11302 = vmatprep.subr.mxu0 0.0
    %11303 = vmatpush2.msra.mxu0 0.0
    %11304 = vmatprep.subr.mxu0 0.0
    %11305 = vmatpush2.msra.mxu0 0.0
    %11306 = vmatprep.subr.mxu0 0.0
    %11307 = vmatpush2.msra.mxu0 0.0
    %11308 = vmatprep.subr.mxu0 0.0
    %11309 = vmatpush2.msra.mxu0 0.0
    %11310 = vmatprep.subr.mxu0 0.0
    %11311 = vmatpush2.msra.mxu0 0.0
    %11312 = vmatprep.subr.mxu0 0.0
    %11313 = vmatpush2.msra.mxu0 0.0
    %11314 = vmatprep.subr.mxu0 0.0
    %11315 = vmatpush2.msra.mxu0 0.0
    %11316 = vmatprep.subr.mxu0 0.0
    %11317 = vmatpush2.msra.mxu0 0.0
    %11318 = vmatprep.mubr.f32.mxu0 0.0
    %11319 = vmatmul.mubr.f32.gmra.mxu0 %v11181
    %v11320 = vpop.f32.mrf.mxu0
    %v11321 = vadd.f32 %v11179, %v11320
    %v11322 = vpop.f32.mrf.mxu0
    %v11323 = vadd.f32 %v11179, %v11322
    %11324 = vdwg.mxu0
    %11325 = vmatprep.subr.mxu0 0.0
    %11326 = vmatpush1.msra.mxu0 0.0
    %11327 = vmatprep.subr.mxu0 0.0
    %11328 = vmatpush1.msra.mxu0 0.0
    %11329 = vmatprep.subr.mxu0 0.0
    %11330 = vmatpush1.msra.mxu0 0.0
    %11331 = vmatprep.subr.mxu0 0.0
    %11332 = vmatpush1.msra.mxu0 0.0
    %11333 = vmatprep.subr.mxu0 0.0
    %11334 = vmatpush1.msra.mxu0 0.0
    %11335 = vmatprep.subr.mxu0 0.0
    %11336 = vmatpush1.msra.mxu0 0.0
    %11337 = vmatprep.subr.mxu0 0.0
    %11338 = vmatpush1.msra.mxu0 0.0
    %11339 = vmatprep.subr.mxu0 0.0
    %11340 = vmatpush1.msra.mxu0 0.0
    %11341 = vmatprep.subr.mxu0 0.0
    %11342 = vmatpush1.msra.mxu0 0.0
    %11343 = vmatprep.subr.mxu0 0.0
    %11344 = vmatpush1.msra.mxu0 0.0
    %11345 = vmatprep.subr.mxu0 0.0
    %11346 = vmatpush1.msra.mxu0 0.0
    %11347 = vmatprep.subr.mxu0 0.0
    %11348 = vmatpush1.msra.mxu0 0.0
    %11349 = vmatprep.subr.mxu0 %v10966
    %11350 = vmatpush1.msra.mxu0 %v10862
    %11351 = vmatprep.subr.mxu0 %v10134
    %11352 = vmatpush1.msra.mxu0 %v10030
    %11353 = vmatprep.subr.mxu0 %v9302
    %11354 = vmatpush1.msra.mxu0 %v9198
    %11355 = vmatprep.subr.mxu0 %v8470
    %11356 = vmatpush1.msra.mxu0 %v8366
    %11357 = vmatprep.subr.mxu0 0.0
    %11358 = vmatpush2.msra.mxu0 0.0
    %11359 = vmatprep.subr.mxu0 0.0
    %11360 = vmatpush2.msra.mxu0 0.0
    %11361 = vmatprep.subr.mxu0 0.0
    %11362 = vmatpush2.msra.mxu0 0.0
    %11363 = vmatprep.subr.mxu0 0.0
    %11364 = vmatpush2.msra.mxu0 0.0
    %11365 = vmatprep.subr.mxu0 0.0
    %11366 = vmatpush2.msra.mxu0 0.0
    %11367 = vmatprep.subr.mxu0 0.0
    %11368 = vmatpush2.msra.mxu0 0.0
    %11369 = vmatprep.subr.mxu0 0.0
    %11370 = vmatpush2.msra.mxu0 0.0
    %11371 = vmatprep.subr.mxu0 0.0
    %11372 = vmatpush2.msra.mxu0 0.0
    %11373 = vmatprep.subr.mxu0 0.0
    %11374 = vmatpush2.msra.mxu0 0.0
    %11375 = vmatprep.subr.mxu0 0.0
    %11376 = vmatpush2.msra.mxu0 0.0
    %11377 = vmatprep.subr.mxu0 0.0
    %11378 = vmatpush2.msra.mxu0 0.0
    %11379 = vmatprep.subr.mxu0 0.0
    %11380 = vmatpush2.msra.mxu0 0.0
    %11381 = vmatprep.subr.mxu0 0.0
    %11382 = vmatpush2.msra.mxu0 0.0
    %11383 = vmatprep.subr.mxu0 0.0
    %11384 = vmatpush2.msra.mxu0 0.0
    %11385 = vmatprep.subr.mxu0 0.0
    %11386 = vmatpush2.msra.mxu0 0.0
    %11387 = vmatprep.subr.mxu0 0.0
    %11388 = vmatpush2.msra.mxu0 0.0
    %11389 = vmatprep.mubr.f32.mxu0 0.0
    %11390 = vmatmul.mubr.f32.gmra.mxu0 %v11181
    %v11391 = vpop.f32.mrf.mxu0
    %v11392 = vadd.f32 %v11179, %v11391
    %v11393 = vpop.f32.mrf.mxu0
    %v11394 = vadd.f32 %v11179, %v11393
    %11395 = vdwg.mxu0
    %11396 = vmatprep.subr.mxu0 0.0
    %11397 = vmatpush1.msra.mxu0 0.0
    %11398 = vmatprep.subr.mxu0 0.0
    %11399 = vmatpush1.msra.mxu0 0.0
    %11400 = vmatprep.subr.mxu0 0.0
    %11401 = vmatpush1.msra.mxu0 0.0
    %11402 = vmatprep.subr.mxu0 0.0
    %11403 = vmatpush1.msra.mxu0 0.0
    %11404 = vmatprep.subr.mxu0 0.0
    %11405 = vmatpush1.msra.mxu0 0.0
    %11406 = vmatprep.subr.mxu0 0.0
    %11407 = vmatpush1.msra.mxu0 0.0
    %11408 = vmatprep.subr.mxu0 0.0
    %11409 = vmatpush1.msra.mxu0 0.0
    %11410 = vmatprep.subr.mxu0 0.0
    %11411 = vmatpush1.msra.mxu0 0.0
    %11412 = vmatprep.subr.mxu0 0.0
    %11413 = vmatpush1.msra.mxu0 0.0
    %11414 = vmatprep.subr.mxu0 0.0
    %11415 = vmatpush1.msra.mxu0 0.0
    %11416 = vmatprep.subr.mxu0 0.0
    %11417 = vmatpush1.msra.mxu0 0.0
    %11418 = vmatprep.subr.mxu0 0.0
    %11419 = vmatpush1.msra.mxu0 0.0
    %11420 = vmatprep.subr.mxu0 %v11174
    %11421 = vmatpush1.msra.mxu0 %v11070
    %11422 = vmatprep.subr.mxu0 %v10342
    %11423 = vmatpush1.msra.mxu0 %v10238
    %11424 = vmatprep.subr.mxu0 %v9510
    %11425 = vmatpush1.msra.mxu0 %v9406
    %11426 = vmatprep.subr.mxu0 %v8678
    %11427 = vmatpush1.msra.mxu0 %v8574
    %11428 = vmatprep.subr.mxu0 0.0
    %11429 = vmatpush2.msra.mxu0 0.0
    %11430 = vmatprep.subr.mxu0 0.0
    %11431 = vmatpush2.msra.mxu0 0.0
    %11432 = vmatprep.subr.mxu0 0.0
    %11433 = vmatpush2.msra.mxu0 0.0
    %11434 = vmatprep.subr.mxu0 0.0
    %11435 = vmatpush2.msra.mxu0 0.0
    %11436 = vmatprep.subr.mxu0 0.0
    %11437 = vmatpush2.msra.mxu0 0.0
    %11438 = vmatprep.subr.mxu0 0.0
    %11439 = vmatpush2.msra.mxu0 0.0
    %11440 = vmatprep.subr.mxu0 0.0
    %11441 = vmatpush2.msra.mxu0 0.0
    %11442 = vmatprep.subr.mxu0 0.0
    %11443 = vmatpush2.msra.mxu0 0.0
    %11444 = vmatprep.subr.mxu0 0.0
    %11445 = vmatpush2.msra.mxu0 0.0
    %11446 = vmatprep.subr.mxu0 0.0
    %11447 = vmatpush2.msra.mxu0 0.0
    %11448 = vmatprep.subr.mxu0 0.0
    %11449 = vmatpush2.msra.mxu0 0.0
    %11450 = vmatprep.subr.mxu0 0.0
    %11451 = vmatpush2.msra.mxu0 0.0
    %11452 = vmatprep.subr.mxu0 0.0
    %11453 = vmatpush2.msra.mxu0 0.0
    %11454 = vmatprep.subr.mxu0 0.0
    %11455 = vmatpush2.msra.mxu0 0.0
    %11456 = vmatprep.subr.mxu0 0.0
    %11457 = vmatpush2.msra.mxu0 0.0
    %11458 = vmatprep.subr.mxu0 0.0
    %11459 = vmatpush2.msra.mxu0 0.0
    %11460 = vmatprep.mubr.f32.mxu0 0.0
    %11461 = vmatmul.mubr.f32.gmra.mxu0 %v11181
    %v11462 = vpop.f32.mrf.mxu0
    %v11463 = vadd.f32 %v11179, %v11462
    %v11464 = vpop.f32.mrf.mxu0
    %v11465 = vadd.f32 %v11179, %v11464
    %11466 = vdwg.mxu0
    %v11475 = vcombine.low %v11250, %v11252
    %v11476 = vcombine.low %v11321, %v11323
    %v11477 = vcombine.low %v11392, %v11394
    %v11478 = vcombine.low %v11463, %v11465
    %11483 = vst [vmem:[#allocation2] sm:$0x77] %v11475
    %11484 = vst [vmem:[#allocation2 + $0x8] sm:$0x77] %v11476
    %11485 = vst [vmem:[#allocation2 + $0x10] sm:$0x77] %v11477
    %11486 = vst [vmem:[#allocation2 + $0x18] sm:$0x77] %v11478
    // Predicated region
    $region10: #{tpu_custom_call.1} parent=1 // pred_check
      _
    $region11: #{tpu_custom_call.1} parent=1 // pred_check_branch
      %11488 = sbr.rel (0) target = $region13
    $region12: #{tpu_custom_call.1} parent=1 // pred_region
      %s11490 = ssub.s32 512, 512
      %11491 = vsyncadd [#allocation3], %s11490
      %s11493 = sshll.u32 [#allocation2], 4
      %s11494 = int_to_ptr.vmem [resolvable:$true] %s11493
      %11496 = dma.vmem_to_hbm [thread:$0]  %s11494, 512, %s2, [#allocation3]
    $region13: #{tpu_custom_call.1} parent=1 // pred_fallthru
      _
    // Predicated region
    $region14: #{tpu_custom_call.1} parent=1 // pred_check
      _
    $region15: #{tpu_custom_call.1} parent=1 // pred_check_branch
      %11498 = sbr.rel (0) target = $region17
    $region16: #{tpu_custom_call.1} parent=1 // pred_region
      %11499 = dma.done [#allocation3], 512
    $region17: #{tpu_custom_call.1} parent=1 // pred_fallthru
      _
    %11500 = vsyncpa [#allocation3], 1

</llo_original>
